<compile_context>
chip_gen: v7x
topology: tpu7x:2x2x1
jax: 0.10.0
libtpu: 0.0.40
codegen_flags: <defaults>
</compile_context>

<pallas_src>
import functools

import jax
import jax.numpy as jnp
from jax.experimental import pallas as pl
from jax.experimental.pallas import tpu as pltpu


# ----------------------------------------------------------------------------
# Pallas kernels
# ----------------------------------------------------------------------------
def _matmul_bias_kernel(a_ref, b_ref, bias_ref, o_ref, acc_ref, *, apply_sigmoid):
    """Tiled GEMM: o = a @ b + bias (optional fused sigmoid). K is grid axis 2."""
    @pl.when(pl.program_id(2) == 0)
    def _():
        acc_ref[...] = jnp.zeros_like(acc_ref)

    acc_ref[...] += jnp.dot(a_ref[...], b_ref[...],
                            preferred_element_type=jnp.float32)

    @pl.when(pl.program_id(2) == pl.num_programs(2) - 1)
    def _():
        acc = acc_ref[...] + bias_ref[...]           # (tm,tn) + (1,tn)
        if apply_sigmoid:
            acc = 1.0 / (1.0 + jnp.exp(-acc))
        o_ref[...] = acc.astype(o_ref.dtype)


def _instnorm_kernel(x_ref, o_ref, *, relu, eps):
    """Per-(n,c) normalization over the spatial axis. Block = (1, H*W, tc)."""
    x = x_ref[...]
    mean = jnp.mean(x, axis=1, keepdims=True)
    var = jnp.mean(jnp.square(x - mean), axis=1, keepdims=True)
    y = (x - mean) * jax.lax.rsqrt(var + eps)
    if relu:
        y = jnp.maximum(y, 0.0)
    o_ref[...] = y


def _instnorm_residual_kernel(x_ref, res_ref, o_ref, *, eps):
    """residual + instance_norm(x)   (tail of a ResidualBlock)."""
    x = x_ref[...]
    mean = jnp.mean(x, axis=1, keepdims=True)
    var = jnp.mean(jnp.square(x - mean), axis=1, keepdims=True)
    o_ref[...] = res_ref[...] + (x - mean) * jax.lax.rsqrt(var + eps)


# ----------------------------------------------------------------------------
# Tiling helpers
# ----------------------------------------------------------------------------
def _round_up(x, m):
    return ((x + m - 1) // m) * m


def _k_tiling(K):
    """Pick the K tile (multiple of 128, <=512) minimizing padded K; prefer larger."""
    kp, neg_tk = min((_round_up(K, tk), -tk) for tk in (128, 256, 384, 512))
    return -neg_tk, kp


def _n_tiling(n_out):
    np_ = _round_up(n_out, 128)
    tn = 256 if np_ % 256 == 0 else 128
    return tn, np_


def _m_tiling(M):
    tm = min(_round_up(M, 8), 256)
    return tm, _round_up(M, tm)


_GEMM_PARAMS = pltpu.CompilerParams(
    dimension_semantics=("parallel", "parallel", "arbitrary"),
)
_IN_PARAMS = pltpu.CompilerParams(
    dimension_semantics=("parallel", "parallel"),
)


# ----------------------------------------------------------------------------
# Pallas wrappers
# ----------------------------------------------------------------------------
def matmul_bias(a, b_p, bias_p, K, n_out, apply_sigmoid=False):
    """a: (M, K); b_p: (Kp, Np) bf16 pre-padded; bias_p: (1, Np) f32 pre-padded."""
    M = a.shape[0]
    Kp, Np = b_p.shape
    tk, kp_check = _k_tiling(K)
    assert kp_check == Kp, (K, Kp, kp_check)
    tn, np_check = _n_tiling(n_out)
    assert np_check == Np, (n_out, Np, np_check)
    tm, Mp = _m_tiling(M)

    a_p = jnp.pad(a.astype(jnp.bfloat16), ((0, Mp - M), (0, Kp - K)))

    out = pl.pallas_call(
        functools.partial(_matmul_bias_kernel, apply_sigmoid=apply_sigmoid),
        out_shape=jax.ShapeDtypeStruct((Mp, Np), jnp.float32),
        grid=(Mp // tm, Np // tn, Kp // tk),
        in_specs=[
            pl.BlockSpec((tm, tk), lambda i, j, k: (i, k)),
            pl.BlockSpec((tk, tn), lambda i, j, k: (k, j)),
            pl.BlockSpec((1, tn), lambda i, j, k: (0, j)),
        ],
        out_specs=pl.BlockSpec((tm, tn), lambda i, j, k: (i, j)),
        scratch_shapes=[pltpu.VMEM((tm, tn), jnp.float32)],
        compiler_params=_GEMM_PARAMS,
    )(a_p, b_p, bias_p)
    return out[:M, :n_out]


def instance_norm(x, relu=False, residual=None, eps=1e-5):
    """InstanceNorm2d(affine=False) on NHWC, optionally fused ReLU / residual add."""
    N, H, W, C = x.shape
    HW = H * W
    x3 = x.reshape(N, HW, C)

    tc = C
    if C % 128 == 0:
        tc = 256 if C % 256 == 0 else 128
        while tc > 128 and HW * tc * 4 > (4 << 20):   # keep blocks VMEM-friendly
            tc //= 2
    grid = (N, C // tc)
    spec = pl.BlockSpec((1, HW, tc), lambda n, c: (n, 0, c))

    if residual is None:
        out = pl.pallas_call(
            functools.partial(_instnorm_kernel, relu=relu, eps=eps),
            out_shape=jax.ShapeDtypeStruct((N, HW, C), jnp.float32),
            grid=grid,
            in_specs=[spec],
            out_specs=spec,
            compiler_params=_IN_PARAMS,
        )(x3)
    else:
        r3 = residual.reshape(N, HW, C)
        out = pl.pallas_call(
            functools.partial(_instnorm_residual_kernel, eps=eps),
            out_shape=jax.ShapeDtypeStruct((N, HW, C), jnp.float32),
            grid=grid,
            in_specs=[spec, spec],
            out_specs=spec,
            compiler_params=_IN_PARAMS,
        )(x3, r3)
    return out.reshape(N, H, W, C)


# ----------------------------------------------------------------------------
# Convolution glue (im2col, NHWC) around the Pallas GEMM
# ----------------------------------------------------------------------------
def _im2col_nhwc(xp, kh, kw, stride):
    """xp: (N, Hp, Wp, C) -> (N*Ho*Wo, kh*kw*C) patches with (kh, kw, C) K-order."""
    N, Hp, Wp, C = xp.shape
    Ho = (Hp - kh) // stride + 1
    Wo = (Wp - kw) // stride + 1
    cols = []
    for i in range(kh):
        for j in range(kw):
            cols.append(xp[:, i:i + stride * Ho:stride, j:j + stride * Wo:stride, :])
    patches = jnp.stack(cols, axis=3)                       # (N, Ho, Wo, kh*kw, C)
    return patches.reshape(N * Ho * Wo, kh * kw * C), Ho, Wo


def conv2d(x, layer, stride=1, padding=0, pad_mode="zero", apply_sigmoid=False):
    """PyTorch-semantics Conv2d on NHWC activations with pre-packed weights."""
    # TODO(synk): replace im2col with an implicit-im2col Pallas GEMM (index_map
    # walking (n, ho, wo) windows) to avoid the kh*kw activation-traffic blow-up.
    x = x.astype(jnp.bfloat16)
    if padding > 0:
        mode = "reflect" if pad_mode == "reflect" else "constant"
        x = jnp.pad(x, ((0, 0), (padding, padding), (padding, padding), (0, 0)),
                    mode=mode)
    N = x.shape[0]
    patches, Ho, Wo = _im2col_nhwc(x, layer["kh"], layer["kw"], stride)
    out = matmul_bias(patches, layer["bmat"], layer["bias"],
                      layer["K"], layer["n_out"], apply_sigmoid=apply_sigmoid)
    return out.reshape(N, Ho, Wo, layer["n_out"])


def conv_transpose2d(x, layer):
    """ConvTranspose2d(k=3, s=2, p=1, output_padding=1) via sub-pixel GEMM.

    A single 2x2-window, stride-1 GEMM over the (high-edge padded) input produces
    4*Cout phase channels; a pixel-shuffle interleaves them into the 2x-upsampled
    output.  No zero-dilated activations -> no wasted MXU work on inserted zeros.
    """
    N, H, W, _ = x.shape
    cout = layer["cout"]
    xp = jnp.pad(x.astype(jnp.bfloat16), ((0, 0), (0, 1), (0, 1), (0, 0)))
    patches, Ho, Wo = _im2col_nhwc(xp, 2, 2, 1)              # Ho = H, Wo = W
    out = matmul_bias(patches, layer["bmat"], layer["bias"],
                      layer["K"], layer["n_out"])
    out = out.reshape(N, H, W, 2, 2, cout)                   # (.., rh, rw, cout)
    out = out.transpose(0, 1, 3, 2, 4, 5).reshape(N, 2 * H, 2 * W, cout)
    return out


# ----------------------------------------------------------------------------
# One-time weight packing (reshape + pad + bf16 cast, done once, not per call)
# ----------------------------------------------------------------------------
def _pad_gemm_weights(bmat, bias, K, n_out):
    _, Kp = _k_tiling(K)
    _, Np = _n_tiling(n_out)
    bmat_p = jnp.pad(bmat, ((0, Kp - K), (0, Np - n_out))).astype(jnp.bfloat16)
    bias_p = jnp.pad(bias.reshape(1, -1), ((0, 0), (0, Np - n_out))).astype(jnp.float32)
    return bmat_p, bias_p


def _pack_conv(w, b):
    """w: (Cout, Cin, kh, kw) PyTorch layout -> GEMM-ready padded bf16 matrix."""
    cout, cin, kh, kw = w.shape
    K = kh * kw * cin
    bmat = jnp.transpose(w, (2, 3, 1, 0)).reshape(K, cout)   # (kh,kw,Cin) K-order
    bmat_p, bias_p = _pad_gemm_weights(bmat, b, K, cout)
    return {"bmat": bmat_p, "bias": bias_p, "K": K, "cout": cout,
            "n_out": cout, "kh": kh, "kw": kw}


def _pack_conv_transpose_s2(w, b):
    """w: (Cin, Cout, 3, 3) -> 2x2-window sub-pixel GEMM weights (4*Cout outputs).

    Output phase (rh, rw) at window offset (di, dj) uses original kernel tap
    tap(d, r):  (0,0)->1, (0,1)->2, (1,1)->0, (1,0)->none.
    """
    cin, cout, kh, kw = w.shape
    assert (kh, kw) == (3, 3)
    tap = {(0, 0): 1, (0, 1): 2, (1, 1): 0, (1, 0): -1}
    w2 = jnp.zeros((2, 2, cin, 2, 2, cout), jnp.float32)
    for di in range(2):
        for rh in range(2):
            th = tap[(di, rh)]
            if th < 0:
                continue
            for dj in range(2):
                for rw in range(2):
                    tw = tap[(dj, rw)]
                    if tw < 0:
                        continue
                    w2 = w2.at[di, dj, :, rh, rw, :].set(w[:, :, th, tw])
    K = 4 * cin
    n_out = 4 * cout
    bmat = w2.reshape(K, n_out)                              # (di,dj,ci) x (rh,rw,co)
    bias4 = jnp.tile(b.reshape(1, -1), (4, 1)).reshape(-1)   # bias per phase channel
    bmat_p, bias_p = _pad_gemm_weights(bmat, bias4, K, n_out)
    return {"bmat": bmat_p, "bias": bias_p, "K": K, "cout": cout,
            "n_out": n_out, "kh": 2, "kw": 2}


def prepare_params(raw):
    return {
        "c0": _pack_conv(raw["c0_w"], raw["c0_b"]),
        "d1": _pack_conv(raw["d1_w"], raw["d1_b"]),
        "d2": _pack_conv(raw["d2_w"], raw["d2_b"]),
        "res": [{"c1": _pack_conv(rp["w1"], rp["b1"]),
                 "c2": _pack_conv(rp["w2"], rp["b2"])} for rp in raw["res"]],
        "u1": _pack_conv_transpose_s2(raw["u1_w"], raw["u1_b"]),
        "u2": _pack_conv_transpose_s2(raw["u2_w"], raw["u2_b"]),
        "c4": _pack_conv(raw["c4_w"], raw["c4_b"]),
    }


# ----------------------------------------------------------------------------
# Generator forward pass
# ----------------------------------------------------------------------------
def residual_block(x, rp):
    y = conv2d(x, rp["c1"], padding=1, pad_mode="reflect")
    y = instance_norm(y, relu=True)
    y = conv2d(y, rp["c2"], padding=1, pad_mode="reflect")
    return instance_norm(y, residual=x)                      # x + IN(conv_block(x))


def generator_forward(x_nchw, params):
    """x_nchw: (N, C, H, W) f32 -> (N, output_nc, H, W) f32 (PyTorch layout)."""
    y = jnp.transpose(x_nchw, (0, 2, 3, 1))                  # NCHW -> NHWC once
    # model0: ReflectionPad(3) -> Conv(3->64, 7) -> IN -> ReLU
    y = conv2d(y, params["c0"], padding=3, pad_mode="reflect")
    y = instance_norm(y, relu=True)
    # model1: two stride-2 downsampling convs
    y = conv2d(y, params["d1"], stride=2, padding=1)
    y = instance_norm(y, relu=True)
    y = conv2d(y, params["d2"], stride=2, padding=1)
    y = instance_norm(y, relu=True)
    # model2: residual blocks
    for rp in params["res"]:
        y = residual_block(y, rp)
    # model3: two stride-2 transposed convs (sub-pixel formulation)
    y = conv_transpose2d(y, params["u1"])
    y = instance_norm(y, relu=True)
    y = conv_transpose2d(y, params["u2"])
    y = instance_norm(y, relu=True)
    # model4: ReflectionPad(3) -> Conv(64->1, 7) -> Sigmoid (fused in GEMM epilogue)
    y = conv2d(y, params["c4"], padding=3, pad_mode="reflect", apply_sigmoid=True)
    return jnp.transpose(y, (0, 3, 1, 2))                    # NHWC -> NCHW once


def init_params(key, input_nc=3, output_nc=1, n_residual_blocks=3):
    """Deterministic synthetic parameters with the module's (PyTorch) shapes."""
    def conv_init(k, cout, cin, kh, kw):
        k1, k2 = jax.random.split(k)
        fan_in = cin * kh * kw
        w = jax.random.normal(k1, (cout, cin, kh, kw), jnp.float32) / jnp.sqrt(fan_in)
        b = 0.01 * jax.random.normal(k2, (cout,), jnp.float32)
        return w, b

    def convT_init(k, cin, cout, kh, kw):
        k1, k2 = jax.random.split(k)
        fan_in = cin * kh * kw
        w = jax.random.normal(k1, (cin, cout, kh, kw), jnp.float32) / jnp.sqrt(fan_in)
        b = 0.01 * jax.random.normal(k2, (cout,), jnp.float32)
        return w, b

    keys = jax.random.split(key, 6 + n_residual_blocks)
    p = {}
    p["c0_w"], p["c0_b"] = conv_init(keys[0], 64, input_nc, 7, 7)
    p["d1_w"], p["d1_b"] = conv_init(keys[1], 128, 64, 3, 3)
    p["d2_w"], p["d2_b"] = conv_init(keys[2], 256, 128, 3, 3)
    p["res"] = []
    for i in range(n_residual_blocks):
        ka, kb = jax.random.split(keys[3 + i])
        w1, b1 = conv_init(ka, 256, 256, 3, 3)
        w2, b2 = conv_init(kb, 256, 256, 3, 3)
        p["res"].append({"w1": w1, "b1": b1, "w2": w2, "b2": b2})
    p["u1_w"], p["u1_b"] = convT_init(keys[3 + n_residual_blocks], 256, 128, 3, 3)
    p["u2_w"], p["u2_b"] = convT_init(keys[4 + n_residual_blocks], 128, 64, 3, 3)
    p["c4_w"], p["c4_b"] = conv_init(keys[5 + n_residual_blocks], output_nc, 64, 7, 7)
    return p


if __name__ == "__main__":
    key = jax.random.PRNGKey(0)
    k_x, k_p = jax.random.split(key)

    # Generator(3, 1, 3): 3 input channels, 1 output channel, 3 residual blocks.
    x = jax.random.normal(k_x, (2, 3, 16, 16), jnp.float32)   # NCHW
    raw_params = init_params(k_p, input_nc=3, output_nc=1, n_residual_blocks=3)
    params = prepare_params(raw_params)                       # pack/pad weights once

    fwd = jax.jit(functools.partial(generator_forward, params=params))
    out = jax.block_until_ready(fwd(x))

    assert out.shape == (2, 1, 16, 16), out.shape
    assert bool(jnp.all(jnp.isfinite(out)))
    assert bool(jnp.all((out >= 0.0) & (out <= 1.0)))  # sigmoid output range
    print("KERNEL_OK")
</pallas_src>

<mosaic_0001>
module attributes {stable_mosaic.version = 11 : i64} {
  func.func @_matmul_bias_kernel(%arg0: i32, %arg1: i32, %arg2: i32, %arg3: memref<256x256xbf16, #tpu.memory_space<vmem>>, %arg4: memref<256x128xbf16, #tpu.memory_space<vmem>>, %arg5: memref<1x128xf32, #tpu.memory_space<vmem>>, %arg6: memref<256x128xf32, #tpu.memory_space<vmem>>, %arg7: memref<256x128xf32, #tpu.memory_space<vmem>>) attributes {dimension_semantics = [#tpu.dimension_semantics<parallel>, #tpu.dimension_semantics<parallel>, #tpu.dimension_semantics<arbitrary>], iteration_bounds = array<i64: 2, 1, 1>, scalar_prefetch = 0 : i64, scratch_operands = 1 : i64, tpu.core_type = #tpu.core_type<tc>, window_params = [{transform_indices = @transform_0, window_bounds = array<i64: 256, 256>}, {transform_indices = @transform_1, window_bounds = array<i64: 256, 128>}, {transform_indices = @transform_2, window_bounds = array<i64: 1, 128>}, {transform_indices = @transform_3, window_bounds = array<i64: 256, 128>}]} {
    %c0_i32 = arith.constant 0 : i32
    %0 = arith.cmpi eq, %arg2, %c0_i32 : i32
    %1 = arith.extui %0 : i1 to i32
    %c0_i32_0 = arith.constant 0 : i32
    %2 = arith.cmpi ne, %1, %c0_i32_0 : i32
    scf.if %2 {
      %cst_10 = arith.constant 0.000000e+00 : f32
      %12 = vector.broadcast %cst_10 : f32 to vector<256x128xf32>
      %c0_11 = arith.constant 0 : index
      %c0_12 = arith.constant 0 : index
      %13 = vector.load %arg7[%c0_11, %c0_12] : memref<256x128xf32, #tpu.memory_space<vmem>>, vector<256x128xf32>
      tpu.vector_store %arg7[%c0_11, %c0_12], %12 {strides = array<i32>} : memref<256x128xf32, #tpu.memory_space<vmem>>, vector<256x128xf32>,
    } else {
    }
    %c0 = arith.constant 0 : index
    %c0_1 = arith.constant 0 : index
    %3 = vector.load %arg7[%c0, %c0_1] : memref<256x128xf32, #tpu.memory_space<vmem>>, vector<256x128xf32>
    %c0_2 = arith.constant 0 : index
    %c0_3 = arith.constant 0 : index
    %4 = vector.load %arg3[%c0_2, %c0_3] : memref<256x256xbf16, #tpu.memory_space<vmem>>, vector<256x256xbf16>
    %c0_4 = arith.constant 0 : index
    %c0_5 = arith.constant 0 : index
    %5 = vector.load %arg4[%c0_4, %c0_5] : memref<256x128xbf16, #tpu.memory_space<vmem>>, vector<256x128xbf16>
    %cst = arith.constant dense<0.000000e+00> : vector<256x128xf32>
    %6 = tpu.matmul %4, %5, %cst {dimension_numbers = #tpu.dot_dimension_numbers<[1], [0], [0], [1], [0, 0, 1, 1], [], []>} : vector<256x256xbf16>, vector<256x128xbf16>, vector<256x128xf32> -> vector<256x128xf32>
    %7 = arith.addf %3, %6 : vector<256x128xf32>
    %c0_6 = arith.constant 0 : index
    %c0_7 = arith.constant 0 : index
    %8 = vector.load %arg7[%c0_6, %c0_7] : memref<256x128xf32, #tpu.memory_space<vmem>>, vector<256x128xf32>
    tpu.vector_store %arg7[%c0_6, %c0_7], %7 {strides = array<i32>} : memref<256x128xf32, #tpu.memory_space<vmem>>, vector<256x128xf32>,
    %c0_i32_8 = arith.constant 0 : i32
    %9 = arith.cmpi eq, %arg2, %c0_i32_8 : i32
    %10 = arith.extui %9 : i1 to i32
    %c0_i32_9 = arith.constant 0 : i32
    %11 = arith.cmpi ne, %10, %c0_i32_9 : i32
    scf.if %11 {
      %c0_10 = arith.constant 0 : index
      %c0_11 = arith.constant 0 : index
      %12 = vector.load %arg7[%c0_10, %c0_11] : memref<256x128xf32, #tpu.memory_space<vmem>>, vector<256x128xf32>
      %c0_12 = arith.constant 0 : index
      %c0_13 = arith.constant 0 : index
      %13 = vector.load %arg5[%c0_12, %c0_13] : memref<1x128xf32, #tpu.memory_space<vmem>>, vector<1x128xf32>
      %14 = vector.broadcast %13 : vector<1x128xf32> to vector<256x128xf32>
      %15 = arith.addf %12, %14 : vector<256x128xf32>
      %c0_14 = arith.constant 0 : index
      %c0_15 = arith.constant 0 : index
      %16 = vector.load %arg6[%c0_14, %c0_15] : memref<256x128xf32, #tpu.memory_space<vmem>>, vector<256x128xf32>
      tpu.vector_store %arg6[%c0_14, %c0_15], %15 {strides = array<i32>} : memref<256x128xf32, #tpu.memory_space<vmem>>, vector<256x128xf32>,
    } else {
    }
    return
  }
  func.func @transform_0(%arg0: i32, %arg1: i32, %arg2: i32) -> (i32, i32) {
    %c0_i32 = arith.constant 0 : i32
    return %arg0, %arg2 : i32, i32
  }
  func.func @transform_1(%arg0: i32, %arg1: i32, %arg2: i32) -> (i32, i32) {
    %c0_i32 = arith.constant 0 : i32
    return %arg2, %arg1 : i32, i32
  }
  func.func @transform_2(%arg0: i32, %arg1: i32, %arg2: i32) -> (i32, i32) {
    %c0_i32 = arith.constant 0 : i32
    %c0_i32_0 = arith.constant 0 : i32
    return %c0_i32, %arg1 : i32, i32
  }
  func.func @transform_3(%arg0: i32, %arg1: i32, %arg2: i32) -> (i32, i32) {
    %c0_i32 = arith.constant 0 : i32
    return %arg0, %arg1 : i32, i32
  }
}

module attributes {stable_mosaic.version = 11 : i64} {
  func.func @_instnorm_kernel(%arg0: i32, %arg1: i32, %arg2: memref<1x256x64xf32, #tpu.memory_space<vmem>>, %arg3: memref<1x256x64xf32, #tpu.memory_space<vmem>>) attributes {dimension_semantics = [#tpu.dimension_semantics<parallel>, #tpu.dimension_semantics<parallel>], iteration_bounds = array<i64: 2, 1>, scalar_prefetch = 0 : i64, scratch_operands = 0 : i64, tpu.core_type = #tpu.core_type<tc>, window_params = [{transform_indices = @transform_0, window_bounds = array<i64: 1, 256, 64>}, {transform_indices = @transform_1, window_bounds = array<i64: 1, 256, 64>}]} {
    %c0 = arith.constant 0 : index
    %c0_0 = arith.constant 0 : index
    %c0_1 = arith.constant 0 : index
    %0 = vector.load %arg2[%c0, %c0_0, %c0_1] : memref<1x256x64xf32, #tpu.memory_space<vmem>>, vector<1x256x64xf32>
    %cst = arith.constant dense<0.000000e+00> : vector<1x64xf32>
    %1 = vector.multi_reduction <add>, %0, %cst [1] : vector<1x256x64xf32> to vector<1x64xf32>
    %2 = vector.shape_cast %1 : vector<1x64xf32> to vector<1x1x64xf32>
    %cst_2 = arith.constant 2.560000e+02 : f32
    %3 = vector.broadcast %cst_2 : f32 to vector<1x1x64xf32>
    %4 = arith.divf %2, %3 : vector<1x1x64xf32>
    %5 = vector.broadcast %4 : vector<1x1x64xf32> to vector<1x256x64xf32>
    %6 = arith.subf %0, %5 : vector<1x256x64xf32>
    %7 = arith.mulf %6, %6 : vector<1x256x64xf32>
    %cst_3 = arith.constant dense<0.000000e+00> : vector<1x64xf32>
    %8 = vector.multi_reduction <add>, %7, %cst_3 [1] : vector<1x256x64xf32> to vector<1x64xf32>
    %9 = vector.shape_cast %8 : vector<1x64xf32> to vector<1x1x64xf32>
    %cst_4 = arith.constant 2.560000e+02 : f32
    %10 = vector.broadcast %cst_4 : f32 to vector<1x1x64xf32>
    %11 = arith.divf %9, %10 : vector<1x1x64xf32>
    %12 = vector.broadcast %4 : vector<1x1x64xf32> to vector<1x256x64xf32>
    %13 = arith.subf %0, %12 : vector<1x256x64xf32>
    %cst_5 = arith.constant 9.99999974E-6 : f32
    %14 = vector.broadcast %cst_5 : f32 to vector<1x1x64xf32>
    %15 = arith.addf %11, %14 : vector<1x1x64xf32>
    %16 = math.rsqrt %15 : vector<1x1x64xf32>
    %17 = vector.broadcast %16 : vector<1x1x64xf32> to vector<1x256x64xf32>
    %18 = arith.mulf %13, %17 : vector<1x256x64xf32>
    %cst_6 = arith.constant 0.000000e+00 : f32
    %19 = vector.broadcast %cst_6 : f32 to vector<1x256x64xf32>
    %20 = arith.maximumf %18, %19 : vector<1x256x64xf32>
    %c0_7 = arith.constant 0 : index
    %c0_8 = arith.constant 0 : index
    %c0_9 = arith.constant 0 : index
    %21 = vector.load %arg3[%c0_7, %c0_8, %c0_9] : memref<1x256x64xf32, #tpu.memory_space<vmem>>, vector<1x256x64xf32>
    tpu.vector_store %arg3[%c0_7, %c0_8, %c0_9], %20 {strides = array<i32>} : memref<1x256x64xf32, #tpu.memory_space<vmem>>, vector<1x256x64xf32>,
    return
  }
  func.func @transform_0(%arg0: i32, %arg1: i32) -> (i32, i32, i32) {
    %c0_i32 = arith.constant 0 : i32
    %c0_i32_0 = arith.constant 0 : i32
    return %arg0, %c0_i32, %arg1 : i32, i32, i32
  }
  func.func @transform_1(%arg0: i32, %arg1: i32) -> (i32, i32, i32) {
    %c0_i32 = arith.constant 0 : i32
    %c0_i32_0 = arith.constant 0 : i32
    return %arg0, %c0_i32, %arg1 : i32, i32, i32
  }
}

module attributes {stable_mosaic.version = 11 : i64} {
  func.func @_matmul_bias_kernel(%arg0: i32, %arg1: i32, %arg2: i32, %arg3: memref<128x128xbf16, #tpu.memory_space<vmem>>, %arg4: memref<128x128xbf16, #tpu.memory_space<vmem>>, %arg5: memref<1x128xf32, #tpu.memory_space<vmem>>, %arg6: memref<128x128xf32, #tpu.memory_space<vmem>>, %arg7: memref<128x128xf32, #tpu.memory_space<vmem>>) attributes {dimension_semantics = [#tpu.dimension_semantics<parallel>, #tpu.dimension_semantics<parallel>, #tpu.dimension_semantics<arbitrary>], iteration_bounds = array<i64: 1, 1, 5>, scalar_prefetch = 0 : i64, scratch_operands = 1 : i64, tpu.core_type = #tpu.core_type<tc>, window_params = [{transform_indices = @transform_0, window_bounds = array<i64: 128, 128>}, {transform_indices = @transform_1, window_bounds = array<i64: 128, 128>}, {transform_indices = @transform_2, window_bounds = array<i64: 1, 128>}, {transform_indices = @transform_3, window_bounds = array<i64: 128, 128>}]} {
    %c0_i32 = arith.constant 0 : i32
    %0 = arith.cmpi eq, %arg2, %c0_i32 : i32
    %1 = arith.extui %0 : i1 to i32
    %c0_i32_0 = arith.constant 0 : i32
    %2 = arith.cmpi ne, %1, %c0_i32_0 : i32
    scf.if %2 {
      %cst_9 = arith.constant 0.000000e+00 : f32
      %12 = vector.broadcast %cst_9 : f32 to vector<128x128xf32>
      %c0_10 = arith.constant 0 : index
      %c0_11 = arith.constant 0 : index
      %13 = vector.load %arg7[%c0_10, %c0_11] : memref<128x128xf32, #tpu.memory_space<vmem>>, vector<128x128xf32>
      tpu.vector_store %arg7[%c0_10, %c0_11], %12 {strides = array<i32>} : memref<128x128xf32, #tpu.memory_space<vmem>>, vector<128x128xf32>,
    } else {
    }
    %c0 = arith.constant 0 : index
    %c0_1 = arith.constant 0 : index
    %3 = vector.load %arg7[%c0, %c0_1] : memref<128x128xf32, #tpu.memory_space<vmem>>, vector<128x128xf32>
    %c0_2 = arith.constant 0 : index
    %c0_3 = arith.constant 0 : index
    %4 = vector.load %arg3[%c0_2, %c0_3] : memref<128x128xbf16, #tpu.memory_space<vmem>>, vector<128x128xbf16>
    %c0_4 = arith.constant 0 : index
    %c0_5 = arith.constant 0 : index
    %5 = vector.load %arg4[%c0_4, %c0_5] : memref<128x128xbf16, #tpu.memory_space<vmem>>, vector<128x128xbf16>
    %cst = arith.constant dense<0.000000e+00> : vector<128x128xf32>
    %6 = tpu.matmul %4, %5, %cst {dimension_numbers = #tpu.dot_dimension_numbers<[1], [0], [0], [1], [0, 0, 1, 1], [], []>} : vector<128x128xbf16>, vector<128x128xbf16>, vector<128x128xf32> -> vector<128x128xf32>
    %7 = arith.addf %3, %6 : vector<128x128xf32>
    %c0_6 = arith.constant 0 : index
    %c0_7 = arith.constant 0 : index
    %8 = vector.load %arg7[%c0_6, %c0_7] : memref<128x128xf32, #tpu.memory_space<vmem>>, vector<128x128xf32>
    tpu.vector_store %arg7[%c0_6, %c0_7], %7 {strides = array<i32>} : memref<128x128xf32, #tpu.memory_space<vmem>>, vector<128x128xf32>,
    %c4_i32 = arith.constant 4 : i32
    %9 = arith.cmpi eq, %arg2, %c4_i32 : i32
    %10 = arith.extui %9 : i1 to i32
    %c0_i32_8 = arith.constant 0 : i32
    %11 = arith.cmpi ne, %10, %c0_i32_8 : i32
    scf.if %11 {
      %c0_9 = arith.constant 0 : index
      %c0_10 = arith.constant 0 : index
      %12 = vector.load %arg7[%c0_9, %c0_10] : memref<128x128xf32, #tpu.memory_space<vmem>>, vector<128x128xf32>
      %c0_11 = arith.constant 0 : index
      %c0_12 = arith.constant 0 : index
      %13 = vector.load %arg5[%c0_11, %c0_12] : memref<1x128xf32, #tpu.memory_space<vmem>>, vector<1x128xf32>
      %14 = vector.broadcast %13 : vector<1x128xf32> to vector<128x128xf32>
      %15 = arith.addf %12, %14 : vector<128x128xf32>
      %c0_13 = arith.constant 0 : index
      %c0_14 = arith.constant 0 : index
      %16 = vector.load %arg6[%c0_13, %c0_14] : memref<128x128xf32, #tpu.memory_space<vmem>>, vector<128x128xf32>
      tpu.vector_store %arg6[%c0_13, %c0_14], %15 {strides = array<i32>} : memref<128x128xf32, #tpu.memory_space<vmem>>, vector<128x128xf32>,
    } else {
    }
    return
  }
  func.func @transform_0(%arg0: i32, %arg1: i32, %arg2: i32) -> (i32, i32) {
    %c0_i32 = arith.constant 0 : i32
    return %arg0, %arg2 : i32, i32
  }
  func.func @transform_1(%arg0: i32, %arg1: i32, %arg2: i32) -> (i32, i32) {
    %c0_i32 = arith.constant 0 : i32
    return %arg2, %arg1 : i32, i32
  }
  func.func @transform_2(%arg0: i32, %arg1: i32, %arg2: i32) -> (i32, i32) {
    %c0_i32 = arith.constant 0 : i32
    %c0_i32_0 = arith.constant 0 : i32
    return %c0_i32, %arg1 : i32, i32
  }
  func.func @transform_3(%arg0: i32, %arg1: i32, %arg2: i32) -> (i32, i32) {
    %c0_i32 = arith.constant 0 : i32
    return %arg0, %arg1 : i32, i32
  }
}

module attributes {stable_mosaic.version = 11 : i64} {
  func.func @_instnorm_kernel(%arg0: i32, %arg1: i32, %arg2: memref<1x64x128xf32, #tpu.memory_space<vmem>>, %arg3: memref<1x64x128xf32, #tpu.memory_space<vmem>>) attributes {dimension_semantics = [#tpu.dimension_semantics<parallel>, #tpu.dimension_semantics<parallel>], iteration_bounds = array<i64: 2, 1>, scalar_prefetch = 0 : i64, scratch_operands = 0 : i64, tpu.core_type = #tpu.core_type<tc>, window_params = [{transform_indices = @transform_0, window_bounds = array<i64: 1, 64, 128>}, {transform_indices = @transform_1, window_bounds = array<i64: 1, 64, 128>}]} {
    %c0 = arith.constant 0 : index
    %c0_0 = arith.constant 0 : index
    %c0_1 = arith.constant 0 : index
    %0 = vector.load %arg2[%c0, %c0_0, %c0_1] : memref<1x64x128xf32, #tpu.memory_space<vmem>>, vector<1x64x128xf32>
    %cst = arith.constant dense<0.000000e+00> : vector<1x128xf32>
    %1 = vector.multi_reduction <add>, %0, %cst [1] : vector<1x64x128xf32> to vector<1x128xf32>
    %2 = vector.shape_cast %1 : vector<1x128xf32> to vector<1x1x128xf32>
    %cst_2 = arith.constant 6.400000e+01 : f32
    %3 = vector.broadcast %cst_2 : f32 to vector<1x1x128xf32>
    %4 = arith.divf %2, %3 : vector<1x1x128xf32>
    %5 = vector.broadcast %4 : vector<1x1x128xf32> to vector<1x64x128xf32>
    %6 = arith.subf %0, %5 : vector<1x64x128xf32>
    %7 = arith.mulf %6, %6 : vector<1x64x128xf32>
    %cst_3 = arith.constant dense<0.000000e+00> : vector<1x128xf32>
    %8 = vector.multi_reduction <add>, %7, %cst_3 [1] : vector<1x64x128xf32> to vector<1x128xf32>
    %9 = vector.shape_cast %8 : vector<1x128xf32> to vector<1x1x128xf32>
    %cst_4 = arith.constant 6.400000e+01 : f32
    %10 = vector.broadcast %cst_4 : f32 to vector<1x1x128xf32>
    %11 = arith.divf %9, %10 : vector<1x1x128xf32>
    %12 = vector.broadcast %4 : vector<1x1x128xf32> to vector<1x64x128xf32>
    %13 = arith.subf %0, %12 : vector<1x64x128xf32>
    %cst_5 = arith.constant 9.99999974E-6 : f32
    %14 = vector.broadcast %cst_5 : f32 to vector<1x1x128xf32>
    %15 = arith.addf %11, %14 : vector<1x1x128xf32>
    %16 = math.rsqrt %15 : vector<1x1x128xf32>
    %17 = vector.broadcast %16 : vector<1x1x128xf32> to vector<1x64x128xf32>
    %18 = arith.mulf %13, %17 : vector<1x64x128xf32>
    %cst_6 = arith.constant 0.000000e+00 : f32
    %19 = vector.broadcast %cst_6 : f32 to vector<1x64x128xf32>
    %20 = arith.maximumf %18, %19 : vector<1x64x128xf32>
    %c0_7 = arith.constant 0 : index
    %c0_8 = arith.constant 0 : index
    %c0_9 = arith.constant 0 : index
    %21 = vector.load %arg3[%c0_7, %c0_8, %c0_9] : memref<1x64x128xf32, #tpu.memory_space<vmem>>, vector<1x64x128xf32>
    tpu.vector_store %arg3[%c0_7, %c0_8, %c0_9], %20 {strides = array<i32>} : memref<1x64x128xf32, #tpu.memory_space<vmem>>, vector<1x64x128xf32>,
    return
  }
  func.func @transform_0(%arg0: i32, %arg1: i32) -> (i32, i32, i32) {
    %c0_i32 = arith.constant 0 : i32
    %c0_i32_0 = arith.constant 0 : i32
    return %arg0, %c0_i32, %arg1 : i32, i32, i32
  }
  func.func @transform_1(%arg0: i32, %arg1: i32) -> (i32, i32, i32) {
    %c0_i32 = arith.constant 0 : i32
    %c0_i32_0 = arith.constant 0 : i32
    return %arg0, %c0_i32, %arg1 : i32, i32, i32
  }
}

module attributes {stable_mosaic.version = 11 : i64} {
  func.func @_matmul_bias_kernel(%arg0: i32, %arg1: i32, %arg2: i32, %arg3: memref<32x384xbf16, #tpu.memory_space<vmem>>, %arg4: memref<384x256xbf16, #tpu.memory_space<vmem>>, %arg5: memref<1x256xf32, #tpu.memory_space<vmem>>, %arg6: memref<32x256xf32, #tpu.memory_space<vmem>>, %arg7: memref<32x256xf32, #tpu.memory_space<vmem>>) attributes {dimension_semantics = [#tpu.dimension_semantics<parallel>, #tpu.dimension_semantics<parallel>, #tpu.dimension_semantics<arbitrary>], iteration_bounds = array<i64: 1, 1, 3>, scalar_prefetch = 0 : i64, scratch_operands = 1 : i64, tpu.core_type = #tpu.core_type<tc>, window_params = [{transform_indices = @transform_0, window_bounds = array<i64: 32, 384>}, {transform_indices = @transform_1, window_bounds = array<i64: 384, 256>}, {transform_indices = @transform_2, window_bounds = array<i64: 1, 256>}, {transform_indices = @transform_3, window_bounds = array<i64: 32, 256>}]} {
    %c0_i32 = arith.constant 0 : i32
    %0 = arith.cmpi eq, %arg2, %c0_i32 : i32
    %1 = arith.extui %0 : i1 to i32
    %c0_i32_0 = arith.constant 0 : i32
    %2 = arith.cmpi ne, %1, %c0_i32_0 : i32
    scf.if %2 {
      %cst_9 = arith.constant 0.000000e+00 : f32
      %12 = vector.broadcast %cst_9 : f32 to vector<32x256xf32>
      %c0_10 = arith.constant 0 : index
      %c0_11 = arith.constant 0 : index
      %13 = vector.load %arg7[%c0_10, %c0_11] : memref<32x256xf32, #tpu.memory_space<vmem>>, vector<32x256xf32>
      tpu.vector_store %arg7[%c0_10, %c0_11], %12 {strides = array<i32>} : memref<32x256xf32, #tpu.memory_space<vmem>>, vector<32x256xf32>,
    } else {
    }
    %c0 = arith.constant 0 : index
    %c0_1 = arith.constant 0 : index
    %3 = vector.load %arg7[%c0, %c0_1] : memref<32x256xf32, #tpu.memory_space<vmem>>, vector<32x256xf32>
    %c0_2 = arith.constant 0 : index
    %c0_3 = arith.constant 0 : index
    %4 = vector.load %arg3[%c0_2, %c0_3] : memref<32x384xbf16, #tpu.memory_space<vmem>>, vector<32x384xbf16>
    %c0_4 = arith.constant 0 : index
    %c0_5 = arith.constant 0 : index
    %5 = vector.load %arg4[%c0_4, %c0_5] : memref<384x256xbf16, #tpu.memory_space<vmem>>, vector<384x256xbf16>
    %cst = arith.constant dense<0.000000e+00> : vector<32x256xf32>
    %6 = tpu.matmul %4, %5, %cst {dimension_numbers = #tpu.dot_dimension_numbers<[1], [0], [0], [1], [0, 0, 1, 1], [], []>} : vector<32x384xbf16>, vector<384x256xbf16>, vector<32x256xf32> -> vector<32x256xf32>
    %7 = arith.addf %3, %6 : vector<32x256xf32>
    %c0_6 = arith.constant 0 : index
    %c0_7 = arith.constant 0 : index
    %8 = vector.load %arg7[%c0_6, %c0_7] : memref<32x256xf32, #tpu.memory_space<vmem>>, vector<32x256xf32>
    tpu.vector_store %arg7[%c0_6, %c0_7], %7 {strides = array<i32>} : memref<32x256xf32, #tpu.memory_space<vmem>>, vector<32x256xf32>,
    %c2_i32 = arith.constant 2 : i32
    %9 = arith.cmpi eq, %arg2, %c2_i32 : i32
    %10 = arith.extui %9 : i1 to i32
    %c0_i32_8 = arith.constant 0 : i32
    %11 = arith.cmpi ne, %10, %c0_i32_8 : i32
    scf.if %11 {
      %c0_9 = arith.constant 0 : index
      %c0_10 = arith.constant 0 : index
      %12 = vector.load %arg7[%c0_9, %c0_10] : memref<32x256xf32, #tpu.memory_space<vmem>>, vector<32x256xf32>
      %c0_11 = arith.constant 0 : index
      %c0_12 = arith.constant 0 : index
      %13 = vector.load %arg5[%c0_11, %c0_12] : memref<1x256xf32, #tpu.memory_space<vmem>>, vector<1x256xf32>
      %14 = vector.broadcast %13 : vector<1x256xf32> to vector<32x256xf32>
      %15 = arith.addf %12, %14 : vector<32x256xf32>
      %c0_13 = arith.constant 0 : index
      %c0_14 = arith.constant 0 : index
      %16 = vector.load %arg6[%c0_13, %c0_14] : memref<32x256xf32, #tpu.memory_space<vmem>>, vector<32x256xf32>
      tpu.vector_store %arg6[%c0_13, %c0_14], %15 {strides = array<i32>} : memref<32x256xf32, #tpu.memory_space<vmem>>, vector<32x256xf32>,
    } else {
    }
    return
  }
  func.func @transform_0(%arg0: i32, %arg1: i32, %arg2: i32) -> (i32, i32) {
    %c0_i32 = arith.constant 0 : i32
    return %arg0, %arg2 : i32, i32
  }
  func.func @transform_1(%arg0: i32, %arg1: i32, %arg2: i32) -> (i32, i32) {
    %c0_i32 = arith.constant 0 : i32
    return %arg2, %arg1 : i32, i32
  }
  func.func @transform_2(%arg0: i32, %arg1: i32, %arg2: i32) -> (i32, i32) {
    %c0_i32 = arith.constant 0 : i32
    %c0_i32_0 = arith.constant 0 : i32
    return %c0_i32, %arg1 : i32, i32
  }
  func.func @transform_3(%arg0: i32, %arg1: i32, %arg2: i32) -> (i32, i32) {
    %c0_i32 = arith.constant 0 : i32
    return %arg0, %arg1 : i32, i32
  }
}

module attributes {stable_mosaic.version = 11 : i64} {
  func.func @_instnorm_kernel(%arg0: i32, %arg1: i32, %arg2: memref<1x16x256xf32, #tpu.memory_space<vmem>>, %arg3: memref<1x16x256xf32, #tpu.memory_space<vmem>>) attributes {dimension_semantics = [#tpu.dimension_semantics<parallel>, #tpu.dimension_semantics<parallel>], iteration_bounds = array<i64: 2, 1>, scalar_prefetch = 0 : i64, scratch_operands = 0 : i64, tpu.core_type = #tpu.core_type<tc>, window_params = [{transform_indices = @transform_0, window_bounds = array<i64: 1, 16, 256>}, {transform_indices = @transform_1, window_bounds = array<i64: 1, 16, 256>}]} {
    %c0 = arith.constant 0 : index
    %c0_0 = arith.constant 0 : index
    %c0_1 = arith.constant 0 : index
    %0 = vector.load %arg2[%c0, %c0_0, %c0_1] : memref<1x16x256xf32, #tpu.memory_space<vmem>>, vector<1x16x256xf32>
    %cst = arith.constant dense<0.000000e+00> : vector<1x256xf32>
    %1 = vector.multi_reduction <add>, %0, %cst [1] : vector<1x16x256xf32> to vector<1x256xf32>
    %2 = vector.shape_cast %1 : vector<1x256xf32> to vector<1x1x256xf32>
    %cst_2 = arith.constant 1.600000e+01 : f32
    %3 = vector.broadcast %cst_2 : f32 to vector<1x1x256xf32>
    %4 = arith.divf %2, %3 : vector<1x1x256xf32>
    %5 = vector.broadcast %4 : vector<1x1x256xf32> to vector<1x16x256xf32>
    %6 = arith.subf %0, %5 : vector<1x16x256xf32>
    %7 = arith.mulf %6, %6 : vector<1x16x256xf32>
    %cst_3 = arith.constant dense<0.000000e+00> : vector<1x256xf32>
    %8 = vector.multi_reduction <add>, %7, %cst_3 [1] : vector<1x16x256xf32> to vector<1x256xf32>
    %9 = vector.shape_cast %8 : vector<1x256xf32> to vector<1x1x256xf32>
    %cst_4 = arith.constant 1.600000e+01 : f32
    %10 = vector.broadcast %cst_4 : f32 to vector<1x1x256xf32>
    %11 = arith.divf %9, %10 : vector<1x1x256xf32>
    %12 = vector.broadcast %4 : vector<1x1x256xf32> to vector<1x16x256xf32>
    %13 = arith.subf %0, %12 : vector<1x16x256xf32>
    %cst_5 = arith.constant 9.99999974E-6 : f32
    %14 = vector.broadcast %cst_5 : f32 to vector<1x1x256xf32>
    %15 = arith.addf %11, %14 : vector<1x1x256xf32>
    %16 = math.rsqrt %15 : vector<1x1x256xf32>
    %17 = vector.broadcast %16 : vector<1x1x256xf32> to vector<1x16x256xf32>
    %18 = arith.mulf %13, %17 : vector<1x16x256xf32>
    %cst_6 = arith.constant 0.000000e+00 : f32
    %19 = vector.broadcast %cst_6 : f32 to vector<1x16x256xf32>
    %20 = arith.maximumf %18, %19 : vector<1x16x256xf32>
    %c0_7 = arith.constant 0 : index
    %c0_8 = arith.constant 0 : index
    %c0_9 = arith.constant 0 : index
    %21 = vector.load %arg3[%c0_7, %c0_8, %c0_9] : memref<1x16x256xf32, #tpu.memory_space<vmem>>, vector<1x16x256xf32>
    tpu.vector_store %arg3[%c0_7, %c0_8, %c0_9], %20 {strides = array<i32>} : memref<1x16x256xf32, #tpu.memory_space<vmem>>, vector<1x16x256xf32>,
    return
  }
  func.func @transform_0(%arg0: i32, %arg1: i32) -> (i32, i32, i32) {
    %c0_i32 = arith.constant 0 : i32
    %c0_i32_0 = arith.constant 0 : i32
    return %arg0, %c0_i32, %arg1 : i32, i32, i32
  }
  func.func @transform_1(%arg0: i32, %arg1: i32) -> (i32, i32, i32) {
    %c0_i32 = arith.constant 0 : i32
    %c0_i32_0 = arith.constant 0 : i32
    return %arg0, %c0_i32, %arg1 : i32, i32, i32
  }
}

module attributes {stable_mosaic.version = 11 : i64} {
  func.func @_matmul_bias_kernel(%arg0: i32, %arg1: i32, %arg2: i32, %arg3: memref<32x384xbf16, #tpu.memory_space<vmem>>, %arg4: memref<384x256xbf16, #tpu.memory_space<vmem>>, %arg5: memref<1x256xf32, #tpu.memory_space<vmem>>, %arg6: memref<32x256xf32, #tpu.memory_space<vmem>>, %arg7: memref<32x256xf32, #tpu.memory_space<vmem>>) attributes {dimension_semantics = [#tpu.dimension_semantics<parallel>, #tpu.dimension_semantics<parallel>, #tpu.dimension_semantics<arbitrary>], iteration_bounds = array<i64: 1, 1, 6>, scalar_prefetch = 0 : i64, scratch_operands = 1 : i64, tpu.core_type = #tpu.core_type<tc>, window_params = [{transform_indices = @transform_0, window_bounds = array<i64: 32, 384>}, {transform_indices = @transform_1, window_bounds = array<i64: 384, 256>}, {transform_indices = @transform_2, window_bounds = array<i64: 1, 256>}, {transform_indices = @transform_3, window_bounds = array<i64: 32, 256>}]} {
    %c0_i32 = arith.constant 0 : i32
    %0 = arith.cmpi eq, %arg2, %c0_i32 : i32
    %1 = arith.extui %0 : i1 to i32
    %c0_i32_0 = arith.constant 0 : i32
    %2 = arith.cmpi ne, %1, %c0_i32_0 : i32
    scf.if %2 {
      %cst_9 = arith.constant 0.000000e+00 : f32
      %12 = vector.broadcast %cst_9 : f32 to vector<32x256xf32>
      %c0_10 = arith.constant 0 : index
      %c0_11 = arith.constant 0 : index
      %13 = vector.load %arg7[%c0_10, %c0_11] : memref<32x256xf32, #tpu.memory_space<vmem>>, vector<32x256xf32>
      tpu.vector_store %arg7[%c0_10, %c0_11], %12 {strides = array<i32>} : memref<32x256xf32, #tpu.memory_space<vmem>>, vector<32x256xf32>,
    } else {
    }
    %c0 = arith.constant 0 : index
    %c0_1 = arith.constant 0 : index
    %3 = vector.load %arg7[%c0, %c0_1] : memref<32x256xf32, #tpu.memory_space<vmem>>, vector<32x256xf32>
    %c0_2 = arith.constant 0 : index
    %c0_3 = arith.constant 0 : index
    %4 = vector.load %arg3[%c0_2, %c0_3] : memref<32x384xbf16, #tpu.memory_space<vmem>>, vector<32x384xbf16>
    %c0_4 = arith.constant 0 : index
    %c0_5 = arith.constant 0 : index
    %5 = vector.load %arg4[%c0_4, %c0_5] : memref<384x256xbf16, #tpu.memory_space<vmem>>, vector<384x256xbf16>
    %cst = arith.constant dense<0.000000e+00> : vector<32x256xf32>
    %6 = tpu.matmul %4, %5, %cst {dimension_numbers = #tpu.dot_dimension_numbers<[1], [0], [0], [1], [0, 0, 1, 1], [], []>} : vector<32x384xbf16>, vector<384x256xbf16>, vector<32x256xf32> -> vector<32x256xf32>
    %7 = arith.addf %3, %6 : vector<32x256xf32>
    %c0_6 = arith.constant 0 : index
    %c0_7 = arith.constant 0 : index
    %8 = vector.load %arg7[%c0_6, %c0_7] : memref<32x256xf32, #tpu.memory_space<vmem>>, vector<32x256xf32>
    tpu.vector_store %arg7[%c0_6, %c0_7], %7 {strides = array<i32>} : memref<32x256xf32, #tpu.memory_space<vmem>>, vector<32x256xf32>,
    %c5_i32 = arith.constant 5 : i32
    %9 = arith.cmpi eq, %arg2, %c5_i32 : i32
    %10 = arith.extui %9 : i1 to i32
    %c0_i32_8 = arith.constant 0 : i32
    %11 = arith.cmpi ne, %10, %c0_i32_8 : i32
    scf.if %11 {
      %c0_9 = arith.constant 0 : index
      %c0_10 = arith.constant 0 : index
      %12 = vector.load %arg7[%c0_9, %c0_10] : memref<32x256xf32, #tpu.memory_space<vmem>>, vector<32x256xf32>
      %c0_11 = arith.constant 0 : index
      %c0_12 = arith.constant 0 : index
      %13 = vector.load %arg5[%c0_11, %c0_12] : memref<1x256xf32, #tpu.memory_space<vmem>>, vector<1x256xf32>
      %14 = vector.broadcast %13 : vector<1x256xf32> to vector<32x256xf32>
      %15 = arith.addf %12, %14 : vector<32x256xf32>
      %c0_13 = arith.constant 0 : index
      %c0_14 = arith.constant 0 : index
      %16 = vector.load %arg6[%c0_13, %c0_14] : memref<32x256xf32, #tpu.memory_space<vmem>>, vector<32x256xf32>
      tpu.vector_store %arg6[%c0_13, %c0_14], %15 {strides = array<i32>} : memref<32x256xf32, #tpu.memory_space<vmem>>, vector<32x256xf32>,
    } else {
    }
    return
  }
  func.func @transform_0(%arg0: i32, %arg1: i32, %arg2: i32) -> (i32, i32) {
    %c0_i32 = arith.constant 0 : i32
    return %arg0, %arg2 : i32, i32
  }
  func.func @transform_1(%arg0: i32, %arg1: i32, %arg2: i32) -> (i32, i32) {
    %c0_i32 = arith.constant 0 : i32
    return %arg2, %arg1 : i32, i32
  }
  func.func @transform_2(%arg0: i32, %arg1: i32, %arg2: i32) -> (i32, i32) {
    %c0_i32 = arith.constant 0 : i32
    %c0_i32_0 = arith.constant 0 : i32
    return %c0_i32, %arg1 : i32, i32
  }
  func.func @transform_3(%arg0: i32, %arg1: i32, %arg2: i32) -> (i32, i32) {
    %c0_i32 = arith.constant 0 : i32
    return %arg0, %arg1 : i32, i32
  }
}

module attributes {stable_mosaic.version = 11 : i64} {
  func.func @_instnorm_residual_kernel(%arg0: i32, %arg1: i32, %arg2: memref<1x16x256xf32, #tpu.memory_space<vmem>>, %arg3: memref<1x16x256xf32, #tpu.memory_space<vmem>>, %arg4: memref<1x16x256xf32, #tpu.memory_space<vmem>>) attributes {dimension_semantics = [#tpu.dimension_semantics<parallel>, #tpu.dimension_semantics<parallel>], iteration_bounds = array<i64: 2, 1>, scalar_prefetch = 0 : i64, scratch_operands = 0 : i64, tpu.core_type = #tpu.core_type<tc>, window_params = [{transform_indices = @transform_0, window_bounds = array<i64: 1, 16, 256>}, {transform_indices = @transform_1, window_bounds = array<i64: 1, 16, 256>}, {transform_indices = @transform_2, window_bounds = array<i64: 1, 16, 256>}]} {
    %c0 = arith.constant 0 : index
    %c0_0 = arith.constant 0 : index
    %c0_1 = arith.constant 0 : index
    %0 = vector.load %arg2[%c0, %c0_0, %c0_1] : memref<1x16x256xf32, #tpu.memory_space<vmem>>, vector<1x16x256xf32>
    %cst = arith.constant dense<0.000000e+00> : vector<1x256xf32>
    %1 = vector.multi_reduction <add>, %0, %cst [1] : vector<1x16x256xf32> to vector<1x256xf32>
    %2 = vector.shape_cast %1 : vector<1x256xf32> to vector<1x1x256xf32>
    %cst_2 = arith.constant 1.600000e+01 : f32
    %3 = vector.broadcast %cst_2 : f32 to vector<1x1x256xf32>
    %4 = arith.divf %2, %3 : vector<1x1x256xf32>
    %5 = vector.broadcast %4 : vector<1x1x256xf32> to vector<1x16x256xf32>
    %6 = arith.subf %0, %5 : vector<1x16x256xf32>
    %7 = arith.mulf %6, %6 : vector<1x16x256xf32>
    %cst_3 = arith.constant dense<0.000000e+00> : vector<1x256xf32>
    %8 = vector.multi_reduction <add>, %7, %cst_3 [1] : vector<1x16x256xf32> to vector<1x256xf32>
    %9 = vector.shape_cast %8 : vector<1x256xf32> to vector<1x1x256xf32>
    %cst_4 = arith.constant 1.600000e+01 : f32
    %10 = vector.broadcast %cst_4 : f32 to vector<1x1x256xf32>
    %11 = arith.divf %9, %10 : vector<1x1x256xf32>
    %c0_5 = arith.constant 0 : index
    %c0_6 = arith.constant 0 : index
    %c0_7 = arith.constant 0 : index
    %12 = vector.load %arg3[%c0_5, %c0_6, %c0_7] : memref<1x16x256xf32, #tpu.memory_space<vmem>>, vector<1x16x256xf32>
    %13 = vector.broadcast %4 : vector<1x1x256xf32> to vector<1x16x256xf32>
    %14 = arith.subf %0, %13 : vector<1x16x256xf32>
    %cst_8 = arith.constant 9.99999974E-6 : f32
    %15 = vector.broadcast %cst_8 : f32 to vector<1x1x256xf32>
    %16 = arith.addf %11, %15 : vector<1x1x256xf32>
    %17 = math.rsqrt %16 : vector<1x1x256xf32>
    %18 = vector.broadcast %17 : vector<1x1x256xf32> to vector<1x16x256xf32>
    %19 = arith.mulf %14, %18 : vector<1x16x256xf32>
    %20 = arith.addf %12, %19 : vector<1x16x256xf32>
    %c0_9 = arith.constant 0 : index
    %c0_10 = arith.constant 0 : index
    %c0_11 = arith.constant 0 : index
    %21 = vector.load %arg4[%c0_9, %c0_10, %c0_11] : memref<1x16x256xf32, #tpu.memory_space<vmem>>, vector<1x16x256xf32>
    tpu.vector_store %arg4[%c0_9, %c0_10, %c0_11], %20 {strides = array<i32>} : memref<1x16x256xf32, #tpu.memory_space<vmem>>, vector<1x16x256xf32>,
    return
  }
  func.func @transform_0(%arg0: i32, %arg1: i32) -> (i32, i32, i32) {
    %c0_i32 = arith.constant 0 : i32
    %c0_i32_0 = arith.constant 0 : i32
    return %arg0, %c0_i32, %arg1 : i32, i32, i32
  }
  func.func @transform_1(%arg0: i32, %arg1: i32) -> (i32, i32, i32) {
    %c0_i32 = arith.constant 0 : i32
    %c0_i32_0 = arith.constant 0 : i32
    return %arg0, %c0_i32, %arg1 : i32, i32, i32
  }
  func.func @transform_2(%arg0: i32, %arg1: i32) -> (i32, i32, i32) {
    %c0_i32 = arith.constant 0 : i32
    %c0_i32_0 = arith.constant 0 : i32
    return %arg0, %c0_i32, %arg1 : i32, i32, i32
  }
}

module attributes {stable_mosaic.version = 11 : i64} {
  func.func @_matmul_bias_kernel(%arg0: i32, %arg1: i32, %arg2: i32, %arg3: memref<32x512xbf16, #tpu.memory_space<vmem>>, %arg4: memref<512x256xbf16, #tpu.memory_space<vmem>>, %arg5: memref<1x256xf32, #tpu.memory_space<vmem>>, %arg6: memref<32x256xf32, #tpu.memory_space<vmem>>, %arg7: memref<32x256xf32, #tpu.memory_space<vmem>>) attributes {dimension_semantics = [#tpu.dimension_semantics<parallel>, #tpu.dimension_semantics<parallel>, #tpu.dimension_semantics<arbitrary>], iteration_bounds = array<i64: 1, 2, 2>, scalar_prefetch = 0 : i64, scratch_operands = 1 : i64, tpu.core_type = #tpu.core_type<tc>, window_params = [{transform_indices = @transform_0, window_bounds = array<i64: 32, 512>}, {transform_indices = @transform_1, window_bounds = array<i64: 512, 256>}, {transform_indices = @transform_2, window_bounds = array<i64: 1, 256>}, {transform_indices = @transform_3, window_bounds = array<i64: 32, 256>}]} {
    %c0_i32 = arith.constant 0 : i32
    %0 = arith.cmpi eq, %arg2, %c0_i32 : i32
    %1 = arith.extui %0 : i1 to i32
    %c0_i32_0 = arith.constant 0 : i32
    %2 = arith.cmpi ne, %1, %c0_i32_0 : i32
    scf.if %2 {
      %cst_9 = arith.constant 0.000000e+00 : f32
      %12 = vector.broadcast %cst_9 : f32 to vector<32x256xf32>
      %c0_10 = arith.constant 0 : index
      %c0_11 = arith.constant 0 : index
      %13 = vector.load %arg7[%c0_10, %c0_11] : memref<32x256xf32, #tpu.memory_space<vmem>>, vector<32x256xf32>
      tpu.vector_store %arg7[%c0_10, %c0_11], %12 {strides = array<i32>} : memref<32x256xf32, #tpu.memory_space<vmem>>, vector<32x256xf32>,
    } else {
    }
    %c0 = arith.constant 0 : index
    %c0_1 = arith.constant 0 : index
    %3 = vector.load %arg7[%c0, %c0_1] : memref<32x256xf32, #tpu.memory_space<vmem>>, vector<32x256xf32>
    %c0_2 = arith.constant 0 : index
    %c0_3 = arith.constant 0 : index
    %4 = vector.load %arg3[%c0_2, %c0_3] : memref<32x512xbf16, #tpu.memory_space<vmem>>, vector<32x512xbf16>
    %c0_4 = arith.constant 0 : index
    %c0_5 = arith.constant 0 : index
    %5 = vector.load %arg4[%c0_4, %c0_5] : memref<512x256xbf16, #tpu.memory_space<vmem>>, vector<512x256xbf16>
    %cst = arith.constant dense<0.000000e+00> : vector<32x256xf32>
    %6 = tpu.matmul %4, %5, %cst {dimension_numbers = #tpu.dot_dimension_numbers<[1], [0], [0], [1], [0, 0, 1, 1], [], []>} : vector<32x512xbf16>, vector<512x256xbf16>, vector<32x256xf32> -> vector<32x256xf32>
    %7 = arith.addf %3, %6 : vector<32x256xf32>
    %c0_6 = arith.constant 0 : index
    %c0_7 = arith.constant 0 : index
    %8 = vector.load %arg7[%c0_6, %c0_7] : memref<32x256xf32, #tpu.memory_space<vmem>>, vector<32x256xf32>
    tpu.vector_store %arg7[%c0_6, %c0_7], %7 {strides = array<i32>} : memref<32x256xf32, #tpu.memory_space<vmem>>, vector<32x256xf32>,
    %c1_i32 = arith.constant 1 : i32
    %9 = arith.cmpi eq, %arg2, %c1_i32 : i32
    %10 = arith.extui %9 : i1 to i32
    %c0_i32_8 = arith.constant 0 : i32
    %11 = arith.cmpi ne, %10, %c0_i32_8 : i32
    scf.if %11 {
      %c0_9 = arith.constant 0 : index
      %c0_10 = arith.constant 0 : index
      %12 = vector.load %arg7[%c0_9, %c0_10] : memref<32x256xf32, #tpu.memory_space<vmem>>, vector<32x256xf32>
      %c0_11 = arith.constant 0 : index
      %c0_12 = arith.constant 0 : index
      %13 = vector.load %arg5[%c0_11, %c0_12] : memref<1x256xf32, #tpu.memory_space<vmem>>, vector<1x256xf32>
      %14 = vector.broadcast %13 : vector<1x256xf32> to vector<32x256xf32>
      %15 = arith.addf %12, %14 : vector<32x256xf32>
      %c0_13 = arith.constant 0 : index
      %c0_14 = arith.constant 0 : index
      %16 = vector.load %arg6[%c0_13, %c0_14] : memref<32x256xf32, #tpu.memory_space<vmem>>, vector<32x256xf32>
      tpu.vector_store %arg6[%c0_13, %c0_14], %15 {strides = array<i32>} : memref<32x256xf32, #tpu.memory_space<vmem>>, vector<32x256xf32>,
    } else {
    }
    return
  }
  func.func @transform_0(%arg0: i32, %arg1: i32, %arg2: i32) -> (i32, i32) {
    %c0_i32 = arith.constant 0 : i32
    return %arg0, %arg2 : i32, i32
  }
  func.func @transform_1(%arg0: i32, %arg1: i32, %arg2: i32) -> (i32, i32) {
    %c0_i32 = arith.constant 0 : i32
    return %arg2, %arg1 : i32, i32
  }
  func.func @transform_2(%arg0: i32, %arg1: i32, %arg2: i32) -> (i32, i32) {
    %c0_i32 = arith.constant 0 : i32
    %c0_i32_0 = arith.constant 0 : i32
    return %c0_i32, %arg1 : i32, i32
  }
  func.func @transform_3(%arg0: i32, %arg1: i32, %arg2: i32) -> (i32, i32) {
    %c0_i32 = arith.constant 0 : i32
    return %arg0, %arg1 : i32, i32
  }
}

module attributes {stable_mosaic.version = 11 : i64} {
  func.func @_matmul_bias_kernel(%arg0: i32, %arg1: i32, %arg2: i32, %arg3: memref<128x512xbf16, #tpu.memory_space<vmem>>, %arg4: memref<512x256xbf16, #tpu.memory_space<vmem>>, %arg5: memref<1x256xf32, #tpu.memory_space<vmem>>, %arg6: memref<128x256xf32, #tpu.memory_space<vmem>>, %arg7: memref<128x256xf32, #tpu.memory_space<vmem>>) attributes {dimension_semantics = [#tpu.dimension_semantics<parallel>, #tpu.dimension_semantics<parallel>, #tpu.dimension_semantics<arbitrary>], iteration_bounds = array<i64: 1, 1, 1>, scalar_prefetch = 0 : i64, scratch_operands = 1 : i64, tpu.core_type = #tpu.core_type<tc>, window_params = [{transform_indices = @transform_0, window_bounds = array<i64: 128, 512>}, {transform_indices = @transform_1, window_bounds = array<i64: 512, 256>}, {transform_indices = @transform_2, window_bounds = array<i64: 1, 256>}, {transform_indices = @transform_3, window_bounds = array<i64: 128, 256>}]} {
    %c0_i32 = arith.constant 0 : i32
    %0 = arith.cmpi eq, %arg2, %c0_i32 : i32
    %1 = arith.extui %0 : i1 to i32
    %c0_i32_0 = arith.constant 0 : i32
    %2 = arith.cmpi ne, %1, %c0_i32_0 : i32
    scf.if %2 {
      %cst_10 = arith.constant 0.000000e+00 : f32
      %12 = vector.broadcast %cst_10 : f32 to vector<128x256xf32>
      %c0_11 = arith.constant 0 : index
      %c0_12 = arith.constant 0 : index
      %13 = vector.load %arg7[%c0_11, %c0_12] : memref<128x256xf32, #tpu.memory_space<vmem>>, vector<128x256xf32>
      tpu.vector_store %arg7[%c0_11, %c0_12], %12 {strides = array<i32>} : memref<128x256xf32, #tpu.memory_space<vmem>>, vector<128x256xf32>,
    } else {
    }
    %c0 = arith.constant 0 : index
    %c0_1 = arith.constant 0 : index
    %3 = vector.load %arg7[%c0, %c0_1] : memref<128x256xf32, #tpu.memory_space<vmem>>, vector<128x256xf32>
    %c0_2 = arith.constant 0 : index
    %c0_3 = arith.constant 0 : index
    %4 = vector.load %arg3[%c0_2, %c0_3] : memref<128x512xbf16, #tpu.memory_space<vmem>>, vector<128x512xbf16>
    %c0_4 = arith.constant 0 : index
    %c0_5 = arith.constant 0 : index
    %5 = vector.load %arg4[%c0_4, %c0_5] : memref<512x256xbf16, #tpu.memory_space<vmem>>, vector<512x256xbf16>
    %cst = arith.constant dense<0.000000e+00> : vector<128x256xf32>
    %6 = tpu.matmul %4, %5, %cst {dimension_numbers = #tpu.dot_dimension_numbers<[1], [0], [0], [1], [0, 0, 1, 1], [], []>} : vector<128x512xbf16>, vector<512x256xbf16>, vector<128x256xf32> -> vector<128x256xf32>
    %7 = arith.addf %3, %6 : vector<128x256xf32>
    %c0_6 = arith.constant 0 : index
    %c0_7 = arith.constant 0 : index
    %8 = vector.load %arg7[%c0_6, %c0_7] : memref<128x256xf32, #tpu.memory_space<vmem>>, vector<128x256xf32>
    tpu.vector_store %arg7[%c0_6, %c0_7], %7 {strides = array<i32>} : memref<128x256xf32, #tpu.memory_space<vmem>>, vector<128x256xf32>,
    %c0_i32_8 = arith.constant 0 : i32
    %9 = arith.cmpi eq, %arg2, %c0_i32_8 : i32
    %10 = arith.extui %9 : i1 to i32
    %c0_i32_9 = arith.constant 0 : i32
    %11 = arith.cmpi ne, %10, %c0_i32_9 : i32
    scf.if %11 {
      %c0_10 = arith.constant 0 : index
      %c0_11 = arith.constant 0 : index
      %12 = vector.load %arg7[%c0_10, %c0_11] : memref<128x256xf32, #tpu.memory_space<vmem>>, vector<128x256xf32>
      %c0_12 = arith.constant 0 : index
      %c0_13 = arith.constant 0 : index
      %13 = vector.load %arg5[%c0_12, %c0_13] : memref<1x256xf32, #tpu.memory_space<vmem>>, vector<1x256xf32>
      %14 = vector.broadcast %13 : vector<1x256xf32> to vector<128x256xf32>
      %15 = arith.addf %12, %14 : vector<128x256xf32>
      %c0_14 = arith.constant 0 : index
      %c0_15 = arith.constant 0 : index
      %16 = vector.load %arg6[%c0_14, %c0_15] : memref<128x256xf32, #tpu.memory_space<vmem>>, vector<128x256xf32>
      tpu.vector_store %arg6[%c0_14, %c0_15], %15 {strides = array<i32>} : memref<128x256xf32, #tpu.memory_space<vmem>>, vector<128x256xf32>,
    } else {
    }
    return
  }
  func.func @transform_0(%arg0: i32, %arg1: i32, %arg2: i32) -> (i32, i32) {
    %c0_i32 = arith.constant 0 : i32
    return %arg0, %arg2 : i32, i32
  }
  func.func @transform_1(%arg0: i32, %arg1: i32, %arg2: i32) -> (i32, i32) {
    %c0_i32 = arith.constant 0 : i32
    return %arg2, %arg1 : i32, i32
  }
  func.func @transform_2(%arg0: i32, %arg1: i32, %arg2: i32) -> (i32, i32) {
    %c0_i32 = arith.constant 0 : i32
    %c0_i32_0 = arith.constant 0 : i32
    return %c0_i32, %arg1 : i32, i32
  }
  func.func @transform_3(%arg0: i32, %arg1: i32, %arg2: i32) -> (i32, i32) {
    %c0_i32 = arith.constant 0 : i32
    return %arg0, %arg1 : i32, i32
  }
}

module attributes {stable_mosaic.version = 11 : i64} {
  func.func @_matmul_bias_kernel(%arg0: i32, %arg1: i32, %arg2: i32, %arg3: memref<256x128xbf16, #tpu.memory_space<vmem>>, %arg4: memref<128x128xbf16, #tpu.memory_space<vmem>>, %arg5: memref<1x128xf32, #tpu.memory_space<vmem>>, %arg6: memref<256x128xf32, #tpu.memory_space<vmem>>, %arg7: memref<256x128xf32, #tpu.memory_space<vmem>>) attributes {dimension_semantics = [#tpu.dimension_semantics<parallel>, #tpu.dimension_semantics<parallel>, #tpu.dimension_semantics<arbitrary>], iteration_bounds = array<i64: 2, 1, 25>, scalar_prefetch = 0 : i64, scratch_operands = 1 : i64, tpu.core_type = #tpu.core_type<tc>, window_params = [{transform_indices = @transform_0, window_bounds = array<i64: 256, 128>}, {transform_indices = @transform_1, window_bounds = array<i64: 128, 128>}, {transform_indices = @transform_2, window_bounds = array<i64: 1, 128>}, {transform_indices = @transform_3, window_bounds = array<i64: 256, 128>}]} {
    %c0_i32 = arith.constant 0 : i32
    %0 = arith.cmpi eq, %arg2, %c0_i32 : i32
    %1 = arith.extui %0 : i1 to i32
    %c0_i32_0 = arith.constant 0 : i32
    %2 = arith.cmpi ne, %1, %c0_i32_0 : i32
    scf.if %2 {
      %cst_9 = arith.constant 0.000000e+00 : f32
      %12 = vector.broadcast %cst_9 : f32 to vector<256x128xf32>
      %c0_10 = arith.constant 0 : index
      %c0_11 = arith.constant 0 : index
      %13 = vector.load %arg7[%c0_10, %c0_11] : memref<256x128xf32, #tpu.memory_space<vmem>>, vector<256x128xf32>
      tpu.vector_store %arg7[%c0_10, %c0_11], %12 {strides = array<i32>} : memref<256x128xf32, #tpu.memory_space<vmem>>, vector<256x128xf32>,
    } else {
    }
    %c0 = arith.constant 0 : index
    %c0_1 = arith.constant 0 : index
    %3 = vector.load %arg7[%c0, %c0_1] : memref<256x128xf32, #tpu.memory_space<vmem>>, vector<256x128xf32>
    %c0_2 = arith.constant 0 : index
    %c0_3 = arith.constant 0 : index
    %4 = vector.load %arg3[%c0_2, %c0_3] : memref<256x128xbf16, #tpu.memory_space<vmem>>, vector<256x128xbf16>
    %c0_4 = arith.constant 0 : index
    %c0_5 = arith.constant 0 : index
    %5 = vector.load %arg4[%c0_4, %c0_5] : memref<128x128xbf16, #tpu.memory_space<vmem>>, vector<128x128xbf16>
    %cst = arith.constant dense<0.000000e+00> : vector<256x128xf32>
    %6 = tpu.matmul %4, %5, %cst {dimension_numbers = #tpu.dot_dimension_numbers<[1], [0], [0], [1], [0, 0, 1, 1], [], []>} : vector<256x128xbf16>, vector<128x128xbf16>, vector<256x128xf32> -> vector<256x128xf32>
    %7 = arith.addf %3, %6 : vector<256x128xf32>
    %c0_6 = arith.constant 0 : index
    %c0_7 = arith.constant 0 : index
    %8 = vector.load %arg7[%c0_6, %c0_7] : memref<256x128xf32, #tpu.memory_space<vmem>>, vector<256x128xf32>
    tpu.vector_store %arg7[%c0_6, %c0_7], %7 {strides = array<i32>} : memref<256x128xf32, #tpu.memory_space<vmem>>, vector<256x128xf32>,
    %c24_i32 = arith.constant 24 : i32
    %9 = arith.cmpi eq, %arg2, %c24_i32 : i32
    %10 = arith.extui %9 : i1 to i32
    %c0_i32_8 = arith.constant 0 : i32
    %11 = arith.cmpi ne, %10, %c0_i32_8 : i32
    scf.if %11 {
      %c0_9 = arith.constant 0 : index
      %c0_10 = arith.constant 0 : index
      %12 = vector.load %arg7[%c0_9, %c0_10] : memref<256x128xf32, #tpu.memory_space<vmem>>, vector<256x128xf32>
      %c0_11 = arith.constant 0 : index
      %c0_12 = arith.constant 0 : index
      %13 = vector.load %arg5[%c0_11, %c0_12] : memref<1x128xf32, #tpu.memory_space<vmem>>, vector<1x128xf32>
      %14 = vector.broadcast %13 : vector<1x128xf32> to vector<256x128xf32>
      %15 = arith.addf %12, %14 : vector<256x128xf32>
      %cst_13 = arith.constant 0.000000e+00 : f32
      %16 = vector.broadcast %cst_13 : f32 to vector<256x128xf32>
      %17 = arith.subf %16, %15 : vector<256x128xf32>
      %18 = math.exp %17 : vector<256x128xf32>
      %cst_14 = arith.constant 1.000000e+00 : f32
      %19 = vector.broadcast %cst_14 : f32 to vector<256x128xf32>
      %20 = arith.addf %19, %18 : vector<256x128xf32>
      %cst_15 = arith.constant 1.000000e+00 : f32
      %21 = vector.broadcast %cst_15 : f32 to vector<256x128xf32>
      %22 = arith.divf %21, %20 : vector<256x128xf32>
      %c0_16 = arith.constant 0 : index
      %c0_17 = arith.constant 0 : index
      %23 = vector.load %arg6[%c0_16, %c0_17] : memref<256x128xf32, #tpu.memory_space<vmem>>, vector<256x128xf32>
      tpu.vector_store %arg6[%c0_16, %c0_17], %22 {strides = array<i32>} : memref<256x128xf32, #tpu.memory_space<vmem>>, vector<256x128xf32>,
    } else {
    }
    return
  }
  func.func @transform_0(%arg0: i32, %arg1: i32, %arg2: i32) -> (i32, i32) {
    %c0_i32 = arith.constant 0 : i32
    return %arg0, %arg2 : i32, i32
  }
  func.func @transform_1(%arg0: i32, %arg1: i32, %arg2: i32) -> (i32, i32) {
    %c0_i32 = arith.constant 0 : i32
    return %arg2, %arg1 : i32, i32
  }
  func.func @transform_2(%arg0: i32, %arg1: i32, %arg2: i32) -> (i32, i32) {
    %c0_i32 = arith.constant 0 : i32
    %c0_i32_0 = arith.constant 0 : i32
    return %c0_i32, %arg1 : i32, i32
  }
  func.func @transform_3(%arg0: i32, %arg1: i32, %arg2: i32) -> (i32, i32) {
    %c0_i32 = arith.constant 0 : i32
    return %arg0, %arg1 : i32, i32
  }
}

</mosaic_0001>

<llo_original>
// kernel: generator_forward.24
$region0: #{generator_forward.24}
  #allocation0 [shape = 'u32[]', space=smem, size = 0x4, offset = 0x4, fixed_abs, tag = 'smem constant byte address 0x4 - core index']
  #allocation1 [shape = 'u32[144,128]{1,0:T(1,128)}', space=vmem, size = 0x12000, scoped, tag = 'internal scratch']
  %s0 = inlined_call_operand.vmem [shape: f32[2,256,64], index: 0, kind: input, shape index: {}]
  %s1 = inlined_call_operand.vmem [shape: f32[2,256,64], index: 1, kind: output, shape index: {}]
  %s2 = sld [smem:[#allocation0]]
  $region37: #{generator_forward.24} parent=0
    _
  %s4 = ssub.s32 1, %s2
  %s5 = scalar_select 0, %s4, %s2
  loop: start=0, step=1, limit=4
  $region2: #{generator_forward.24} parent=0 // loop_pre_header
    _
  $region3: #{generator_forward.24} parent=0 // loop_header
    %s7 = sphi 0, %s11
    %p8 = scmp.ge.s32.totalorder %s7, 4
    %s14 = sphi 0, %s26
    %s15 = sphi 0, %s22
    %s16 = sphi 0, %s14
    %s17 = sphi 0, %s15
    %s18 = sphi 0, %s16
    %s19 = sphi 0, %s17
    %s31 = sphi 0, %s33
    %s34 = sphi 0, %s31
    %s35 = sphi 0, %s34
    %s51 = sphi 0, %s35
    %s59 = sphi 0, %s61
    %s62 = sphi 0, %s59
    %s63 = sphi 0, %s62
    %s79 = sphi 0, %s63
  $region4: #{generator_forward.24} parent=0 // loop_header_branch
    %10 = sbr.rel (%p8) target = $region8
  $region5: #{generator_forward.24} parent=0 // loop_body
    %s12 = ssub.s32 %s7, 1
    %s13 = ssub.s32 %s7, 2
    %s20 = sadd.s32 1, %s15
    %p21 = scmp.ge.s32.totalorder %s20, 1
    %s22 = scalar_select %p21, 0, %s20
    %s23 = sadd.s32 1, %s14
    %s24 = scalar_select %p21, %s23, %s14
    %p25 = scmp.ge.s32.totalorder %s24, 2
    %s26 = scalar_select %p25, 0, %s24
    %s27 = ssub.s32 %s14, %s26
    %s28 = ssub.s32 %s15, %s22
    %s29 = sor.u32 %s27, %s28
    %p30 = scmp.eq.s32.totalorder %s29, 0
    %s32 = sadd.s32 %s31, 1
    %s33 = scalar_select %p30, %s31, %s32
    %p36 = pneg %p30
    %p37 = scmp.eq.s32.totalorder %s7, 1
    %p38 = por %p36, %p37
    %p39 = scmp.ne.s32.totalorder %s31, %s34
    %p40 = scmp.eq.s32.totalorder %s7, 0
    %p41 = por %p39, %p40
    %p42 = scmp.ne.s32.totalorder %s31, %s34
    %p43 = scmp.eq.s32.totalorder %s12, 1
    %p44 = por %p42, %p43
    %p45 = scmp.ne.s32.totalorder %s34, %s35
    %p46 = scmp.eq.s32.totalorder %s12, 0
    %p47 = por %p45, %p46
    %p48 = scmp.ne.s32.totalorder %s34, %s35
    %p49 = scmp.eq.s32.totalorder %s13, 1
    %p50 = por %p48, %p49
    %p52 = scmp.ne.s32.totalorder %s35, %s51
    %p53 = scmp.eq.s32.totalorder %s13, 0
    %p54 = por %p52, %p53
    %s55 = ssub.s32 %s14, %s26
    %s56 = ssub.s32 %s15, %s22
    %s57 = sor.u32 %s55, %s56
    %p58 = scmp.eq.s32.totalorder %s57, 0
    %s60 = sadd.s32 %s59, 1
    %s61 = scalar_select %p58, %s59, %s60
    %p64 = pneg %p58
    %p65 = scmp.eq.s32.totalorder %s7, 1
    %p66 = por %p64, %p65
    %p67 = scmp.ne.s32.totalorder %s59, %s62
    %p68 = scmp.eq.s32.totalorder %s7, 0
    %p69 = por %p67, %p68
    %p70 = scmp.ne.s32.totalorder %s59, %s62
    %p71 = scmp.eq.s32.totalorder %s12, 1
    %p72 = por %p70, %p71
    %p73 = scmp.ne.s32.totalorder %s62, %s63
    %p74 = scmp.eq.s32.totalorder %s12, 0
    %p75 = por %p73, %p74
    %p76 = scmp.ne.s32.totalorder %s62, %s63
    %p77 = scmp.eq.s32.totalorder %s13, 1
    %p78 = por %p76, %p77
    %p80 = scmp.ne.s32.totalorder %s63, %s79
    %p81 = scmp.eq.s32.totalorder %s13, 0
    %p82 = por %p80, %p81
    %p83 = scmp.le.s32.totalorder 1, %s7
    %p84 = scmp.lt.s32.totalorder %s7, 3
    %p85 = pnand %p83, %p84
    %p86 = pneg %p85
    // Predicated region
    $region9: #{generator_forward.24} parent=5 // pred_check
      _
    $region10: #{generator_forward.24} parent=5 // pred_check_branch
      %88 = sbr.rel (%p85) target = $region12
    $region11: #{generator_forward.24} parent=5 // pred_region
      %s89 = ssub.s32 %s7, 1
    $region12: #{generator_forward.24} parent=5 // pred_fallthru
      _
    %p90 = scmp.lt.s32.totalorder %s7, 2
    // Predicated region
    $region13: #{generator_forward.24} parent=5 // pred_check
      %p91 = pneg %p90
    $region14: #{generator_forward.24} parent=5 // pred_check_branch
      %93 = sbr.rel (%p91) target = $region16
    $region15: #{generator_forward.24} parent=5 // pred_region
      // Predicated region
      $region17: #{generator_forward.24} parent=15 // pred_check
        %p94 = pneg %p41
      $region18: #{generator_forward.24} parent=15 // pred_check_branch
        %96 = sbr.rel (%p94) target = $region20
      $region19: #{generator_forward.24} parent=15 // pred_region
        %p97 = scmp.lt.s32.totalorder %s14, 1
        %s98 = scalar_select %p97, %s14, 1
        %p99 = scmp.lt.s32.totalorder %s15, 0
        %s100 = scalar_select %p99, %s15, 0
        %s101 = smul.addr %s98, 32
        %s102 = sadd.s32 %s100, %s101
        %s103 = smul.addr %s102, 8
        %s104 = scalar_lea.vmem %s0, %s103
      $region20: #{generator_forward.24} parent=15 // pred_fallthru
        _
    $region16: #{generator_forward.24} parent=5 // pred_fallthru
      _
    %p105 = scmp.le.s32.totalorder 1, %s7
    %p106 = scmp.lt.s32.totalorder %s7, 3
    %p107 = pnand %p105, %p106
    %p108 = pneg %p107
    // Predicated region
    $region21: #{generator_forward.24} parent=5 // pred_check
      _
    $region22: #{generator_forward.24} parent=5 // pred_check_branch
      %110 = sbr.rel (%p107) target = $region24
    $region23: #{generator_forward.24} parent=5 // pred_region
      %s111 = ssub.s32 %s7, 1
      %p112 = scmp.lt.s32.totalorder %s16, 1
      %s113 = scalar_select %p112, %s16, 1
      %p114 = scmp.lt.s32.totalorder %s17, 0
      %s115 = scalar_select %p114, %s17, 0
      %s116 = smul.addr %s113, 32
      %s117 = sadd.s32 %s115, %s116
      %s118 = smul.addr %s117, 8
      %s119 = scalar_lea.vmem %s0, %s118
      %p120 = pneg %p47
      %p121 = pneg %p44
      %p122 = pneg %p75
      %p123 = pneg %p72
      %p124 = scmp.lt.s32.totalorder %s16, 1
      %s125 = scalar_select %p124, %s16, 1
      %p126 = scmp.lt.s32.totalorder %s17, 0
      %s127 = scalar_select %p126, %s17, 0
      %s128 = smul.addr %s125, 32
      %s129 = sadd.s32 %s127, %s128
      %s130 = smul.addr %s129, 8
      %s131 = scalar_lea.vmem %s1, %s130
      %p132 = scmp.lt.s32.totalorder %s16, 1
      %s133 = scalar_select %p132, %s16, 1
      %p134 = scmp.lt.s32.totalorder %s17, 0
      %s135 = scalar_select %p134, %s17, 0
      %s136 = smul.addr %s133, 32
      %s137 = sadd.s32 %s135, %s136
      %s138 = smul.addr %s137, 8
      %s139 = scalar_lea.vmem %s0, %s138
      %p140 = scmp.lt.s32.totalorder %s16, 1
      %s141 = scalar_select %p140, %s16, 1
      %p142 = scmp.lt.s32.totalorder %s17, 0
      %s143 = scalar_select %p142, %s17, 0
      %s144 = smul.addr %s141, 32
      %s145 = sadd.s32 %s143, %s144
      %s146 = smul.addr %s145, 8
      %s147 = scalar_lea.vmem %s1, %s146
      %v148 = vld [vmem:[%s139] sm:$0xff]
      %v149 = vld [vmem:[%s139 + $0x8] sm:$0xff]
      %v150 = vld [vmem:[%s139 + $0x10] sm:$0xff]
      %v151 = vld [vmem:[%s139 + $0x18] sm:$0xff]
      %v152 = vld [vmem:[%s139 + $0x20] sm:$0xff]
      %v153 = vld [vmem:[%s139 + $0x28] sm:$0xff]
      %v154 = vld [vmem:[%s139 + $0x30] sm:$0xff]
      %v155 = vld [vmem:[%s139 + $0x38] sm:$0xff]
      %v156 = vld [vmem:[%s139 + $0x40] sm:$0xff]
      %v157 = vld [vmem:[%s139 + $0x48] sm:$0xff]
      %v158 = vld [vmem:[%s139 + $0x50] sm:$0xff]
      %v159 = vld [vmem:[%s139 + $0x58] sm:$0xff]
      %v160 = vld [vmem:[%s139 + $0x60] sm:$0xff]
      %v161 = vld [vmem:[%s139 + $0x68] sm:$0xff]
      %v162 = vld [vmem:[%s139 + $0x70] sm:$0xff]
      %v163 = vld [vmem:[%s139 + $0x78] sm:$0xff]
      %v164 = vld [vmem:[%s139 + $0x80] sm:$0xff]
      %v165 = vld [vmem:[%s139 + $0x88] sm:$0xff]
      %v166 = vld [vmem:[%s139 + $0x90] sm:$0xff]
      %v167 = vld [vmem:[%s139 + $0x98] sm:$0xff]
      %v168 = vld [vmem:[%s139 + $0xa0] sm:$0xff]
      %v169 = vld [vmem:[%s139 + $0xa8] sm:$0xff]
      %v170 = vld [vmem:[%s139 + $0xb0] sm:$0xff]
      %v171 = vld [vmem:[%s139 + $0xb8] sm:$0xff]
      %v172 = vld [vmem:[%s139 + $0xc0] sm:$0xff]
      %v173 = vld [vmem:[%s139 + $0xc8] sm:$0xff]
      %v174 = vld [vmem:[%s139 + $0xd0] sm:$0xff]
      %v175 = vld [vmem:[%s139 + $0xd8] sm:$0xff]
      %v176 = vld [vmem:[%s139 + $0xe0] sm:$0xff]
      %v177 = vld [vmem:[%s139 + $0xe8] sm:$0xff]
      %v178 = vld [vmem:[%s139 + $0xf0] sm:$0xff]
      %v179 = vld [vmem:[%s139 + $0xf8] sm:$0xff]
      %vm180 = vcmask 523264
      %v181 = vsel %vm180, %v148, 0.0
      %v182 = vsel %vm180, %v149, 0.0
      %v183 = vadd.f32 %v181, %v182
      %v184 = vsel %vm180, %v150, 0.0
      %v185 = vadd.f32 %v183, %v184
      %v186 = vsel %vm180, %v151, 0.0
      %v187 = vadd.f32 %v185, %v186
      %v188 = vsel %vm180, %v152, 0.0
      %v189 = vadd.f32 %v187, %v188
      %v190 = vsel %vm180, %v153, 0.0
      %v191 = vadd.f32 %v189, %v190
      %v192 = vsel %vm180, %v154, 0.0
      %v193 = vadd.f32 %v191, %v192
      %v194 = vsel %vm180, %v155, 0.0
      %v195 = vadd.f32 %v193, %v194
      %v196 = vsel %vm180, %v156, 0.0
      %v197 = vadd.f32 %v195, %v196
      %v198 = vsel %vm180, %v157, 0.0
      %v199 = vadd.f32 %v197, %v198
      %v200 = vsel %vm180, %v158, 0.0
      %v201 = vadd.f32 %v199, %v200
      %v202 = vsel %vm180, %v159, 0.0
      %v203 = vadd.f32 %v201, %v202
      %v204 = vsel %vm180, %v160, 0.0
      %v205 = vadd.f32 %v203, %v204
      %v206 = vsel %vm180, %v161, 0.0
      %v207 = vadd.f32 %v205, %v206
      %v208 = vsel %vm180, %v162, 0.0
      %v209 = vadd.f32 %v207, %v208
      %v210 = vsel %vm180, %v163, 0.0
      %v211 = vadd.f32 %v209, %v210
      %v212 = vsel %vm180, %v164, 0.0
      %v213 = vadd.f32 %v211, %v212
      %v214 = vsel %vm180, %v165, 0.0
      %v215 = vadd.f32 %v213, %v214
      %v216 = vsel %vm180, %v166, 0.0
      %v217 = vadd.f32 %v215, %v216
      %v218 = vsel %vm180, %v167, 0.0
      %v219 = vadd.f32 %v217, %v218
      %v220 = vsel %vm180, %v168, 0.0
      %v221 = vadd.f32 %v219, %v220
      %v222 = vsel %vm180, %v169, 0.0
      %v223 = vadd.f32 %v221, %v222
      %v224 = vsel %vm180, %v170, 0.0
      %v225 = vadd.f32 %v223, %v224
      %v226 = vsel %vm180, %v171, 0.0
      %v227 = vadd.f32 %v225, %v226
      %v228 = vsel %vm180, %v172, 0.0
      %v229 = vadd.f32 %v227, %v228
      %v230 = vsel %vm180, %v173, 0.0
      %v231 = vadd.f32 %v229, %v230
      %v232 = vsel %vm180, %v174, 0.0
      %v233 = vadd.f32 %v231, %v232
      %v234 = vsel %vm180, %v175, 0.0
      %v235 = vadd.f32 %v233, %v234
      %v236 = vsel %vm180, %v176, 0.0
      %v237 = vadd.f32 %v235, %v236
      %v238 = vsel %vm180, %v177, 0.0
      %v239 = vadd.f32 %v237, %v238
      %v240 = vsel %vm180, %v178, 0.0
      %v241 = vadd.f32 %v239, %v240
      %v242 = vsel %vm180, %v179, 0.0
      %v243 = vadd.f32 %v241, %v242
      %v244 = vrot.slane %v243, 4
      %v245 = vadd.f32 %v243, %v244
      %v246 = vrot.slane %v245, 2
      %v247 = vadd.f32 %v245, %v246
      %v248 = vrot.slane %v247, 1
      %v249 = vadd.f32 %v247, %v248
      %v250 = vrcp.pop 256.0
      %v251 = vmul.f32 %v249, %v250
      %v252 = vsub.f32 %v148, %v251
      %v253 = vsub.f32 %v149, %v251
      %v254 = vsub.f32 %v150, %v251
      %v255 = vsub.f32 %v151, %v251
      %v256 = vsub.f32 %v152, %v251
      %v257 = vsub.f32 %v153, %v251
      %v258 = vsub.f32 %v154, %v251
      %v259 = vsub.f32 %v155, %v251
      %v260 = vsub.f32 %v156, %v251
      %v261 = vsub.f32 %v157, %v251
      %v262 = vsub.f32 %v158, %v251
      %v263 = vsub.f32 %v159, %v251
      %v264 = vsub.f32 %v160, %v251
      %v265 = vsub.f32 %v161, %v251
      %v266 = vsub.f32 %v162, %v251
      %v267 = vsub.f32 %v163, %v251
      %v268 = vsub.f32 %v164, %v251
      %v269 = vsub.f32 %v165, %v251
      %v270 = vsub.f32 %v166, %v251
      %v271 = vsub.f32 %v167, %v251
      %v272 = vsub.f32 %v168, %v251
      %v273 = vsub.f32 %v169, %v251
      %v274 = vsub.f32 %v170, %v251
      %v275 = vsub.f32 %v171, %v251
      %v276 = vsub.f32 %v172, %v251
      %v277 = vsub.f32 %v173, %v251
      %v278 = vsub.f32 %v174, %v251
      %v279 = vsub.f32 %v175, %v251
      %v280 = vsub.f32 %v176, %v251
      %v281 = vsub.f32 %v177, %v251
      %v282 = vsub.f32 %v178, %v251
      %v283 = vsub.f32 %v179, %v251
      %v284 = vmul.f32 %v252, %v252
      %v285 = vmul.f32 %v253, %v253
      %v286 = vmul.f32 %v254, %v254
      %v287 = vmul.f32 %v255, %v255
      %v288 = vmul.f32 %v256, %v256
      %v289 = vmul.f32 %v257, %v257
      %v290 = vmul.f32 %v258, %v258
      %v291 = vmul.f32 %v259, %v259
      %v292 = vmul.f32 %v260, %v260
      %v293 = vmul.f32 %v261, %v261
      %v294 = vmul.f32 %v262, %v262
      %v295 = vmul.f32 %v263, %v263
      %v296 = vmul.f32 %v264, %v264
      %v297 = vmul.f32 %v265, %v265
      %v298 = vmul.f32 %v266, %v266
      %v299 = vmul.f32 %v267, %v267
      %v300 = vmul.f32 %v268, %v268
      %v301 = vmul.f32 %v269, %v269
      %v302 = vmul.f32 %v270, %v270
      %v303 = vmul.f32 %v271, %v271
      %v304 = vmul.f32 %v272, %v272
      %v305 = vmul.f32 %v273, %v273
      %v306 = vmul.f32 %v274, %v274
      %v307 = vmul.f32 %v275, %v275
      %v308 = vmul.f32 %v276, %v276
      %v309 = vmul.f32 %v277, %v277
      %v310 = vmul.f32 %v278, %v278
      %v311 = vmul.f32 %v279, %v279
      %v312 = vmul.f32 %v280, %v280
      %v313 = vmul.f32 %v281, %v281
      %v314 = vmul.f32 %v282, %v282
      %v315 = vmul.f32 %v283, %v283
      %v316 = vsel %vm180, %v284, 0.0
      %v317 = vsel %vm180, %v285, 0.0
      %v318 = vadd.f32 %v316, %v317
      %v319 = vsel %vm180, %v286, 0.0
      %v320 = vadd.f32 %v318, %v319
      %v321 = vsel %vm180, %v287, 0.0
      %v322 = vadd.f32 %v320, %v321
      %v323 = vsel %vm180, %v288, 0.0
      %v324 = vadd.f32 %v322, %v323
      %v325 = vsel %vm180, %v289, 0.0
      %v326 = vadd.f32 %v324, %v325
      %v327 = vsel %vm180, %v290, 0.0
      %v328 = vadd.f32 %v326, %v327
      %v329 = vsel %vm180, %v291, 0.0
      %v330 = vadd.f32 %v328, %v329
      %v331 = vsel %vm180, %v292, 0.0
      %v332 = vadd.f32 %v330, %v331
      %v333 = vsel %vm180, %v293, 0.0
      %v334 = vadd.f32 %v332, %v333
      %v335 = vsel %vm180, %v294, 0.0
      %v336 = vadd.f32 %v334, %v335
      %v337 = vsel %vm180, %v295, 0.0
      %v338 = vadd.f32 %v336, %v337
      %v339 = vsel %vm180, %v296, 0.0
      %v340 = vadd.f32 %v338, %v339
      %v341 = vsel %vm180, %v297, 0.0
      %v342 = vadd.f32 %v340, %v341
      %v343 = vsel %vm180, %v298, 0.0
      %v344 = vadd.f32 %v342, %v343
      %v345 = vsel %vm180, %v299, 0.0
      %v346 = vadd.f32 %v344, %v345
      %v347 = vsel %vm180, %v300, 0.0
      %v348 = vadd.f32 %v346, %v347
      %v349 = vsel %vm180, %v301, 0.0
      %v350 = vadd.f32 %v348, %v349
      %v351 = vsel %vm180, %v302, 0.0
      %v352 = vadd.f32 %v350, %v351
      %v353 = vsel %vm180, %v303, 0.0
      %v354 = vadd.f32 %v352, %v353
      %v355 = vsel %vm180, %v304, 0.0
      %v356 = vadd.f32 %v354, %v355
      %v357 = vsel %vm180, %v305, 0.0
      %v358 = vadd.f32 %v356, %v357
      %v359 = vsel %vm180, %v306, 0.0
      %v360 = vadd.f32 %v358, %v359
      %v361 = vsel %vm180, %v307, 0.0
      %v362 = vadd.f32 %v360, %v361
      %v363 = vsel %vm180, %v308, 0.0
      %v364 = vadd.f32 %v362, %v363
      %v365 = vsel %vm180, %v309, 0.0
      %v366 = vadd.f32 %v364, %v365
      %v367 = vsel %vm180, %v310, 0.0
      %v368 = vadd.f32 %v366, %v367
      %v369 = vsel %vm180, %v311, 0.0
      %v370 = vadd.f32 %v368, %v369
      %v371 = vsel %vm180, %v312, 0.0
      %v372 = vadd.f32 %v370, %v371
      %v373 = vsel %vm180, %v313, 0.0
      %v374 = vadd.f32 %v372, %v373
      %v375 = vsel %vm180, %v314, 0.0
      %v376 = vadd.f32 %v374, %v375
      %v377 = vsel %vm180, %v315, 0.0
      %v378 = vadd.f32 %v376, %v377
      %v379 = vrot.slane %v378, 4
      %v380 = vadd.f32 %v378, %v379
      %v381 = vrot.slane %v380, 2
      %v382 = vadd.f32 %v380, %v381
      %v383 = vrot.slane %v382, 1
      %v384 = vadd.f32 %v382, %v383
      %v385 = vmul.f32 %v384, %v250
      %v386 = vadd.f32 %v385, 1e-05
      %v387 = vrsqrt.pop %v386
      %v388 = vmul.f32 %v252, %v387
      %v389 = vmul.f32 %v253, %v387
      %v390 = vmul.f32 %v254, %v387
      %v391 = vmul.f32 %v255, %v387
      %v392 = vmul.f32 %v256, %v387
      %v393 = vmul.f32 %v257, %v387
      %v394 = vmul.f32 %v258, %v387
      %v395 = vmul.f32 %v259, %v387
      %v396 = vmul.f32 %v260, %v387
      %v397 = vmul.f32 %v261, %v387
      %v398 = vmul.f32 %v262, %v387
      %v399 = vmul.f32 %v263, %v387
      %v400 = vmul.f32 %v264, %v387
      %v401 = vmul.f32 %v265, %v387
      %v402 = vmul.f32 %v266, %v387
      %v403 = vmul.f32 %v267, %v387
      %v404 = vmul.f32 %v268, %v387
      %v405 = vmul.f32 %v269, %v387
      %v406 = vmul.f32 %v270, %v387
      %v407 = vmul.f32 %v271, %v387
      %v408 = vmul.f32 %v272, %v387
      %v409 = vmul.f32 %v273, %v387
      %v410 = vmul.f32 %v274, %v387
      %v411 = vmul.f32 %v275, %v387
      %v412 = vmul.f32 %v276, %v387
      %v413 = vmul.f32 %v277, %v387
      %v414 = vmul.f32 %v278, %v387
      %v415 = vmul.f32 %v279, %v387
      %v416 = vmul.f32 %v280, %v387
      %v417 = vmul.f32 %v281, %v387
      %v418 = vmul.f32 %v282, %v387
      %v419 = vmul.f32 %v283, %v387
      %v420 = vmax.f32 %v388, 0.0
      %v421 = vmax.f32 %v389, 0.0
      %v422 = vmax.f32 %v390, 0.0
      %v423 = vmax.f32 %v391, 0.0
      %v424 = vmax.f32 %v392, 0.0
      %v425 = vmax.f32 %v393, 0.0
      %v426 = vmax.f32 %v394, 0.0
      %v427 = vmax.f32 %v395, 0.0
      %v428 = vmax.f32 %v396, 0.0
      %v429 = vmax.f32 %v397, 0.0
      %v430 = vmax.f32 %v398, 0.0
      %v431 = vmax.f32 %v399, 0.0
      %v432 = vmax.f32 %v400, 0.0
      %v433 = vmax.f32 %v401, 0.0
      %v434 = vmax.f32 %v402, 0.0
      %v435 = vmax.f32 %v403, 0.0
      %v436 = vmax.f32 %v404, 0.0
      %v437 = vmax.f32 %v405, 0.0
      %v438 = vmax.f32 %v406, 0.0
      %v439 = vmax.f32 %v407, 0.0
      %v440 = vmax.f32 %v408, 0.0
      %v441 = vmax.f32 %v409, 0.0
      %v442 = vmax.f32 %v410, 0.0
      %v443 = vmax.f32 %v411, 0.0
      %v444 = vmax.f32 %v412, 0.0
      %v445 = vmax.f32 %v413, 0.0
      %v446 = vmax.f32 %v414, 0.0
      %v447 = vmax.f32 %v415, 0.0
      %v448 = vmax.f32 %v416, 0.0
      %v449 = vmax.f32 %v417, 0.0
      %v450 = vmax.f32 %v418, 0.0
      %v451 = vmax.f32 %v419, 0.0
      %452 = vst.msk [vmem:[%s147] sm:$0xff] %vm180, %v420
      %453 = vst.msk [vmem:[%s147 + $0x8] sm:$0xff] %vm180, %v421
      %454 = vst.msk [vmem:[%s147 + $0x10] sm:$0xff] %vm180, %v422
      %455 = vst.msk [vmem:[%s147 + $0x18] sm:$0xff] %vm180, %v423
      %456 = vst.msk [vmem:[%s147 + $0x20] sm:$0xff] %vm180, %v424
      %457 = vst.msk [vmem:[%s147 + $0x28] sm:$0xff] %vm180, %v425
      %458 = vst.msk [vmem:[%s147 + $0x30] sm:$0xff] %vm180, %v426
      %459 = vst.msk [vmem:[%s147 + $0x38] sm:$0xff] %vm180, %v427
      %460 = vst.msk [vmem:[%s147 + $0x40] sm:$0xff] %vm180, %v428
      %461 = vst.msk [vmem:[%s147 + $0x48] sm:$0xff] %vm180, %v429
      %462 = vst.msk [vmem:[%s147 + $0x50] sm:$0xff] %vm180, %v430
      %463 = vst.msk [vmem:[%s147 + $0x58] sm:$0xff] %vm180, %v431
      %464 = vst.msk [vmem:[%s147 + $0x60] sm:$0xff] %vm180, %v432
      %465 = vst.msk [vmem:[%s147 + $0x68] sm:$0xff] %vm180, %v433
      %466 = vst.msk [vmem:[%s147 + $0x70] sm:$0xff] %vm180, %v434
      %467 = vst.msk [vmem:[%s147 + $0x78] sm:$0xff] %vm180, %v435
      %468 = vst.msk [vmem:[%s147 + $0x80] sm:$0xff] %vm180, %v436
      %469 = vst.msk [vmem:[%s147 + $0x88] sm:$0xff] %vm180, %v437
      %470 = vst.msk [vmem:[%s147 + $0x90] sm:$0xff] %vm180, %v438
      %471 = vst.msk [vmem:[%s147 + $0x98] sm:$0xff] %vm180, %v439
      %472 = vst.msk [vmem:[%s147 + $0xa0] sm:$0xff] %vm180, %v440
      %473 = vst.msk [vmem:[%s147 + $0xa8] sm:$0xff] %vm180, %v441
      %474 = vst.msk [vmem:[%s147 + $0xb0] sm:$0xff] %vm180, %v442
      %475 = vst.msk [vmem:[%s147 + $0xb8] sm:$0xff] %vm180, %v443
      %476 = vst.msk [vmem:[%s147 + $0xc0] sm:$0xff] %vm180, %v444
      %477 = vst.msk [vmem:[%s147 + $0xc8] sm:$0xff] %vm180, %v445
      %478 = vst.msk [vmem:[%s147 + $0xd0] sm:$0xff] %vm180, %v446
      %479 = vst.msk [vmem:[%s147 + $0xd8] sm:$0xff] %vm180, %v447
      %480 = vst.msk [vmem:[%s147 + $0xe0] sm:$0xff] %vm180, %v448
      %481 = vst.msk [vmem:[%s147 + $0xe8] sm:$0xff] %vm180, %v449
      %482 = vst.msk [vmem:[%s147 + $0xf0] sm:$0xff] %vm180, %v450
      %483 = vst.msk [vmem:[%s147 + $0xf8] sm:$0xff] %vm180, %v451
      %p484 = scmp.lt.s32.totalorder %s16, 1
      %s485 = scalar_select %p484, %s16, 1
      %p486 = scmp.lt.s32.totalorder %s17, 0
      %s487 = scalar_select %p486, %s17, 0
      %s488 = smul.addr %s485, 32
      %s489 = sadd.s32 %s487, %s488
      %s490 = smul.addr %s489, 8
      %s491 = scalar_lea.vmem %s1, %s490
      // Predicated region
      $region25: #{generator_forward.24} parent=23 // pred_check
        %p492 = pneg %p72
      $region26: #{generator_forward.24} parent=23 // pred_check_branch
        %494 = sbr.rel (%p492) target = $region28
      $region27: #{generator_forward.24} parent=23 // pred_region
        _
      $region28: #{generator_forward.24} parent=23 // pred_fallthru
        _
    $region24: #{generator_forward.24} parent=5 // pred_fallthru
      _
    %p495 = scmp.le.s32.totalorder 2, %s7
    // Predicated region
    $region29: #{generator_forward.24} parent=5 // pred_check
      %p496 = pneg %p495
    $region30: #{generator_forward.24} parent=5 // pred_check_branch
      %498 = sbr.rel (%p496) target = $region32
    $region31: #{generator_forward.24} parent=5 // pred_region
      %s499 = ssub.s32 %s7, 2
      // Predicated region
      $region33: #{generator_forward.24} parent=31 // pred_check
        %p500 = pneg %p78
      $region34: #{generator_forward.24} parent=31 // pred_check_branch
        %502 = sbr.rel (%p500) target = $region36
      $region35: #{generator_forward.24} parent=31 // pred_region
        %p503 = scmp.lt.s32.totalorder %s18, 1
        %s504 = scalar_select %p503, %s18, 1
        %p505 = scmp.lt.s32.totalorder %s19, 0
        %s506 = scalar_select %p505, %s19, 0
        %s507 = smul.addr %s504, 32
        %s508 = sadd.s32 %s506, %s507
        %s509 = smul.addr %s508, 8
        %s510 = scalar_lea.vmem %s1, %s509
      $region36: #{generator_forward.24} parent=31 // pred_fallthru
        _
    $region32: #{generator_forward.24} parent=5 // pred_fallthru
      _
  $region6: #{generator_forward.24} parent=0 // loop_footer
    %s11 = sadd.s32 1, %s7
  $region7: #{generator_forward.24} parent=0 // loop_footer_branch
    %6 = sbr.rel target = $region3
  $region8: #{generator_forward.24} parent=0 // loop_exit
    _

// kernel: generator_forward.23
$region0: #{generator_forward.23}
  #allocation0 [shape = 'u32[]', space=smem, size = 0x4, offset = 0x4, fixed_abs, tag = 'smem constant byte address 0x4 - core index']
  #allocation1 [shape = 'u32[144,128]{1,0:T(1,128)}', space=vmem, size = 0x12000, scoped, tag = 'internal scratch']
  #allocation2 [shape = 'f32[256,128]{1,0:T(8,128)}', space=vmem, size = 0x20000, scoped, tag = 'scratch operand']
  %s0 = inlined_call_operand.vmem [shape: bf16[512,256], index: 0, kind: input, shape index: {}]
  %s1 = inlined_call_operand.vmem [shape: bf16[256,128], index: 1, kind: input, shape index: {}]
  %s2 = inlined_call_operand.vmem [shape: f32[1,128], index: 2, kind: input, shape index: {}]
  %s3 = inlined_call_operand.vmem [shape: f32[512,128], index: 3, kind: output, shape index: {}]
  %s4 = sld [smem:[#allocation0]]
  $region53: #{generator_forward.23} parent=0
    _
  %s6 = ssub.s32 1, %s4
  %s7 = scalar_select 0, %s6, %s4
  loop: start=0, step=1, limit=4
  $region2: #{generator_forward.23} parent=0 // loop_pre_header
    _
  $region3: #{generator_forward.23} parent=0 // loop_header
    %s9 = sphi 0, %s13
    %p10 = scmp.ge.s32.totalorder %s9, 4
    %s16 = sphi 0, %s35
    %s17 = sphi 0, %s31
    %s18 = sphi 0, %s27
    %s19 = sphi 0, %s16
    %s20 = sphi 0, %s17
    %s21 = sphi 0, %s18
    %s22 = sphi 0, %s19
    %s23 = sphi 0, %s20
    %s24 = sphi 0, %s21
    %s40 = sphi 0, %s42
    %s43 = sphi 0, %s40
    %s44 = sphi 0, %s43
    %s60 = sphi 0, %s44
    %s68 = sphi 0, %s70
    %s71 = sphi 0, %s68
    %s72 = sphi 0, %s71
    %s88 = sphi 0, %s72
    %s94 = sphi 0, %s96
    %s97 = sphi 0, %s94
    %s98 = sphi 0, %s97
    %s114 = sphi 0, %s98
    %s122 = sphi 0, %s124
    %s125 = sphi 0, %s122
    %s126 = sphi 0, %s125
    %s142 = sphi 0, %s126
  $region4: #{generator_forward.23} parent=0 // loop_header_branch
    %12 = sbr.rel (%p10) target = $region8
  $region5: #{generator_forward.23} parent=0 // loop_body
    %s14 = ssub.s32 %s9, 1
    %s15 = ssub.s32 %s9, 2
    %s25 = sadd.s32 1, %s18
    %p26 = scmp.ge.s32.totalorder %s25, 1
    %s27 = scalar_select %p26, 0, %s25
    %s28 = sadd.s32 1, %s17
    %s29 = scalar_select %p26, %s28, %s17
    %p30 = scmp.ge.s32.totalorder %s29, 1
    %s31 = scalar_select %p30, 0, %s29
    %s32 = sadd.s32 1, %s16
    %s33 = scalar_select %p30, %s32, %s16
    %p34 = scmp.ge.s32.totalorder %s33, 2
    %s35 = scalar_select %p34, 0, %s33
    %s36 = ssub.s32 %s16, %s35
    %s37 = ssub.s32 %s18, %s27
    %s38 = sor.u32 %s36, %s37
    %p39 = scmp.eq.s32.totalorder %s38, 0
    %s41 = sadd.s32 %s40, 1
    %s42 = scalar_select %p39, %s40, %s41
    %p45 = pneg %p39
    %p46 = scmp.eq.s32.totalorder %s9, 1
    %p47 = por %p45, %p46
    %p48 = scmp.ne.s32.totalorder %s40, %s43
    %p49 = scmp.eq.s32.totalorder %s9, 0
    %p50 = por %p48, %p49
    %p51 = scmp.ne.s32.totalorder %s40, %s43
    %p52 = scmp.eq.s32.totalorder %s14, 1
    %p53 = por %p51, %p52
    %p54 = scmp.ne.s32.totalorder %s43, %s44
    %p55 = scmp.eq.s32.totalorder %s14, 0
    %p56 = por %p54, %p55
    %p57 = scmp.ne.s32.totalorder %s43, %s44
    %p58 = scmp.eq.s32.totalorder %s15, 1
    %p59 = por %p57, %p58
    %p61 = scmp.ne.s32.totalorder %s44, %s60
    %p62 = scmp.eq.s32.totalorder %s15, 0
    %p63 = por %p61, %p62
    %s64 = ssub.s32 %s18, %s27
    %s65 = ssub.s32 %s17, %s31
    %s66 = sor.u32 %s64, %s65
    %p67 = scmp.eq.s32.totalorder %s66, 0
    %s69 = sadd.s32 %s68, 1
    %s70 = scalar_select %p67, %s68, %s69
    %p73 = pneg %p67
    %p74 = scmp.eq.s32.totalorder %s9, 1
    %p75 = por %p73, %p74
    %p76 = scmp.ne.s32.totalorder %s68, %s71
    %p77 = scmp.eq.s32.totalorder %s9, 0
    %p78 = por %p76, %p77
    %p79 = scmp.ne.s32.totalorder %s68, %s71
    %p80 = scmp.eq.s32.totalorder %s14, 1
    %p81 = por %p79, %p80
    %p82 = scmp.ne.s32.totalorder %s71, %s72
    %p83 = scmp.eq.s32.totalorder %s14, 0
    %p84 = por %p82, %p83
    %p85 = scmp.ne.s32.totalorder %s71, %s72
    %p86 = scmp.eq.s32.totalorder %s15, 1
    %p87 = por %p85, %p86
    %p89 = scmp.ne.s32.totalorder %s72, %s88
    %p90 = scmp.eq.s32.totalorder %s15, 0
    %p91 = por %p89, %p90
    %s92 = ssub.s32 %s17, %s31
    %p93 = scmp.eq.s32.totalorder %s92, 0
    %s95 = sadd.s32 %s94, 1
    %s96 = scalar_select %p93, %s94, %s95
    %p99 = pneg %p93
    %p100 = scmp.eq.s32.totalorder %s9, 1
    %p101 = por %p99, %p100
    %p102 = scmp.ne.s32.totalorder %s94, %s97
    %p103 = scmp.eq.s32.totalorder %s9, 0
    %p104 = por %p102, %p103
    %p105 = scmp.ne.s32.totalorder %s94, %s97
    %p106 = scmp.eq.s32.totalorder %s14, 1
    %p107 = por %p105, %p106
    %p108 = scmp.ne.s32.totalorder %s97, %s98
    %p109 = scmp.eq.s32.totalorder %s14, 0
    %p110 = por %p108, %p109
    %p111 = scmp.ne.s32.totalorder %s97, %s98
    %p112 = scmp.eq.s32.totalorder %s15, 1
    %p113 = por %p111, %p112
    %p115 = scmp.ne.s32.totalorder %s98, %s114
    %p116 = scmp.eq.s32.totalorder %s15, 0
    %p117 = por %p115, %p116
    %s118 = ssub.s32 %s16, %s35
    %s119 = ssub.s32 %s17, %s31
    %s120 = sor.u32 %s118, %s119
    %p121 = scmp.eq.s32.totalorder %s120, 0
    %s123 = sadd.s32 %s122, 1
    %s124 = scalar_select %p121, %s122, %s123
    %p127 = pneg %p121
    %p128 = scmp.eq.s32.totalorder %s9, 1
    %p129 = por %p127, %p128
    %p130 = scmp.ne.s32.totalorder %s122, %s125
    %p131 = scmp.eq.s32.totalorder %s9, 0
    %p132 = por %p130, %p131
    %p133 = scmp.ne.s32.totalorder %s122, %s125
    %p134 = scmp.eq.s32.totalorder %s14, 1
    %p135 = por %p133, %p134
    %p136 = scmp.ne.s32.totalorder %s125, %s126
    %p137 = scmp.eq.s32.totalorder %s14, 0
    %p138 = por %p136, %p137
    %p139 = scmp.ne.s32.totalorder %s125, %s126
    %p140 = scmp.eq.s32.totalorder %s15, 1
    %p141 = por %p139, %p140
    %p143 = scmp.ne.s32.totalorder %s126, %s142
    %p144 = scmp.eq.s32.totalorder %s15, 0
    %p145 = por %p143, %p144
    %p146 = scmp.le.s32.totalorder 1, %s9
    %p147 = scmp.lt.s32.totalorder %s9, 3
    %p148 = pnand %p146, %p147
    %p149 = pneg %p148
    // Predicated region
    $region9: #{generator_forward.23} parent=5 // pred_check
      _
    $region10: #{generator_forward.23} parent=5 // pred_check_branch
      %151 = sbr.rel (%p148) target = $region12
    $region11: #{generator_forward.23} parent=5 // pred_region
      %s152 = ssub.s32 %s9, 1
      // Predicated region
      $region13: #{generator_forward.23} parent=11 // pred_check
        %p153 = pneg %p84
      $region14: #{generator_forward.23} parent=11 // pred_check_branch
        %155 = sbr.rel (%p153) target = $region16
      $region15: #{generator_forward.23} parent=11 // pred_region
        %s156 = smul.u32 32, %s21
        %p157 = scmp.lt.s32.totalorder %s156, 31
        %s158 = scalar_select %p157, %s156, 31
        %p159 = scmp.lt.s32.totalorder %s20, 0
        %s160 = scalar_select %p159, %s20, 0
        %s161 = sadd.s32 %s160, %s158
        %s162 = smul.addr %s161, 4
        %s163 = scalar_lea.vmem %s1, %s162
        %s164 = smul.u32 32, %s21
      $region16: #{generator_forward.23} parent=11 // pred_fallthru
        _
      // Predicated region
      $region17: #{generator_forward.23} parent=11 // pred_check
        %p165 = pneg %p110
      $region18: #{generator_forward.23} parent=11 // pred_check_branch
        %167 = sbr.rel (%p165) target = $region20
      $region19: #{generator_forward.23} parent=11 // pred_region
        %p168 = scmp.lt.s32.totalorder %s20, 0
        %s169 = scalar_select %p168, %s20, 0
        %s170 = scalar_lea.vmem %s2, %s169
      $region20: #{generator_forward.23} parent=11 // pred_fallthru
        _
    $region12: #{generator_forward.23} parent=5 // pred_fallthru
      _
    %p171 = scmp.lt.s32.totalorder %s9, 2
    // Predicated region
    $region21: #{generator_forward.23} parent=5 // pred_check
      %p172 = pneg %p171
    $region22: #{generator_forward.23} parent=5 // pred_check_branch
      %174 = sbr.rel (%p172) target = $region24
    $region23: #{generator_forward.23} parent=5 // pred_region
      // Predicated region
      $region25: #{generator_forward.23} parent=23 // pred_check
        %p175 = pneg %p50
      $region26: #{generator_forward.23} parent=23 // pred_check_branch
        %177 = sbr.rel (%p175) target = $region28
      $region27: #{generator_forward.23} parent=23 // pred_region
        %s178 = smul.u32 32, %s16
        %s179 = smul.u32 2, %s18
        %p180 = scmp.lt.s32.totalorder %s178, 63
        %s181 = scalar_select %p180, %s178, 63
        %p182 = scmp.lt.s32.totalorder %s179, 1
        %s183 = scalar_select %p182, %s179, 1
        %s184 = smul.addr %s181, 2
        %s185 = sadd.s32 %s183, %s184
        %s186 = smul.addr %s185, 4
        %s187 = scalar_lea.vmem %s0, %s186
        %s188 = smul.u32 32, %s16
        %s189 = smul.u32 2, %s18
      $region28: #{generator_forward.23} parent=23 // pred_fallthru
        _
    $region24: #{generator_forward.23} parent=5 // pred_fallthru
      _
    %p190 = scmp.le.s32.totalorder 1, %s9
    %p191 = scmp.lt.s32.totalorder %s9, 3
    %p192 = pnand %p190, %p191
    %p193 = pneg %p192
    // Predicated region
    $region29: #{generator_forward.23} parent=5 // pred_check
      _
    $region30: #{generator_forward.23} parent=5 // pred_check_branch
      %195 = sbr.rel (%p192) target = $region32
    $region31: #{generator_forward.23} parent=5 // pred_region
      %s196 = ssub.s32 %s9, 1
      %s197 = smul.u32 32, %s19
      %s198 = smul.u32 2, %s21
      %p199 = scmp.lt.s32.totalorder %s197, 63
      %s200 = scalar_select %p199, %s197, 63
      %p201 = scmp.lt.s32.totalorder %s198, 1
      %s202 = scalar_select %p201, %s198, 1
      %s203 = smul.addr %s200, 2
      %s204 = sadd.s32 %s202, %s203
      %s205 = smul.addr %s204, 4
      %s206 = scalar_lea.vmem %s0, %s205
      %p207 = pneg %p56
      %p208 = pneg %p53
      %s209 = smul.u32 32, %s21
      %p210 = scmp.lt.s32.totalorder %s209, 31
      %s211 = scalar_select %p210, %s209, 31
      %p212 = scmp.lt.s32.totalorder %s20, 0
      %s213 = scalar_select %p212, %s20, 0
      %s214 = sadd.s32 %s213, %s211
      %s215 = smul.addr %s214, 4
      %s216 = scalar_lea.vmem %s1, %s215
      %p217 = pneg %p84
      %p218 = pneg %p81
      %p219 = scmp.lt.s32.totalorder %s20, 0
      %s220 = scalar_select %p219, %s20, 0
      %s221 = scalar_lea.vmem %s2, %s220
      %p222 = pneg %p110
      %p223 = pneg %p107
      %p224 = pneg %p138
      %p225 = pneg %p135
      %s226 = smul.u32 32, %s19
      %p227 = scmp.lt.s32.totalorder %s226, 63
      %s228 = scalar_select %p227, %s226, 63
      %p229 = scmp.lt.s32.totalorder %s20, 0
      %s230 = scalar_select %p229, %s20, 0
      %s231 = sadd.s32 %s230, %s228
      %s232 = smul.addr %s231, 8
      %s233 = scalar_lea.vmem %s3, %s232
      %s234 = smul.u32 32, %s19
      %s235 = smul.u32 2, %s21
      %p236 = scmp.lt.s32.totalorder %s234, 63
      %s237 = scalar_select %p236, %s234, 63
      %p238 = scmp.lt.s32.totalorder %s235, 1
      %s239 = scalar_select %p238, %s235, 1
      %s240 = smul.addr %s237, 2
      %s241 = sadd.s32 %s239, %s240
      %s242 = smul.addr %s241, 4
      %s243 = scalar_lea.vmem %s0, %s242
      %s244 = smul.u32 32, %s19
      %s245 = smul.u32 2, %s21
      %s246 = smul.u32 32, %s21
      %p247 = scmp.lt.s32.totalorder %s246, 31
      %s248 = scalar_select %p247, %s246, 31
      %p249 = scmp.lt.s32.totalorder %s20, 0
      %s250 = scalar_select %p249, %s20, 0
      %s251 = sadd.s32 %s250, %s248
      %s252 = smul.addr %s251, 4
      %s253 = scalar_lea.vmem %s1, %s252
      %s254 = smul.u32 32, %s21
      %p255 = scmp.lt.s32.totalorder %s20, 0
      %s256 = scalar_select %p255, %s20, 0
      %s257 = scalar_lea.vmem %s2, %s256
      %s258 = smul.u32 32, %s19
      %p259 = scmp.lt.s32.totalorder %s258, 63
      %s260 = scalar_select %p259, %s258, 63
      %p261 = scmp.lt.s32.totalorder %s20, 0
      %s262 = scalar_select %p261, %s20, 0
      %s263 = sadd.s32 %s262, %s260
      %s264 = smul.addr %s263, 8
      %s265 = scalar_lea.vmem %s3, %s264
      %s266 = smul.u32 32, %s19
      %p268 = scmp.eq.s32.totalorder %s21, 0
      // Predicated region
      $region33: #{generator_forward.23} parent=31 // pred_check
        %p269 = pneg %p268
      $region34: #{generator_forward.23} parent=31 // pred_check_branch
        %271 = sbr.rel (%p269) target = $region36
      $region35: #{generator_forward.23} parent=31 // pred_region
        %272 = vst [vmem:[#allocation2] sm:$0xff] 0.0
        %273 = vst [vmem:[#allocation2 + $0x8] sm:$0xff] 0.0
        %274 = vst [vmem:[#allocation2 + $0x10] sm:$0xff] 0.0
        %275 = vst [vmem:[#allocation2 + $0x18] sm:$0xff] 0.0
        %276 = vst [vmem:[#allocation2 + $0x20] sm:$0xff] 0.0
        %277 = vst [vmem:[#allocation2 + $0x28] sm:$0xff] 0.0
        %278 = vst [vmem:[#allocation2 + $0x30] sm:$0xff] 0.0
        %279 = vst [vmem:[#allocation2 + $0x38] sm:$0xff] 0.0
        %280 = vst [vmem:[#allocation2 + $0x40] sm:$0xff] 0.0
        %281 = vst [vmem:[#allocation2 + $0x48] sm:$0xff] 0.0
        %282 = vst [vmem:[#allocation2 + $0x50] sm:$0xff] 0.0
        %283 = vst [vmem:[#allocation2 + $0x58] sm:$0xff] 0.0
        %284 = vst [vmem:[#allocation2 + $0x60] sm:$0xff] 0.0
        %285 = vst [vmem:[#allocation2 + $0x68] sm:$0xff] 0.0
        %286 = vst [vmem:[#allocation2 + $0x70] sm:$0xff] 0.0
        %287 = vst [vmem:[#allocation2 + $0x78] sm:$0xff] 0.0
        %288 = vst [vmem:[#allocation2 + $0x80] sm:$0xff] 0.0
        %289 = vst [vmem:[#allocation2 + $0x88] sm:$0xff] 0.0
        %290 = vst [vmem:[#allocation2 + $0x90] sm:$0xff] 0.0
        %291 = vst [vmem:[#allocation2 + $0x98] sm:$0xff] 0.0
        %292 = vst [vmem:[#allocation2 + $0xa0] sm:$0xff] 0.0
        %293 = vst [vmem:[#allocation2 + $0xa8] sm:$0xff] 0.0
        %294 = vst [vmem:[#allocation2 + $0xb0] sm:$0xff] 0.0
        %295 = vst [vmem:[#allocation2 + $0xb8] sm:$0xff] 0.0
        %296 = vst [vmem:[#allocation2 + $0xc0] sm:$0xff] 0.0
        %297 = vst [vmem:[#allocation2 + $0xc8] sm:$0xff] 0.0
        %298 = vst [vmem:[#allocation2 + $0xd0] sm:$0xff] 0.0
        %299 = vst [vmem:[#allocation2 + $0xd8] sm:$0xff] 0.0
        %300 = vst [vmem:[#allocation2 + $0xe0] sm:$0xff] 0.0
        %301 = vst [vmem:[#allocation2 + $0xe8] sm:$0xff] 0.0
        %302 = vst [vmem:[#allocation2 + $0xf0] sm:$0xff] 0.0
        %303 = vst [vmem:[#allocation2 + $0xf8] sm:$0xff] 0.0
      $region36: #{generator_forward.23} parent=31 // pred_fallthru
        _
      %v304 = vld [vmem:[#allocation2] sm:$0xff]
      %v305 = vld [vmem:[#allocation2 + $0x8] sm:$0xff]
      %v306 = vld [vmem:[#allocation2 + $0x10] sm:$0xff]
      %v307 = vld [vmem:[#allocation2 + $0x18] sm:$0xff]
      %v308 = vld [vmem:[#allocation2 + $0x20] sm:$0xff]
      %v309 = vld [vmem:[#allocation2 + $0x28] sm:$0xff]
      %v310 = vld [vmem:[#allocation2 + $0x30] sm:$0xff]
      %v311 = vld [vmem:[#allocation2 + $0x38] sm:$0xff]
      %v312 = vld [vmem:[#allocation2 + $0x40] sm:$0xff]
      %v313 = vld [vmem:[#allocation2 + $0x48] sm:$0xff]
      %v314 = vld [vmem:[#allocation2 + $0x50] sm:$0xff]
      %v315 = vld [vmem:[#allocation2 + $0x58] sm:$0xff]
      %v316 = vld [vmem:[#allocation2 + $0x60] sm:$0xff]
      %v317 = vld [vmem:[#allocation2 + $0x68] sm:$0xff]
      %v318 = vld [vmem:[#allocation2 + $0x70] sm:$0xff]
      %v319 = vld [vmem:[#allocation2 + $0x78] sm:$0xff]
      %v320 = vld [vmem:[#allocation2 + $0x80] sm:$0xff]
      %v321 = vld [vmem:[#allocation2 + $0x88] sm:$0xff]
      %v322 = vld [vmem:[#allocation2 + $0x90] sm:$0xff]
      %v323 = vld [vmem:[#allocation2 + $0x98] sm:$0xff]
      %v324 = vld [vmem:[#allocation2 + $0xa0] sm:$0xff]
      %v325 = vld [vmem:[#allocation2 + $0xa8] sm:$0xff]
      %v326 = vld [vmem:[#allocation2 + $0xb0] sm:$0xff]
      %v327 = vld [vmem:[#allocation2 + $0xb8] sm:$0xff]
      %v328 = vld [vmem:[#allocation2 + $0xc0] sm:$0xff]
      %v329 = vld [vmem:[#allocation2 + $0xc8] sm:$0xff]
      %v330 = vld [vmem:[#allocation2 + $0xd0] sm:$0xff]
      %v331 = vld [vmem:[#allocation2 + $0xd8] sm:$0xff]
      %v332 = vld [vmem:[#allocation2 + $0xe0] sm:$0xff]
      %v333 = vld [vmem:[#allocation2 + $0xe8] sm:$0xff]
      %v334 = vld [vmem:[#allocation2 + $0xf0] sm:$0xff]
      %v335 = vld [vmem:[#allocation2 + $0xf8] sm:$0xff]
      %v336 = vld [vmem:[%s243] sm:$0xff]
      %v337 = vld [vmem:[%s243 + $0x8] sm:$0xff]
      %v338 = vld [vmem:[%s243 + $0x10] sm:$0xff]
      %v339 = vld [vmem:[%s243 + $0x18] sm:$0xff]
      %v340 = vld [vmem:[%s243 + $0x20] sm:$0xff]
      %v341 = vld [vmem:[%s243 + $0x28] sm:$0xff]
      %v342 = vld [vmem:[%s243 + $0x30] sm:$0xff]
      %v343 = vld [vmem:[%s243 + $0x38] sm:$0xff]
      %v344 = vld [vmem:[%s243 + $0x40] sm:$0xff]
      %v345 = vld [vmem:[%s243 + $0x48] sm:$0xff]
      %v346 = vld [vmem:[%s243 + $0x50] sm:$0xff]
      %v347 = vld [vmem:[%s243 + $0x58] sm:$0xff]
      %v348 = vld [vmem:[%s243 + $0x60] sm:$0xff]
      %v349 = vld [vmem:[%s243 + $0x68] sm:$0xff]
      %v350 = vld [vmem:[%s243 + $0x70] sm:$0xff]
      %v351 = vld [vmem:[%s243 + $0x78] sm:$0xff]
      %v352 = vld [vmem:[%s243 + $0x80] sm:$0xff]
      %v353 = vld [vmem:[%s243 + $0x88] sm:$0xff]
      %v354 = vld [vmem:[%s243 + $0x90] sm:$0xff]
      %v355 = vld [vmem:[%s243 + $0x98] sm:$0xff]
      %v356 = vld [vmem:[%s243 + $0xa0] sm:$0xff]
      %v357 = vld [vmem:[%s243 + $0xa8] sm:$0xff]
      %v358 = vld [vmem:[%s243 + $0xb0] sm:$0xff]
      %v359 = vld [vmem:[%s243 + $0xb8] sm:$0xff]
      %v360 = vld [vmem:[%s243 + $0xc0] sm:$0xff]
      %v361 = vld [vmem:[%s243 + $0xc8] sm:$0xff]
      %v362 = vld [vmem:[%s243 + $0xd0] sm:$0xff]
      %v363 = vld [vmem:[%s243 + $0xd8] sm:$0xff]
      %v364 = vld [vmem:[%s243 + $0xe0] sm:$0xff]
      %v365 = vld [vmem:[%s243 + $0xe8] sm:$0xff]
      %v366 = vld [vmem:[%s243 + $0xf0] sm:$0xff]
      %v367 = vld [vmem:[%s243 + $0xf8] sm:$0xff]
      %v368 = vld [vmem:[%s253] sm:$0xf]
      %v369 = vld [vmem:[%s253 + $0x4] sm:$0xf]
      %v370 = vld [vmem:[%s253 + $0x8] sm:$0xf]
      %v371 = vld [vmem:[%s253 + $0xc] sm:$0xf]
      %v372 = vld [vmem:[%s253 + $0x10] sm:$0xf]
      %v373 = vld [vmem:[%s253 + $0x14] sm:$0xf]
      %v374 = vld [vmem:[%s253 + $0x18] sm:$0xf]
      %v375 = vld [vmem:[%s253 + $0x1c] sm:$0xf]
      %v376 = vld [vmem:[%s253 + $0x20] sm:$0xf]
      %v377 = vld [vmem:[%s253 + $0x24] sm:$0xf]
      %v378 = vld [vmem:[%s253 + $0x28] sm:$0xf]
      %v379 = vld [vmem:[%s253 + $0x2c] sm:$0xf]
      %v380 = vld [vmem:[%s253 + $0x30] sm:$0xf]
      %v381 = vld [vmem:[%s253 + $0x34] sm:$0xf]
      %v382 = vld [vmem:[%s253 + $0x38] sm:$0xf]
      %v383 = vld [vmem:[%s253 + $0x3c] sm:$0xf]
      %v384 = vld [vmem:[%s253 + $0x40] sm:$0xf]
      %v385 = vld [vmem:[%s253 + $0x44] sm:$0xf]
      %v386 = vld [vmem:[%s253 + $0x48] sm:$0xf]
      %v387 = vld [vmem:[%s253 + $0x4c] sm:$0xf]
      %v388 = vld [vmem:[%s253 + $0x50] sm:$0xf]
      %v389 = vld [vmem:[%s253 + $0x54] sm:$0xf]
      %v390 = vld [vmem:[%s253 + $0x58] sm:$0xf]
      %v391 = vld [vmem:[%s253 + $0x5c] sm:$0xf]
      %v392 = vld [vmem:[%s253 + $0x60] sm:$0xf]
      %v393 = vld [vmem:[%s253 + $0x64] sm:$0xf]
      %v394 = vld [vmem:[%s253 + $0x68] sm:$0xf]
      %v395 = vld [vmem:[%s253 + $0x6c] sm:$0xf]
      %v396 = vld [vmem:[%s253 + $0x70] sm:$0xf]
      %v397 = vld [vmem:[%s253 + $0x74] sm:$0xf]
      %v398 = vld [vmem:[%s253 + $0x78] sm:$0xf]
      %v399 = vld [vmem:[%s253 + $0x7c] sm:$0xf]
      %v432 = vunpack.c.l.b16 %v336
      %v433 = vunpack.c.h.b16 %v336
      %v434 = vunpack.c.l.b16 %v337
      %v435 = vunpack.c.h.b16 %v337
      %v436 = vunpack.c.l.b16 %v338
      %v437 = vunpack.c.h.b16 %v338
      %v438 = vunpack.c.l.b16 %v339
      %v439 = vunpack.c.h.b16 %v339
      %v440 = vunpack.c.l.b16 %v340
      %v441 = vunpack.c.h.b16 %v340
      %v442 = vunpack.c.l.b16 %v341
      %v443 = vunpack.c.h.b16 %v341
      %v444 = vunpack.c.l.b16 %v342
      %v445 = vunpack.c.h.b16 %v342
      %v446 = vunpack.c.l.b16 %v343
      %v447 = vunpack.c.h.b16 %v343
      %v448 = vunpack.c.l.b16 %v344
      %v449 = vunpack.c.h.b16 %v344
      %v450 = vunpack.c.l.b16 %v345
      %v451 = vunpack.c.h.b16 %v345
      %v452 = vunpack.c.l.b16 %v346
      %v453 = vunpack.c.h.b16 %v346
      %v454 = vunpack.c.l.b16 %v347
      %v455 = vunpack.c.h.b16 %v347
      %v456 = vunpack.c.l.b16 %v348
      %v457 = vunpack.c.h.b16 %v348
      %v458 = vunpack.c.l.b16 %v349
      %v459 = vunpack.c.h.b16 %v349
      %v460 = vunpack.c.l.b16 %v350
      %v461 = vunpack.c.h.b16 %v350
      %v462 = vunpack.c.l.b16 %v351
      %v463 = vunpack.c.h.b16 %v351
      %v464 = vunpack.c.l.b16 %v352
      %v465 = vunpack.c.h.b16 %v352
      %v466 = vunpack.c.l.b16 %v353
      %v467 = vunpack.c.h.b16 %v353
      %v468 = vunpack.c.l.b16 %v354
      %v469 = vunpack.c.h.b16 %v354
      %v470 = vunpack.c.l.b16 %v355
      %v471 = vunpack.c.h.b16 %v355
      %v472 = vunpack.c.l.b16 %v356
      %v473 = vunpack.c.h.b16 %v356
      %v474 = vunpack.c.l.b16 %v357
      %v475 = vunpack.c.h.b16 %v357
      %v476 = vunpack.c.l.b16 %v358
      %v477 = vunpack.c.h.b16 %v358
      %v478 = vunpack.c.l.b16 %v359
      %v479 = vunpack.c.h.b16 %v359
      %v480 = vunpack.c.l.b16 %v360
      %v481 = vunpack.c.h.b16 %v360
      %v482 = vunpack.c.l.b16 %v361
      %v483 = vunpack.c.h.b16 %v361
      %v484 = vunpack.c.l.b16 %v362
      %v485 = vunpack.c.h.b16 %v362
      %v486 = vunpack.c.l.b16 %v363
      %v487 = vunpack.c.h.b16 %v363
      %v488 = vunpack.c.l.b16 %v364
      %v489 = vunpack.c.h.b16 %v364
      %v490 = vunpack.c.l.b16 %v365
      %v491 = vunpack.c.h.b16 %v365
      %v492 = vunpack.c.l.b16 %v366
      %v493 = vunpack.c.h.b16 %v366
      %v494 = vunpack.c.l.b16 %v367
      %v495 = vunpack.c.h.b16 %v367
      %v496 = vpack.c.b16 %v434, %v432
      %v497 = vpack.c.b16 %v435, %v433
      %v498 = vpack.c.b16 %v438, %v436
      %v499 = vpack.c.b16 %v439, %v437
      %v500 = vpack.c.b16 %v442, %v440
      %v501 = vpack.c.b16 %v443, %v441
      %v502 = vpack.c.b16 %v446, %v444
      %v503 = vpack.c.b16 %v447, %v445
      %v504 = vpack.c.b16 %v450, %v448
      %v505 = vpack.c.b16 %v451, %v449
      %v506 = vpack.c.b16 %v454, %v452
      %v507 = vpack.c.b16 %v455, %v453
      %v508 = vpack.c.b16 %v458, %v456
      %v509 = vpack.c.b16 %v459, %v457
      %v510 = vpack.c.b16 %v462, %v460
      %v511 = vpack.c.b16 %v463, %v461
      %v512 = vpack.c.b16 %v466, %v464
      %v513 = vpack.c.b16 %v467, %v465
      %v514 = vpack.c.b16 %v470, %v468
      %v515 = vpack.c.b16 %v471, %v469
      %v516 = vpack.c.b16 %v474, %v472
      %v517 = vpack.c.b16 %v475, %v473
      %v518 = vpack.c.b16 %v478, %v476
      %v519 = vpack.c.b16 %v479, %v477
      %v520 = vpack.c.b16 %v482, %v480
      %v521 = vpack.c.b16 %v483, %v481
      %v522 = vpack.c.b16 %v486, %v484
      %v523 = vpack.c.b16 %v487, %v485
      %v524 = vpack.c.b16 %v490, %v488
      %v525 = vpack.c.b16 %v491, %v489
      %v526 = vpack.c.b16 %v494, %v492
      %v527 = vpack.c.b16 %v495, %v493
      %v592 = vunpack.c.l.b16 %v368
      %v593 = vunpack.c.l.b16 %v369
      %v594 = vunpack.c.l.b16 %v370
      %v595 = vunpack.c.l.b16 %v371
      %v596 = vunpack.c.l.b16 %v372
      %v597 = vunpack.c.l.b16 %v373
      %v598 = vunpack.c.l.b16 %v374
      %v599 = vunpack.c.l.b16 %v375
      %v600 = vunpack.c.l.b16 %v376
      %v601 = vunpack.c.l.b16 %v377
      %v602 = vunpack.c.l.b16 %v378
      %v603 = vunpack.c.l.b16 %v379
      %v604 = vunpack.c.l.b16 %v380
      %v605 = vunpack.c.l.b16 %v381
      %v606 = vunpack.c.l.b16 %v382
      %v607 = vunpack.c.l.b16 %v383
      %v608 = vunpack.c.l.b16 %v384
      %v609 = vunpack.c.l.b16 %v385
      %v610 = vunpack.c.l.b16 %v386
      %v611 = vunpack.c.l.b16 %v387
      %v612 = vunpack.c.l.b16 %v388
      %v613 = vunpack.c.l.b16 %v389
      %v614 = vunpack.c.l.b16 %v390
      %v615 = vunpack.c.l.b16 %v391
      %v616 = vunpack.c.l.b16 %v392
      %v617 = vunpack.c.l.b16 %v393
      %v618 = vunpack.c.l.b16 %v394
      %v619 = vunpack.c.l.b16 %v395
      %v620 = vunpack.c.l.b16 %v396
      %v621 = vunpack.c.l.b16 %v397
      %v622 = vunpack.c.l.b16 %v398
      %v623 = vunpack.c.l.b16 %v399
      %v624 = vpack.c.b16 %v593, %v592
      %v625 = vpack.c.b16 %v595, %v594
      %v626 = vpack.c.b16 %v597, %v596
      %v627 = vpack.c.b16 %v599, %v598
      %v628 = vpack.c.b16 %v601, %v600
      %v629 = vpack.c.b16 %v603, %v602
      %v630 = vpack.c.b16 %v605, %v604
      %v631 = vpack.c.b16 %v607, %v606
      %v632 = vpack.c.b16 %v609, %v608
      %v633 = vpack.c.b16 %v611, %v610
      %v634 = vpack.c.b16 %v613, %v612
      %v635 = vpack.c.b16 %v615, %v614
      %v636 = vpack.c.b16 %v617, %v616
      %v637 = vpack.c.b16 %v619, %v618
      %v638 = vpack.c.b16 %v621, %v620
      %v639 = vpack.c.b16 %v623, %v622
      %656 = vmatprep.subr.bf16.mxu0 0
      %657 = vmatpush1.bf16.msra.mxu0 %v624
      %658 = vmatprep.subr.bf16.mxu0 0
      %659 = vmatpush1.bf16.msra.mxu0 %v625
      %660 = vmatprep.subr.bf16.mxu0 0
      %661 = vmatpush1.bf16.msra.mxu0 %v626
      %662 = vmatprep.subr.bf16.mxu0 0
      %663 = vmatpush1.bf16.msra.mxu0 %v627
      %664 = vmatprep.subr.bf16.mxu0 0
      %665 = vmatpush1.bf16.msra.mxu0 %v628
      %666 = vmatprep.subr.bf16.mxu0 0
      %667 = vmatpush1.bf16.msra.mxu0 %v629
      %668 = vmatprep.subr.bf16.mxu0 0
      %669 = vmatpush1.bf16.msra.mxu0 %v630
      %670 = vmatprep.subr.bf16.mxu0 0
      %671 = vmatpush1.bf16.msra.mxu0 %v631
      %672 = vmatprep.subr.bf16.mxu0 0
      %673 = vmatpush1.bf16.msra.mxu0 %v632
      %674 = vmatprep.subr.bf16.mxu0 0
      %675 = vmatpush1.bf16.msra.mxu0 %v633
      %676 = vmatprep.subr.bf16.mxu0 0
      %677 = vmatpush1.bf16.msra.mxu0 %v634
      %678 = vmatprep.subr.bf16.mxu0 0
      %679 = vmatpush1.bf16.msra.mxu0 %v635
      %680 = vmatprep.subr.bf16.mxu0 0
      %681 = vmatpush1.bf16.msra.mxu0 %v636
      %682 = vmatprep.subr.bf16.mxu0 0
      %683 = vmatpush1.bf16.msra.mxu0 %v637
      %684 = vmatprep.subr.bf16.mxu0 0
      %685 = vmatpush1.bf16.msra.mxu0 %v638
      %686 = vmatprep.subr.bf16.mxu0 0
      %687 = vmatpush1.bf16.msra.mxu0 %v639
      %688 = vmatprep.mubr.bf16.mxu0 %v497
      %689 = vmatmul.mubr.bf16.gmra.mrb[0].mxu0 %v496
      %v690 = vpop.f32.mrb[0].mxu0
      %v691 = vadd.f32 0.0, %v690
      %v692 = vpop.f32.mrb[0].mxu0
      %v693 = vpop.f32.mrb[0].mxu0
      %v694 = vadd.f32 0.0, %v693
      %v695 = vpop.f32.mrb[0].mxu0
      %696 = vmatprep.mubr.bf16.mxu0 %v499
      %697 = vmatmul.mubr.bf16.gmra.mrb[0].mxu0 %v498
      %v698 = vpop.f32.mrb[0].mxu0
      %v699 = vadd.f32 0.0, %v698
      %v700 = vpop.f32.mrb[0].mxu0
      %v701 = vpop.f32.mrb[0].mxu0
      %v702 = vadd.f32 0.0, %v701
      %v703 = vpop.f32.mrb[0].mxu0
      %704 = vmatprep.mubr.bf16.mxu0 %v501
      %705 = vmatmul.mubr.bf16.gmra.mrb[0].mxu0 %v500
      %v706 = vpop.f32.mrb[0].mxu0
      %v707 = vadd.f32 0.0, %v706
      %v708 = vpop.f32.mrb[0].mxu0
      %v709 = vpop.f32.mrb[0].mxu0
      %v710 = vadd.f32 0.0, %v709
      %v711 = vpop.f32.mrb[0].mxu0
      %712 = vmatprep.mubr.bf16.mxu0 %v503
      %713 = vmatmul.mubr.bf16.gmra.mrb[0].mxu0 %v502
      %v714 = vpop.f32.mrb[0].mxu0
      %v715 = vadd.f32 0.0, %v714
      %v716 = vpop.f32.mrb[0].mxu0
      %v717 = vpop.f32.mrb[0].mxu0
      %v718 = vadd.f32 0.0, %v717
      %v719 = vpop.f32.mrb[0].mxu0
      %720 = vmatprep.mubr.bf16.mxu0 %v505
      %721 = vmatmul.mubr.bf16.gmra.mrb[0].mxu0 %v504
      %v722 = vpop.f32.mrb[0].mxu0
      %v723 = vadd.f32 0.0, %v722
      %v724 = vpop.f32.mrb[0].mxu0
      %v725 = vpop.f32.mrb[0].mxu0
      %v726 = vadd.f32 0.0, %v725
      %v727 = vpop.f32.mrb[0].mxu0
      %728 = vmatprep.mubr.bf16.mxu0 %v507
      %729 = vmatmul.mubr.bf16.gmra.mrb[0].mxu0 %v506
      %v730 = vpop.f32.mrb[0].mxu0
      %v731 = vadd.f32 0.0, %v730
      %v732 = vpop.f32.mrb[0].mxu0
      %v733 = vpop.f32.mrb[0].mxu0
      %v734 = vadd.f32 0.0, %v733
      %v735 = vpop.f32.mrb[0].mxu0
      %736 = vmatprep.mubr.bf16.mxu0 %v509
      %737 = vmatmul.mubr.bf16.gmra.mrb[0].mxu0 %v508
      %v738 = vpop.f32.mrb[0].mxu0
      %v739 = vadd.f32 0.0, %v738
      %v740 = vpop.f32.mrb[0].mxu0
      %v741 = vpop.f32.mrb[0].mxu0
      %v742 = vadd.f32 0.0, %v741
      %v743 = vpop.f32.mrb[0].mxu0
      %744 = vmatprep.mubr.bf16.mxu0 %v511
      %745 = vmatmul.mubr.bf16.gmra.mrb[0].mxu0 %v510
      %v746 = vpop.f32.mrb[0].mxu0
      %v747 = vadd.f32 0.0, %v746
      %v748 = vpop.f32.mrb[0].mxu0
      %v749 = vpop.f32.mrb[0].mxu0
      %v750 = vadd.f32 0.0, %v749
      %v751 = vpop.f32.mrb[0].mxu0
      %752 = vmatprep.mubr.bf16.mxu0 %v513
      %753 = vmatmul.mubr.bf16.gmra.mrb[0].mxu0 %v512
      %v754 = vpop.f32.mrb[0].mxu0
      %v755 = vadd.f32 0.0, %v754
      %v756 = vpop.f32.mrb[0].mxu0
      %v757 = vpop.f32.mrb[0].mxu0
      %v758 = vadd.f32 0.0, %v757
      %v759 = vpop.f32.mrb[0].mxu0
      %760 = vmatprep.mubr.bf16.mxu0 %v515
      %761 = vmatmul.mubr.bf16.gmra.mrb[0].mxu0 %v514
      %v762 = vpop.f32.mrb[0].mxu0
      %v763 = vadd.f32 0.0, %v762
      %v764 = vpop.f32.mrb[0].mxu0
      %v765 = vpop.f32.mrb[0].mxu0
      %v766 = vadd.f32 0.0, %v765
      %v767 = vpop.f32.mrb[0].mxu0
      %768 = vmatprep.mubr.bf16.mxu0 %v517
      %769 = vmatmul.mubr.bf16.gmra.mrb[0].mxu0 %v516
      %v770 = vpop.f32.mrb[0].mxu0
      %v771 = vadd.f32 0.0, %v770
      %v772 = vpop.f32.mrb[0].mxu0
      %v773 = vpop.f32.mrb[0].mxu0
      %v774 = vadd.f32 0.0, %v773
      %v775 = vpop.f32.mrb[0].mxu0
      %776 = vmatprep.mubr.bf16.mxu0 %v519
      %777 = vmatmul.mubr.bf16.gmra.mrb[0].mxu0 %v518
      %v778 = vpop.f32.mrb[0].mxu0
      %v779 = vadd.f32 0.0, %v778
      %v780 = vpop.f32.mrb[0].mxu0
      %v781 = vpop.f32.mrb[0].mxu0
      %v782 = vadd.f32 0.0, %v781
      %v783 = vpop.f32.mrb[0].mxu0
      %784 = vmatprep.mubr.bf16.mxu0 %v521
      %785 = vmatmul.mubr.bf16.gmra.mrb[0].mxu0 %v520
      %v786 = vpop.f32.mrb[0].mxu0
      %v787 = vadd.f32 0.0, %v786
      %v788 = vpop.f32.mrb[0].mxu0
      %v789 = vpop.f32.mrb[0].mxu0
      %v790 = vadd.f32 0.0, %v789
      %v791 = vpop.f32.mrb[0].mxu0
      %792 = vmatprep.mubr.bf16.mxu0 %v523
      %793 = vmatmul.mubr.bf16.gmra.mrb[0].mxu0 %v522
      %v794 = vpop.f32.mrb[0].mxu0
      %v795 = vadd.f32 0.0, %v794
      %v796 = vpop.f32.mrb[0].mxu0
      %v797 = vpop.f32.mrb[0].mxu0
      %v798 = vadd.f32 0.0, %v797
      %v799 = vpop.f32.mrb[0].mxu0
      %800 = vmatprep.mubr.bf16.mxu0 %v525
      %801 = vmatmul.mubr.bf16.gmra.mrb[0].mxu0 %v524
      %v802 = vpop.f32.mrb[0].mxu0
      %v803 = vadd.f32 0.0, %v802
      %v804 = vpop.f32.mrb[0].mxu0
      %v805 = vpop.f32.mrb[0].mxu0
      %v806 = vadd.f32 0.0, %v805
      %v807 = vpop.f32.mrb[0].mxu0
      %808 = vmatprep.mubr.bf16.mxu0 %v527
      %809 = vmatmul.mubr.bf16.gmra.mrb[0].mxu0 %v526
      %v810 = vpop.f32.mrb[0].mxu0
      %v811 = vadd.f32 0.0, %v810
      %v812 = vpop.f32.mrb[0].mxu0
      %v813 = vpop.f32.mrb[0].mxu0
      %v814 = vadd.f32 0.0, %v813
      %v815 = vpop.f32.mrb[0].mxu0
      %816 = vdwg.mxu0
      %v817 = vadd.f32 %v304, %v691
      %v818 = vadd.f32 %v305, %v694
      %v819 = vadd.f32 %v306, %v699
      %v820 = vadd.f32 %v307, %v702
      %v821 = vadd.f32 %v308, %v707
      %v822 = vadd.f32 %v309, %v710
      %v823 = vadd.f32 %v310, %v715
      %v824 = vadd.f32 %v311, %v718
      %v825 = vadd.f32 %v312, %v723
      %v826 = vadd.f32 %v313, %v726
      %v827 = vadd.f32 %v314, %v731
      %v828 = vadd.f32 %v315, %v734
      %v829 = vadd.f32 %v316, %v739
      %v830 = vadd.f32 %v317, %v742
      %v831 = vadd.f32 %v318, %v747
      %v832 = vadd.f32 %v319, %v750
      %v833 = vadd.f32 %v320, %v755
      %v834 = vadd.f32 %v321, %v758
      %v835 = vadd.f32 %v322, %v763
      %v836 = vadd.f32 %v323, %v766
      %v837 = vadd.f32 %v324, %v771
      %v838 = vadd.f32 %v325, %v774
      %v839 = vadd.f32 %v326, %v779
      %v840 = vadd.f32 %v327, %v782
      %v841 = vadd.f32 %v328, %v787
      %v842 = vadd.f32 %v329, %v790
      %v843 = vadd.f32 %v330, %v795
      %v844 = vadd.f32 %v331, %v798
      %v845 = vadd.f32 %v332, %v803
      %v846 = vadd.f32 %v333, %v806
      %v847 = vadd.f32 %v334, %v811
      %v848 = vadd.f32 %v335, %v814
      %849 = vst [vmem:[#allocation2] sm:$0xff] %v817
      %850 = vst [vmem:[#allocation2 + $0x8] sm:$0xff] %v818
      %851 = vst [vmem:[#allocation2 + $0x10] sm:$0xff] %v819
      %852 = vst [vmem:[#allocation2 + $0x18] sm:$0xff] %v820
      %853 = vst [vmem:[#allocation2 + $0x20] sm:$0xff] %v821
      %854 = vst [vmem:[#allocation2 + $0x28] sm:$0xff] %v822
      %855 = vst [vmem:[#allocation2 + $0x30] sm:$0xff] %v823
      %856 = vst [vmem:[#allocation2 + $0x38] sm:$0xff] %v824
      %857 = vst [vmem:[#allocation2 + $0x40] sm:$0xff] %v825
      %858 = vst [vmem:[#allocation2 + $0x48] sm:$0xff] %v826
      %859 = vst [vmem:[#allocation2 + $0x50] sm:$0xff] %v827
      %860 = vst [vmem:[#allocation2 + $0x58] sm:$0xff] %v828
      %861 = vst [vmem:[#allocation2 + $0x60] sm:$0xff] %v829
      %862 = vst [vmem:[#allocation2 + $0x68] sm:$0xff] %v830
      %863 = vst [vmem:[#allocation2 + $0x70] sm:$0xff] %v831
      %864 = vst [vmem:[#allocation2 + $0x78] sm:$0xff] %v832
      %865 = vst [vmem:[#allocation2 + $0x80] sm:$0xff] %v833
      %866 = vst [vmem:[#allocation2 + $0x88] sm:$0xff] %v834
      %867 = vst [vmem:[#allocation2 + $0x90] sm:$0xff] %v835
      %868 = vst [vmem:[#allocation2 + $0x98] sm:$0xff] %v836
      %869 = vst [vmem:[#allocation2 + $0xa0] sm:$0xff] %v837
      %870 = vst [vmem:[#allocation2 + $0xa8] sm:$0xff] %v838
      %871 = vst [vmem:[#allocation2 + $0xb0] sm:$0xff] %v839
      %872 = vst [vmem:[#allocation2 + $0xb8] sm:$0xff] %v840
      %873 = vst [vmem:[#allocation2 + $0xc0] sm:$0xff] %v841
      %874 = vst [vmem:[#allocation2 + $0xc8] sm:$0xff] %v842
      %875 = vst [vmem:[#allocation2 + $0xd0] sm:$0xff] %v843
      %876 = vst [vmem:[#allocation2 + $0xd8] sm:$0xff] %v844
      %877 = vst [vmem:[#allocation2 + $0xe0] sm:$0xff] %v845
      %878 = vst [vmem:[#allocation2 + $0xe8] sm:$0xff] %v846
      %879 = vst [vmem:[#allocation2 + $0xf0] sm:$0xff] %v847
      %880 = vst [vmem:[#allocation2 + $0xf8] sm:$0xff] %v848
      // Predicated region
      $region37: #{generator_forward.23} parent=31 // pred_check
        %p881 = pneg %p268
      $region38: #{generator_forward.23} parent=31 // pred_check_branch
        %883 = sbr.rel (%p881) target = $region40
      $region39: #{generator_forward.23} parent=31 // pred_region
        %v884 = vld [vmem:[#allocation2] sm:$0xff]
        %v885 = vld [vmem:[#allocation2 + $0x8] sm:$0xff]
        %v886 = vld [vmem:[#allocation2 + $0x10] sm:$0xff]
        %v887 = vld [vmem:[#allocation2 + $0x18] sm:$0xff]
        %v888 = vld [vmem:[#allocation2 + $0x20] sm:$0xff]
        %v889 = vld [vmem:[#allocation2 + $0x28] sm:$0xff]
        %v890 = vld [vmem:[#allocation2 + $0x30] sm:$0xff]
        %v891 = vld [vmem:[#allocation2 + $0x38] sm:$0xff]
        %v892 = vld [vmem:[#allocation2 + $0x40] sm:$0xff]
        %v893 = vld [vmem:[#allocation2 + $0x48] sm:$0xff]
        %v894 = vld [vmem:[#allocation2 + $0x50] sm:$0xff]
        %v895 = vld [vmem:[#allocation2 + $0x58] sm:$0xff]
        %v896 = vld [vmem:[#allocation2 + $0x60] sm:$0xff]
        %v897 = vld [vmem:[#allocation2 + $0x68] sm:$0xff]
        %v898 = vld [vmem:[#allocation2 + $0x70] sm:$0xff]
        %v899 = vld [vmem:[#allocation2 + $0x78] sm:$0xff]
        %v900 = vld [vmem:[#allocation2 + $0x80] sm:$0xff]
        %v901 = vld [vmem:[#allocation2 + $0x88] sm:$0xff]
        %v902 = vld [vmem:[#allocation2 + $0x90] sm:$0xff]
        %v903 = vld [vmem:[#allocation2 + $0x98] sm:$0xff]
        %v904 = vld [vmem:[#allocation2 + $0xa0] sm:$0xff]
        %v905 = vld [vmem:[#allocation2 + $0xa8] sm:$0xff]
        %v906 = vld [vmem:[#allocation2 + $0xb0] sm:$0xff]
        %v907 = vld [vmem:[#allocation2 + $0xb8] sm:$0xff]
        %v908 = vld [vmem:[#allocation2 + $0xc0] sm:$0xff]
        %v909 = vld [vmem:[#allocation2 + $0xc8] sm:$0xff]
        %v910 = vld [vmem:[#allocation2 + $0xd0] sm:$0xff]
        %v911 = vld [vmem:[#allocation2 + $0xd8] sm:$0xff]
        %v912 = vld [vmem:[#allocation2 + $0xe0] sm:$0xff]
        %v913 = vld [vmem:[#allocation2 + $0xe8] sm:$0xff]
        %v914 = vld [vmem:[#allocation2 + $0xf0] sm:$0xff]
        %v915 = vld [vmem:[#allocation2 + $0xf8] sm:$0xff]
        %v916 = vld [vmem:[%s257] sm:$0x1]
        %v918 = vlaneseq
        %v919 = vshrl.u32 %v918, 7
        %v920 = vsub.s32 0, %v919
        %v921 = vrot.slane %v916, %v920
        %v923 = vadd.f32 %v884, %v921
        %v924 = vadd.f32 %v885, %v921
        %v925 = vadd.f32 %v886, %v921
        %v926 = vadd.f32 %v887, %v921
        %v927 = vadd.f32 %v888, %v921
        %v928 = vadd.f32 %v889, %v921
        %v929 = vadd.f32 %v890, %v921
        %v930 = vadd.f32 %v891, %v921
        %v931 = vadd.f32 %v892, %v921
        %v932 = vadd.f32 %v893, %v921
        %v933 = vadd.f32 %v894, %v921
        %v934 = vadd.f32 %v895, %v921
        %v935 = vadd.f32 %v896, %v921
        %v936 = vadd.f32 %v897, %v921
        %v937 = vadd.f32 %v898, %v921
        %v938 = vadd.f32 %v899, %v921
        %v939 = vadd.f32 %v900, %v921
        %v940 = vadd.f32 %v901, %v921
        %v941 = vadd.f32 %v902, %v921
        %v942 = vadd.f32 %v903, %v921
        %v943 = vadd.f32 %v904, %v921
        %v944 = vadd.f32 %v905, %v921
        %v945 = vadd.f32 %v906, %v921
        %v946 = vadd.f32 %v907, %v921
        %v947 = vadd.f32 %v908, %v921
        %v948 = vadd.f32 %v909, %v921
        %v949 = vadd.f32 %v910, %v921
        %v950 = vadd.f32 %v911, %v921
        %v951 = vadd.f32 %v912, %v921
        %v952 = vadd.f32 %v913, %v921
        %v953 = vadd.f32 %v914, %v921
        %v954 = vadd.f32 %v915, %v921
        %955 = vst [vmem:[%s265] sm:$0xff] %v923
        %956 = vst [vmem:[%s265 + $0x8] sm:$0xff] %v924
        %957 = vst [vmem:[%s265 + $0x10] sm:$0xff] %v925
        %958 = vst [vmem:[%s265 + $0x18] sm:$0xff] %v926
        %959 = vst [vmem:[%s265 + $0x20] sm:$0xff] %v927
        %960 = vst [vmem:[%s265 + $0x28] sm:$0xff] %v928
        %961 = vst [vmem:[%s265 + $0x30] sm:$0xff] %v929
        %962 = vst [vmem:[%s265 + $0x38] sm:$0xff] %v930
        %963 = vst [vmem:[%s265 + $0x40] sm:$0xff] %v931
        %964 = vst [vmem:[%s265 + $0x48] sm:$0xff] %v932
        %965 = vst [vmem:[%s265 + $0x50] sm:$0xff] %v933
        %966 = vst [vmem:[%s265 + $0x58] sm:$0xff] %v934
        %967 = vst [vmem:[%s265 + $0x60] sm:$0xff] %v935
        %968 = vst [vmem:[%s265 + $0x68] sm:$0xff] %v936
        %969 = vst [vmem:[%s265 + $0x70] sm:$0xff] %v937
        %970 = vst [vmem:[%s265 + $0x78] sm:$0xff] %v938
        %971 = vst [vmem:[%s265 + $0x80] sm:$0xff] %v939
        %972 = vst [vmem:[%s265 + $0x88] sm:$0xff] %v940
        %973 = vst [vmem:[%s265 + $0x90] sm:$0xff] %v941
        %974 = vst [vmem:[%s265 + $0x98] sm:$0xff] %v942
        %975 = vst [vmem:[%s265 + $0xa0] sm:$0xff] %v943
        %976 = vst [vmem:[%s265 + $0xa8] sm:$0xff] %v944
        %977 = vst [vmem:[%s265 + $0xb0] sm:$0xff] %v945
        %978 = vst [vmem:[%s265 + $0xb8] sm:$0xff] %v946
        %979 = vst [vmem:[%s265 + $0xc0] sm:$0xff] %v947
        %980 = vst [vmem:[%s265 + $0xc8] sm:$0xff] %v948
        %981 = vst [vmem:[%s265 + $0xd0] sm:$0xff] %v949
        %982 = vst [vmem:[%s265 + $0xd8] sm:$0xff] %v950
        %983 = vst [vmem:[%s265 + $0xe0] sm:$0xff] %v951
        %984 = vst [vmem:[%s265 + $0xe8] sm:$0xff] %v952
        %985 = vst [vmem:[%s265 + $0xf0] sm:$0xff] %v953
        %986 = vst [vmem:[%s265 + $0xf8] sm:$0xff] %v954
      $region40: #{generator_forward.23} parent=31 // pred_fallthru
        _
      %s987 = smul.u32 32, %s19
      %p988 = scmp.lt.s32.totalorder %s987, 63
      %s989 = scalar_select %p988, %s987, 63
      %p990 = scmp.lt.s32.totalorder %s20, 0
      %s991 = scalar_select %p990, %s20, 0
      %s992 = sadd.s32 %s991, %s989
      %s993 = smul.addr %s992, 8
      %s994 = scalar_lea.vmem %s3, %s993
      // Predicated region
      $region41: #{generator_forward.23} parent=31 // pred_check
        %p995 = pneg %p135
      $region42: #{generator_forward.23} parent=31 // pred_check_branch
        %997 = sbr.rel (%p995) target = $region44
      $region43: #{generator_forward.23} parent=31 // pred_region
        %s998 = smul.u32 32, %s19
      $region44: #{generator_forward.23} parent=31 // pred_fallthru
        _
    $region32: #{generator_forward.23} parent=5 // pred_fallthru
      _
    %p999 = scmp.le.s32.totalorder 2, %s9
    // Predicated region
    $region45: #{generator_forward.23} parent=5 // pred_check
      %p1000 = pneg %p999
    $region46: #{generator_forward.23} parent=5 // pred_check_branch
      %1002 = sbr.rel (%p1000) target = $region48
    $region47: #{generator_forward.23} parent=5 // pred_region
      %s1003 = ssub.s32 %s9, 2
      // Predicated region
      $region49: #{generator_forward.23} parent=47 // pred_check
        %p1004 = pneg %p141
      $region50: #{generator_forward.23} parent=47 // pred_check_branch
        %1006 = sbr.rel (%p1004) target = $region52
      $region51: #{generator_forward.23} parent=47 // pred_region
        %s1007 = smul.u32 32, %s22
        %p1008 = scmp.lt.s32.totalorder %s1007, 63
        %s1009 = scalar_select %p1008, %s1007, 63
        %p1010 = scmp.lt.s32.totalorder %s23, 0
        %s1011 = scalar_select %p1010, %s23, 0
        %s1012 = sadd.s32 %s1011, %s1009
        %s1013 = smul.addr %s1012, 8
        %s1014 = scalar_lea.vmem %s3, %s1013
      $region52: #{generator_forward.23} parent=47 // pred_fallthru
        _
    $region48: #{generator_forward.23} parent=5 // pred_fallthru
      _
  $region6: #{generator_forward.23} parent=0 // loop_footer
    %s13 = sadd.s32 1, %s9
  $region7: #{generator_forward.23} parent=0 // loop_footer_branch
    %8 = sbr.rel target = $region3
  $region8: #{generator_forward.23} parent=0 // loop_exit
    _

// kernel: generator_forward.25
$region0: #{generator_forward.25}
  #allocation0 [shape = 'u32[]', space=smem, size = 0x4, offset = 0x4, fixed_abs, tag = 'smem constant byte address 0x4 - core index']
  #allocation1 [shape = 'u32[144,128]{1,0:T(1,128)}', space=vmem, size = 0x12000, scoped, tag = 'internal scratch']
  #allocation2 [shape = 'f32[128,128]{1,0:T(8,128)}', space=vmem, size = 0x10000, scoped, tag = 'scratch operand']
  %s0 = inlined_call_operand.vmem [shape: bf16[128,640], index: 0, kind: input, shape index: {}]
  %s1 = inlined_call_operand.vmem [shape: bf16[640,128], index: 1, kind: input, shape index: {}]
  %s2 = inlined_call_operand.vmem [shape: f32[1,128], index: 2, kind: input, shape index: {}]
  %s3 = inlined_call_operand.vmem [shape: f32[128,128], index: 3, kind: output, shape index: {}]
  %s4 = sld [smem:[#allocation0]]
  $region94: #{generator_forward.25} parent=0
    _
  %s6 = ssub.s32 1, %s4
  %s7 = scalar_select 0, %s6, %s4
  $region1: #{generator_forward.25} parent=0
    #allocation3 [shape = 'u8[65536]{0}', space=vmem, size = 0x10000, scoped, tag = 'input window, operand 0']
    loop: start=0, step=1, limit=7
    $region2: #{generator_forward.25} parent=1 // loop_pre_header
      _
    $region3: #{generator_forward.25} parent=1 // loop_header
      %s9 = sphi 0, %s13
      %p10 = scmp.ge.s32.totalorder %s9, 7
      %s16 = sphi 0, %s35
      %s17 = sphi 0, %s31
      %s18 = sphi 0, %s27
      %s19 = sphi 0, %s16
      %s20 = sphi 0, %s17
      %s21 = sphi 0, %s18
      %s22 = sphi 0, %s19
      %s23 = sphi 0, %s20
      %s24 = sphi 0, %s21
      %s40 = sphi 0, %s42
      %s43 = sphi 0, %s40
      %s44 = sphi 0, %s43
      %s60 = sphi 0, %s44
      %s68 = sphi 0, %s70
      %s71 = sphi 0, %s68
      %s72 = sphi 0, %s71
      %s88 = sphi 0, %s72
      %s94 = sphi 0, %s96
      %s97 = sphi 0, %s94
      %s98 = sphi 0, %s97
      %s114 = sphi 0, %s98
      %s122 = sphi 0, %s124
      %s125 = sphi 0, %s122
      %s126 = sphi 0, %s125
      %s142 = sphi 0, %s126
    $region4: #{generator_forward.25} parent=1 // loop_header_branch
      %12 = sbr.rel (%p10) target = $region8
    $region5: #{generator_forward.25} parent=1 // loop_body
      %s14 = ssub.s32 %s9, 1
      %s15 = ssub.s32 %s9, 2
      %s25 = sadd.s32 1, %s18
      %p26 = scmp.ge.s32.totalorder %s25, 5
      %s27 = scalar_select %p26, 0, %s25
      %s28 = sadd.s32 1, %s17
      %s29 = scalar_select %p26, %s28, %s17
      %p30 = scmp.ge.s32.totalorder %s29, 1
      %s31 = scalar_select %p30, 0, %s29
      %s32 = sadd.s32 1, %s16
      %s33 = scalar_select %p30, %s32, %s16
      %p34 = scmp.ge.s32.totalorder %s33, 1
      %s35 = scalar_select %p34, 0, %s33
      %s36 = ssub.s32 %s16, %s35
      %s37 = ssub.s32 %s18, %s27
      %s38 = sor.u32 %s36, %s37
      %p39 = scmp.eq.s32.totalorder %s38, 0
      %s41 = sadd.s32 %s40, 1
      %s42 = scalar_select %p39, %s40, %s41
      %p45 = pneg %p39
      %p46 = scmp.eq.s32.totalorder %s9, 4
      %p47 = por %p45, %p46
      %p48 = scmp.ne.s32.totalorder %s40, %s43
      %p49 = scmp.eq.s32.totalorder %s9, 0
      %p50 = por %p48, %p49
      %p51 = scmp.ne.s32.totalorder %s40, %s43
      %p52 = scmp.eq.s32.totalorder %s14, 4
      %p53 = por %p51, %p52
      %p54 = scmp.ne.s32.totalorder %s43, %s44
      %p55 = scmp.eq.s32.totalorder %s14, 0
      %p56 = por %p54, %p55
      %p57 = scmp.ne.s32.totalorder %s43, %s44
      %p58 = scmp.eq.s32.totalorder %s15, 4
      %p59 = por %p57, %p58
      %p61 = scmp.ne.s32.totalorder %s44, %s60
      %p62 = scmp.eq.s32.totalorder %s15, 0
      %p63 = por %p61, %p62
      %s64 = ssub.s32 %s18, %s27
      %s65 = ssub.s32 %s17, %s31
      %s66 = sor.u32 %s64, %s65
      %p67 = scmp.eq.s32.totalorder %s66, 0
      %s69 = sadd.s32 %s68, 1
      %s70 = scalar_select %p67, %s68, %s69
      %p73 = pneg %p67
      %p74 = scmp.eq.s32.totalorder %s9, 4
      %p75 = por %p73, %p74
      %p76 = scmp.ne.s32.totalorder %s68, %s71
      %p77 = scmp.eq.s32.totalorder %s9, 0
      %p78 = por %p76, %p77
      %p79 = scmp.ne.s32.totalorder %s68, %s71
      %p80 = scmp.eq.s32.totalorder %s14, 4
      %p81 = por %p79, %p80
      %p82 = scmp.ne.s32.totalorder %s71, %s72
      %p83 = scmp.eq.s32.totalorder %s14, 0
      %p84 = por %p82, %p83
      %p85 = scmp.ne.s32.totalorder %s71, %s72
      %p86 = scmp.eq.s32.totalorder %s15, 4
      %p87 = por %p85, %p86
      %p89 = scmp.ne.s32.totalorder %s72, %s88
      %p90 = scmp.eq.s32.totalorder %s15, 0
      %p91 = por %p89, %p90
      %s92 = ssub.s32 %s17, %s31
      %p93 = scmp.eq.s32.totalorder %s92, 0
      %s95 = sadd.s32 %s94, 1
      %s96 = scalar_select %p93, %s94, %s95
      %p99 = pneg %p93
      %p100 = scmp.eq.s32.totalorder %s9, 4
      %p101 = por %p99, %p100
      %p102 = scmp.ne.s32.totalorder %s94, %s97
      %p103 = scmp.eq.s32.totalorder %s9, 0
      %p104 = por %p102, %p103
      %p105 = scmp.ne.s32.totalorder %s94, %s97
      %p106 = scmp.eq.s32.totalorder %s14, 4
      %p107 = por %p105, %p106
      %p108 = scmp.ne.s32.totalorder %s97, %s98
      %p109 = scmp.eq.s32.totalorder %s14, 0
      %p110 = por %p108, %p109
      %p111 = scmp.ne.s32.totalorder %s97, %s98
      %p112 = scmp.eq.s32.totalorder %s15, 4
      %p113 = por %p111, %p112
      %p115 = scmp.ne.s32.totalorder %s98, %s114
      %p116 = scmp.eq.s32.totalorder %s15, 0
      %p117 = por %p115, %p116
      %s118 = ssub.s32 %s16, %s35
      %s119 = ssub.s32 %s17, %s31
      %s120 = sor.u32 %s118, %s119
      %p121 = scmp.eq.s32.totalorder %s120, 0
      %s123 = sadd.s32 %s122, 1
      %s124 = scalar_select %p121, %s122, %s123
      %p127 = pneg %p121
      %p128 = scmp.eq.s32.totalorder %s9, 4
      %p129 = por %p127, %p128
      %p130 = scmp.ne.s32.totalorder %s122, %s125
      %p131 = scmp.eq.s32.totalorder %s9, 0
      %p132 = por %p130, %p131
      %p133 = scmp.ne.s32.totalorder %s122, %s125
      %p134 = scmp.eq.s32.totalorder %s14, 4
      %p135 = por %p133, %p134
      %p136 = scmp.ne.s32.totalorder %s125, %s126
      %p137 = scmp.eq.s32.totalorder %s14, 0
      %p138 = por %p136, %p137
      %p139 = scmp.ne.s32.totalorder %s125, %s126
      %p140 = scmp.eq.s32.totalorder %s15, 4
      %p141 = por %p139, %p140
      %p143 = scmp.ne.s32.totalorder %s126, %s142
      %p144 = scmp.eq.s32.totalorder %s15, 0
      %p145 = por %p143, %p144
      %p146 = scmp.le.s32.totalorder 1, %s9
      %p147 = scmp.lt.s32.totalorder %s9, 6
      %p148 = pnand %p146, %p147
      %p149 = pneg %p148
      // Predicated region
      $region9: #{generator_forward.25} parent=5 // pred_check
        _
      $region10: #{generator_forward.25} parent=5 // pred_check_branch
        %151 = sbr.rel (%p148) target = $region12
      $region11: #{generator_forward.25} parent=5 // pred_region
        %s152 = ssub.s32 %s9, 1
        // Predicated region
        $region13: #{generator_forward.25} parent=11 // pred_check
          %p153 = pneg %p110
        $region14: #{generator_forward.25} parent=11 // pred_check_branch
          %155 = sbr.rel (%p153) target = $region16
        $region15: #{generator_forward.25} parent=11 // pred_region
          %p156 = scmp.lt.s32.totalorder %s20, 0
          %s157 = scalar_select %p156, %s20, 0
          %s158 = scalar_lea.vmem %s2, %s157
        $region16: #{generator_forward.25} parent=11 // pred_fallthru
          _
      $region12: #{generator_forward.25} parent=5 // pred_fallthru
        _
      %p159 = scmp.lt.s32.totalorder %s9, 5
      // Predicated region
      $region17: #{generator_forward.25} parent=5 // pred_check
        %p160 = pneg %p159
      $region18: #{generator_forward.25} parent=5 // pred_check_branch
        %162 = sbr.rel (%p160) target = $region20
      $region19: #{generator_forward.25} parent=5 // pred_region
        // Predicated region
        $region21: #{generator_forward.25} parent=19 // pred_check
          %p163 = pneg %p50
        $region22: #{generator_forward.25} parent=19 // pred_check_branch
          %165 = sbr.rel (%p163) target = $region24
        $region23: #{generator_forward.25} parent=19 // pred_region
          %s166 = sand.u32 %s40, 1
          %s167 = sand.u32 %s40, 1
          %s168 = smul.addr %s167, 64
          %s169 = scalar_lea.vmem [#allocation3], %s168
          %s170 = smul.u32 16, %s16
          %s171 = smul.addr %s170, 5
          %s172 = sadd.s32 %s18, %s171
          %s173 = smul.addr %s172, 4
          %s174 = scalar_lea.vmem %s0, %s173
          // Predicated region
          $region25: #{generator_forward.25} parent=23 // pred_check
            _
          $region26: #{generator_forward.25} parent=23 // pred_check_branch
            %176 = sbr.rel (0) target = $region28
          $region27: #{generator_forward.25} parent=23 // pred_region
            // Predicated region
            $region29: #{generator_forward.25} parent=27 // pred_check
              _
            $region30: #{generator_forward.25} parent=27 // pred_check_branch
              %178 = sbr.rel target = $region32
            $region31: #{generator_forward.25} parent=27 // pred_region
              // Predicated region
              $region44: #{generator_forward.25} parent=31 // pred_check
                _
              $region45: #{generator_forward.25} parent=31 // pred_check_branch
                %223 = sbr.rel (0) target = $region47
              $region46: #{generator_forward.25} parent=31 // pred_region
                loop: start=0, step=1, limit=1
                $region48: #{generator_forward.25} parent=46 // loop_pre_header
                  _
                $region49: #{generator_forward.25} parent=46 // loop_header
                  %s225 = sphi 0, %s229
                  %p226 = scmp.ge.s32.totalorder %s225, 1
                  %s230 = sphi %s174, %s174
                  %s231 = sphi %s169, %s169
                $region50: #{generator_forward.25} parent=46 // loop_header_branch
                  %228 = sbr.rel (%p226) target = $region54
                $region51: #{generator_forward.25} parent=46 // loop_body
                  _
                $region52: #{generator_forward.25} parent=46 // loop_footer
                  %s229 = sadd.s32 1, %s225
                $region53: #{generator_forward.25} parent=46 // loop_footer_branch
                  %224 = sbr.rel target = $region49
                $region54: #{generator_forward.25} parent=46 // loop_exit
                  _
                loop: start=0, step=1, limit=1
                $region55: #{generator_forward.25} parent=46 // loop_pre_header
                  _
                $region56: #{generator_forward.25} parent=46 // loop_header
                  %s234 = sphi 0, %s238
                  %p235 = scmp.ge.s32.totalorder %s234, 1
                  %s239 = sphi %s174, %s174
                  %s240 = sphi %s169, %s169
                $region57: #{generator_forward.25} parent=46 // loop_header_branch
                  %237 = sbr.rel (%p235) target = $region61
                $region58: #{generator_forward.25} parent=46 // loop_body
                  %v241 = vld [vmem:[%s239] sm:$0xf]
                  %242 = vst [vmem:[%s240] sm:$0xf] %v241
                  %v243 = vld [vmem:[%s239 + $0x14] sm:$0xf]
                  %244 = vst [vmem:[%s240 + $0x4] sm:$0xf] %v243
                  %v245 = vld [vmem:[%s239 + $0x28] sm:$0xf]
                  %246 = vst [vmem:[%s240 + $0x8] sm:$0xf] %v245
                  %v247 = vld [vmem:[%s239 + $0x3c] sm:$0xf]
                  %248 = vst [vmem:[%s240 + $0xc] sm:$0xf] %v247
                  %v249 = vld [vmem:[%s239 + $0x50] sm:$0xf]
                  %250 = vst [vmem:[%s240 + $0x10] sm:$0xf] %v249
                  %v251 = vld [vmem:[%s239 + $0x64] sm:$0xf]
                  %252 = vst [vmem:[%s240 + $0x14] sm:$0xf] %v251
                  %v253 = vld [vmem:[%s239 + $0x78] sm:$0xf]
                  %254 = vst [vmem:[%s240 + $0x18] sm:$0xf] %v253
                  %v255 = vld [vmem:[%s239 + $0x8c] sm:$0xf]
                  %256 = vst [vmem:[%s240 + $0x1c] sm:$0xf] %v255
                  %v257 = vld [vmem:[%s239 + $0xa0] sm:$0xf]
                  %258 = vst [vmem:[%s240 + $0x20] sm:$0xf] %v257
                  %v259 = vld [vmem:[%s239 + $0xb4] sm:$0xf]
                  %260 = vst [vmem:[%s240 + $0x24] sm:$0xf] %v259
                  %v261 = vld [vmem:[%s239 + $0xc8] sm:$0xf]
                  %262 = vst [vmem:[%s240 + $0x28] sm:$0xf] %v261
                  %v263 = vld [vmem:[%s239 + $0xdc] sm:$0xf]
                  %264 = vst [vmem:[%s240 + $0x2c] sm:$0xf] %v263
                  %v265 = vld [vmem:[%s239 + $0xf0] sm:$0xf]
                  %266 = vst [vmem:[%s240 + $0x30] sm:$0xf] %v265
                  %v267 = vld [vmem:[%s239 + $0x104] sm:$0xf]
                  %268 = vst [vmem:[%s240 + $0x34] sm:$0xf] %v267
                  %v269 = vld [vmem:[%s239 + $0x118] sm:$0xf]
                  %270 = vst [vmem:[%s240 + $0x38] sm:$0xf] %v269
                  %v271 = vld [vmem:[%s239 + $0x12c] sm:$0xf]
                  %272 = vst [vmem:[%s240 + $0x3c] sm:$0xf] %v271
                $region59: #{generator_forward.25} parent=46 // loop_footer
                  %s238 = sadd.s32 1, %s234
                $region60: #{generator_forward.25} parent=46 // loop_footer_branch
                  %233 = sbr.rel target = $region56
                $region61: #{generator_forward.25} parent=46 // loop_exit
                  _
              $region47: #{generator_forward.25} parent=31 // pred_fallthru
                _
            $region32: #{generator_forward.25} parent=27 // pred_fallthru
              _
            // Predicated region
            $region33: #{generator_forward.25} parent=27 // pred_check
              _
            $region34: #{generator_forward.25} parent=27 // pred_check_branch
              %180 = sbr.rel (0) target = $region36
            $region35: #{generator_forward.25} parent=27 // pred_region
              loop: start=0, step=1, limit=1
              $region37: #{generator_forward.25} parent=35 // loop_pre_header
                _
              $region38: #{generator_forward.25} parent=35 // loop_header
                %s183 = sphi 0, %s187
                %p184 = scmp.ge.s32.totalorder %s183, 1
                %s188 = sphi %s174, %s174
                %s189 = sphi %s169, %s169
              $region39: #{generator_forward.25} parent=35 // loop_header_branch
                %186 = sbr.rel (%p184) target = $region43
              $region40: #{generator_forward.25} parent=35 // loop_body
                %v190 = vld [vmem:[%s188] sm:$0xf]
                %191 = vst [vmem:[%s189] sm:$0xf] %v190
                %v192 = vld [vmem:[%s188 + $0x14] sm:$0xf]
                %193 = vst [vmem:[%s189 + $0x4] sm:$0xf] %v192
                %v194 = vld [vmem:[%s188 + $0x28] sm:$0xf]
                %195 = vst [vmem:[%s189 + $0x8] sm:$0xf] %v194
                %v196 = vld [vmem:[%s188 + $0x3c] sm:$0xf]
                %197 = vst [vmem:[%s189 + $0xc] sm:$0xf] %v196
                %v198 = vld [vmem:[%s188 + $0x50] sm:$0xf]
                %199 = vst [vmem:[%s189 + $0x10] sm:$0xf] %v198
                %v200 = vld [vmem:[%s188 + $0x64] sm:$0xf]
                %201 = vst [vmem:[%s189 + $0x14] sm:$0xf] %v200
                %v202 = vld [vmem:[%s188 + $0x78] sm:$0xf]
                %203 = vst [vmem:[%s189 + $0x18] sm:$0xf] %v202
                %v204 = vld [vmem:[%s188 + $0x8c] sm:$0xf]
                %205 = vst [vmem:[%s189 + $0x1c] sm:$0xf] %v204
                %v206 = vld [vmem:[%s188 + $0xa0] sm:$0xf]
                %207 = vst [vmem:[%s189 + $0x20] sm:$0xf] %v206
                %v208 = vld [vmem:[%s188 + $0xb4] sm:$0xf]
                %209 = vst [vmem:[%s189 + $0x24] sm:$0xf] %v208
                %v210 = vld [vmem:[%s188 + $0xc8] sm:$0xf]
                %211 = vst [vmem:[%s189 + $0x28] sm:$0xf] %v210
                %v212 = vld [vmem:[%s188 + $0xdc] sm:$0xf]
                %213 = vst [vmem:[%s189 + $0x2c] sm:$0xf] %v212
                %v214 = vld [vmem:[%s188 + $0xf0] sm:$0xf]
                %215 = vst [vmem:[%s189 + $0x30] sm:$0xf] %v214
                %v216 = vld [vmem:[%s188 + $0x104] sm:$0xf]
                %217 = vst [vmem:[%s189 + $0x34] sm:$0xf] %v216
                %v218 = vld [vmem:[%s188 + $0x118] sm:$0xf]
                %219 = vst [vmem:[%s189 + $0x38] sm:$0xf] %v218
                %v220 = vld [vmem:[%s188 + $0x12c] sm:$0xf]
                %221 = vst [vmem:[%s189 + $0x3c] sm:$0xf] %v220
              $region41: #{generator_forward.25} parent=35 // loop_footer
                %s187 = sadd.s32 1, %s183
              $region42: #{generator_forward.25} parent=35 // loop_footer_branch
                %182 = sbr.rel target = $region38
              $region43: #{generator_forward.25} parent=35 // loop_exit
                _
            $region36: #{generator_forward.25} parent=27 // pred_fallthru
              _
          $region28: #{generator_forward.25} parent=23 // pred_fallthru
            _
          %273 = vnop
        $region24: #{generator_forward.25} parent=19 // pred_fallthru
          _
        // Predicated region
        $region62: #{generator_forward.25} parent=19 // pred_check
          %p274 = pneg %p78
        $region63: #{generator_forward.25} parent=19 // pred_check_branch
          %276 = sbr.rel (%p274) target = $region65
        $region64: #{generator_forward.25} parent=19 // pred_region
          %s277 = smul.u32 16, %s18
          %p278 = scmp.lt.s32.totalorder %s277, 79
          %s279 = scalar_select %p278, %s277, 79
          %p280 = scmp.lt.s32.totalorder %s17, 0
          %s281 = scalar_select %p280, %s17, 0
          %s282 = sadd.s32 %s281, %s279
          %s283 = smul.addr %s282, 4
          %s284 = scalar_lea.vmem %s1, %s283
          %s285 = smul.u32 16, %s18
        $region65: #{generator_forward.25} parent=19 // pred_fallthru
          _
      $region20: #{generator_forward.25} parent=5 // pred_fallthru
        _
      %p286 = scmp.le.s32.totalorder 1, %s9
      %p287 = scmp.lt.s32.totalorder %s9, 6
      %p288 = pnand %p286, %p287
      %p289 = pneg %p288
      // Predicated region
      $region66: #{generator_forward.25} parent=5 // pred_check
        _
      $region67: #{generator_forward.25} parent=5 // pred_check_branch
        %291 = sbr.rel (%p288) target = $region69
      $region68: #{generator_forward.25} parent=5 // pred_region
        %s292 = ssub.s32 %s9, 1
        %s293 = sand.u32 %s43, 1
        %s294 = sand.u32 %s43, 1
        %s295 = smul.addr %s294, 64
        %s296 = scalar_lea.vmem [#allocation3], %s295
        // Predicated region
        $region70: #{generator_forward.25} parent=68 // pred_check
          %p297 = pneg %p56
        $region71: #{generator_forward.25} parent=68 // pred_check_branch
          %299 = sbr.rel (%p297) target = $region73
        $region72: #{generator_forward.25} parent=68 // pred_region
          _
        $region73: #{generator_forward.25} parent=68 // pred_fallthru
          _
        %s300 = sand.u32 %s43, 1
        %s301 = sand.u32 %s43, 1
        %s302 = smul.addr %s301, 64
        %s303 = scalar_lea.vmem [#allocation3], %s302
        %p304 = pneg %p56
        %p305 = pneg %p53
        %s306 = smul.u32 16, %s21
        %p307 = scmp.lt.s32.totalorder %s306, 79
        %s308 = scalar_select %p307, %s306, 79
        %p309 = scmp.lt.s32.totalorder %s20, 0
        %s310 = scalar_select %p309, %s20, 0
        %s311 = sadd.s32 %s310, %s308
        %s312 = smul.addr %s311, 4
        %s313 = scalar_lea.vmem %s1, %s312
        %p314 = pneg %p84
        %p315 = pneg %p81
        %p316 = scmp.lt.s32.totalorder %s20, 0
        %s317 = scalar_select %p316, %s20, 0
        %s318 = scalar_lea.vmem %s2, %s317
        %p319 = pneg %p110
        %p320 = pneg %p107
        %p321 = pneg %p138
        %p322 = pneg %p135
        %s323 = smul.u32 16, %s19
        %p324 = scmp.lt.s32.totalorder %s323, 15
        %s325 = scalar_select %p324, %s323, 15
        %p326 = scmp.lt.s32.totalorder %s20, 0
        %s327 = scalar_select %p326, %s20, 0
        %s328 = sadd.s32 %s327, %s325
        %s329 = smul.addr %s328, 8
        %s330 = scalar_lea.vmem %s3, %s329
        %s331 = smul.u32 16, %s19
        %s332 = smul.u32 16, %s21
        %p333 = scmp.lt.s32.totalorder %s332, 79
        %s334 = scalar_select %p333, %s332, 79
        %p335 = scmp.lt.s32.totalorder %s20, 0
        %s336 = scalar_select %p335, %s20, 0
        %s337 = sadd.s32 %s336, %s334
        %s338 = smul.addr %s337, 4
        %s339 = scalar_lea.vmem %s1, %s338
        %s340 = smul.u32 16, %s21
        %p341 = scmp.lt.s32.totalorder %s20, 0
        %s342 = scalar_select %p341, %s20, 0
        %s343 = scalar_lea.vmem %s2, %s342
        %s344 = smul.u32 16, %s19
        %p345 = scmp.lt.s32.totalorder %s344, 15
        %s346 = scalar_select %p345, %s344, 15
        %p347 = scmp.lt.s32.totalorder %s20, 0
        %s348 = scalar_select %p347, %s20, 0
        %s349 = sadd.s32 %s348, %s346
        %s350 = smul.addr %s349, 8
        %s351 = scalar_lea.vmem %s3, %s350
        %s352 = smul.u32 16, %s19
        %p354 = scmp.eq.s32.totalorder %s21, 0
        // Predicated region
        $region74: #{generator_forward.25} parent=68 // pred_check
          %p355 = pneg %p354
        $region75: #{generator_forward.25} parent=68 // pred_check_branch
          %357 = sbr.rel (%p355) target = $region77
        $region76: #{generator_forward.25} parent=68 // pred_region
          %358 = vst [vmem:[#allocation2] sm:$0xff] 0.0
          %359 = vst [vmem:[#allocation2 + $0x8] sm:$0xff] 0.0
          %360 = vst [vmem:[#allocation2 + $0x10] sm:$0xff] 0.0
          %361 = vst [vmem:[#allocation2 + $0x18] sm:$0xff] 0.0
          %362 = vst [vmem:[#allocation2 + $0x20] sm:$0xff] 0.0
          %363 = vst [vmem:[#allocation2 + $0x28] sm:$0xff] 0.0
          %364 = vst [vmem:[#allocation2 + $0x30] sm:$0xff] 0.0
          %365 = vst [vmem:[#allocation2 + $0x38] sm:$0xff] 0.0
          %366 = vst [vmem:[#allocation2 + $0x40] sm:$0xff] 0.0
          %367 = vst [vmem:[#allocation2 + $0x48] sm:$0xff] 0.0
          %368 = vst [vmem:[#allocation2 + $0x50] sm:$0xff] 0.0
          %369 = vst [vmem:[#allocation2 + $0x58] sm:$0xff] 0.0
          %370 = vst [vmem:[#allocation2 + $0x60] sm:$0xff] 0.0
          %371 = vst [vmem:[#allocation2 + $0x68] sm:$0xff] 0.0
          %372 = vst [vmem:[#allocation2 + $0x70] sm:$0xff] 0.0
          %373 = vst [vmem:[#allocation2 + $0x78] sm:$0xff] 0.0
        $region77: #{generator_forward.25} parent=68 // pred_fallthru
          _
        %v374 = vld [vmem:[#allocation2] sm:$0xff]
        %v375 = vld [vmem:[#allocation2 + $0x8] sm:$0xff]
        %v376 = vld [vmem:[#allocation2 + $0x10] sm:$0xff]
        %v377 = vld [vmem:[#allocation2 + $0x18] sm:$0xff]
        %v378 = vld [vmem:[#allocation2 + $0x20] sm:$0xff]
        %v379 = vld [vmem:[#allocation2 + $0x28] sm:$0xff]
        %v380 = vld [vmem:[#allocation2 + $0x30] sm:$0xff]
        %v381 = vld [vmem:[#allocation2 + $0x38] sm:$0xff]
        %v382 = vld [vmem:[#allocation2 + $0x40] sm:$0xff]
        %v383 = vld [vmem:[#allocation2 + $0x48] sm:$0xff]
        %v384 = vld [vmem:[#allocation2 + $0x50] sm:$0xff]
        %v385 = vld [vmem:[#allocation2 + $0x58] sm:$0xff]
        %v386 = vld [vmem:[#allocation2 + $0x60] sm:$0xff]
        %v387 = vld [vmem:[#allocation2 + $0x68] sm:$0xff]
        %v388 = vld [vmem:[#allocation2 + $0x70] sm:$0xff]
        %v389 = vld [vmem:[#allocation2 + $0x78] sm:$0xff]
        %v390 = vld [vmem:[%s296] sm:$0xf]
        %v391 = vld [vmem:[%s296 + $0x4] sm:$0xf]
        %v392 = vld [vmem:[%s296 + $0x8] sm:$0xf]
        %v393 = vld [vmem:[%s296 + $0xc] sm:$0xf]
        %v394 = vld [vmem:[%s296 + $0x10] sm:$0xf]
        %v395 = vld [vmem:[%s296 + $0x14] sm:$0xf]
        %v396 = vld [vmem:[%s296 + $0x18] sm:$0xf]
        %v397 = vld [vmem:[%s296 + $0x1c] sm:$0xf]
        %v398 = vld [vmem:[%s296 + $0x20] sm:$0xf]
        %v399 = vld [vmem:[%s296 + $0x24] sm:$0xf]
        %v400 = vld [vmem:[%s296 + $0x28] sm:$0xf]
        %v401 = vld [vmem:[%s296 + $0x2c] sm:$0xf]
        %v402 = vld [vmem:[%s296 + $0x30] sm:$0xf]
        %v403 = vld [vmem:[%s296 + $0x34] sm:$0xf]
        %v404 = vld [vmem:[%s296 + $0x38] sm:$0xf]
        %v405 = vld [vmem:[%s296 + $0x3c] sm:$0xf]
        %v406 = vld [vmem:[%s339] sm:$0xf]
        %v407 = vld [vmem:[%s339 + $0x4] sm:$0xf]
        %v408 = vld [vmem:[%s339 + $0x8] sm:$0xf]
        %v409 = vld [vmem:[%s339 + $0xc] sm:$0xf]
        %v410 = vld [vmem:[%s339 + $0x10] sm:$0xf]
        %v411 = vld [vmem:[%s339 + $0x14] sm:$0xf]
        %v412 = vld [vmem:[%s339 + $0x18] sm:$0xf]
        %v413 = vld [vmem:[%s339 + $0x1c] sm:$0xf]
        %v414 = vld [vmem:[%s339 + $0x20] sm:$0xf]
        %v415 = vld [vmem:[%s339 + $0x24] sm:$0xf]
        %v416 = vld [vmem:[%s339 + $0x28] sm:$0xf]
        %v417 = vld [vmem:[%s339 + $0x2c] sm:$0xf]
        %v418 = vld [vmem:[%s339 + $0x30] sm:$0xf]
        %v419 = vld [vmem:[%s339 + $0x34] sm:$0xf]
        %v420 = vld [vmem:[%s339 + $0x38] sm:$0xf]
        %v421 = vld [vmem:[%s339 + $0x3c] sm:$0xf]
        %v438 = vunpack.c.l.b16 %v390
        %v439 = vunpack.c.l.b16 %v391
        %v440 = vunpack.c.l.b16 %v392
        %v441 = vunpack.c.l.b16 %v393
        %v442 = vunpack.c.l.b16 %v394
        %v443 = vunpack.c.l.b16 %v395
        %v444 = vunpack.c.l.b16 %v396
        %v445 = vunpack.c.l.b16 %v397
        %v446 = vunpack.c.l.b16 %v398
        %v447 = vunpack.c.l.b16 %v399
        %v448 = vunpack.c.l.b16 %v400
        %v449 = vunpack.c.l.b16 %v401
        %v450 = vunpack.c.l.b16 %v402
        %v451 = vunpack.c.l.b16 %v403
        %v452 = vunpack.c.l.b16 %v404
        %v453 = vunpack.c.l.b16 %v405
        %v454 = vpack.c.b16 %v439, %v438
        %v455 = vpack.c.b16 %v441, %v440
        %v456 = vpack.c.b16 %v443, %v442
        %v457 = vpack.c.b16 %v445, %v444
        %v458 = vpack.c.b16 %v447, %v446
        %v459 = vpack.c.b16 %v449, %v448
        %v460 = vpack.c.b16 %v451, %v450
        %v461 = vpack.c.b16 %v453, %v452
        %v486 = vunpack.c.l.b16 %v406
        %v487 = vunpack.c.l.b16 %v407
        %v488 = vunpack.c.l.b16 %v408
        %v489 = vunpack.c.l.b16 %v409
        %v490 = vunpack.c.l.b16 %v410
        %v491 = vunpack.c.l.b16 %v411
        %v492 = vunpack.c.l.b16 %v412
        %v493 = vunpack.c.l.b16 %v413
        %v494 = vunpack.c.l.b16 %v414
        %v495 = vunpack.c.l.b16 %v415
        %v496 = vunpack.c.l.b16 %v416
        %v497 = vunpack.c.l.b16 %v417
        %v498 = vunpack.c.l.b16 %v418
        %v499 = vunpack.c.l.b16 %v419
        %v500 = vunpack.c.l.b16 %v420
        %v501 = vunpack.c.l.b16 %v421
        %v502 = vpack.c.b16 %v487, %v486
        %v503 = vpack.c.b16 %v489, %v488
        %v504 = vpack.c.b16 %v491, %v490
        %v505 = vpack.c.b16 %v493, %v492
        %v506 = vpack.c.b16 %v495, %v494
        %v507 = vpack.c.b16 %v497, %v496
        %v508 = vpack.c.b16 %v499, %v498
        %v509 = vpack.c.b16 %v501, %v500
        %518 = vmatprep.subr.bf16.mxu0 0
        %519 = vmatpush1.bf16.msra.mxu0 %v502
        %520 = vmatprep.subr.bf16.mxu0 0
        %521 = vmatpush1.bf16.msra.mxu0 %v503
        %522 = vmatprep.subr.bf16.mxu0 0
        %523 = vmatpush1.bf16.msra.mxu0 %v504
        %524 = vmatprep.subr.bf16.mxu0 0
        %525 = vmatpush1.bf16.msra.mxu0 %v505
        %526 = vmatprep.subr.bf16.mxu0 0
        %527 = vmatpush1.bf16.msra.mxu0 %v506
        %528 = vmatprep.subr.bf16.mxu0 0
        %529 = vmatpush1.bf16.msra.mxu0 %v507
        %530 = vmatprep.subr.bf16.mxu0 0
        %531 = vmatpush1.bf16.msra.mxu0 %v508
        %532 = vmatprep.subr.bf16.mxu0 0
        %533 = vmatpush1.bf16.msra.mxu0 %v509
        %534 = vmatprep.subr.bf16.mxu0 0
        %535 = vmatpush1.bf16.msra.mxu0 0
        %536 = vmatprep.subr.bf16.mxu0 0
        %537 = vmatpush1.bf16.msra.mxu0 0
        %538 = vmatprep.subr.bf16.mxu0 0
        %539 = vmatpush1.bf16.msra.mxu0 0
        %540 = vmatprep.subr.bf16.mxu0 0
        %541 = vmatpush1.bf16.msra.mxu0 0
        %542 = vmatprep.subr.bf16.mxu0 0
        %543 = vmatpush1.bf16.msra.mxu0 0
        %544 = vmatprep.subr.bf16.mxu0 0
        %545 = vmatpush1.bf16.msra.mxu0 0
        %546 = vmatprep.subr.bf16.mxu0 0
        %547 = vmatpush1.bf16.msra.mxu0 0
        %548 = vmatprep.subr.bf16.mxu0 0
        %549 = vmatpush1.bf16.msra.mxu0 0
        %550 = vmatprep.mubr.bf16.mxu0 0
        %551 = vmatmul.mubr.bf16.gmra.mrb[0].mxu0 %v454
        %v552 = vpop.f32.mrb[0].mxu0
        %v553 = vadd.f32 0.0, %v552
        %v554 = vpop.f32.mrb[0].mxu0
        %v555 = vpop.f32.mrb[0].mxu0
        %v556 = vadd.f32 0.0, %v555
        %v557 = vpop.f32.mrb[0].mxu0
        %558 = vmatprep.mubr.bf16.mxu0 0
        %559 = vmatmul.mubr.bf16.gmra.mrb[0].mxu0 %v455
        %v560 = vpop.f32.mrb[0].mxu0
        %v561 = vadd.f32 0.0, %v560
        %v562 = vpop.f32.mrb[0].mxu0
        %v563 = vpop.f32.mrb[0].mxu0
        %v564 = vadd.f32 0.0, %v563
        %v565 = vpop.f32.mrb[0].mxu0
        %566 = vmatprep.mubr.bf16.mxu0 0
        %567 = vmatmul.mubr.bf16.gmra.mrb[0].mxu0 %v456
        %v568 = vpop.f32.mrb[0].mxu0
        %v569 = vadd.f32 0.0, %v568
        %v570 = vpop.f32.mrb[0].mxu0
        %v571 = vpop.f32.mrb[0].mxu0
        %v572 = vadd.f32 0.0, %v571
        %v573 = vpop.f32.mrb[0].mxu0
        %574 = vmatprep.mubr.bf16.mxu0 0
        %575 = vmatmul.mubr.bf16.gmra.mrb[0].mxu0 %v457
        %v576 = vpop.f32.mrb[0].mxu0
        %v577 = vadd.f32 0.0, %v576
        %v578 = vpop.f32.mrb[0].mxu0
        %v579 = vpop.f32.mrb[0].mxu0
        %v580 = vadd.f32 0.0, %v579
        %v581 = vpop.f32.mrb[0].mxu0
        %582 = vmatprep.mubr.bf16.mxu0 0
        %583 = vmatmul.mubr.bf16.gmra.mrb[0].mxu0 %v458
        %v584 = vpop.f32.mrb[0].mxu0
        %v585 = vadd.f32 0.0, %v584
        %v586 = vpop.f32.mrb[0].mxu0
        %v587 = vpop.f32.mrb[0].mxu0
        %v588 = vadd.f32 0.0, %v587
        %v589 = vpop.f32.mrb[0].mxu0
        %590 = vmatprep.mubr.bf16.mxu0 0
        %591 = vmatmul.mubr.bf16.gmra.mrb[0].mxu0 %v459
        %v592 = vpop.f32.mrb[0].mxu0
        %v593 = vadd.f32 0.0, %v592
        %v594 = vpop.f32.mrb[0].mxu0
        %v595 = vpop.f32.mrb[0].mxu0
        %v596 = vadd.f32 0.0, %v595
        %v597 = vpop.f32.mrb[0].mxu0
        %598 = vmatprep.mubr.bf16.mxu0 0
        %599 = vmatmul.mubr.bf16.gmra.mrb[0].mxu0 %v460
        %v600 = vpop.f32.mrb[0].mxu0
        %v601 = vadd.f32 0.0, %v600
        %v602 = vpop.f32.mrb[0].mxu0
        %v603 = vpop.f32.mrb[0].mxu0
        %v604 = vadd.f32 0.0, %v603
        %v605 = vpop.f32.mrb[0].mxu0
        %606 = vmatprep.mubr.bf16.mxu0 0
        %607 = vmatmul.mubr.bf16.gmra.mrb[0].mxu0 %v461
        %v608 = vpop.f32.mrb[0].mxu0
        %v609 = vadd.f32 0.0, %v608
        %v610 = vpop.f32.mrb[0].mxu0
        %v611 = vpop.f32.mrb[0].mxu0
        %v612 = vadd.f32 0.0, %v611
        %v613 = vpop.f32.mrb[0].mxu0
        %614 = vdwg.mxu0
        %v615 = vadd.f32 %v374, %v553
        %v616 = vadd.f32 %v375, %v556
        %v617 = vadd.f32 %v376, %v561
        %v618 = vadd.f32 %v377, %v564
        %v619 = vadd.f32 %v378, %v569
        %v620 = vadd.f32 %v379, %v572
        %v621 = vadd.f32 %v380, %v577
        %v622 = vadd.f32 %v381, %v580
        %v623 = vadd.f32 %v382, %v585
        %v624 = vadd.f32 %v383, %v588
        %v625 = vadd.f32 %v384, %v593
        %v626 = vadd.f32 %v385, %v596
        %v627 = vadd.f32 %v386, %v601
        %v628 = vadd.f32 %v387, %v604
        %v629 = vadd.f32 %v388, %v609
        %v630 = vadd.f32 %v389, %v612
        %631 = vst [vmem:[#allocation2] sm:$0xff] %v615
        %632 = vst [vmem:[#allocation2 + $0x8] sm:$0xff] %v616
        %633 = vst [vmem:[#allocation2 + $0x10] sm:$0xff] %v617
        %634 = vst [vmem:[#allocation2 + $0x18] sm:$0xff] %v618
        %635 = vst [vmem:[#allocation2 + $0x20] sm:$0xff] %v619
        %636 = vst [vmem:[#allocation2 + $0x28] sm:$0xff] %v620
        %637 = vst [vmem:[#allocation2 + $0x30] sm:$0xff] %v621
        %638 = vst [vmem:[#allocation2 + $0x38] sm:$0xff] %v622
        %639 = vst [vmem:[#allocation2 + $0x40] sm:$0xff] %v623
        %640 = vst [vmem:[#allocation2 + $0x48] sm:$0xff] %v624
        %641 = vst [vmem:[#allocation2 + $0x50] sm:$0xff] %v625
        %642 = vst [vmem:[#allocation2 + $0x58] sm:$0xff] %v626
        %643 = vst [vmem:[#allocation2 + $0x60] sm:$0xff] %v627
        %644 = vst [vmem:[#allocation2 + $0x68] sm:$0xff] %v628
        %645 = vst [vmem:[#allocation2 + $0x70] sm:$0xff] %v629
        %646 = vst [vmem:[#allocation2 + $0x78] sm:$0xff] %v630
        %p647 = scmp.eq.s32.totalorder %s21, 4
        // Predicated region
        $region78: #{generator_forward.25} parent=68 // pred_check
          %p648 = pneg %p647
        $region79: #{generator_forward.25} parent=68 // pred_check_branch
          %650 = sbr.rel (%p648) target = $region81
        $region80: #{generator_forward.25} parent=68 // pred_region
          %v651 = vld [vmem:[#allocation2] sm:$0xff]
          %v652 = vld [vmem:[#allocation2 + $0x8] sm:$0xff]
          %v653 = vld [vmem:[#allocation2 + $0x10] sm:$0xff]
          %v654 = vld [vmem:[#allocation2 + $0x18] sm:$0xff]
          %v655 = vld [vmem:[#allocation2 + $0x20] sm:$0xff]
          %v656 = vld [vmem:[#allocation2 + $0x28] sm:$0xff]
          %v657 = vld [vmem:[#allocation2 + $0x30] sm:$0xff]
          %v658 = vld [vmem:[#allocation2 + $0x38] sm:$0xff]
          %v659 = vld [vmem:[#allocation2 + $0x40] sm:$0xff]
          %v660 = vld [vmem:[#allocation2 + $0x48] sm:$0xff]
          %v661 = vld [vmem:[#allocation2 + $0x50] sm:$0xff]
          %v662 = vld [vmem:[#allocation2 + $0x58] sm:$0xff]
          %v663 = vld [vmem:[#allocation2 + $0x60] sm:$0xff]
          %v664 = vld [vmem:[#allocation2 + $0x68] sm:$0xff]
          %v665 = vld [vmem:[#allocation2 + $0x70] sm:$0xff]
          %v666 = vld [vmem:[#allocation2 + $0x78] sm:$0xff]
          %v667 = vld [vmem:[%s343] sm:$0x1]
          %v669 = vlaneseq
          %v670 = vshrl.u32 %v669, 7
          %v671 = vsub.s32 0, %v670
          %v672 = vrot.slane %v667, %v671
          %v674 = vadd.f32 %v651, %v672
          %v675 = vadd.f32 %v652, %v672
          %v676 = vadd.f32 %v653, %v672
          %v677 = vadd.f32 %v654, %v672
          %v678 = vadd.f32 %v655, %v672
          %v679 = vadd.f32 %v656, %v672
          %v680 = vadd.f32 %v657, %v672
          %v681 = vadd.f32 %v658, %v672
          %v682 = vadd.f32 %v659, %v672
          %v683 = vadd.f32 %v660, %v672
          %v684 = vadd.f32 %v661, %v672
          %v685 = vadd.f32 %v662, %v672
          %v686 = vadd.f32 %v663, %v672
          %v687 = vadd.f32 %v664, %v672
          %v688 = vadd.f32 %v665, %v672
          %v689 = vadd.f32 %v666, %v672
          %690 = vst [vmem:[%s351] sm:$0xff] %v674
          %691 = vst [vmem:[%s351 + $0x8] sm:$0xff] %v675
          %692 = vst [vmem:[%s351 + $0x10] sm:$0xff] %v676
          %693 = vst [vmem:[%s351 + $0x18] sm:$0xff] %v677
          %694 = vst [vmem:[%s351 + $0x20] sm:$0xff] %v678
          %695 = vst [vmem:[%s351 + $0x28] sm:$0xff] %v679
          %696 = vst [vmem:[%s351 + $0x30] sm:$0xff] %v680
          %697 = vst [vmem:[%s351 + $0x38] sm:$0xff] %v681
          %698 = vst [vmem:[%s351 + $0x40] sm:$0xff] %v682
          %699 = vst [vmem:[%s351 + $0x48] sm:$0xff] %v683
          %700 = vst [vmem:[%s351 + $0x50] sm:$0xff] %v684
          %701 = vst [vmem:[%s351 + $0x58] sm:$0xff] %v685
          %702 = vst [vmem:[%s351 + $0x60] sm:$0xff] %v686
          %703 = vst [vmem:[%s351 + $0x68] sm:$0xff] %v687
          %704 = vst [vmem:[%s351 + $0x70] sm:$0xff] %v688
          %705 = vst [vmem:[%s351 + $0x78] sm:$0xff] %v689
        $region81: #{generator_forward.25} parent=68 // pred_fallthru
          _
        %s706 = smul.u32 16, %s19
        %p707 = scmp.lt.s32.totalorder %s706, 15
        %s708 = scalar_select %p707, %s706, 15
        %p709 = scmp.lt.s32.totalorder %s20, 0
        %s710 = scalar_select %p709, %s20, 0
        %s711 = sadd.s32 %s710, %s708
        %s712 = smul.addr %s711, 8
        %s713 = scalar_lea.vmem %s3, %s712
        // Predicated region
        $region82: #{generator_forward.25} parent=68 // pred_check
          %p714 = pneg %p135
        $region83: #{generator_forward.25} parent=68 // pred_check_branch
          %716 = sbr.rel (%p714) target = $region85
        $region84: #{generator_forward.25} parent=68 // pred_region
          %s717 = smul.u32 16, %s19
        $region85: #{generator_forward.25} parent=68 // pred_fallthru
          _
        // Predicated region
        $region86: #{generator_forward.25} parent=68 // pred_check
          %p718 = pneg %p135
        $region87: #{generator_forward.25} parent=68 // pred_check_branch
          %720 = sbr.rel (%p718) target = $region89
        $region88: #{generator_forward.25} parent=68 // pred_region
          %s721 = smul.u32 16, %s19
          %p722 = scmp.lt.s32.totalorder %s721, 15
          %s723 = scalar_select %p722, %s721, 15
          %p724 = scmp.lt.s32.totalorder %s20, 0
          %s725 = scalar_select %p724, %s20, 0
          %s726 = sadd.s32 %s725, %s723
          %s727 = smul.addr %s726, 8
          %s728 = scalar_lea.vmem %s3, %s727
        $region89: #{generator_forward.25} parent=68 // pred_fallthru
          _
      $region69: #{generator_forward.25} parent=5 // pred_fallthru
        _
      %p729 = scmp.le.s32.totalorder 2, %s9
      // Predicated region
      $region90: #{generator_forward.25} parent=5 // pred_check
        %p730 = pneg %p729
      $region91: #{generator_forward.25} parent=5 // pred_check_branch
        %732 = sbr.rel (%p730) target = $region93
      $region92: #{generator_forward.25} parent=5 // pred_region
        %s733 = ssub.s32 %s9, 2
      $region93: #{generator_forward.25} parent=5 // pred_fallthru
        _
    $region6: #{generator_forward.25} parent=1 // loop_footer
      %s13 = sadd.s32 1, %s9
    $region7: #{generator_forward.25} parent=1 // loop_footer_branch
      %8 = sbr.rel target = $region3
    $region8: #{generator_forward.25} parent=1 // loop_exit
      _

// kernel: generator_forward.26
$region0: #{generator_forward.26}
  #allocation0 [shape = 'u32[]', space=smem, size = 0x4, offset = 0x4, fixed_abs, tag = 'smem constant byte address 0x4 - core index']
  #allocation1 [shape = 'u32[144,128]{1,0:T(1,128)}', space=vmem, size = 0x12000, scoped, tag = 'internal scratch']
  %s0 = inlined_call_operand.vmem [shape: f32[2,64,128], index: 0, kind: input, shape index: {}]
  %s1 = inlined_call_operand.vmem [shape: f32[2,64,128], index: 1, kind: output, shape index: {}]
  %s2 = sld [smem:[#allocation0]]
  $region37: #{generator_forward.26} parent=0
    _
  %s4 = ssub.s32 1, %s2
  %s5 = scalar_select 0, %s4, %s2
  loop: start=0, step=1, limit=4
  $region2: #{generator_forward.26} parent=0 // loop_pre_header
    _
  $region3: #{generator_forward.26} parent=0 // loop_header
    %s7 = sphi 0, %s11
    %p8 = scmp.ge.s32.totalorder %s7, 4
    %s14 = sphi 0, %s26
    %s15 = sphi 0, %s22
    %s16 = sphi 0, %s14
    %s17 = sphi 0, %s15
    %s18 = sphi 0, %s16
    %s19 = sphi 0, %s17
    %s31 = sphi 0, %s33
    %s34 = sphi 0, %s31
    %s35 = sphi 0, %s34
    %s51 = sphi 0, %s35
    %s59 = sphi 0, %s61
    %s62 = sphi 0, %s59
    %s63 = sphi 0, %s62
    %s79 = sphi 0, %s63
  $region4: #{generator_forward.26} parent=0 // loop_header_branch
    %10 = sbr.rel (%p8) target = $region8
  $region5: #{generator_forward.26} parent=0 // loop_body
    %s12 = ssub.s32 %s7, 1
    %s13 = ssub.s32 %s7, 2
    %s20 = sadd.s32 1, %s15
    %p21 = scmp.ge.s32.totalorder %s20, 1
    %s22 = scalar_select %p21, 0, %s20
    %s23 = sadd.s32 1, %s14
    %s24 = scalar_select %p21, %s23, %s14
    %p25 = scmp.ge.s32.totalorder %s24, 2
    %s26 = scalar_select %p25, 0, %s24
    %s27 = ssub.s32 %s14, %s26
    %s28 = ssub.s32 %s15, %s22
    %s29 = sor.u32 %s27, %s28
    %p30 = scmp.eq.s32.totalorder %s29, 0
    %s32 = sadd.s32 %s31, 1
    %s33 = scalar_select %p30, %s31, %s32
    %p36 = pneg %p30
    %p37 = scmp.eq.s32.totalorder %s7, 1
    %p38 = por %p36, %p37
    %p39 = scmp.ne.s32.totalorder %s31, %s34
    %p40 = scmp.eq.s32.totalorder %s7, 0
    %p41 = por %p39, %p40
    %p42 = scmp.ne.s32.totalorder %s31, %s34
    %p43 = scmp.eq.s32.totalorder %s12, 1
    %p44 = por %p42, %p43
    %p45 = scmp.ne.s32.totalorder %s34, %s35
    %p46 = scmp.eq.s32.totalorder %s12, 0
    %p47 = por %p45, %p46
    %p48 = scmp.ne.s32.totalorder %s34, %s35
    %p49 = scmp.eq.s32.totalorder %s13, 1
    %p50 = por %p48, %p49
    %p52 = scmp.ne.s32.totalorder %s35, %s51
    %p53 = scmp.eq.s32.totalorder %s13, 0
    %p54 = por %p52, %p53
    %s55 = ssub.s32 %s14, %s26
    %s56 = ssub.s32 %s15, %s22
    %s57 = sor.u32 %s55, %s56
    %p58 = scmp.eq.s32.totalorder %s57, 0
    %s60 = sadd.s32 %s59, 1
    %s61 = scalar_select %p58, %s59, %s60
    %p64 = pneg %p58
    %p65 = scmp.eq.s32.totalorder %s7, 1
    %p66 = por %p64, %p65
    %p67 = scmp.ne.s32.totalorder %s59, %s62
    %p68 = scmp.eq.s32.totalorder %s7, 0
    %p69 = por %p67, %p68
    %p70 = scmp.ne.s32.totalorder %s59, %s62
    %p71 = scmp.eq.s32.totalorder %s12, 1
    %p72 = por %p70, %p71
    %p73 = scmp.ne.s32.totalorder %s62, %s63
    %p74 = scmp.eq.s32.totalorder %s12, 0
    %p75 = por %p73, %p74
    %p76 = scmp.ne.s32.totalorder %s62, %s63
    %p77 = scmp.eq.s32.totalorder %s13, 1
    %p78 = por %p76, %p77
    %p80 = scmp.ne.s32.totalorder %s63, %s79
    %p81 = scmp.eq.s32.totalorder %s13, 0
    %p82 = por %p80, %p81
    %p83 = scmp.le.s32.totalorder 1, %s7
    %p84 = scmp.lt.s32.totalorder %s7, 3
    %p85 = pnand %p83, %p84
    %p86 = pneg %p85
    // Predicated region
    $region9: #{generator_forward.26} parent=5 // pred_check
      _
    $region10: #{generator_forward.26} parent=5 // pred_check_branch
      %88 = sbr.rel (%p85) target = $region12
    $region11: #{generator_forward.26} parent=5 // pred_region
      %s89 = ssub.s32 %s7, 1
    $region12: #{generator_forward.26} parent=5 // pred_fallthru
      _
    %p90 = scmp.lt.s32.totalorder %s7, 2
    // Predicated region
    $region13: #{generator_forward.26} parent=5 // pred_check
      %p91 = pneg %p90
    $region14: #{generator_forward.26} parent=5 // pred_check_branch
      %93 = sbr.rel (%p91) target = $region16
    $region15: #{generator_forward.26} parent=5 // pred_region
      // Predicated region
      $region17: #{generator_forward.26} parent=15 // pred_check
        %p94 = pneg %p41
      $region18: #{generator_forward.26} parent=15 // pred_check_branch
        %96 = sbr.rel (%p94) target = $region20
      $region19: #{generator_forward.26} parent=15 // pred_region
        %p97 = scmp.lt.s32.totalorder %s14, 1
        %s98 = scalar_select %p97, %s14, 1
        %p99 = scmp.lt.s32.totalorder %s15, 0
        %s100 = scalar_select %p99, %s15, 0
        %s101 = smul.addr %s98, 8
        %s102 = sadd.s32 %s100, %s101
        %s103 = smul.addr %s102, 8
        %s104 = scalar_lea.vmem %s0, %s103
      $region20: #{generator_forward.26} parent=15 // pred_fallthru
        _
    $region16: #{generator_forward.26} parent=5 // pred_fallthru
      _
    %p105 = scmp.le.s32.totalorder 1, %s7
    %p106 = scmp.lt.s32.totalorder %s7, 3
    %p107 = pnand %p105, %p106
    %p108 = pneg %p107
    // Predicated region
    $region21: #{generator_forward.26} parent=5 // pred_check
      _
    $region22: #{generator_forward.26} parent=5 // pred_check_branch
      %110 = sbr.rel (%p107) target = $region24
    $region23: #{generator_forward.26} parent=5 // pred_region
      %s111 = ssub.s32 %s7, 1
      %p112 = scmp.lt.s32.totalorder %s16, 1
      %s113 = scalar_select %p112, %s16, 1
      %p114 = scmp.lt.s32.totalorder %s17, 0
      %s115 = scalar_select %p114, %s17, 0
      %s116 = smul.addr %s113, 8
      %s117 = sadd.s32 %s115, %s116
      %s118 = smul.addr %s117, 8
      %s119 = scalar_lea.vmem %s0, %s118
      %p120 = pneg %p47
      %p121 = pneg %p44
      %p122 = pneg %p75
      %p123 = pneg %p72
      %p124 = scmp.lt.s32.totalorder %s16, 1
      %s125 = scalar_select %p124, %s16, 1
      %p126 = scmp.lt.s32.totalorder %s17, 0
      %s127 = scalar_select %p126, %s17, 0
      %s128 = smul.addr %s125, 8
      %s129 = sadd.s32 %s127, %s128
      %s130 = smul.addr %s129, 8
      %s131 = scalar_lea.vmem %s1, %s130
      %p132 = scmp.lt.s32.totalorder %s16, 1
      %s133 = scalar_select %p132, %s16, 1
      %p134 = scmp.lt.s32.totalorder %s17, 0
      %s135 = scalar_select %p134, %s17, 0
      %s136 = smul.addr %s133, 8
      %s137 = sadd.s32 %s135, %s136
      %s138 = smul.addr %s137, 8
      %s139 = scalar_lea.vmem %s0, %s138
      %p140 = scmp.lt.s32.totalorder %s16, 1
      %s141 = scalar_select %p140, %s16, 1
      %p142 = scmp.lt.s32.totalorder %s17, 0
      %s143 = scalar_select %p142, %s17, 0
      %s144 = smul.addr %s141, 8
      %s145 = sadd.s32 %s143, %s144
      %s146 = smul.addr %s145, 8
      %s147 = scalar_lea.vmem %s1, %s146
      %v148 = vld [vmem:[%s139] sm:$0xff]
      %v149 = vld [vmem:[%s139 + $0x8] sm:$0xff]
      %v150 = vld [vmem:[%s139 + $0x10] sm:$0xff]
      %v151 = vld [vmem:[%s139 + $0x18] sm:$0xff]
      %v152 = vld [vmem:[%s139 + $0x20] sm:$0xff]
      %v153 = vld [vmem:[%s139 + $0x28] sm:$0xff]
      %v154 = vld [vmem:[%s139 + $0x30] sm:$0xff]
      %v155 = vld [vmem:[%s139 + $0x38] sm:$0xff]
      %v156 = vadd.f32 %v148, %v149
      %v157 = vadd.f32 %v156, %v150
      %v158 = vadd.f32 %v157, %v151
      %v159 = vadd.f32 %v158, %v152
      %v160 = vadd.f32 %v159, %v153
      %v161 = vadd.f32 %v160, %v154
      %v162 = vadd.f32 %v161, %v155
      %v163 = vrot.slane %v162, 4
      %v164 = vadd.f32 %v162, %v163
      %v165 = vrot.slane %v164, 2
      %v166 = vadd.f32 %v164, %v165
      %v167 = vrot.slane %v166, 1
      %v168 = vadd.f32 %v166, %v167
      %v169 = vrcp.pop 64.0
      %v170 = vmul.f32 %v168, %v169
      %v171 = vsub.f32 %v148, %v170
      %v172 = vsub.f32 %v149, %v170
      %v173 = vsub.f32 %v150, %v170
      %v174 = vsub.f32 %v151, %v170
      %v175 = vsub.f32 %v152, %v170
      %v176 = vsub.f32 %v153, %v170
      %v177 = vsub.f32 %v154, %v170
      %v178 = vsub.f32 %v155, %v170
      %v179 = vmul.f32 %v171, %v171
      %v180 = vmul.f32 %v172, %v172
      %v181 = vmul.f32 %v173, %v173
      %v182 = vmul.f32 %v174, %v174
      %v183 = vmul.f32 %v175, %v175
      %v184 = vmul.f32 %v176, %v176
      %v185 = vmul.f32 %v177, %v177
      %v186 = vmul.f32 %v178, %v178
      %v187 = vadd.f32 %v179, %v180
      %v188 = vadd.f32 %v187, %v181
      %v189 = vadd.f32 %v188, %v182
      %v190 = vadd.f32 %v189, %v183
      %v191 = vadd.f32 %v190, %v184
      %v192 = vadd.f32 %v191, %v185
      %v193 = vadd.f32 %v192, %v186
      %v194 = vrot.slane %v193, 4
      %v195 = vadd.f32 %v193, %v194
      %v196 = vrot.slane %v195, 2
      %v197 = vadd.f32 %v195, %v196
      %v198 = vrot.slane %v197, 1
      %v199 = vadd.f32 %v197, %v198
      %v200 = vmul.f32 %v199, %v169
      %v201 = vadd.f32 %v200, 1e-05
      %v202 = vrsqrt.pop %v201
      %v203 = vmul.f32 %v171, %v202
      %v204 = vmul.f32 %v172, %v202
      %v205 = vmul.f32 %v173, %v202
      %v206 = vmul.f32 %v174, %v202
      %v207 = vmul.f32 %v175, %v202
      %v208 = vmul.f32 %v176, %v202
      %v209 = vmul.f32 %v177, %v202
      %v210 = vmul.f32 %v178, %v202
      %v211 = vmax.f32 %v203, 0.0
      %v212 = vmax.f32 %v204, 0.0
      %v213 = vmax.f32 %v205, 0.0
      %v214 = vmax.f32 %v206, 0.0
      %v215 = vmax.f32 %v207, 0.0
      %v216 = vmax.f32 %v208, 0.0
      %v217 = vmax.f32 %v209, 0.0
      %v218 = vmax.f32 %v210, 0.0
      %219 = vst [vmem:[%s147] sm:$0xff] %v211
      %220 = vst [vmem:[%s147 + $0x8] sm:$0xff] %v212
      %221 = vst [vmem:[%s147 + $0x10] sm:$0xff] %v213
      %222 = vst [vmem:[%s147 + $0x18] sm:$0xff] %v214
      %223 = vst [vmem:[%s147 + $0x20] sm:$0xff] %v215
      %224 = vst [vmem:[%s147 + $0x28] sm:$0xff] %v216
      %225 = vst [vmem:[%s147 + $0x30] sm:$0xff] %v217
      %226 = vst [vmem:[%s147 + $0x38] sm:$0xff] %v218
      %p227 = scmp.lt.s32.totalorder %s16, 1
      %s228 = scalar_select %p227, %s16, 1
      %p229 = scmp.lt.s32.totalorder %s17, 0
      %s230 = scalar_select %p229, %s17, 0
      %s231 = smul.addr %s228, 8
      %s232 = sadd.s32 %s230, %s231
      %s233 = smul.addr %s232, 8
      %s234 = scalar_lea.vmem %s1, %s233
      // Predicated region
      $region25: #{generator_forward.26} parent=23 // pred_check
        %p235 = pneg %p72
      $region26: #{generator_forward.26} parent=23 // pred_check_branch
        %237 = sbr.rel (%p235) target = $region28
      $region27: #{generator_forward.26} parent=23 // pred_region
        _
      $region28: #{generator_forward.26} parent=23 // pred_fallthru
        _
    $region24: #{generator_forward.26} parent=5 // pred_fallthru
      _
    %p238 = scmp.le.s32.totalorder 2, %s7
    // Predicated region
    $region29: #{generator_forward.26} parent=5 // pred_check
      %p239 = pneg %p238
    $region30: #{generator_forward.26} parent=5 // pred_check_branch
      %241 = sbr.rel (%p239) target = $region32
    $region31: #{generator_forward.26} parent=5 // pred_region
      %s242 = ssub.s32 %s7, 2
      // Predicated region
      $region33: #{generator_forward.26} parent=31 // pred_check
        %p243 = pneg %p78
      $region34: #{generator_forward.26} parent=31 // pred_check_branch
        %245 = sbr.rel (%p243) target = $region36
      $region35: #{generator_forward.26} parent=31 // pred_region
        %p246 = scmp.lt.s32.totalorder %s18, 1
        %s247 = scalar_select %p246, %s18, 1
        %p248 = scmp.lt.s32.totalorder %s19, 0
        %s249 = scalar_select %p248, %s19, 0
        %s250 = smul.addr %s247, 8
        %s251 = sadd.s32 %s249, %s250
        %s252 = smul.addr %s251, 8
        %s253 = scalar_lea.vmem %s1, %s252
      $region36: #{generator_forward.26} parent=31 // pred_fallthru
        _
    $region32: #{generator_forward.26} parent=5 // pred_fallthru
      _
  $region6: #{generator_forward.26} parent=0 // loop_footer
    %s11 = sadd.s32 1, %s7
  $region7: #{generator_forward.26} parent=0 // loop_footer_branch
    %6 = sbr.rel target = $region3
  $region8: #{generator_forward.26} parent=0 // loop_exit
    _

// kernel: generator_forward.27
$region0: #{generator_forward.27}
  #allocation0 [shape = 'u32[]', space=smem, size = 0x4, offset = 0x4, fixed_abs, tag = 'smem constant byte address 0x4 - core index']
  #allocation1 [shape = 'u32[144,128]{1,0:T(1,128)}', space=vmem, size = 0x12000, scoped, tag = 'internal scratch']
  #allocation2 [shape = 'f32[32,256]{1,0:T(8,128)}', space=vmem, size = 0x8000, scoped, tag = 'scratch operand']
  %s0 = inlined_call_operand.vmem [shape: bf16[32,1152], index: 0, kind: input, shape index: {}]
  %s1 = inlined_call_operand.vmem [shape: bf16[1152,256], index: 1, kind: input, shape index: {}]
  %s2 = inlined_call_operand.vmem [shape: f32[1,256], index: 2, kind: input, shape index: {}]
  %s3 = inlined_call_operand.vmem [shape: f32[32,256], index: 3, kind: output, shape index: {}]
  %s4 = sld [smem:[#allocation0]]
  $region79: #{generator_forward.27} parent=0
    _
  %s6 = ssub.s32 1, %s4
  %s7 = scalar_select 0, %s6, %s4
  $region1: #{generator_forward.27} parent=0
    #allocation3 [shape = 'u8[49152]{0}', space=vmem, size = 0xc000, scoped, tag = 'input window, operand 0']
    loop: start=0, step=1, limit=5
    $region2: #{generator_forward.27} parent=1 // loop_pre_header
      _
    $region3: #{generator_forward.27} parent=1 // loop_header
      %s9 = sphi 0, %s13
      %p10 = scmp.ge.s32.totalorder %s9, 5
      %s16 = sphi 0, %s35
      %s17 = sphi 0, %s31
      %s18 = sphi 0, %s27
      %s19 = sphi 0, %s16
      %s20 = sphi 0, %s17
      %s21 = sphi 0, %s18
      %s22 = sphi 0, %s19
      %s23 = sphi 0, %s20
      %s24 = sphi 0, %s21
      %s40 = sphi 0, %s42
      %s43 = sphi 0, %s40
      %s44 = sphi 0, %s43
      %s60 = sphi 0, %s44
      %s68 = sphi 0, %s70
      %s71 = sphi 0, %s68
      %s72 = sphi 0, %s71
      %s88 = sphi 0, %s72
      %s94 = sphi 0, %s96
      %s97 = sphi 0, %s94
      %s98 = sphi 0, %s97
      %s114 = sphi 0, %s98
      %s122 = sphi 0, %s124
      %s125 = sphi 0, %s122
      %s126 = sphi 0, %s125
      %s142 = sphi 0, %s126
    $region4: #{generator_forward.27} parent=1 // loop_header_branch
      %12 = sbr.rel (%p10) target = $region8
    $region5: #{generator_forward.27} parent=1 // loop_body
      %s14 = ssub.s32 %s9, 1
      %s15 = ssub.s32 %s9, 2
      %s25 = sadd.s32 1, %s18
      %p26 = scmp.ge.s32.totalorder %s25, 3
      %s27 = scalar_select %p26, 0, %s25
      %s28 = sadd.s32 1, %s17
      %s29 = scalar_select %p26, %s28, %s17
      %p30 = scmp.ge.s32.totalorder %s29, 1
      %s31 = scalar_select %p30, 0, %s29
      %s32 = sadd.s32 1, %s16
      %s33 = scalar_select %p30, %s32, %s16
      %p34 = scmp.ge.s32.totalorder %s33, 1
      %s35 = scalar_select %p34, 0, %s33
      %s36 = ssub.s32 %s16, %s35
      %s37 = ssub.s32 %s18, %s27
      %s38 = sor.u32 %s36, %s37
      %p39 = scmp.eq.s32.totalorder %s38, 0
      %s41 = sadd.s32 %s40, 1
      %s42 = scalar_select %p39, %s40, %s41
      %p45 = pneg %p39
      %p46 = scmp.eq.s32.totalorder %s9, 2
      %p47 = por %p45, %p46
      %p48 = scmp.ne.s32.totalorder %s40, %s43
      %p49 = scmp.eq.s32.totalorder %s9, 0
      %p50 = por %p48, %p49
      %p51 = scmp.ne.s32.totalorder %s40, %s43
      %p52 = scmp.eq.s32.totalorder %s14, 2
      %p53 = por %p51, %p52
      %p54 = scmp.ne.s32.totalorder %s43, %s44
      %p55 = scmp.eq.s32.totalorder %s14, 0
      %p56 = por %p54, %p55
      %p57 = scmp.ne.s32.totalorder %s43, %s44
      %p58 = scmp.eq.s32.totalorder %s15, 2
      %p59 = por %p57, %p58
      %p61 = scmp.ne.s32.totalorder %s44, %s60
      %p62 = scmp.eq.s32.totalorder %s15, 0
      %p63 = por %p61, %p62
      %s64 = ssub.s32 %s18, %s27
      %s65 = ssub.s32 %s17, %s31
      %s66 = sor.u32 %s64, %s65
      %p67 = scmp.eq.s32.totalorder %s66, 0
      %s69 = sadd.s32 %s68, 1
      %s70 = scalar_select %p67, %s68, %s69
      %p73 = pneg %p67
      %p74 = scmp.eq.s32.totalorder %s9, 2
      %p75 = por %p73, %p74
      %p76 = scmp.ne.s32.totalorder %s68, %s71
      %p77 = scmp.eq.s32.totalorder %s9, 0
      %p78 = por %p76, %p77
      %p79 = scmp.ne.s32.totalorder %s68, %s71
      %p80 = scmp.eq.s32.totalorder %s14, 2
      %p81 = por %p79, %p80
      %p82 = scmp.ne.s32.totalorder %s71, %s72
      %p83 = scmp.eq.s32.totalorder %s14, 0
      %p84 = por %p82, %p83
      %p85 = scmp.ne.s32.totalorder %s71, %s72
      %p86 = scmp.eq.s32.totalorder %s15, 2
      %p87 = por %p85, %p86
      %p89 = scmp.ne.s32.totalorder %s72, %s88
      %p90 = scmp.eq.s32.totalorder %s15, 0
      %p91 = por %p89, %p90
      %s92 = ssub.s32 %s17, %s31
      %p93 = scmp.eq.s32.totalorder %s92, 0
      %s95 = sadd.s32 %s94, 1
      %s96 = scalar_select %p93, %s94, %s95
      %p99 = pneg %p93
      %p100 = scmp.eq.s32.totalorder %s9, 2
      %p101 = por %p99, %p100
      %p102 = scmp.ne.s32.totalorder %s94, %s97
      %p103 = scmp.eq.s32.totalorder %s9, 0
      %p104 = por %p102, %p103
      %p105 = scmp.ne.s32.totalorder %s94, %s97
      %p106 = scmp.eq.s32.totalorder %s14, 2
      %p107 = por %p105, %p106
      %p108 = scmp.ne.s32.totalorder %s97, %s98
      %p109 = scmp.eq.s32.totalorder %s14, 0
      %p110 = por %p108, %p109
      %p111 = scmp.ne.s32.totalorder %s97, %s98
      %p112 = scmp.eq.s32.totalorder %s15, 2
      %p113 = por %p111, %p112
      %p115 = scmp.ne.s32.totalorder %s98, %s114
      %p116 = scmp.eq.s32.totalorder %s15, 0
      %p117 = por %p115, %p116
      %s118 = ssub.s32 %s16, %s35
      %s119 = ssub.s32 %s17, %s31
      %s120 = sor.u32 %s118, %s119
      %p121 = scmp.eq.s32.totalorder %s120, 0
      %s123 = sadd.s32 %s122, 1
      %s124 = scalar_select %p121, %s122, %s123
      %p127 = pneg %p121
      %p128 = scmp.eq.s32.totalorder %s9, 2
      %p129 = por %p127, %p128
      %p130 = scmp.ne.s32.totalorder %s122, %s125
      %p131 = scmp.eq.s32.totalorder %s9, 0
      %p132 = por %p130, %p131
      %p133 = scmp.ne.s32.totalorder %s122, %s125
      %p134 = scmp.eq.s32.totalorder %s14, 2
      %p135 = por %p133, %p134
      %p136 = scmp.ne.s32.totalorder %s125, %s126
      %p137 = scmp.eq.s32.totalorder %s14, 0
      %p138 = por %p136, %p137
      %p139 = scmp.ne.s32.totalorder %s125, %s126
      %p140 = scmp.eq.s32.totalorder %s15, 2
      %p141 = por %p139, %p140
      %p143 = scmp.ne.s32.totalorder %s126, %s142
      %p144 = scmp.eq.s32.totalorder %s15, 0
      %p145 = por %p143, %p144
      %p146 = scmp.le.s32.totalorder 1, %s9
      %p147 = scmp.lt.s32.totalorder %s9, 4
      %p148 = pnand %p146, %p147
      %p149 = pneg %p148
      // Predicated region
      $region9: #{generator_forward.27} parent=5 // pred_check
        _
      $region10: #{generator_forward.27} parent=5 // pred_check_branch
        %151 = sbr.rel (%p148) target = $region12
      $region11: #{generator_forward.27} parent=5 // pred_region
        %s152 = ssub.s32 %s9, 1
        // Predicated region
        $region13: #{generator_forward.27} parent=11 // pred_check
          %p153 = pneg %p110
        $region14: #{generator_forward.27} parent=11 // pred_check_branch
          %155 = sbr.rel (%p153) target = $region16
        $region15: #{generator_forward.27} parent=11 // pred_region
          %s156 = smul.u32 2, %s20
          %p157 = scmp.lt.s32.totalorder %s156, 1
          %s158 = scalar_select %p157, %s156, 1
          %s159 = scalar_lea.vmem %s2, %s158
          %s160 = smul.u32 2, %s20
        $region16: #{generator_forward.27} parent=11 // pred_fallthru
          _
      $region12: #{generator_forward.27} parent=5 // pred_fallthru
        _
      %p161 = scmp.lt.s32.totalorder %s9, 3
      // Predicated region
      $region17: #{generator_forward.27} parent=5 // pred_check
        %p162 = pneg %p161
      $region18: #{generator_forward.27} parent=5 // pred_check_branch
        %164 = sbr.rel (%p162) target = $region20
      $region19: #{generator_forward.27} parent=5 // pred_region
        // Predicated region
        $region21: #{generator_forward.27} parent=19 // pred_check
          %p165 = pneg %p50
        $region22: #{generator_forward.27} parent=19 // pred_check_branch
          %167 = sbr.rel (%p165) target = $region24
        $region23: #{generator_forward.27} parent=19 // pred_region
          %s168 = sand.u32 %s40, 1
          %s169 = sand.u32 %s40, 1
          %s170 = smul.addr %s169, 48
          %s171 = scalar_lea.vmem [#allocation3], %s170
          %s172 = smul.u32 4, %s16
          %s173 = smul.u32 3, %s18
          %s174 = smul.addr %s172, 9
          %s175 = sadd.s32 %s173, %s174
          %s176 = smul.addr %s175, 4
          %s177 = scalar_lea.vmem %s0, %s176
          // Predicated region
          $region25: #{generator_forward.27} parent=23 // pred_check
            _
          $region26: #{generator_forward.27} parent=23 // pred_check_branch
            %179 = sbr.rel (0) target = $region28
          $region27: #{generator_forward.27} parent=23 // pred_region
            // Predicated region
            $region29: #{generator_forward.27} parent=27 // pred_check
              _
            $region30: #{generator_forward.27} parent=27 // pred_check_branch
              %181 = sbr.rel (0) target = $region32
            $region31: #{generator_forward.27} parent=27 // pred_region
              %s182 = scalar_lea.vmem %s177, 8
              %s183 = scalar_lea.vmem %s171, 8 [#allocation3]
              loop: start=0, step=1, limit=1
              $region33: #{generator_forward.27} parent=31 // loop_pre_header
                _
              $region34: #{generator_forward.27} parent=31 // loop_header
                %s185 = sphi 0, %s189
                %p186 = scmp.ge.s32.totalorder %s185, 1
                %s190 = sphi %s177, %s177
                %s191 = sphi %s171, %s171
              $region35: #{generator_forward.27} parent=31 // loop_header_branch
                %188 = sbr.rel (%p186) target = $region39
              $region36: #{generator_forward.27} parent=31 // loop_body
                %v192 = vld [vmem:[%s190] sm:$0xff]
                %193 = vst [vmem:[%s191] sm:$0xff] %v192
                %v194 = vld [vmem:[%s190 + $0x24] sm:$0xff]
                %195 = vst [vmem:[%s191 + $0xc] sm:$0xff] %v194
                %v196 = vld [vmem:[%s190 + $0x48] sm:$0xff]
                %197 = vst [vmem:[%s191 + $0x18] sm:$0xff] %v196
                %v198 = vld [vmem:[%s190 + $0x6c] sm:$0xff]
                %199 = vst [vmem:[%s191 + $0x24] sm:$0xff] %v198
              $region37: #{generator_forward.27} parent=31 // loop_footer
                %s189 = sadd.s32 1, %s185
              $region38: #{generator_forward.27} parent=31 // loop_footer_branch
                %184 = sbr.rel target = $region34
              $region39: #{generator_forward.27} parent=31 // loop_exit
                _
              loop: start=0, step=1, limit=1
              $region40: #{generator_forward.27} parent=31 // loop_pre_header
                _
              $region41: #{generator_forward.27} parent=31 // loop_header
                %s202 = sphi 0, %s206
                %p203 = scmp.ge.s32.totalorder %s202, 1
                %s207 = sphi %s182, %s182
                %s208 = sphi %s183, %s183
              $region42: #{generator_forward.27} parent=31 // loop_header_branch
                %205 = sbr.rel (%p203) target = $region46
              $region43: #{generator_forward.27} parent=31 // loop_body
                %v209 = vld [vmem:[%s207] sm:$0xf]
                %210 = vst [vmem:[%s208] sm:$0xf] %v209
                %v211 = vld [vmem:[%s207 + $0x24] sm:$0xf]
                %212 = vst [vmem:[%s208 + $0xc] sm:$0xf] %v211
                %v213 = vld [vmem:[%s207 + $0x48] sm:$0xf]
                %214 = vst [vmem:[%s208 + $0x18] sm:$0xf] %v213
                %v215 = vld [vmem:[%s207 + $0x6c] sm:$0xf]
                %216 = vst [vmem:[%s208 + $0x24] sm:$0xf] %v215
              $region44: #{generator_forward.27} parent=31 // loop_footer
                %s206 = sadd.s32 1, %s202
              $region45: #{generator_forward.27} parent=31 // loop_footer_branch
                %201 = sbr.rel target = $region41
              $region46: #{generator_forward.27} parent=31 // loop_exit
                _
            $region32: #{generator_forward.27} parent=27 // pred_fallthru
              _
          $region28: #{generator_forward.27} parent=23 // pred_fallthru
            _
          %217 = vnop
        $region24: #{generator_forward.27} parent=19 // pred_fallthru
          _
        // Predicated region
        $region47: #{generator_forward.27} parent=19 // pred_check
          %p218 = pneg %p78
        $region48: #{generator_forward.27} parent=19 // pred_check_branch
          %220 = sbr.rel (%p218) target = $region50
        $region49: #{generator_forward.27} parent=19 // pred_region
          %s221 = smul.u32 48, %s18
          %s222 = smul.u32 2, %s17
          %p223 = scmp.lt.s32.totalorder %s221, 143
          %s224 = scalar_select %p223, %s221, 143
          %p225 = scmp.lt.s32.totalorder %s222, 1
          %s226 = scalar_select %p225, %s222, 1
          %s227 = smul.addr %s224, 2
          %s228 = sadd.s32 %s226, %s227
          %s229 = smul.addr %s228, 4
          %s230 = scalar_lea.vmem %s1, %s229
          %s231 = smul.u32 48, %s18
          %s232 = smul.u32 2, %s17
        $region50: #{generator_forward.27} parent=19 // pred_fallthru
          _
      $region20: #{generator_forward.27} parent=5 // pred_fallthru
        _
      %p233 = scmp.le.s32.totalorder 1, %s9
      %p234 = scmp.lt.s32.totalorder %s9, 4
      %p235 = pnand %p233, %p234
      %p236 = pneg %p235
      // Predicated region
      $region51: #{generator_forward.27} parent=5 // pred_check
        _
      $region52: #{generator_forward.27} parent=5 // pred_check_branch
        %238 = sbr.rel (%p235) target = $region54
      $region53: #{generator_forward.27} parent=5 // pred_region
        %s239 = ssub.s32 %s9, 1
        %s240 = sand.u32 %s43, 1
        %s241 = sand.u32 %s43, 1
        %s242 = smul.addr %s241, 48
        %s243 = scalar_lea.vmem [#allocation3], %s242
        // Predicated region
        $region55: #{generator_forward.27} parent=53 // pred_check
          %p244 = pneg %p56
        $region56: #{generator_forward.27} parent=53 // pred_check_branch
          %246 = sbr.rel (%p244) target = $region58
        $region57: #{generator_forward.27} parent=53 // pred_region
          _
        $region58: #{generator_forward.27} parent=53 // pred_fallthru
          _
        %s247 = sand.u32 %s43, 1
        %s248 = sand.u32 %s43, 1
        %s249 = smul.addr %s248, 48
        %s250 = scalar_lea.vmem [#allocation3], %s249
        %p251 = pneg %p56
        %p252 = pneg %p53
        %s253 = smul.u32 48, %s21
        %s254 = smul.u32 2, %s20
        %p255 = scmp.lt.s32.totalorder %s253, 143
        %s256 = scalar_select %p255, %s253, 143
        %p257 = scmp.lt.s32.totalorder %s254, 1
        %s258 = scalar_select %p257, %s254, 1
        %s259 = smul.addr %s256, 2
        %s260 = sadd.s32 %s258, %s259
        %s261 = smul.addr %s260, 4
        %s262 = scalar_lea.vmem %s1, %s261
        %p263 = pneg %p84
        %p264 = pneg %p81
        %s265 = smul.u32 2, %s20
        %p266 = scmp.lt.s32.totalorder %s265, 1
        %s267 = scalar_select %p266, %s265, 1
        %s268 = scalar_lea.vmem %s2, %s267
        %p269 = pneg %p110
        %p270 = pneg %p107
        %p271 = pneg %p138
        %p272 = pneg %p135
        %s273 = smul.u32 4, %s19
        %s274 = smul.u32 2, %s20
        %p275 = scmp.lt.s32.totalorder %s273, 3
        %s276 = scalar_select %p275, %s273, 3
        %p277 = scmp.lt.s32.totalorder %s274, 1
        %s278 = scalar_select %p277, %s274, 1
        %s279 = smul.addr %s276, 2
        %s280 = sadd.s32 %s278, %s279
        %s281 = smul.addr %s280, 8
        %s282 = scalar_lea.vmem %s3, %s281
        %s283 = smul.u32 4, %s19
        %s284 = smul.u32 3, %s21
        %s285 = smul.u32 48, %s21
        %s286 = smul.u32 2, %s20
        %p287 = scmp.lt.s32.totalorder %s285, 143
        %s288 = scalar_select %p287, %s285, 143
        %p289 = scmp.lt.s32.totalorder %s286, 1
        %s290 = scalar_select %p289, %s286, 1
        %s291 = smul.addr %s288, 2
        %s292 = sadd.s32 %s290, %s291
        %s293 = smul.addr %s292, 4
        %s294 = scalar_lea.vmem %s1, %s293
        %s295 = smul.u32 48, %s21
        %s296 = smul.u32 2, %s20
        %s297 = smul.u32 2, %s20
        %p298 = scmp.lt.s32.totalorder %s297, 1
        %s299 = scalar_select %p298, %s297, 1
        %s300 = scalar_lea.vmem %s2, %s299
        %s301 = smul.u32 2, %s20
        %s302 = smul.u32 4, %s19
        %s303 = smul.u32 2, %s20
        %p304 = scmp.lt.s32.totalorder %s302, 3
        %s305 = scalar_select %p304, %s302, 3
        %p306 = scmp.lt.s32.totalorder %s303, 1
        %s307 = scalar_select %p306, %s303, 1
        %s308 = smul.addr %s305, 2
        %s309 = sadd.s32 %s307, %s308
        %s310 = smul.addr %s309, 8
        %s311 = scalar_lea.vmem %s3, %s310
        %s312 = smul.u32 4, %s19
        %s313 = smul.u32 2, %s20
        %p315 = scmp.eq.s32.totalorder %s21, 0
        // Predicated region
        $region59: #{generator_forward.27} parent=53 // pred_check
          %p316 = pneg %p315
        $region60: #{generator_forward.27} parent=53 // pred_check_branch
          %318 = sbr.rel (%p316) target = $region62
        $region61: #{generator_forward.27} parent=53 // pred_region
          %319 = vst [vmem:[#allocation2] sm:$0xff] 0.0
          %320 = vst [vmem:[#allocation2 + $0x8] sm:$0xff] 0.0
          %321 = vst [vmem:[#allocation2 + $0x10] sm:$0xff] 0.0
          %322 = vst [vmem:[#allocation2 + $0x18] sm:$0xff] 0.0
          %323 = vst [vmem:[#allocation2 + $0x20] sm:$0xff] 0.0
          %324 = vst [vmem:[#allocation2 + $0x28] sm:$0xff] 0.0
          %325 = vst [vmem:[#allocation2 + $0x30] sm:$0xff] 0.0
          %326 = vst [vmem:[#allocation2 + $0x38] sm:$0xff] 0.0
        $region62: #{generator_forward.27} parent=53 // pred_fallthru
          _
        %v327 = vld [vmem:[#allocation2] sm:$0xff]
        %v328 = vld [vmem:[#allocation2 + $0x8] sm:$0xff]
        %v329 = vld [vmem:[#allocation2 + $0x10] sm:$0xff]
        %v330 = vld [vmem:[#allocation2 + $0x18] sm:$0xff]
        %v331 = vld [vmem:[#allocation2 + $0x20] sm:$0xff]
        %v332 = vld [vmem:[#allocation2 + $0x28] sm:$0xff]
        %v333 = vld [vmem:[#allocation2 + $0x30] sm:$0xff]
        %v334 = vld [vmem:[#allocation2 + $0x38] sm:$0xff]
        %v335 = vld [vmem:[%s243] sm:$0xff]
        %v336 = vld [vmem:[%s243 + $0x8] sm:$0xf]
        %v337 = vld [vmem:[%s243 + $0xc] sm:$0xff]
        %v338 = vld [vmem:[%s243 + $0x14] sm:$0xf]
        %v339 = vld [vmem:[%s243 + $0x18] sm:$0xff]
        %v340 = vld [vmem:[%s243 + $0x20] sm:$0xf]
        %v341 = vld [vmem:[%s243 + $0x24] sm:$0xff]
        %v342 = vld [vmem:[%s243 + $0x2c] sm:$0xf]
        %v343 = vld [vmem:[%s294] sm:$0xff]
        %v344 = vld [vmem:[%s294 + $0x8] sm:$0xff]
        %v345 = vld [vmem:[%s294 + $0x10] sm:$0xff]
        %v346 = vld [vmem:[%s294 + $0x18] sm:$0xff]
        %v347 = vld [vmem:[%s294 + $0x20] sm:$0xff]
        %v348 = vld [vmem:[%s294 + $0x28] sm:$0xff]
        %v349 = vld [vmem:[%s294 + $0x30] sm:$0xff]
        %v350 = vld [vmem:[%s294 + $0x38] sm:$0xff]
        %v351 = vld [vmem:[%s294 + $0x40] sm:$0xff]
        %v352 = vld [vmem:[%s294 + $0x48] sm:$0xff]
        %v353 = vld [vmem:[%s294 + $0x50] sm:$0xff]
        %v354 = vld [vmem:[%s294 + $0x58] sm:$0xff]
        %v355 = vld [vmem:[%s294 + $0x60] sm:$0xff]
        %v356 = vld [vmem:[%s294 + $0x68] sm:$0xff]
        %v357 = vld [vmem:[%s294 + $0x70] sm:$0xff]
        %v358 = vld [vmem:[%s294 + $0x78] sm:$0xff]
        %v359 = vld [vmem:[%s294 + $0x80] sm:$0xff]
        %v360 = vld [vmem:[%s294 + $0x88] sm:$0xff]
        %v361 = vld [vmem:[%s294 + $0x90] sm:$0xff]
        %v362 = vld [vmem:[%s294 + $0x98] sm:$0xff]
        %v363 = vld [vmem:[%s294 + $0xa0] sm:$0xff]
        %v364 = vld [vmem:[%s294 + $0xa8] sm:$0xff]
        %v365 = vld [vmem:[%s294 + $0xb0] sm:$0xff]
        %v366 = vld [vmem:[%s294 + $0xb8] sm:$0xff]
        %v367 = vld [vmem:[%s294 + $0xc0] sm:$0xff]
        %v368 = vld [vmem:[%s294 + $0xc8] sm:$0xff]
        %v369 = vld [vmem:[%s294 + $0xd0] sm:$0xff]
        %v370 = vld [vmem:[%s294 + $0xd8] sm:$0xff]
        %v371 = vld [vmem:[%s294 + $0xe0] sm:$0xff]
        %v372 = vld [vmem:[%s294 + $0xe8] sm:$0xff]
        %v373 = vld [vmem:[%s294 + $0xf0] sm:$0xff]
        %v374 = vld [vmem:[%s294 + $0xf8] sm:$0xff]
        %v375 = vld [vmem:[%s294 + $0x100] sm:$0xff]
        %v376 = vld [vmem:[%s294 + $0x108] sm:$0xff]
        %v377 = vld [vmem:[%s294 + $0x110] sm:$0xff]
        %v378 = vld [vmem:[%s294 + $0x118] sm:$0xff]
        %v379 = vld [vmem:[%s294 + $0x120] sm:$0xff]
        %v380 = vld [vmem:[%s294 + $0x128] sm:$0xff]
        %v381 = vld [vmem:[%s294 + $0x130] sm:$0xff]
        %v382 = vld [vmem:[%s294 + $0x138] sm:$0xff]
        %v383 = vld [vmem:[%s294 + $0x140] sm:$0xff]
        %v384 = vld [vmem:[%s294 + $0x148] sm:$0xff]
        %v385 = vld [vmem:[%s294 + $0x150] sm:$0xff]
        %v386 = vld [vmem:[%s294 + $0x158] sm:$0xff]
        %v387 = vld [vmem:[%s294 + $0x160] sm:$0xff]
        %v388 = vld [vmem:[%s294 + $0x168] sm:$0xff]
        %v389 = vld [vmem:[%s294 + $0x170] sm:$0xff]
        %v390 = vld [vmem:[%s294 + $0x178] sm:$0xff]
        %v399 = vunpack.c.l.b16 %v335
        %v400 = vunpack.c.h.b16 %v335
        %v401 = vunpack.c.l.b16 %v336
        %v402 = vunpack.c.l.b16 %v337
        %v403 = vunpack.c.h.b16 %v337
        %v404 = vunpack.c.l.b16 %v338
        %v405 = vunpack.c.l.b16 %v339
        %v406 = vunpack.c.h.b16 %v339
        %v407 = vunpack.c.l.b16 %v340
        %v408 = vunpack.c.l.b16 %v341
        %v409 = vunpack.c.h.b16 %v341
        %v410 = vunpack.c.l.b16 %v342
        %v411 = vpack.c.b16 %v402, %v399
        %v412 = vpack.c.b16 %v403, %v400
        %v413 = vpack.c.b16 %v404, %v401
        %v414 = vpack.c.b16 %v408, %v405
        %v415 = vpack.c.b16 %v409, %v406
        %v416 = vpack.c.b16 %v410, %v407
        %v471 = vunpack.c.l.b16 %v343
        %v472 = vunpack.c.h.b16 %v343
        %v473 = vunpack.c.l.b16 %v344
        %v474 = vunpack.c.h.b16 %v344
        %v475 = vunpack.c.l.b16 %v345
        %v476 = vunpack.c.h.b16 %v345
        %v477 = vunpack.c.l.b16 %v346
        %v478 = vunpack.c.h.b16 %v346
        %v479 = vunpack.c.l.b16 %v347
        %v480 = vunpack.c.h.b16 %v347
        %v481 = vunpack.c.l.b16 %v348
        %v482 = vunpack.c.h.b16 %v348
        %v483 = vunpack.c.l.b16 %v349
        %v484 = vunpack.c.h.b16 %v349
        %v485 = vunpack.c.l.b16 %v350
        %v486 = vunpack.c.h.b16 %v350
        %v487 = vunpack.c.l.b16 %v351
        %v488 = vunpack.c.h.b16 %v351
        %v489 = vunpack.c.l.b16 %v352
        %v490 = vunpack.c.h.b16 %v352
        %v491 = vunpack.c.l.b16 %v353
        %v492 = vunpack.c.h.b16 %v353
        %v493 = vunpack.c.l.b16 %v354
        %v494 = vunpack.c.h.b16 %v354
        %v495 = vunpack.c.l.b16 %v355
        %v496 = vunpack.c.h.b16 %v355
        %v497 = vunpack.c.l.b16 %v356
        %v498 = vunpack.c.h.b16 %v356
        %v499 = vunpack.c.l.b16 %v357
        %v500 = vunpack.c.h.b16 %v357
        %v501 = vunpack.c.l.b16 %v358
        %v502 = vunpack.c.h.b16 %v358
        %v503 = vunpack.c.l.b16 %v359
        %v504 = vunpack.c.h.b16 %v359
        %v505 = vunpack.c.l.b16 %v360
        %v506 = vunpack.c.h.b16 %v360
        %v507 = vunpack.c.l.b16 %v361
        %v508 = vunpack.c.h.b16 %v361
        %v509 = vunpack.c.l.b16 %v362
        %v510 = vunpack.c.h.b16 %v362
        %v511 = vunpack.c.l.b16 %v363
        %v512 = vunpack.c.h.b16 %v363
        %v513 = vunpack.c.l.b16 %v364
        %v514 = vunpack.c.h.b16 %v364
        %v515 = vunpack.c.l.b16 %v365
        %v516 = vunpack.c.h.b16 %v365
        %v517 = vunpack.c.l.b16 %v366
        %v518 = vunpack.c.h.b16 %v366
        %v519 = vunpack.c.l.b16 %v367
        %v520 = vunpack.c.h.b16 %v367
        %v521 = vunpack.c.l.b16 %v368
        %v522 = vunpack.c.h.b16 %v368
        %v523 = vunpack.c.l.b16 %v369
        %v524 = vunpack.c.h.b16 %v369
        %v525 = vunpack.c.l.b16 %v370
        %v526 = vunpack.c.h.b16 %v370
        %v527 = vunpack.c.l.b16 %v371
        %v528 = vunpack.c.h.b16 %v371
        %v529 = vunpack.c.l.b16 %v372
        %v530 = vunpack.c.h.b16 %v372
        %v531 = vunpack.c.l.b16 %v373
        %v532 = vunpack.c.h.b16 %v373
        %v533 = vunpack.c.l.b16 %v374
        %v534 = vunpack.c.h.b16 %v374
        %v535 = vunpack.c.l.b16 %v375
        %v536 = vunpack.c.h.b16 %v375
        %v537 = vunpack.c.l.b16 %v376
        %v538 = vunpack.c.h.b16 %v376
        %v539 = vunpack.c.l.b16 %v377
        %v540 = vunpack.c.h.b16 %v377
        %v541 = vunpack.c.l.b16 %v378
        %v542 = vunpack.c.h.b16 %v378
        %v543 = vunpack.c.l.b16 %v379
        %v544 = vunpack.c.h.b16 %v379
        %v545 = vunpack.c.l.b16 %v380
        %v546 = vunpack.c.h.b16 %v380
        %v547 = vunpack.c.l.b16 %v381
        %v548 = vunpack.c.h.b16 %v381
        %v549 = vunpack.c.l.b16 %v382
        %v550 = vunpack.c.h.b16 %v382
        %v551 = vunpack.c.l.b16 %v383
        %v552 = vunpack.c.h.b16 %v383
        %v553 = vunpack.c.l.b16 %v384
        %v554 = vunpack.c.h.b16 %v384
        %v555 = vunpack.c.l.b16 %v385
        %v556 = vunpack.c.h.b16 %v385
        %v557 = vunpack.c.l.b16 %v386
        %v558 = vunpack.c.h.b16 %v386
        %v559 = vunpack.c.l.b16 %v387
        %v560 = vunpack.c.h.b16 %v387
        %v561 = vunpack.c.l.b16 %v388
        %v562 = vunpack.c.h.b16 %v388
        %v563 = vunpack.c.l.b16 %v389
        %v564 = vunpack.c.h.b16 %v389
        %v565 = vunpack.c.l.b16 %v390
        %v566 = vunpack.c.h.b16 %v390
        %v567 = vpack.c.b16 %v473, %v471
        %v568 = vpack.c.b16 %v474, %v472
        %v569 = vpack.c.b16 %v477, %v475
        %v570 = vpack.c.b16 %v478, %v476
        %v571 = vpack.c.b16 %v481, %v479
        %v572 = vpack.c.b16 %v482, %v480
        %v573 = vpack.c.b16 %v485, %v483
        %v574 = vpack.c.b16 %v486, %v484
        %v575 = vpack.c.b16 %v489, %v487
        %v576 = vpack.c.b16 %v490, %v488
        %v577 = vpack.c.b16 %v493, %v491
        %v578 = vpack.c.b16 %v494, %v492
        %v579 = vpack.c.b16 %v497, %v495
        %v580 = vpack.c.b16 %v498, %v496
        %v581 = vpack.c.b16 %v501, %v499
        %v582 = vpack.c.b16 %v502, %v500
        %v583 = vpack.c.b16 %v505, %v503
        %v584 = vpack.c.b16 %v506, %v504
        %v585 = vpack.c.b16 %v509, %v507
        %v586 = vpack.c.b16 %v510, %v508
        %v587 = vpack.c.b16 %v513, %v511
        %v588 = vpack.c.b16 %v514, %v512
        %v589 = vpack.c.b16 %v517, %v515
        %v590 = vpack.c.b16 %v518, %v516
        %v591 = vpack.c.b16 %v521, %v519
        %v592 = vpack.c.b16 %v522, %v520
        %v593 = vpack.c.b16 %v525, %v523
        %v594 = vpack.c.b16 %v526, %v524
        %v595 = vpack.c.b16 %v529, %v527
        %v596 = vpack.c.b16 %v530, %v528
        %v597 = vpack.c.b16 %v533, %v531
        %v598 = vpack.c.b16 %v534, %v532
        %v599 = vpack.c.b16 %v537, %v535
        %v600 = vpack.c.b16 %v538, %v536
        %v601 = vpack.c.b16 %v541, %v539
        %v602 = vpack.c.b16 %v542, %v540
        %v603 = vpack.c.b16 %v545, %v543
        %v604 = vpack.c.b16 %v546, %v544
        %v605 = vpack.c.b16 %v549, %v547
        %v606 = vpack.c.b16 %v550, %v548
        %v607 = vpack.c.b16 %v553, %v551
        %v608 = vpack.c.b16 %v554, %v552
        %v609 = vpack.c.b16 %v557, %v555
        %v610 = vpack.c.b16 %v558, %v556
        %v611 = vpack.c.b16 %v561, %v559
        %v612 = vpack.c.b16 %v562, %v560
        %v613 = vpack.c.b16 %v565, %v563
        %v614 = vpack.c.b16 %v566, %v564
        %663 = vmatprep.subr.bf16.mxu0 %v568
        %664 = vmatpush1.bf16.msra.mxu0 %v567
        %665 = vmatprep.subr.bf16.mxu0 %v570
        %666 = vmatpush1.bf16.msra.mxu0 %v569
        %667 = vmatprep.subr.bf16.mxu0 %v572
        %668 = vmatpush1.bf16.msra.mxu0 %v571
        %669 = vmatprep.subr.bf16.mxu0 %v574
        %670 = vmatpush1.bf16.msra.mxu0 %v573
        %671 = vmatprep.subr.bf16.mxu0 %v576
        %672 = vmatpush1.bf16.msra.mxu0 %v575
        %673 = vmatprep.subr.bf16.mxu0 %v578
        %674 = vmatpush1.bf16.msra.mxu0 %v577
        %675 = vmatprep.subr.bf16.mxu0 %v580
        %676 = vmatpush1.bf16.msra.mxu0 %v579
        %677 = vmatprep.subr.bf16.mxu0 %v582
        %678 = vmatpush1.bf16.msra.mxu0 %v581
        %679 = vmatprep.subr.bf16.mxu0 %v584
        %680 = vmatpush1.bf16.msra.mxu0 %v583
        %681 = vmatprep.subr.bf16.mxu0 %v586
        %682 = vmatpush1.bf16.msra.mxu0 %v585
        %683 = vmatprep.subr.bf16.mxu0 %v588
        %684 = vmatpush1.bf16.msra.mxu0 %v587
        %685 = vmatprep.subr.bf16.mxu0 %v590
        %686 = vmatpush1.bf16.msra.mxu0 %v589
        %687 = vmatprep.subr.bf16.mxu0 %v592
        %688 = vmatpush1.bf16.msra.mxu0 %v591
        %689 = vmatprep.subr.bf16.mxu0 %v594
        %690 = vmatpush1.bf16.msra.mxu0 %v593
        %691 = vmatprep.subr.bf16.mxu0 %v596
        %692 = vmatpush1.bf16.msra.mxu0 %v595
        %693 = vmatprep.subr.bf16.mxu0 %v598
        %694 = vmatpush1.bf16.msra.mxu0 %v597
        %695 = vmatprep.mubr.bf16.mxu0 %v412
        %696 = vmatmul.mubr.bf16.gmra.mrb[0].mxu0 %v411
        %v697 = vpop.f32.mrb[0].mxu0
        %v698 = vadd.f32 0.0, %v697
        %v699 = vpop.f32.mrb[0].mxu0
        %v700 = vadd.f32 0.0, %v699
        %v701 = vpop.f32.mrb[0].mxu0
        %v702 = vadd.f32 0.0, %v701
        %v703 = vpop.f32.mrb[0].mxu0
        %v704 = vadd.f32 0.0, %v703
        %705 = vmatprep.mubr.bf16.mxu0 %v415
        %706 = vmatmul.mubr.bf16.gmra.mrb[0].mxu0 %v414
        %v707 = vpop.f32.mrb[0].mxu0
        %v708 = vadd.f32 0.0, %v707
        %v709 = vpop.f32.mrb[0].mxu0
        %v710 = vadd.f32 0.0, %v709
        %v711 = vpop.f32.mrb[0].mxu0
        %v712 = vadd.f32 0.0, %v711
        %v713 = vpop.f32.mrb[0].mxu0
        %v714 = vadd.f32 0.0, %v713
        %715 = vdwg.mxu0
        %716 = vmatprep.subr.bf16.mxu0 %v600
        %717 = vmatpush1.bf16.msra.mxu0 %v599
        %718 = vmatprep.subr.bf16.mxu0 %v602
        %719 = vmatpush1.bf16.msra.mxu0 %v601
        %720 = vmatprep.subr.bf16.mxu0 %v604
        %721 = vmatpush1.bf16.msra.mxu0 %v603
        %722 = vmatprep.subr.bf16.mxu0 %v606
        %723 = vmatpush1.bf16.msra.mxu0 %v605
        %724 = vmatprep.subr.bf16.mxu0 %v608
        %725 = vmatpush1.bf16.msra.mxu0 %v607
        %726 = vmatprep.subr.bf16.mxu0 %v610
        %727 = vmatpush1.bf16.msra.mxu0 %v609
        %728 = vmatprep.subr.bf16.mxu0 %v612
        %729 = vmatpush1.bf16.msra.mxu0 %v611
        %730 = vmatprep.subr.bf16.mxu0 %v614
        %731 = vmatpush1.bf16.msra.mxu0 %v613
        %732 = vmatprep.subr.bf16.mxu0 0
        %733 = vmatpush1.bf16.msra.mxu0 0
        %734 = vmatprep.subr.bf16.mxu0 0
        %735 = vmatpush1.bf16.msra.mxu0 0
        %736 = vmatprep.subr.bf16.mxu0 0
        %737 = vmatpush1.bf16.msra.mxu0 0
        %738 = vmatprep.subr.bf16.mxu0 0
        %739 = vmatpush1.bf16.msra.mxu0 0
        %740 = vmatprep.subr.bf16.mxu0 0
        %741 = vmatpush1.bf16.msra.mxu0 0
        %742 = vmatprep.subr.bf16.mxu0 0
        %743 = vmatpush1.bf16.msra.mxu0 0
        %744 = vmatprep.subr.bf16.mxu0 0
        %745 = vmatpush1.bf16.msra.mxu0 0
        %746 = vmatprep.subr.bf16.mxu0 0
        %747 = vmatpush1.bf16.msra.mxu0 0
        %748 = vmatprep.mubr.bf16.mxu0 0
        %749 = vmatmul.mubr.bf16.gmra.mrb[0].mxu0 %v413
        %v750 = vpop.f32.mrb[0].mxu0
        %v751 = vadd.f32 %v698, %v750
        %v752 = vpop.f32.mrb[0].mxu0
        %v753 = vadd.f32 %v700, %v752
        %v754 = vpop.f32.mrb[0].mxu0
        %v755 = vadd.f32 %v702, %v754
        %v756 = vpop.f32.mrb[0].mxu0
        %v757 = vadd.f32 %v704, %v756
        %758 = vmatprep.mubr.bf16.mxu0 0
        %759 = vmatmul.mubr.bf16.gmra.mrb[0].mxu0 %v416
        %v760 = vpop.f32.mrb[0].mxu0
        %v761 = vadd.f32 %v708, %v760
        %v762 = vpop.f32.mrb[0].mxu0
        %v763 = vadd.f32 %v710, %v762
        %v764 = vpop.f32.mrb[0].mxu0
        %v765 = vadd.f32 %v712, %v764
        %v766 = vpop.f32.mrb[0].mxu0
        %v767 = vadd.f32 %v714, %v766
        %768 = vdwg.mxu0
        %v769 = vadd.f32 %v327, %v751
        %v770 = vadd.f32 %v328, %v753
        %v771 = vadd.f32 %v329, %v755
        %v772 = vadd.f32 %v330, %v757
        %v773 = vadd.f32 %v331, %v761
        %v774 = vadd.f32 %v332, %v763
        %v775 = vadd.f32 %v333, %v765
        %v776 = vadd.f32 %v334, %v767
        %777 = vst [vmem:[#allocation2] sm:$0xff] %v769
        %778 = vst [vmem:[#allocation2 + $0x8] sm:$0xff] %v770
        %779 = vst [vmem:[#allocation2 + $0x10] sm:$0xff] %v771
        %780 = vst [vmem:[#allocation2 + $0x18] sm:$0xff] %v772
        %781 = vst [vmem:[#allocation2 + $0x20] sm:$0xff] %v773
        %782 = vst [vmem:[#allocation2 + $0x28] sm:$0xff] %v774
        %783 = vst [vmem:[#allocation2 + $0x30] sm:$0xff] %v775
        %784 = vst [vmem:[#allocation2 + $0x38] sm:$0xff] %v776
        %p785 = scmp.eq.s32.totalorder %s21, 2
        // Predicated region
        $region63: #{generator_forward.27} parent=53 // pred_check
          %p786 = pneg %p785
        $region64: #{generator_forward.27} parent=53 // pred_check_branch
          %788 = sbr.rel (%p786) target = $region66
        $region65: #{generator_forward.27} parent=53 // pred_region
          %v789 = vld [vmem:[#allocation2] sm:$0xff]
          %v790 = vld [vmem:[#allocation2 + $0x8] sm:$0xff]
          %v791 = vld [vmem:[#allocation2 + $0x10] sm:$0xff]
          %v792 = vld [vmem:[#allocation2 + $0x18] sm:$0xff]
          %v793 = vld [vmem:[#allocation2 + $0x20] sm:$0xff]
          %v794 = vld [vmem:[#allocation2 + $0x28] sm:$0xff]
          %v795 = vld [vmem:[#allocation2 + $0x30] sm:$0xff]
          %v796 = vld [vmem:[#allocation2 + $0x38] sm:$0xff]
          %v797 = vld [vmem:[%s300] sm:$0x3]
          %v799 = vlaneseq
          %v800 = vshrl.u32 %v799, 7
          %v801 = vsub.s32 0, %v800
          %v802 = vrot.slane %v797, %v801
          %v803 = vlaneseq
          %v804 = vshrl.u32 %v803, 7
          %v805 = vsub.s32 1, %v804
          %v806 = vrot.slane %v797, %v805
          %v809 = vadd.f32 %v789, %v802
          %v810 = vadd.f32 %v790, %v806
          %v811 = vadd.f32 %v791, %v802
          %v812 = vadd.f32 %v792, %v806
          %v813 = vadd.f32 %v793, %v802
          %v814 = vadd.f32 %v794, %v806
          %v815 = vadd.f32 %v795, %v802
          %v816 = vadd.f32 %v796, %v806
          %817 = vst [vmem:[%s311] sm:$0xff] %v809
          %818 = vst [vmem:[%s311 + $0x8] sm:$0xff] %v810
          %819 = vst [vmem:[%s311 + $0x10] sm:$0xff] %v811
          %820 = vst [vmem:[%s311 + $0x18] sm:$0xff] %v812
          %821 = vst [vmem:[%s311 + $0x20] sm:$0xff] %v813
          %822 = vst [vmem:[%s311 + $0x28] sm:$0xff] %v814
          %823 = vst [vmem:[%s311 + $0x30] sm:$0xff] %v815
          %824 = vst [vmem:[%s311 + $0x38] sm:$0xff] %v816
        $region66: #{generator_forward.27} parent=53 // pred_fallthru
          _
        %s825 = smul.u32 4, %s19
        %s826 = smul.u32 2, %s20
        %p827 = scmp.lt.s32.totalorder %s825, 3
        %s828 = scalar_select %p827, %s825, 3
        %p829 = scmp.lt.s32.totalorder %s826, 1
        %s830 = scalar_select %p829, %s826, 1
        %s831 = smul.addr %s828, 2
        %s832 = sadd.s32 %s830, %s831
        %s833 = smul.addr %s832, 8
        %s834 = scalar_lea.vmem %s3, %s833
        // Predicated region
        $region67: #{generator_forward.27} parent=53 // pred_check
          %p835 = pneg %p135
        $region68: #{generator_forward.27} parent=53 // pred_check_branch
          %837 = sbr.rel (%p835) target = $region70
        $region69: #{generator_forward.27} parent=53 // pred_region
          %s838 = smul.u32 4, %s19
          %s839 = smul.u32 2, %s20
        $region70: #{generator_forward.27} parent=53 // pred_fallthru
          _
        // Predicated region
        $region71: #{generator_forward.27} parent=53 // pred_check
          %p840 = pneg %p135
        $region72: #{generator_forward.27} parent=53 // pred_check_branch
          %842 = sbr.rel (%p840) target = $region74
        $region73: #{generator_forward.27} parent=53 // pred_region
          %s843 = smul.u32 4, %s19
          %s844 = smul.u32 2, %s20
          %p845 = scmp.lt.s32.totalorder %s843, 3
          %s846 = scalar_select %p845, %s843, 3
          %p847 = scmp.lt.s32.totalorder %s844, 1
          %s848 = scalar_select %p847, %s844, 1
          %s849 = smul.addr %s846, 2
          %s850 = sadd.s32 %s848, %s849
          %s851 = smul.addr %s850, 8
          %s852 = scalar_lea.vmem %s3, %s851
        $region74: #{generator_forward.27} parent=53 // pred_fallthru
          _
      $region54: #{generator_forward.27} parent=5 // pred_fallthru
        _
      %p853 = scmp.le.s32.totalorder 2, %s9
      // Predicated region
      $region75: #{generator_forward.27} parent=5 // pred_check
        %p854 = pneg %p853
      $region76: #{generator_forward.27} parent=5 // pred_check_branch
        %856 = sbr.rel (%p854) target = $region78
      $region77: #{generator_forward.27} parent=5 // pred_region
        %s857 = ssub.s32 %s9, 2
      $region78: #{generator_forward.27} parent=5 // pred_fallthru
        _
    $region6: #{generator_forward.27} parent=1 // loop_footer
      %s13 = sadd.s32 1, %s9
    $region7: #{generator_forward.27} parent=1 // loop_footer_branch
      %8 = sbr.rel target = $region3
    $region8: #{generator_forward.27} parent=1 // loop_exit
      _

// kernel: generator_forward.28
$region0: #{generator_forward.28}
  #allocation0 [shape = 'u32[]', space=smem, size = 0x4, offset = 0x4, fixed_abs, tag = 'smem constant byte address 0x4 - core index']
  #allocation1 [shape = 'u32[144,128]{1,0:T(1,128)}', space=vmem, size = 0x12000, scoped, tag = 'internal scratch']
  %s0 = inlined_call_operand.vmem [shape: f32[2,16,256], index: 0, kind: input, shape index: {}]
  %s1 = inlined_call_operand.vmem [shape: f32[2,16,256], index: 1, kind: output, shape index: {}]
  %s2 = sld [smem:[#allocation0]]
  $region37: #{generator_forward.28} parent=0
    _
  %s4 = ssub.s32 1, %s2
  %s5 = scalar_select 0, %s4, %s2
  loop: start=0, step=1, limit=4
  $region2: #{generator_forward.28} parent=0 // loop_pre_header
    _
  $region3: #{generator_forward.28} parent=0 // loop_header
    %s7 = sphi 0, %s11
    %p8 = scmp.ge.s32.totalorder %s7, 4
    %s14 = sphi 0, %s26
    %s15 = sphi 0, %s22
    %s16 = sphi 0, %s14
    %s17 = sphi 0, %s15
    %s18 = sphi 0, %s16
    %s19 = sphi 0, %s17
    %s31 = sphi 0, %s33
    %s34 = sphi 0, %s31
    %s35 = sphi 0, %s34
    %s51 = sphi 0, %s35
    %s59 = sphi 0, %s61
    %s62 = sphi 0, %s59
    %s63 = sphi 0, %s62
    %s79 = sphi 0, %s63
  $region4: #{generator_forward.28} parent=0 // loop_header_branch
    %10 = sbr.rel (%p8) target = $region8
  $region5: #{generator_forward.28} parent=0 // loop_body
    %s12 = ssub.s32 %s7, 1
    %s13 = ssub.s32 %s7, 2
    %s20 = sadd.s32 1, %s15
    %p21 = scmp.ge.s32.totalorder %s20, 1
    %s22 = scalar_select %p21, 0, %s20
    %s23 = sadd.s32 1, %s14
    %s24 = scalar_select %p21, %s23, %s14
    %p25 = scmp.ge.s32.totalorder %s24, 2
    %s26 = scalar_select %p25, 0, %s24
    %s27 = ssub.s32 %s14, %s26
    %s28 = ssub.s32 %s15, %s22
    %s29 = sor.u32 %s27, %s28
    %p30 = scmp.eq.s32.totalorder %s29, 0
    %s32 = sadd.s32 %s31, 1
    %s33 = scalar_select %p30, %s31, %s32
    %p36 = pneg %p30
    %p37 = scmp.eq.s32.totalorder %s7, 1
    %p38 = por %p36, %p37
    %p39 = scmp.ne.s32.totalorder %s31, %s34
    %p40 = scmp.eq.s32.totalorder %s7, 0
    %p41 = por %p39, %p40
    %p42 = scmp.ne.s32.totalorder %s31, %s34
    %p43 = scmp.eq.s32.totalorder %s12, 1
    %p44 = por %p42, %p43
    %p45 = scmp.ne.s32.totalorder %s34, %s35
    %p46 = scmp.eq.s32.totalorder %s12, 0
    %p47 = por %p45, %p46
    %p48 = scmp.ne.s32.totalorder %s34, %s35
    %p49 = scmp.eq.s32.totalorder %s13, 1
    %p50 = por %p48, %p49
    %p52 = scmp.ne.s32.totalorder %s35, %s51
    %p53 = scmp.eq.s32.totalorder %s13, 0
    %p54 = por %p52, %p53
    %s55 = ssub.s32 %s14, %s26
    %s56 = ssub.s32 %s15, %s22
    %s57 = sor.u32 %s55, %s56
    %p58 = scmp.eq.s32.totalorder %s57, 0
    %s60 = sadd.s32 %s59, 1
    %s61 = scalar_select %p58, %s59, %s60
    %p64 = pneg %p58
    %p65 = scmp.eq.s32.totalorder %s7, 1
    %p66 = por %p64, %p65
    %p67 = scmp.ne.s32.totalorder %s59, %s62
    %p68 = scmp.eq.s32.totalorder %s7, 0
    %p69 = por %p67, %p68
    %p70 = scmp.ne.s32.totalorder %s59, %s62
    %p71 = scmp.eq.s32.totalorder %s12, 1
    %p72 = por %p70, %p71
    %p73 = scmp.ne.s32.totalorder %s62, %s63
    %p74 = scmp.eq.s32.totalorder %s12, 0
    %p75 = por %p73, %p74
    %p76 = scmp.ne.s32.totalorder %s62, %s63
    %p77 = scmp.eq.s32.totalorder %s13, 1
    %p78 = por %p76, %p77
    %p80 = scmp.ne.s32.totalorder %s63, %s79
    %p81 = scmp.eq.s32.totalorder %s13, 0
    %p82 = por %p80, %p81
    %p83 = scmp.le.s32.totalorder 1, %s7
    %p84 = scmp.lt.s32.totalorder %s7, 3
    %p85 = pnand %p83, %p84
    %p86 = pneg %p85
    // Predicated region
    $region9: #{generator_forward.28} parent=5 // pred_check
      _
    $region10: #{generator_forward.28} parent=5 // pred_check_branch
      %88 = sbr.rel (%p85) target = $region12
    $region11: #{generator_forward.28} parent=5 // pred_region
      %s89 = ssub.s32 %s7, 1
    $region12: #{generator_forward.28} parent=5 // pred_fallthru
      _
    %p90 = scmp.lt.s32.totalorder %s7, 2
    // Predicated region
    $region13: #{generator_forward.28} parent=5 // pred_check
      %p91 = pneg %p90
    $region14: #{generator_forward.28} parent=5 // pred_check_branch
      %93 = sbr.rel (%p91) target = $region16
    $region15: #{generator_forward.28} parent=5 // pred_region
      // Predicated region
      $region17: #{generator_forward.28} parent=15 // pred_check
        %p94 = pneg %p41
      $region18: #{generator_forward.28} parent=15 // pred_check_branch
        %96 = sbr.rel (%p94) target = $region20
      $region19: #{generator_forward.28} parent=15 // pred_region
        %s97 = smul.u32 2, %s15
        %p98 = scmp.lt.s32.totalorder %s14, 1
        %s99 = scalar_select %p98, %s14, 1
        %p100 = scmp.lt.s32.totalorder %s97, 1
        %s101 = scalar_select %p100, %s97, 1
        %s102 = smul.addr %s99, 4
        %s103 = sadd.s32 %s101, %s102
        %s104 = smul.addr %s103, 8
        %s105 = scalar_lea.vmem %s0, %s104
        %s106 = smul.u32 2, %s15
      $region20: #{generator_forward.28} parent=15 // pred_fallthru
        _
    $region16: #{generator_forward.28} parent=5 // pred_fallthru
      _
    %p107 = scmp.le.s32.totalorder 1, %s7
    %p108 = scmp.lt.s32.totalorder %s7, 3
    %p109 = pnand %p107, %p108
    %p110 = pneg %p109
    // Predicated region
    $region21: #{generator_forward.28} parent=5 // pred_check
      _
    $region22: #{generator_forward.28} parent=5 // pred_check_branch
      %112 = sbr.rel (%p109) target = $region24
    $region23: #{generator_forward.28} parent=5 // pred_region
      %s113 = ssub.s32 %s7, 1
      %s114 = smul.u32 2, %s17
      %p115 = scmp.lt.s32.totalorder %s16, 1
      %s116 = scalar_select %p115, %s16, 1
      %p117 = scmp.lt.s32.totalorder %s114, 1
      %s118 = scalar_select %p117, %s114, 1
      %s119 = smul.addr %s116, 4
      %s120 = sadd.s32 %s118, %s119
      %s121 = smul.addr %s120, 8
      %s122 = scalar_lea.vmem %s0, %s121
      %p123 = pneg %p47
      %p124 = pneg %p44
      %p125 = pneg %p75
      %p126 = pneg %p72
      %s127 = smul.u32 2, %s17
      %p128 = scmp.lt.s32.totalorder %s16, 1
      %s129 = scalar_select %p128, %s16, 1
      %p130 = scmp.lt.s32.totalorder %s127, 1
      %s131 = scalar_select %p130, %s127, 1
      %s132 = smul.addr %s129, 4
      %s133 = sadd.s32 %s131, %s132
      %s134 = smul.addr %s133, 8
      %s135 = scalar_lea.vmem %s1, %s134
      %s136 = smul.u32 2, %s17
      %p137 = scmp.lt.s32.totalorder %s16, 1
      %s138 = scalar_select %p137, %s16, 1
      %p139 = scmp.lt.s32.totalorder %s136, 1
      %s140 = scalar_select %p139, %s136, 1
      %s141 = smul.addr %s138, 4
      %s142 = sadd.s32 %s140, %s141
      %s143 = smul.addr %s142, 8
      %s144 = scalar_lea.vmem %s0, %s143
      %s145 = smul.u32 2, %s17
      %s146 = smul.u32 2, %s17
      %p147 = scmp.lt.s32.totalorder %s16, 1
      %s148 = scalar_select %p147, %s16, 1
      %p149 = scmp.lt.s32.totalorder %s146, 1
      %s150 = scalar_select %p149, %s146, 1
      %s151 = smul.addr %s148, 4
      %s152 = sadd.s32 %s150, %s151
      %s153 = smul.addr %s152, 8
      %s154 = scalar_lea.vmem %s1, %s153
      %s155 = smul.u32 2, %s17
      %v156 = vld [vmem:[%s144] sm:$0xff]
      %v157 = vld [vmem:[%s144 + $0x8] sm:$0xff]
      %v158 = vld [vmem:[%s144 + $0x10] sm:$0xff]
      %v159 = vld [vmem:[%s144 + $0x18] sm:$0xff]
      %v160 = vadd.f32 %v156, %v158
      %v161 = vrot.slane %v160, 4
      %v162 = vadd.f32 %v160, %v161
      %v163 = vrot.slane %v162, 2
      %v164 = vadd.f32 %v162, %v163
      %v165 = vrot.slane %v164, 1
      %v166 = vadd.f32 %v164, %v165
      %v167 = vadd.f32 %v157, %v159
      %v168 = vrot.slane %v167, 4
      %v169 = vadd.f32 %v167, %v168
      %v170 = vrot.slane %v169, 2
      %v171 = vadd.f32 %v169, %v170
      %v172 = vrot.slane %v171, 1
      %v173 = vadd.f32 %v171, %v172
      %v174 = vrcp.pop 16.0
      %v175 = vmul.f32 %v166, %v174
      %v176 = vmul.f32 %v173, %v174
      %v177 = vsub.f32 %v156, %v175
      %v178 = vsub.f32 %v157, %v176
      %v179 = vsub.f32 %v158, %v175
      %v180 = vsub.f32 %v159, %v176
      %v181 = vmul.f32 %v177, %v177
      %v182 = vmul.f32 %v178, %v178
      %v183 = vmul.f32 %v179, %v179
      %v184 = vmul.f32 %v180, %v180
      %v185 = vadd.f32 %v181, %v183
      %v186 = vrot.slane %v185, 4
      %v187 = vadd.f32 %v185, %v186
      %v188 = vrot.slane %v187, 2
      %v189 = vadd.f32 %v187, %v188
      %v190 = vrot.slane %v189, 1
      %v191 = vadd.f32 %v189, %v190
      %v192 = vadd.f32 %v182, %v184
      %v193 = vrot.slane %v192, 4
      %v194 = vadd.f32 %v192, %v193
      %v195 = vrot.slane %v194, 2
      %v196 = vadd.f32 %v194, %v195
      %v197 = vrot.slane %v196, 1
      %v198 = vadd.f32 %v196, %v197
      %v199 = vmul.f32 %v191, %v174
      %v200 = vmul.f32 %v198, %v174
      %v201 = vadd.f32 %v199, 1e-05
      %v202 = vadd.f32 %v200, 1e-05
      %v203 = vrsqrt.pop %v201
      %v204 = vrsqrt.pop %v202
      %v205 = vmul.f32 %v177, %v203
      %v206 = vmul.f32 %v178, %v204
      %v207 = vmul.f32 %v179, %v203
      %v208 = vmul.f32 %v180, %v204
      %v209 = vmax.f32 %v205, 0.0
      %v210 = vmax.f32 %v206, 0.0
      %v211 = vmax.f32 %v207, 0.0
      %v212 = vmax.f32 %v208, 0.0
      %213 = vst [vmem:[%s154] sm:$0xff] %v209
      %214 = vst [vmem:[%s154 + $0x8] sm:$0xff] %v210
      %215 = vst [vmem:[%s154 + $0x10] sm:$0xff] %v211
      %216 = vst [vmem:[%s154 + $0x18] sm:$0xff] %v212
      %s217 = smul.u32 2, %s17
      %p218 = scmp.lt.s32.totalorder %s16, 1
      %s219 = scalar_select %p218, %s16, 1
      %p220 = scmp.lt.s32.totalorder %s217, 1
      %s221 = scalar_select %p220, %s217, 1
      %s222 = smul.addr %s219, 4
      %s223 = sadd.s32 %s221, %s222
      %s224 = smul.addr %s223, 8
      %s225 = scalar_lea.vmem %s1, %s224
      // Predicated region
      $region25: #{generator_forward.28} parent=23 // pred_check
        %p226 = pneg %p72
      $region26: #{generator_forward.28} parent=23 // pred_check_branch
        %228 = sbr.rel (%p226) target = $region28
      $region27: #{generator_forward.28} parent=23 // pred_region
        %s229 = smul.u32 2, %s17
      $region28: #{generator_forward.28} parent=23 // pred_fallthru
        _
    $region24: #{generator_forward.28} parent=5 // pred_fallthru
      _
    %p230 = scmp.le.s32.totalorder 2, %s7
    // Predicated region
    $region29: #{generator_forward.28} parent=5 // pred_check
      %p231 = pneg %p230
    $region30: #{generator_forward.28} parent=5 // pred_check_branch
      %233 = sbr.rel (%p231) target = $region32
    $region31: #{generator_forward.28} parent=5 // pred_region
      %s234 = ssub.s32 %s7, 2
      // Predicated region
      $region33: #{generator_forward.28} parent=31 // pred_check
        %p235 = pneg %p78
      $region34: #{generator_forward.28} parent=31 // pred_check_branch
        %237 = sbr.rel (%p235) target = $region36
      $region35: #{generator_forward.28} parent=31 // pred_region
        %s238 = smul.u32 2, %s19
        %p239 = scmp.lt.s32.totalorder %s18, 1
        %s240 = scalar_select %p239, %s18, 1
        %p241 = scmp.lt.s32.totalorder %s238, 1
        %s242 = scalar_select %p241, %s238, 1
        %s243 = smul.addr %s240, 4
        %s244 = sadd.s32 %s242, %s243
        %s245 = smul.addr %s244, 8
        %s246 = scalar_lea.vmem %s1, %s245
      $region36: #{generator_forward.28} parent=31 // pred_fallthru
        _
    $region32: #{generator_forward.28} parent=5 // pred_fallthru
      _
  $region6: #{generator_forward.28} parent=0 // loop_footer
    %s11 = sadd.s32 1, %s7
  $region7: #{generator_forward.28} parent=0 // loop_footer_branch
    %6 = sbr.rel target = $region3
  $region8: #{generator_forward.28} parent=0 // loop_exit
    _

// kernel: generator_forward.29
$region0: #{generator_forward.29}
  #allocation0 [shape = 'u32[]', space=smem, size = 0x4, offset = 0x4, fixed_abs, tag = 'smem constant byte address 0x4 - core index']
  #allocation1 [shape = 'u32[144,128]{1,0:T(1,128)}', space=vmem, size = 0x12000, scoped, tag = 'internal scratch']
  #allocation2 [shape = 'f32[32,256]{1,0:T(8,128)}', space=vmem, size = 0x8000, scoped, tag = 'scratch operand']
  %s0 = inlined_call_operand.vmem [shape: bf16[32,2304], index: 0, kind: input, shape index: {}]
  %s1 = inlined_call_operand.vmem [shape: bf16[2304,256], index: 1, kind: input, shape index: {}]
  %s2 = inlined_call_operand.vmem [shape: f32[1,256], index: 2, kind: input, shape index: {}]
  %s3 = inlined_call_operand.vmem [shape: f32[32,256], index: 3, kind: output, shape index: {}]
  %s4 = sld [smem:[#allocation0]]
  $region79: #{generator_forward.29} parent=0
    _
  %s6 = ssub.s32 1, %s4
  %s7 = scalar_select 0, %s6, %s4
  $region1: #{generator_forward.29} parent=0
    #allocation3 [shape = 'u8[49152]{0}', space=vmem, size = 0xc000, scoped, tag = 'input window, operand 0']
    loop: start=0, step=1, limit=8
    $region2: #{generator_forward.29} parent=1 // loop_pre_header
      _
    $region3: #{generator_forward.29} parent=1 // loop_header
      %s9 = sphi 0, %s13
      %p10 = scmp.ge.s32.totalorder %s9, 8
      %s16 = sphi 0, %s35
      %s17 = sphi 0, %s31
      %s18 = sphi 0, %s27
      %s19 = sphi 0, %s16
      %s20 = sphi 0, %s17
      %s21 = sphi 0, %s18
      %s22 = sphi 0, %s19
      %s23 = sphi 0, %s20
      %s24 = sphi 0, %s21
      %s40 = sphi 0, %s42
      %s43 = sphi 0, %s40
      %s44 = sphi 0, %s43
      %s60 = sphi 0, %s44
      %s68 = sphi 0, %s70
      %s71 = sphi 0, %s68
      %s72 = sphi 0, %s71
      %s88 = sphi 0, %s72
      %s94 = sphi 0, %s96
      %s97 = sphi 0, %s94
      %s98 = sphi 0, %s97
      %s114 = sphi 0, %s98
      %s122 = sphi 0, %s124
      %s125 = sphi 0, %s122
      %s126 = sphi 0, %s125
      %s142 = sphi 0, %s126
    $region4: #{generator_forward.29} parent=1 // loop_header_branch
      %12 = sbr.rel (%p10) target = $region8
    $region5: #{generator_forward.29} parent=1 // loop_body
      %s14 = ssub.s32 %s9, 1
      %s15 = ssub.s32 %s9, 2
      %s25 = sadd.s32 1, %s18
      %p26 = scmp.ge.s32.totalorder %s25, 6
      %s27 = scalar_select %p26, 0, %s25
      %s28 = sadd.s32 1, %s17
      %s29 = scalar_select %p26, %s28, %s17
      %p30 = scmp.ge.s32.totalorder %s29, 1
      %s31 = scalar_select %p30, 0, %s29
      %s32 = sadd.s32 1, %s16
      %s33 = scalar_select %p30, %s32, %s16
      %p34 = scmp.ge.s32.totalorder %s33, 1
      %s35 = scalar_select %p34, 0, %s33
      %s36 = ssub.s32 %s16, %s35
      %s37 = ssub.s32 %s18, %s27
      %s38 = sor.u32 %s36, %s37
      %p39 = scmp.eq.s32.totalorder %s38, 0
      %s41 = sadd.s32 %s40, 1
      %s42 = scalar_select %p39, %s40, %s41
      %p45 = pneg %p39
      %p46 = scmp.eq.s32.totalorder %s9, 5
      %p47 = por %p45, %p46
      %p48 = scmp.ne.s32.totalorder %s40, %s43
      %p49 = scmp.eq.s32.totalorder %s9, 0
      %p50 = por %p48, %p49
      %p51 = scmp.ne.s32.totalorder %s40, %s43
      %p52 = scmp.eq.s32.totalorder %s14, 5
      %p53 = por %p51, %p52
      %p54 = scmp.ne.s32.totalorder %s43, %s44
      %p55 = scmp.eq.s32.totalorder %s14, 0
      %p56 = por %p54, %p55
      %p57 = scmp.ne.s32.totalorder %s43, %s44
      %p58 = scmp.eq.s32.totalorder %s15, 5
      %p59 = por %p57, %p58
      %p61 = scmp.ne.s32.totalorder %s44, %s60
      %p62 = scmp.eq.s32.totalorder %s15, 0
      %p63 = por %p61, %p62
      %s64 = ssub.s32 %s18, %s27
      %s65 = ssub.s32 %s17, %s31
      %s66 = sor.u32 %s64, %s65
      %p67 = scmp.eq.s32.totalorder %s66, 0
      %s69 = sadd.s32 %s68, 1
      %s70 = scalar_select %p67, %s68, %s69
      %p73 = pneg %p67
      %p74 = scmp.eq.s32.totalorder %s9, 5
      %p75 = por %p73, %p74
      %p76 = scmp.ne.s32.totalorder %s68, %s71
      %p77 = scmp.eq.s32.totalorder %s9, 0
      %p78 = por %p76, %p77
      %p79 = scmp.ne.s32.totalorder %s68, %s71
      %p80 = scmp.eq.s32.totalorder %s14, 5
      %p81 = por %p79, %p80
      %p82 = scmp.ne.s32.totalorder %s71, %s72
      %p83 = scmp.eq.s32.totalorder %s14, 0
      %p84 = por %p82, %p83
      %p85 = scmp.ne.s32.totalorder %s71, %s72
      %p86 = scmp.eq.s32.totalorder %s15, 5
      %p87 = por %p85, %p86
      %p89 = scmp.ne.s32.totalorder %s72, %s88
      %p90 = scmp.eq.s32.totalorder %s15, 0
      %p91 = por %p89, %p90
      %s92 = ssub.s32 %s17, %s31
      %p93 = scmp.eq.s32.totalorder %s92, 0
      %s95 = sadd.s32 %s94, 1
      %s96 = scalar_select %p93, %s94, %s95
      %p99 = pneg %p93
      %p100 = scmp.eq.s32.totalorder %s9, 5
      %p101 = por %p99, %p100
      %p102 = scmp.ne.s32.totalorder %s94, %s97
      %p103 = scmp.eq.s32.totalorder %s9, 0
      %p104 = por %p102, %p103
      %p105 = scmp.ne.s32.totalorder %s94, %s97
      %p106 = scmp.eq.s32.totalorder %s14, 5
      %p107 = por %p105, %p106
      %p108 = scmp.ne.s32.totalorder %s97, %s98
      %p109 = scmp.eq.s32.totalorder %s14, 0
      %p110 = por %p108, %p109
      %p111 = scmp.ne.s32.totalorder %s97, %s98
      %p112 = scmp.eq.s32.totalorder %s15, 5
      %p113 = por %p111, %p112
      %p115 = scmp.ne.s32.totalorder %s98, %s114
      %p116 = scmp.eq.s32.totalorder %s15, 0
      %p117 = por %p115, %p116
      %s118 = ssub.s32 %s16, %s35
      %s119 = ssub.s32 %s17, %s31
      %s120 = sor.u32 %s118, %s119
      %p121 = scmp.eq.s32.totalorder %s120, 0
      %s123 = sadd.s32 %s122, 1
      %s124 = scalar_select %p121, %s122, %s123
      %p127 = pneg %p121
      %p128 = scmp.eq.s32.totalorder %s9, 5
      %p129 = por %p127, %p128
      %p130 = scmp.ne.s32.totalorder %s122, %s125
      %p131 = scmp.eq.s32.totalorder %s9, 0
      %p132 = por %p130, %p131
      %p133 = scmp.ne.s32.totalorder %s122, %s125
      %p134 = scmp.eq.s32.totalorder %s14, 5
      %p135 = por %p133, %p134
      %p136 = scmp.ne.s32.totalorder %s125, %s126
      %p137 = scmp.eq.s32.totalorder %s14, 0
      %p138 = por %p136, %p137
      %p139 = scmp.ne.s32.totalorder %s125, %s126
      %p140 = scmp.eq.s32.totalorder %s15, 5
      %p141 = por %p139, %p140
      %p143 = scmp.ne.s32.totalorder %s126, %s142
      %p144 = scmp.eq.s32.totalorder %s15, 0
      %p145 = por %p143, %p144
      %p146 = scmp.le.s32.totalorder 1, %s9
      %p147 = scmp.lt.s32.totalorder %s9, 7
      %p148 = pnand %p146, %p147
      %p149 = pneg %p148
      // Predicated region
      $region9: #{generator_forward.29} parent=5 // pred_check
        _
      $region10: #{generator_forward.29} parent=5 // pred_check_branch
        %151 = sbr.rel (%p148) target = $region12
      $region11: #{generator_forward.29} parent=5 // pred_region
        %s152 = ssub.s32 %s9, 1
        // Predicated region
        $region13: #{generator_forward.29} parent=11 // pred_check
          %p153 = pneg %p110
        $region14: #{generator_forward.29} parent=11 // pred_check_branch
          %155 = sbr.rel (%p153) target = $region16
        $region15: #{generator_forward.29} parent=11 // pred_region
          %s156 = smul.u32 2, %s20
          %p157 = scmp.lt.s32.totalorder %s156, 1
          %s158 = scalar_select %p157, %s156, 1
          %s159 = scalar_lea.vmem %s2, %s158
          %s160 = smul.u32 2, %s20
        $region16: #{generator_forward.29} parent=11 // pred_fallthru
          _
      $region12: #{generator_forward.29} parent=5 // pred_fallthru
        _
      %p161 = scmp.lt.s32.totalorder %s9, 6
      // Predicated region
      $region17: #{generator_forward.29} parent=5 // pred_check
        %p162 = pneg %p161
      $region18: #{generator_forward.29} parent=5 // pred_check_branch
        %164 = sbr.rel (%p162) target = $region20
      $region19: #{generator_forward.29} parent=5 // pred_region
        // Predicated region
        $region21: #{generator_forward.29} parent=19 // pred_check
          %p165 = pneg %p50
        $region22: #{generator_forward.29} parent=19 // pred_check_branch
          %167 = sbr.rel (%p165) target = $region24
        $region23: #{generator_forward.29} parent=19 // pred_region
          %s168 = sand.u32 %s40, 1
          %s169 = sand.u32 %s40, 1
          %s170 = smul.addr %s169, 48
          %s171 = scalar_lea.vmem [#allocation3], %s170
          %s172 = smul.u32 4, %s16
          %s173 = smul.u32 3, %s18
          %s174 = smul.addr %s172, 18
          %s175 = sadd.s32 %s173, %s174
          %s176 = smul.addr %s175, 4
          %s177 = scalar_lea.vmem %s0, %s176
          // Predicated region
          $region25: #{generator_forward.29} parent=23 // pred_check
            _
          $region26: #{generator_forward.29} parent=23 // pred_check_branch
            %179 = sbr.rel (0) target = $region28
          $region27: #{generator_forward.29} parent=23 // pred_region
            // Predicated region
            $region29: #{generator_forward.29} parent=27 // pred_check
              _
            $region30: #{generator_forward.29} parent=27 // pred_check_branch
              %181 = sbr.rel (0) target = $region32
            $region31: #{generator_forward.29} parent=27 // pred_region
              %s182 = scalar_lea.vmem %s177, 8
              %s183 = scalar_lea.vmem %s171, 8 [#allocation3]
              loop: start=0, step=1, limit=1
              $region33: #{generator_forward.29} parent=31 // loop_pre_header
                _
              $region34: #{generator_forward.29} parent=31 // loop_header
                %s185 = sphi 0, %s189
                %p186 = scmp.ge.s32.totalorder %s185, 1
                %s190 = sphi %s177, %s177
                %s191 = sphi %s171, %s171
              $region35: #{generator_forward.29} parent=31 // loop_header_branch
                %188 = sbr.rel (%p186) target = $region39
              $region36: #{generator_forward.29} parent=31 // loop_body
                %v192 = vld [vmem:[%s190] sm:$0xff]
                %193 = vst [vmem:[%s191] sm:$0xff] %v192
                %v194 = vld [vmem:[%s190 + $0x48] sm:$0xff]
                %195 = vst [vmem:[%s191 + $0xc] sm:$0xff] %v194
                %v196 = vld [vmem:[%s190 + $0x90] sm:$0xff]
                %197 = vst [vmem:[%s191 + $0x18] sm:$0xff] %v196
                %v198 = vld [vmem:[%s190 + $0xd8] sm:$0xff]
                %199 = vst [vmem:[%s191 + $0x24] sm:$0xff] %v198
              $region37: #{generator_forward.29} parent=31 // loop_footer
                %s189 = sadd.s32 1, %s185
              $region38: #{generator_forward.29} parent=31 // loop_footer_branch
                %184 = sbr.rel target = $region34
              $region39: #{generator_forward.29} parent=31 // loop_exit
                _
              loop: start=0, step=1, limit=1
              $region40: #{generator_forward.29} parent=31 // loop_pre_header
                _
              $region41: #{generator_forward.29} parent=31 // loop_header
                %s202 = sphi 0, %s206
                %p203 = scmp.ge.s32.totalorder %s202, 1
                %s207 = sphi %s182, %s182
                %s208 = sphi %s183, %s183
              $region42: #{generator_forward.29} parent=31 // loop_header_branch
                %205 = sbr.rel (%p203) target = $region46
              $region43: #{generator_forward.29} parent=31 // loop_body
                %v209 = vld [vmem:[%s207] sm:$0xf]
                %210 = vst [vmem:[%s208] sm:$0xf] %v209
                %v211 = vld [vmem:[%s207 + $0x48] sm:$0xf]
                %212 = vst [vmem:[%s208 + $0xc] sm:$0xf] %v211
                %v213 = vld [vmem:[%s207 + $0x90] sm:$0xf]
                %214 = vst [vmem:[%s208 + $0x18] sm:$0xf] %v213
                %v215 = vld [vmem:[%s207 + $0xd8] sm:$0xf]
                %216 = vst [vmem:[%s208 + $0x24] sm:$0xf] %v215
              $region44: #{generator_forward.29} parent=31 // loop_footer
                %s206 = sadd.s32 1, %s202
              $region45: #{generator_forward.29} parent=31 // loop_footer_branch
                %201 = sbr.rel target = $region41
              $region46: #{generator_forward.29} parent=31 // loop_exit
                _
            $region32: #{generator_forward.29} parent=27 // pred_fallthru
              _
          $region28: #{generator_forward.29} parent=23 // pred_fallthru
            _
          %217 = vnop
        $region24: #{generator_forward.29} parent=19 // pred_fallthru
          _
        // Predicated region
        $region47: #{generator_forward.29} parent=19 // pred_check
          %p218 = pneg %p78
        $region48: #{generator_forward.29} parent=19 // pred_check_branch
          %220 = sbr.rel (%p218) target = $region50
        $region49: #{generator_forward.29} parent=19 // pred_region
          %s221 = smul.u32 48, %s18
          %s222 = smul.u32 2, %s17
          %p223 = scmp.lt.s32.totalorder %s221, 287
          %s224 = scalar_select %p223, %s221, 287
          %p225 = scmp.lt.s32.totalorder %s222, 1
          %s226 = scalar_select %p225, %s222, 1
          %s227 = smul.addr %s224, 2
          %s228 = sadd.s32 %s226, %s227
          %s229 = smul.addr %s228, 4
          %s230 = scalar_lea.vmem %s1, %s229
          %s231 = smul.u32 48, %s18
          %s232 = smul.u32 2, %s17
        $region50: #{generator_forward.29} parent=19 // pred_fallthru
          _
      $region20: #{generator_forward.29} parent=5 // pred_fallthru
        _
      %p233 = scmp.le.s32.totalorder 1, %s9
      %p234 = scmp.lt.s32.totalorder %s9, 7
      %p235 = pnand %p233, %p234
      %p236 = pneg %p235
      // Predicated region
      $region51: #{generator_forward.29} parent=5 // pred_check
        _
      $region52: #{generator_forward.29} parent=5 // pred_check_branch
        %238 = sbr.rel (%p235) target = $region54
      $region53: #{generator_forward.29} parent=5 // pred_region
        %s239 = ssub.s32 %s9, 1
        %s240 = sand.u32 %s43, 1
        %s241 = sand.u32 %s43, 1
        %s242 = smul.addr %s241, 48
        %s243 = scalar_lea.vmem [#allocation3], %s242
        // Predicated region
        $region55: #{generator_forward.29} parent=53 // pred_check
          %p244 = pneg %p56
        $region56: #{generator_forward.29} parent=53 // pred_check_branch
          %246 = sbr.rel (%p244) target = $region58
        $region57: #{generator_forward.29} parent=53 // pred_region
          _
        $region58: #{generator_forward.29} parent=53 // pred_fallthru
          _
        %s247 = sand.u32 %s43, 1
        %s248 = sand.u32 %s43, 1
        %s249 = smul.addr %s248, 48
        %s250 = scalar_lea.vmem [#allocation3], %s249
        %p251 = pneg %p56
        %p252 = pneg %p53
        %s253 = smul.u32 48, %s21
        %s254 = smul.u32 2, %s20
        %p255 = scmp.lt.s32.totalorder %s253, 287
        %s256 = scalar_select %p255, %s253, 287
        %p257 = scmp.lt.s32.totalorder %s254, 1
        %s258 = scalar_select %p257, %s254, 1
        %s259 = smul.addr %s256, 2
        %s260 = sadd.s32 %s258, %s259
        %s261 = smul.addr %s260, 4
        %s262 = scalar_lea.vmem %s1, %s261
        %p263 = pneg %p84
        %p264 = pneg %p81
        %s265 = smul.u32 2, %s20
        %p266 = scmp.lt.s32.totalorder %s265, 1
        %s267 = scalar_select %p266, %s265, 1
        %s268 = scalar_lea.vmem %s2, %s267
        %p269 = pneg %p110
        %p270 = pneg %p107
        %p271 = pneg %p138
        %p272 = pneg %p135
        %s273 = smul.u32 4, %s19
        %s274 = smul.u32 2, %s20
        %p275 = scmp.lt.s32.totalorder %s273, 3
        %s276 = scalar_select %p275, %s273, 3
        %p277 = scmp.lt.s32.totalorder %s274, 1
        %s278 = scalar_select %p277, %s274, 1
        %s279 = smul.addr %s276, 2
        %s280 = sadd.s32 %s278, %s279
        %s281 = smul.addr %s280, 8
        %s282 = scalar_lea.vmem %s3, %s281
        %s283 = smul.u32 4, %s19
        %s284 = smul.u32 3, %s21
        %s285 = smul.u32 48, %s21
        %s286 = smul.u32 2, %s20
        %p287 = scmp.lt.s32.totalorder %s285, 287
        %s288 = scalar_select %p287, %s285, 287
        %p289 = scmp.lt.s32.totalorder %s286, 1
        %s290 = scalar_select %p289, %s286, 1
        %s291 = smul.addr %s288, 2
        %s292 = sadd.s32 %s290, %s291
        %s293 = smul.addr %s292, 4
        %s294 = scalar_lea.vmem %s1, %s293
        %s295 = smul.u32 48, %s21
        %s296 = smul.u32 2, %s20
        %s297 = smul.u32 2, %s20
        %p298 = scmp.lt.s32.totalorder %s297, 1
        %s299 = scalar_select %p298, %s297, 1
        %s300 = scalar_lea.vmem %s2, %s299
        %s301 = smul.u32 2, %s20
        %s302 = smul.u32 4, %s19
        %s303 = smul.u32 2, %s20
        %p304 = scmp.lt.s32.totalorder %s302, 3
        %s305 = scalar_select %p304, %s302, 3
        %p306 = scmp.lt.s32.totalorder %s303, 1
        %s307 = scalar_select %p306, %s303, 1
        %s308 = smul.addr %s305, 2
        %s309 = sadd.s32 %s307, %s308
        %s310 = smul.addr %s309, 8
        %s311 = scalar_lea.vmem %s3, %s310
        %s312 = smul.u32 4, %s19
        %s313 = smul.u32 2, %s20
        %p315 = scmp.eq.s32.totalorder %s21, 0
        // Predicated region
        $region59: #{generator_forward.29} parent=53 // pred_check
          %p316 = pneg %p315
        $region60: #{generator_forward.29} parent=53 // pred_check_branch
          %318 = sbr.rel (%p316) target = $region62
        $region61: #{generator_forward.29} parent=53 // pred_region
          %319 = vst [vmem:[#allocation2] sm:$0xff] 0.0
          %320 = vst [vmem:[#allocation2 + $0x8] sm:$0xff] 0.0
          %321 = vst [vmem:[#allocation2 + $0x10] sm:$0xff] 0.0
          %322 = vst [vmem:[#allocation2 + $0x18] sm:$0xff] 0.0
          %323 = vst [vmem:[#allocation2 + $0x20] sm:$0xff] 0.0
          %324 = vst [vmem:[#allocation2 + $0x28] sm:$0xff] 0.0
          %325 = vst [vmem:[#allocation2 + $0x30] sm:$0xff] 0.0
          %326 = vst [vmem:[#allocation2 + $0x38] sm:$0xff] 0.0
        $region62: #{generator_forward.29} parent=53 // pred_fallthru
          _
        %v327 = vld [vmem:[#allocation2] sm:$0xff]
        %v328 = vld [vmem:[#allocation2 + $0x8] sm:$0xff]
        %v329 = vld [vmem:[#allocation2 + $0x10] sm:$0xff]
        %v330 = vld [vmem:[#allocation2 + $0x18] sm:$0xff]
        %v331 = vld [vmem:[#allocation2 + $0x20] sm:$0xff]
        %v332 = vld [vmem:[#allocation2 + $0x28] sm:$0xff]
        %v333 = vld [vmem:[#allocation2 + $0x30] sm:$0xff]
        %v334 = vld [vmem:[#allocation2 + $0x38] sm:$0xff]
        %v335 = vld [vmem:[%s243] sm:$0xff]
        %v336 = vld [vmem:[%s243 + $0x8] sm:$0xf]
        %v337 = vld [vmem:[%s243 + $0xc] sm:$0xff]
        %v338 = vld [vmem:[%s243 + $0x14] sm:$0xf]
        %v339 = vld [vmem:[%s243 + $0x18] sm:$0xff]
        %v340 = vld [vmem:[%s243 + $0x20] sm:$0xf]
        %v341 = vld [vmem:[%s243 + $0x24] sm:$0xff]
        %v342 = vld [vmem:[%s243 + $0x2c] sm:$0xf]
        %v343 = vld [vmem:[%s294] sm:$0xff]
        %v344 = vld [vmem:[%s294 + $0x8] sm:$0xff]
        %v345 = vld [vmem:[%s294 + $0x10] sm:$0xff]
        %v346 = vld [vmem:[%s294 + $0x18] sm:$0xff]
        %v347 = vld [vmem:[%s294 + $0x20] sm:$0xff]
        %v348 = vld [vmem:[%s294 + $0x28] sm:$0xff]
        %v349 = vld [vmem:[%s294 + $0x30] sm:$0xff]
        %v350 = vld [vmem:[%s294 + $0x38] sm:$0xff]
        %v351 = vld [vmem:[%s294 + $0x40] sm:$0xff]
        %v352 = vld [vmem:[%s294 + $0x48] sm:$0xff]
        %v353 = vld [vmem:[%s294 + $0x50] sm:$0xff]
        %v354 = vld [vmem:[%s294 + $0x58] sm:$0xff]
        %v355 = vld [vmem:[%s294 + $0x60] sm:$0xff]
        %v356 = vld [vmem:[%s294 + $0x68] sm:$0xff]
        %v357 = vld [vmem:[%s294 + $0x70] sm:$0xff]
        %v358 = vld [vmem:[%s294 + $0x78] sm:$0xff]
        %v359 = vld [vmem:[%s294 + $0x80] sm:$0xff]
        %v360 = vld [vmem:[%s294 + $0x88] sm:$0xff]
        %v361 = vld [vmem:[%s294 + $0x90] sm:$0xff]
        %v362 = vld [vmem:[%s294 + $0x98] sm:$0xff]
        %v363 = vld [vmem:[%s294 + $0xa0] sm:$0xff]
        %v364 = vld [vmem:[%s294 + $0xa8] sm:$0xff]
        %v365 = vld [vmem:[%s294 + $0xb0] sm:$0xff]
        %v366 = vld [vmem:[%s294 + $0xb8] sm:$0xff]
        %v367 = vld [vmem:[%s294 + $0xc0] sm:$0xff]
        %v368 = vld [vmem:[%s294 + $0xc8] sm:$0xff]
        %v369 = vld [vmem:[%s294 + $0xd0] sm:$0xff]
        %v370 = vld [vmem:[%s294 + $0xd8] sm:$0xff]
        %v371 = vld [vmem:[%s294 + $0xe0] sm:$0xff]
        %v372 = vld [vmem:[%s294 + $0xe8] sm:$0xff]
        %v373 = vld [vmem:[%s294 + $0xf0] sm:$0xff]
        %v374 = vld [vmem:[%s294 + $0xf8] sm:$0xff]
        %v375 = vld [vmem:[%s294 + $0x100] sm:$0xff]
        %v376 = vld [vmem:[%s294 + $0x108] sm:$0xff]
        %v377 = vld [vmem:[%s294 + $0x110] sm:$0xff]
        %v378 = vld [vmem:[%s294 + $0x118] sm:$0xff]
        %v379 = vld [vmem:[%s294 + $0x120] sm:$0xff]
        %v380 = vld [vmem:[%s294 + $0x128] sm:$0xff]
        %v381 = vld [vmem:[%s294 + $0x130] sm:$0xff]
        %v382 = vld [vmem:[%s294 + $0x138] sm:$0xff]
        %v383 = vld [vmem:[%s294 + $0x140] sm:$0xff]
        %v384 = vld [vmem:[%s294 + $0x148] sm:$0xff]
        %v385 = vld [vmem:[%s294 + $0x150] sm:$0xff]
        %v386 = vld [vmem:[%s294 + $0x158] sm:$0xff]
        %v387 = vld [vmem:[%s294 + $0x160] sm:$0xff]
        %v388 = vld [vmem:[%s294 + $0x168] sm:$0xff]
        %v389 = vld [vmem:[%s294 + $0x170] sm:$0xff]
        %v390 = vld [vmem:[%s294 + $0x178] sm:$0xff]
        %v399 = vunpack.c.l.b16 %v335
        %v400 = vunpack.c.h.b16 %v335
        %v401 = vunpack.c.l.b16 %v336
        %v402 = vunpack.c.l.b16 %v337
        %v403 = vunpack.c.h.b16 %v337
        %v404 = vunpack.c.l.b16 %v338
        %v405 = vunpack.c.l.b16 %v339
        %v406 = vunpack.c.h.b16 %v339
        %v407 = vunpack.c.l.b16 %v340
        %v408 = vunpack.c.l.b16 %v341
        %v409 = vunpack.c.h.b16 %v341
        %v410 = vunpack.c.l.b16 %v342
        %v411 = vpack.c.b16 %v402, %v399
        %v412 = vpack.c.b16 %v403, %v400
        %v413 = vpack.c.b16 %v404, %v401
        %v414 = vpack.c.b16 %v408, %v405
        %v415 = vpack.c.b16 %v409, %v406
        %v416 = vpack.c.b16 %v410, %v407
        %v471 = vunpack.c.l.b16 %v343
        %v472 = vunpack.c.h.b16 %v343
        %v473 = vunpack.c.l.b16 %v344
        %v474 = vunpack.c.h.b16 %v344
        %v475 = vunpack.c.l.b16 %v345
        %v476 = vunpack.c.h.b16 %v345
        %v477 = vunpack.c.l.b16 %v346
        %v478 = vunpack.c.h.b16 %v346
        %v479 = vunpack.c.l.b16 %v347
        %v480 = vunpack.c.h.b16 %v347
        %v481 = vunpack.c.l.b16 %v348
        %v482 = vunpack.c.h.b16 %v348
        %v483 = vunpack.c.l.b16 %v349
        %v484 = vunpack.c.h.b16 %v349
        %v485 = vunpack.c.l.b16 %v350
        %v486 = vunpack.c.h.b16 %v350
        %v487 = vunpack.c.l.b16 %v351
        %v488 = vunpack.c.h.b16 %v351
        %v489 = vunpack.c.l.b16 %v352
        %v490 = vunpack.c.h.b16 %v352
        %v491 = vunpack.c.l.b16 %v353
        %v492 = vunpack.c.h.b16 %v353
        %v493 = vunpack.c.l.b16 %v354
        %v494 = vunpack.c.h.b16 %v354
        %v495 = vunpack.c.l.b16 %v355
        %v496 = vunpack.c.h.b16 %v355
        %v497 = vunpack.c.l.b16 %v356
        %v498 = vunpack.c.h.b16 %v356
        %v499 = vunpack.c.l.b16 %v357
        %v500 = vunpack.c.h.b16 %v357
        %v501 = vunpack.c.l.b16 %v358
        %v502 = vunpack.c.h.b16 %v358
        %v503 = vunpack.c.l.b16 %v359
        %v504 = vunpack.c.h.b16 %v359
        %v505 = vunpack.c.l.b16 %v360
        %v506 = vunpack.c.h.b16 %v360
        %v507 = vunpack.c.l.b16 %v361
        %v508 = vunpack.c.h.b16 %v361
        %v509 = vunpack.c.l.b16 %v362
        %v510 = vunpack.c.h.b16 %v362
        %v511 = vunpack.c.l.b16 %v363
        %v512 = vunpack.c.h.b16 %v363
        %v513 = vunpack.c.l.b16 %v364
        %v514 = vunpack.c.h.b16 %v364
        %v515 = vunpack.c.l.b16 %v365
        %v516 = vunpack.c.h.b16 %v365
        %v517 = vunpack.c.l.b16 %v366
        %v518 = vunpack.c.h.b16 %v366
        %v519 = vunpack.c.l.b16 %v367
        %v520 = vunpack.c.h.b16 %v367
        %v521 = vunpack.c.l.b16 %v368
        %v522 = vunpack.c.h.b16 %v368
        %v523 = vunpack.c.l.b16 %v369
        %v524 = vunpack.c.h.b16 %v369
        %v525 = vunpack.c.l.b16 %v370
        %v526 = vunpack.c.h.b16 %v370
        %v527 = vunpack.c.l.b16 %v371
        %v528 = vunpack.c.h.b16 %v371
        %v529 = vunpack.c.l.b16 %v372
        %v530 = vunpack.c.h.b16 %v372
        %v531 = vunpack.c.l.b16 %v373
        %v532 = vunpack.c.h.b16 %v373
        %v533 = vunpack.c.l.b16 %v374
        %v534 = vunpack.c.h.b16 %v374
        %v535 = vunpack.c.l.b16 %v375
        %v536 = vunpack.c.h.b16 %v375
        %v537 = vunpack.c.l.b16 %v376
        %v538 = vunpack.c.h.b16 %v376
        %v539 = vunpack.c.l.b16 %v377
        %v540 = vunpack.c.h.b16 %v377
        %v541 = vunpack.c.l.b16 %v378
        %v542 = vunpack.c.h.b16 %v378
        %v543 = vunpack.c.l.b16 %v379
        %v544 = vunpack.c.h.b16 %v379
        %v545 = vunpack.c.l.b16 %v380
        %v546 = vunpack.c.h.b16 %v380
        %v547 = vunpack.c.l.b16 %v381
        %v548 = vunpack.c.h.b16 %v381
        %v549 = vunpack.c.l.b16 %v382
        %v550 = vunpack.c.h.b16 %v382
        %v551 = vunpack.c.l.b16 %v383
        %v552 = vunpack.c.h.b16 %v383
        %v553 = vunpack.c.l.b16 %v384
        %v554 = vunpack.c.h.b16 %v384
        %v555 = vunpack.c.l.b16 %v385
        %v556 = vunpack.c.h.b16 %v385
        %v557 = vunpack.c.l.b16 %v386
        %v558 = vunpack.c.h.b16 %v386
        %v559 = vunpack.c.l.b16 %v387
        %v560 = vunpack.c.h.b16 %v387
        %v561 = vunpack.c.l.b16 %v388
        %v562 = vunpack.c.h.b16 %v388
        %v563 = vunpack.c.l.b16 %v389
        %v564 = vunpack.c.h.b16 %v389
        %v565 = vunpack.c.l.b16 %v390
        %v566 = vunpack.c.h.b16 %v390
        %v567 = vpack.c.b16 %v473, %v471
        %v568 = vpack.c.b16 %v474, %v472
        %v569 = vpack.c.b16 %v477, %v475
        %v570 = vpack.c.b16 %v478, %v476
        %v571 = vpack.c.b16 %v481, %v479
        %v572 = vpack.c.b16 %v482, %v480
        %v573 = vpack.c.b16 %v485, %v483
        %v574 = vpack.c.b16 %v486, %v484
        %v575 = vpack.c.b16 %v489, %v487
        %v576 = vpack.c.b16 %v490, %v488
        %v577 = vpack.c.b16 %v493, %v491
        %v578 = vpack.c.b16 %v494, %v492
        %v579 = vpack.c.b16 %v497, %v495
        %v580 = vpack.c.b16 %v498, %v496
        %v581 = vpack.c.b16 %v501, %v499
        %v582 = vpack.c.b16 %v502, %v500
        %v583 = vpack.c.b16 %v505, %v503
        %v584 = vpack.c.b16 %v506, %v504
        %v585 = vpack.c.b16 %v509, %v507
        %v586 = vpack.c.b16 %v510, %v508
        %v587 = vpack.c.b16 %v513, %v511
        %v588 = vpack.c.b16 %v514, %v512
        %v589 = vpack.c.b16 %v517, %v515
        %v590 = vpack.c.b16 %v518, %v516
        %v591 = vpack.c.b16 %v521, %v519
        %v592 = vpack.c.b16 %v522, %v520
        %v593 = vpack.c.b16 %v525, %v523
        %v594 = vpack.c.b16 %v526, %v524
        %v595 = vpack.c.b16 %v529, %v527
        %v596 = vpack.c.b16 %v530, %v528
        %v597 = vpack.c.b16 %v533, %v531
        %v598 = vpack.c.b16 %v534, %v532
        %v599 = vpack.c.b16 %v537, %v535
        %v600 = vpack.c.b16 %v538, %v536
        %v601 = vpack.c.b16 %v541, %v539
        %v602 = vpack.c.b16 %v542, %v540
        %v603 = vpack.c.b16 %v545, %v543
        %v604 = vpack.c.b16 %v546, %v544
        %v605 = vpack.c.b16 %v549, %v547
        %v606 = vpack.c.b16 %v550, %v548
        %v607 = vpack.c.b16 %v553, %v551
        %v608 = vpack.c.b16 %v554, %v552
        %v609 = vpack.c.b16 %v557, %v555
        %v610 = vpack.c.b16 %v558, %v556
        %v611 = vpack.c.b16 %v561, %v559
        %v612 = vpack.c.b16 %v562, %v560
        %v613 = vpack.c.b16 %v565, %v563
        %v614 = vpack.c.b16 %v566, %v564
        %663 = vmatprep.subr.bf16.mxu0 %v568
        %664 = vmatpush1.bf16.msra.mxu0 %v567
        %665 = vmatprep.subr.bf16.mxu0 %v570
        %666 = vmatpush1.bf16.msra.mxu0 %v569
        %667 = vmatprep.subr.bf16.mxu0 %v572
        %668 = vmatpush1.bf16.msra.mxu0 %v571
        %669 = vmatprep.subr.bf16.mxu0 %v574
        %670 = vmatpush1.bf16.msra.mxu0 %v573
        %671 = vmatprep.subr.bf16.mxu0 %v576
        %672 = vmatpush1.bf16.msra.mxu0 %v575
        %673 = vmatprep.subr.bf16.mxu0 %v578
        %674 = vmatpush1.bf16.msra.mxu0 %v577
        %675 = vmatprep.subr.bf16.mxu0 %v580
        %676 = vmatpush1.bf16.msra.mxu0 %v579
        %677 = vmatprep.subr.bf16.mxu0 %v582
        %678 = vmatpush1.bf16.msra.mxu0 %v581
        %679 = vmatprep.subr.bf16.mxu0 %v584
        %680 = vmatpush1.bf16.msra.mxu0 %v583
        %681 = vmatprep.subr.bf16.mxu0 %v586
        %682 = vmatpush1.bf16.msra.mxu0 %v585
        %683 = vmatprep.subr.bf16.mxu0 %v588
        %684 = vmatpush1.bf16.msra.mxu0 %v587
        %685 = vmatprep.subr.bf16.mxu0 %v590
        %686 = vmatpush1.bf16.msra.mxu0 %v589
        %687 = vmatprep.subr.bf16.mxu0 %v592
        %688 = vmatpush1.bf16.msra.mxu0 %v591
        %689 = vmatprep.subr.bf16.mxu0 %v594
        %690 = vmatpush1.bf16.msra.mxu0 %v593
        %691 = vmatprep.subr.bf16.mxu0 %v596
        %692 = vmatpush1.bf16.msra.mxu0 %v595
        %693 = vmatprep.subr.bf16.mxu0 %v598
        %694 = vmatpush1.bf16.msra.mxu0 %v597
        %695 = vmatprep.mubr.bf16.mxu0 %v412
        %696 = vmatmul.mubr.bf16.gmra.mrb[0].mxu0 %v411
        %v697 = vpop.f32.mrb[0].mxu0
        %v698 = vadd.f32 0.0, %v697
        %v699 = vpop.f32.mrb[0].mxu0
        %v700 = vadd.f32 0.0, %v699
        %v701 = vpop.f32.mrb[0].mxu0
        %v702 = vadd.f32 0.0, %v701
        %v703 = vpop.f32.mrb[0].mxu0
        %v704 = vadd.f32 0.0, %v703
        %705 = vmatprep.mubr.bf16.mxu0 %v415
        %706 = vmatmul.mubr.bf16.gmra.mrb[0].mxu0 %v414
        %v707 = vpop.f32.mrb[0].mxu0
        %v708 = vadd.f32 0.0, %v707
        %v709 = vpop.f32.mrb[0].mxu0
        %v710 = vadd.f32 0.0, %v709
        %v711 = vpop.f32.mrb[0].mxu0
        %v712 = vadd.f32 0.0, %v711
        %v713 = vpop.f32.mrb[0].mxu0
        %v714 = vadd.f32 0.0, %v713
        %715 = vdwg.mxu0
        %716 = vmatprep.subr.bf16.mxu0 %v600
        %717 = vmatpush1.bf16.msra.mxu0 %v599
        %718 = vmatprep.subr.bf16.mxu0 %v602
        %719 = vmatpush1.bf16.msra.mxu0 %v601
        %720 = vmatprep.subr.bf16.mxu0 %v604
        %721 = vmatpush1.bf16.msra.mxu0 %v603
        %722 = vmatprep.subr.bf16.mxu0 %v606
        %723 = vmatpush1.bf16.msra.mxu0 %v605
        %724 = vmatprep.subr.bf16.mxu0 %v608
        %725 = vmatpush1.bf16.msra.mxu0 %v607
        %726 = vmatprep.subr.bf16.mxu0 %v610
        %727 = vmatpush1.bf16.msra.mxu0 %v609
        %728 = vmatprep.subr.bf16.mxu0 %v612
        %729 = vmatpush1.bf16.msra.mxu0 %v611
        %730 = vmatprep.subr.bf16.mxu0 %v614
        %731 = vmatpush1.bf16.msra.mxu0 %v613
        %732 = vmatprep.subr.bf16.mxu0 0
        %733 = vmatpush1.bf16.msra.mxu0 0
        %734 = vmatprep.subr.bf16.mxu0 0
        %735 = vmatpush1.bf16.msra.mxu0 0
        %736 = vmatprep.subr.bf16.mxu0 0
        %737 = vmatpush1.bf16.msra.mxu0 0
        %738 = vmatprep.subr.bf16.mxu0 0
        %739 = vmatpush1.bf16.msra.mxu0 0
        %740 = vmatprep.subr.bf16.mxu0 0
        %741 = vmatpush1.bf16.msra.mxu0 0
        %742 = vmatprep.subr.bf16.mxu0 0
        %743 = vmatpush1.bf16.msra.mxu0 0
        %744 = vmatprep.subr.bf16.mxu0 0
        %745 = vmatpush1.bf16.msra.mxu0 0
        %746 = vmatprep.subr.bf16.mxu0 0
        %747 = vmatpush1.bf16.msra.mxu0 0
        %748 = vmatprep.mubr.bf16.mxu0 0
        %749 = vmatmul.mubr.bf16.gmra.mrb[0].mxu0 %v413
        %v750 = vpop.f32.mrb[0].mxu0
        %v751 = vadd.f32 %v698, %v750
        %v752 = vpop.f32.mrb[0].mxu0
        %v753 = vadd.f32 %v700, %v752
        %v754 = vpop.f32.mrb[0].mxu0
        %v755 = vadd.f32 %v702, %v754
        %v756 = vpop.f32.mrb[0].mxu0
        %v757 = vadd.f32 %v704, %v756
        %758 = vmatprep.mubr.bf16.mxu0 0
        %759 = vmatmul.mubr.bf16.gmra.mrb[0].mxu0 %v416
        %v760 = vpop.f32.mrb[0].mxu0
        %v761 = vadd.f32 %v708, %v760
        %v762 = vpop.f32.mrb[0].mxu0
        %v763 = vadd.f32 %v710, %v762
        %v764 = vpop.f32.mrb[0].mxu0
        %v765 = vadd.f32 %v712, %v764
        %v766 = vpop.f32.mrb[0].mxu0
        %v767 = vadd.f32 %v714, %v766
        %768 = vdwg.mxu0
        %v769 = vadd.f32 %v327, %v751
        %v770 = vadd.f32 %v328, %v753
        %v771 = vadd.f32 %v329, %v755
        %v772 = vadd.f32 %v330, %v757
        %v773 = vadd.f32 %v331, %v761
        %v774 = vadd.f32 %v332, %v763
        %v775 = vadd.f32 %v333, %v765
        %v776 = vadd.f32 %v334, %v767
        %777 = vst [vmem:[#allocation2] sm:$0xff] %v769
        %778 = vst [vmem:[#allocation2 + $0x8] sm:$0xff] %v770
        %779 = vst [vmem:[#allocation2 + $0x10] sm:$0xff] %v771
        %780 = vst [vmem:[#allocation2 + $0x18] sm:$0xff] %v772
        %781 = vst [vmem:[#allocation2 + $0x20] sm:$0xff] %v773
        %782 = vst [vmem:[#allocation2 + $0x28] sm:$0xff] %v774
        %783 = vst [vmem:[#allocation2 + $0x30] sm:$0xff] %v775
        %784 = vst [vmem:[#allocation2 + $0x38] sm:$0xff] %v776
        %p785 = scmp.eq.s32.totalorder %s21, 5
        // Predicated region
        $region63: #{generator_forward.29} parent=53 // pred_check
          %p786 = pneg %p785
        $region64: #{generator_forward.29} parent=53 // pred_check_branch
          %788 = sbr.rel (%p786) target = $region66
        $region65: #{generator_forward.29} parent=53 // pred_region
          %v789 = vld [vmem:[#allocation2] sm:$0xff]
          %v790 = vld [vmem:[#allocation2 + $0x8] sm:$0xff]
          %v791 = vld [vmem:[#allocation2 + $0x10] sm:$0xff]
          %v792 = vld [vmem:[#allocation2 + $0x18] sm:$0xff]
          %v793 = vld [vmem:[#allocation2 + $0x20] sm:$0xff]
          %v794 = vld [vmem:[#allocation2 + $0x28] sm:$0xff]
          %v795 = vld [vmem:[#allocation2 + $0x30] sm:$0xff]
          %v796 = vld [vmem:[#allocation2 + $0x38] sm:$0xff]
          %v797 = vld [vmem:[%s300] sm:$0x3]
          %v799 = vlaneseq
          %v800 = vshrl.u32 %v799, 7
          %v801 = vsub.s32 0, %v800
          %v802 = vrot.slane %v797, %v801
          %v803 = vlaneseq
          %v804 = vshrl.u32 %v803, 7
          %v805 = vsub.s32 1, %v804
          %v806 = vrot.slane %v797, %v805
          %v809 = vadd.f32 %v789, %v802
          %v810 = vadd.f32 %v790, %v806
          %v811 = vadd.f32 %v791, %v802
          %v812 = vadd.f32 %v792, %v806
          %v813 = vadd.f32 %v793, %v802
          %v814 = vadd.f32 %v794, %v806
          %v815 = vadd.f32 %v795, %v802
          %v816 = vadd.f32 %v796, %v806
          %817 = vst [vmem:[%s311] sm:$0xff] %v809
          %818 = vst [vmem:[%s311 + $0x8] sm:$0xff] %v810
          %819 = vst [vmem:[%s311 + $0x10] sm:$0xff] %v811
          %820 = vst [vmem:[%s311 + $0x18] sm:$0xff] %v812
          %821 = vst [vmem:[%s311 + $0x20] sm:$0xff] %v813
          %822 = vst [vmem:[%s311 + $0x28] sm:$0xff] %v814
          %823 = vst [vmem:[%s311 + $0x30] sm:$0xff] %v815
          %824 = vst [vmem:[%s311 + $0x38] sm:$0xff] %v816
        $region66: #{generator_forward.29} parent=53 // pred_fallthru
          _
        %s825 = smul.u32 4, %s19
        %s826 = smul.u32 2, %s20
        %p827 = scmp.lt.s32.totalorder %s825, 3
        %s828 = scalar_select %p827, %s825, 3
        %p829 = scmp.lt.s32.totalorder %s826, 1
        %s830 = scalar_select %p829, %s826, 1
        %s831 = smul.addr %s828, 2
        %s832 = sadd.s32 %s830, %s831
        %s833 = smul.addr %s832, 8
        %s834 = scalar_lea.vmem %s3, %s833
        // Predicated region
        $region67: #{generator_forward.29} parent=53 // pred_check
          %p835 = pneg %p135
        $region68: #{generator_forward.29} parent=53 // pred_check_branch
          %837 = sbr.rel (%p835) target = $region70
        $region69: #{generator_forward.29} parent=53 // pred_region
          %s838 = smul.u32 4, %s19
          %s839 = smul.u32 2, %s20
        $region70: #{generator_forward.29} parent=53 // pred_fallthru
          _
        // Predicated region
        $region71: #{generator_forward.29} parent=53 // pred_check
          %p840 = pneg %p135
        $region72: #{generator_forward.29} parent=53 // pred_check_branch
          %842 = sbr.rel (%p840) target = $region74
        $region73: #{generator_forward.29} parent=53 // pred_region
          %s843 = smul.u32 4, %s19
          %s844 = smul.u32 2, %s20
          %p845 = scmp.lt.s32.totalorder %s843, 3
          %s846 = scalar_select %p845, %s843, 3
          %p847 = scmp.lt.s32.totalorder %s844, 1
          %s848 = scalar_select %p847, %s844, 1
          %s849 = smul.addr %s846, 2
          %s850 = sadd.s32 %s848, %s849
          %s851 = smul.addr %s850, 8
          %s852 = scalar_lea.vmem %s3, %s851
        $region74: #{generator_forward.29} parent=53 // pred_fallthru
          _
      $region54: #{generator_forward.29} parent=5 // pred_fallthru
        _
      %p853 = scmp.le.s32.totalorder 2, %s9
      // Predicated region
      $region75: #{generator_forward.29} parent=5 // pred_check
        %p854 = pneg %p853
      $region76: #{generator_forward.29} parent=5 // pred_check_branch
        %856 = sbr.rel (%p854) target = $region78
      $region77: #{generator_forward.29} parent=5 // pred_region
        %s857 = ssub.s32 %s9, 2
      $region78: #{generator_forward.29} parent=5 // pred_fallthru
        _
    $region6: #{generator_forward.29} parent=1 // loop_footer
      %s13 = sadd.s32 1, %s9
    $region7: #{generator_forward.29} parent=1 // loop_footer_branch
      %8 = sbr.rel target = $region3
    $region8: #{generator_forward.29} parent=1 // loop_exit
      _

// kernel: generator_forward.32
$region0: #{generator_forward.32}
  #allocation0 [shape = 'u32[]', space=smem, size = 0x4, offset = 0x4, fixed_abs, tag = 'smem constant byte address 0x4 - core index']
  #allocation1 [shape = 'u32[144,128]{1,0:T(1,128)}', space=vmem, size = 0x12000, scoped, tag = 'internal scratch']
  %s0 = inlined_call_operand.vmem [shape: f32[2,16,256], index: 0, kind: input, shape index: {}]
  %s1 = inlined_call_operand.vmem [shape: f32[2,16,256], index: 1, kind: input, shape index: {}]
  %s2 = inlined_call_operand.vmem [shape: f32[2,16,256], index: 2, kind: output, shape index: {}]
  %s3 = sld [smem:[#allocation0]]
  $region41: #{generator_forward.32} parent=0
    _
  %s5 = ssub.s32 1, %s3
  %s6 = scalar_select 0, %s5, %s3
  loop: start=0, step=1, limit=4
  $region2: #{generator_forward.32} parent=0 // loop_pre_header
    _
  $region3: #{generator_forward.32} parent=0 // loop_header
    %s8 = sphi 0, %s12
    %p9 = scmp.ge.s32.totalorder %s8, 4
    %s15 = sphi 0, %s27
    %s16 = sphi 0, %s23
    %s17 = sphi 0, %s15
    %s18 = sphi 0, %s16
    %s19 = sphi 0, %s17
    %s20 = sphi 0, %s18
    %s32 = sphi 0, %s34
    %s35 = sphi 0, %s32
    %s36 = sphi 0, %s35
    %s52 = sphi 0, %s36
    %s60 = sphi 0, %s62
    %s63 = sphi 0, %s60
    %s64 = sphi 0, %s63
    %s80 = sphi 0, %s64
    %s88 = sphi 0, %s90
    %s91 = sphi 0, %s88
    %s92 = sphi 0, %s91
    %s108 = sphi 0, %s92
  $region4: #{generator_forward.32} parent=0 // loop_header_branch
    %11 = sbr.rel (%p9) target = $region8
  $region5: #{generator_forward.32} parent=0 // loop_body
    %s13 = ssub.s32 %s8, 1
    %s14 = ssub.s32 %s8, 2
    %s21 = sadd.s32 1, %s16
    %p22 = scmp.ge.s32.totalorder %s21, 1
    %s23 = scalar_select %p22, 0, %s21
    %s24 = sadd.s32 1, %s15
    %s25 = scalar_select %p22, %s24, %s15
    %p26 = scmp.ge.s32.totalorder %s25, 2
    %s27 = scalar_select %p26, 0, %s25
    %s28 = ssub.s32 %s15, %s27
    %s29 = ssub.s32 %s16, %s23
    %s30 = sor.u32 %s28, %s29
    %p31 = scmp.eq.s32.totalorder %s30, 0
    %s33 = sadd.s32 %s32, 1
    %s34 = scalar_select %p31, %s32, %s33
    %p37 = pneg %p31
    %p38 = scmp.eq.s32.totalorder %s8, 1
    %p39 = por %p37, %p38
    %p40 = scmp.ne.s32.totalorder %s32, %s35
    %p41 = scmp.eq.s32.totalorder %s8, 0
    %p42 = por %p40, %p41
    %p43 = scmp.ne.s32.totalorder %s32, %s35
    %p44 = scmp.eq.s32.totalorder %s13, 1
    %p45 = por %p43, %p44
    %p46 = scmp.ne.s32.totalorder %s35, %s36
    %p47 = scmp.eq.s32.totalorder %s13, 0
    %p48 = por %p46, %p47
    %p49 = scmp.ne.s32.totalorder %s35, %s36
    %p50 = scmp.eq.s32.totalorder %s14, 1
    %p51 = por %p49, %p50
    %p53 = scmp.ne.s32.totalorder %s36, %s52
    %p54 = scmp.eq.s32.totalorder %s14, 0
    %p55 = por %p53, %p54
    %s56 = ssub.s32 %s15, %s27
    %s57 = ssub.s32 %s16, %s23
    %s58 = sor.u32 %s56, %s57
    %p59 = scmp.eq.s32.totalorder %s58, 0
    %s61 = sadd.s32 %s60, 1
    %s62 = scalar_select %p59, %s60, %s61
    %p65 = pneg %p59
    %p66 = scmp.eq.s32.totalorder %s8, 1
    %p67 = por %p65, %p66
    %p68 = scmp.ne.s32.totalorder %s60, %s63
    %p69 = scmp.eq.s32.totalorder %s8, 0
    %p70 = por %p68, %p69
    %p71 = scmp.ne.s32.totalorder %s60, %s63
    %p72 = scmp.eq.s32.totalorder %s13, 1
    %p73 = por %p71, %p72
    %p74 = scmp.ne.s32.totalorder %s63, %s64
    %p75 = scmp.eq.s32.totalorder %s13, 0
    %p76 = por %p74, %p75
    %p77 = scmp.ne.s32.totalorder %s63, %s64
    %p78 = scmp.eq.s32.totalorder %s14, 1
    %p79 = por %p77, %p78
    %p81 = scmp.ne.s32.totalorder %s64, %s80
    %p82 = scmp.eq.s32.totalorder %s14, 0
    %p83 = por %p81, %p82
    %s84 = ssub.s32 %s15, %s27
    %s85 = ssub.s32 %s16, %s23
    %s86 = sor.u32 %s84, %s85
    %p87 = scmp.eq.s32.totalorder %s86, 0
    %s89 = sadd.s32 %s88, 1
    %s90 = scalar_select %p87, %s88, %s89
    %p93 = pneg %p87
    %p94 = scmp.eq.s32.totalorder %s8, 1
    %p95 = por %p93, %p94
    %p96 = scmp.ne.s32.totalorder %s88, %s91
    %p97 = scmp.eq.s32.totalorder %s8, 0
    %p98 = por %p96, %p97
    %p99 = scmp.ne.s32.totalorder %s88, %s91
    %p100 = scmp.eq.s32.totalorder %s13, 1
    %p101 = por %p99, %p100
    %p102 = scmp.ne.s32.totalorder %s91, %s92
    %p103 = scmp.eq.s32.totalorder %s13, 0
    %p104 = por %p102, %p103
    %p105 = scmp.ne.s32.totalorder %s91, %s92
    %p106 = scmp.eq.s32.totalorder %s14, 1
    %p107 = por %p105, %p106
    %p109 = scmp.ne.s32.totalorder %s92, %s108
    %p110 = scmp.eq.s32.totalorder %s14, 0
    %p111 = por %p109, %p110
    %p112 = scmp.le.s32.totalorder 1, %s8
    %p113 = scmp.lt.s32.totalorder %s8, 3
    %p114 = pnand %p112, %p113
    %p115 = pneg %p114
    // Predicated region
    $region9: #{generator_forward.32} parent=5 // pred_check
      _
    $region10: #{generator_forward.32} parent=5 // pred_check_branch
      %117 = sbr.rel (%p114) target = $region12
    $region11: #{generator_forward.32} parent=5 // pred_region
      %s118 = ssub.s32 %s8, 1
    $region12: #{generator_forward.32} parent=5 // pred_fallthru
      _
    %p119 = scmp.lt.s32.totalorder %s8, 2
    // Predicated region
    $region13: #{generator_forward.32} parent=5 // pred_check
      %p120 = pneg %p119
    $region14: #{generator_forward.32} parent=5 // pred_check_branch
      %122 = sbr.rel (%p120) target = $region16
    $region15: #{generator_forward.32} parent=5 // pred_region
      // Predicated region
      $region17: #{generator_forward.32} parent=15 // pred_check
        %p123 = pneg %p42
      $region18: #{generator_forward.32} parent=15 // pred_check_branch
        %125 = sbr.rel (%p123) target = $region20
      $region19: #{generator_forward.32} parent=15 // pred_region
        %s126 = smul.u32 2, %s16
        %p127 = scmp.lt.s32.totalorder %s15, 1
        %s128 = scalar_select %p127, %s15, 1
        %p129 = scmp.lt.s32.totalorder %s126, 1
        %s130 = scalar_select %p129, %s126, 1
        %s131 = smul.addr %s128, 4
        %s132 = sadd.s32 %s130, %s131
        %s133 = smul.addr %s132, 8
        %s134 = scalar_lea.vmem %s0, %s133
        %s135 = smul.u32 2, %s16
      $region20: #{generator_forward.32} parent=15 // pred_fallthru
        _
      // Predicated region
      $region21: #{generator_forward.32} parent=15 // pred_check
        %p136 = pneg %p70
      $region22: #{generator_forward.32} parent=15 // pred_check_branch
        %138 = sbr.rel (%p136) target = $region24
      $region23: #{generator_forward.32} parent=15 // pred_region
        %s139 = smul.u32 2, %s16
        %p140 = scmp.lt.s32.totalorder %s15, 1
        %s141 = scalar_select %p140, %s15, 1
        %p142 = scmp.lt.s32.totalorder %s139, 1
        %s143 = scalar_select %p142, %s139, 1
        %s144 = smul.addr %s141, 4
        %s145 = sadd.s32 %s143, %s144
        %s146 = smul.addr %s145, 8
        %s147 = scalar_lea.vmem %s1, %s146
        %s148 = smul.u32 2, %s16
      $region24: #{generator_forward.32} parent=15 // pred_fallthru
        _
    $region16: #{generator_forward.32} parent=5 // pred_fallthru
      _
    %p149 = scmp.le.s32.totalorder 1, %s8
    %p150 = scmp.lt.s32.totalorder %s8, 3
    %p151 = pnand %p149, %p150
    %p152 = pneg %p151
    // Predicated region
    $region25: #{generator_forward.32} parent=5 // pred_check
      _
    $region26: #{generator_forward.32} parent=5 // pred_check_branch
      %154 = sbr.rel (%p151) target = $region28
    $region27: #{generator_forward.32} parent=5 // pred_region
      %s155 = ssub.s32 %s8, 1
      %s156 = smul.u32 2, %s18
      %p157 = scmp.lt.s32.totalorder %s17, 1
      %s158 = scalar_select %p157, %s17, 1
      %p159 = scmp.lt.s32.totalorder %s156, 1
      %s160 = scalar_select %p159, %s156, 1
      %s161 = smul.addr %s158, 4
      %s162 = sadd.s32 %s160, %s161
      %s163 = smul.addr %s162, 8
      %s164 = scalar_lea.vmem %s0, %s163
      %p165 = pneg %p48
      %p166 = pneg %p45
      %s167 = smul.u32 2, %s18
      %p168 = scmp.lt.s32.totalorder %s17, 1
      %s169 = scalar_select %p168, %s17, 1
      %p170 = scmp.lt.s32.totalorder %s167, 1
      %s171 = scalar_select %p170, %s167, 1
      %s172 = smul.addr %s169, 4
      %s173 = sadd.s32 %s171, %s172
      %s174 = smul.addr %s173, 8
      %s175 = scalar_lea.vmem %s1, %s174
      %p176 = pneg %p76
      %p177 = pneg %p73
      %p178 = pneg %p104
      %p179 = pneg %p101
      %s180 = smul.u32 2, %s18
      %p181 = scmp.lt.s32.totalorder %s17, 1
      %s182 = scalar_select %p181, %s17, 1
      %p183 = scmp.lt.s32.totalorder %s180, 1
      %s184 = scalar_select %p183, %s180, 1
      %s185 = smul.addr %s182, 4
      %s186 = sadd.s32 %s184, %s185
      %s187 = smul.addr %s186, 8
      %s188 = scalar_lea.vmem %s2, %s187
      %s189 = smul.u32 2, %s18
      %p190 = scmp.lt.s32.totalorder %s17, 1
      %s191 = scalar_select %p190, %s17, 1
      %p192 = scmp.lt.s32.totalorder %s189, 1
      %s193 = scalar_select %p192, %s189, 1
      %s194 = smul.addr %s191, 4
      %s195 = sadd.s32 %s193, %s194
      %s196 = smul.addr %s195, 8
      %s197 = scalar_lea.vmem %s0, %s196
      %s198 = smul.u32 2, %s18
      %s199 = smul.u32 2, %s18
      %p200 = scmp.lt.s32.totalorder %s17, 1
      %s201 = scalar_select %p200, %s17, 1
      %p202 = scmp.lt.s32.totalorder %s199, 1
      %s203 = scalar_select %p202, %s199, 1
      %s204 = smul.addr %s201, 4
      %s205 = sadd.s32 %s203, %s204
      %s206 = smul.addr %s205, 8
      %s207 = scalar_lea.vmem %s1, %s206
      %s208 = smul.u32 2, %s18
      %s209 = smul.u32 2, %s18
      %p210 = scmp.lt.s32.totalorder %s17, 1
      %s211 = scalar_select %p210, %s17, 1
      %p212 = scmp.lt.s32.totalorder %s209, 1
      %s213 = scalar_select %p212, %s209, 1
      %s214 = smul.addr %s211, 4
      %s215 = sadd.s32 %s213, %s214
      %s216 = smul.addr %s215, 8
      %s217 = scalar_lea.vmem %s2, %s216
      %s218 = smul.u32 2, %s18
      %v219 = vld [vmem:[%s197] sm:$0xff]
      %v220 = vld [vmem:[%s197 + $0x8] sm:$0xff]
      %v221 = vld [vmem:[%s197 + $0x10] sm:$0xff]
      %v222 = vld [vmem:[%s197 + $0x18] sm:$0xff]
      %v223 = vadd.f32 %v219, %v221
      %v224 = vrot.slane %v223, 4
      %v225 = vadd.f32 %v223, %v224
      %v226 = vrot.slane %v225, 2
      %v227 = vadd.f32 %v225, %v226
      %v228 = vrot.slane %v227, 1
      %v229 = vadd.f32 %v227, %v228
      %v230 = vadd.f32 %v220, %v222
      %v231 = vrot.slane %v230, 4
      %v232 = vadd.f32 %v230, %v231
      %v233 = vrot.slane %v232, 2
      %v234 = vadd.f32 %v232, %v233
      %v235 = vrot.slane %v234, 1
      %v236 = vadd.f32 %v234, %v235
      %v237 = vrcp.pop 16.0
      %v238 = vmul.f32 %v229, %v237
      %v239 = vmul.f32 %v236, %v237
      %v240 = vsub.f32 %v219, %v238
      %v241 = vsub.f32 %v220, %v239
      %v242 = vsub.f32 %v221, %v238
      %v243 = vsub.f32 %v222, %v239
      %v244 = vmul.f32 %v240, %v240
      %v245 = vmul.f32 %v241, %v241
      %v246 = vmul.f32 %v242, %v242
      %v247 = vmul.f32 %v243, %v243
      %v248 = vadd.f32 %v244, %v246
      %v249 = vrot.slane %v248, 4
      %v250 = vadd.f32 %v248, %v249
      %v251 = vrot.slane %v250, 2
      %v252 = vadd.f32 %v250, %v251
      %v253 = vrot.slane %v252, 1
      %v254 = vadd.f32 %v252, %v253
      %v255 = vadd.f32 %v245, %v247
      %v256 = vrot.slane %v255, 4
      %v257 = vadd.f32 %v255, %v256
      %v258 = vrot.slane %v257, 2
      %v259 = vadd.f32 %v257, %v258
      %v260 = vrot.slane %v259, 1
      %v261 = vadd.f32 %v259, %v260
      %v262 = vmul.f32 %v254, %v237
      %v263 = vmul.f32 %v261, %v237
      %v264 = vld [vmem:[%s207] sm:$0xff]
      %v265 = vld [vmem:[%s207 + $0x8] sm:$0xff]
      %v266 = vld [vmem:[%s207 + $0x10] sm:$0xff]
      %v267 = vld [vmem:[%s207 + $0x18] sm:$0xff]
      %v268 = vadd.f32 %v262, 1e-05
      %v269 = vadd.f32 %v263, 1e-05
      %v270 = vrsqrt.pop %v268
      %v271 = vrsqrt.pop %v269
      %v272 = vmul.f32 %v240, %v270
      %v273 = vmul.f32 %v241, %v271
      %v274 = vmul.f32 %v242, %v270
      %v275 = vmul.f32 %v243, %v271
      %v276 = vadd.f32 %v264, %v272
      %v277 = vadd.f32 %v265, %v273
      %v278 = vadd.f32 %v266, %v274
      %v279 = vadd.f32 %v267, %v275
      %280 = vst [vmem:[%s217] sm:$0xff] %v276
      %281 = vst [vmem:[%s217 + $0x8] sm:$0xff] %v277
      %282 = vst [vmem:[%s217 + $0x10] sm:$0xff] %v278
      %283 = vst [vmem:[%s217 + $0x18] sm:$0xff] %v279
      %s284 = smul.u32 2, %s18
      %p285 = scmp.lt.s32.totalorder %s17, 1
      %s286 = scalar_select %p285, %s17, 1
      %p287 = scmp.lt.s32.totalorder %s284, 1
      %s288 = scalar_select %p287, %s284, 1
      %s289 = smul.addr %s286, 4
      %s290 = sadd.s32 %s288, %s289
      %s291 = smul.addr %s290, 8
      %s292 = scalar_lea.vmem %s2, %s291
      // Predicated region
      $region29: #{generator_forward.32} parent=27 // pred_check
        %p293 = pneg %p101
      $region30: #{generator_forward.32} parent=27 // pred_check_branch
        %295 = sbr.rel (%p293) target = $region32
      $region31: #{generator_forward.32} parent=27 // pred_region
        %s296 = smul.u32 2, %s18
      $region32: #{generator_forward.32} parent=27 // pred_fallthru
        _
    $region28: #{generator_forward.32} parent=5 // pred_fallthru
      _
    %p297 = scmp.le.s32.totalorder 2, %s8
    // Predicated region
    $region33: #{generator_forward.32} parent=5 // pred_check
      %p298 = pneg %p297
    $region34: #{generator_forward.32} parent=5 // pred_check_branch
      %300 = sbr.rel (%p298) target = $region36
    $region35: #{generator_forward.32} parent=5 // pred_region
      %s301 = ssub.s32 %s8, 2
      // Predicated region
      $region37: #{generator_forward.32} parent=35 // pred_check
        %p302 = pneg %p107
      $region38: #{generator_forward.32} parent=35 // pred_check_branch
        %304 = sbr.rel (%p302) target = $region40
      $region39: #{generator_forward.32} parent=35 // pred_region
        %s305 = smul.u32 2, %s20
        %p306 = scmp.lt.s32.totalorder %s19, 1
        %s307 = scalar_select %p306, %s19, 1
        %p308 = scmp.lt.s32.totalorder %s305, 1
        %s309 = scalar_select %p308, %s305, 1
        %s310 = smul.addr %s307, 4
        %s311 = sadd.s32 %s309, %s310
        %s312 = smul.addr %s311, 8
        %s313 = scalar_lea.vmem %s2, %s312
      $region40: #{generator_forward.32} parent=35 // pred_fallthru
        _
    $region36: #{generator_forward.32} parent=5 // pred_fallthru
      _
  $region6: #{generator_forward.32} parent=0 // loop_footer
    %s12 = sadd.s32 1, %s8
  $region7: #{generator_forward.32} parent=0 // loop_footer_branch
    %7 = sbr.rel target = $region3
  $region8: #{generator_forward.32} parent=0 // loop_exit
    _

// kernel: generator_forward.41
$region0: #{generator_forward.41}
  #allocation0 [shape = 'u32[]', space=smem, size = 0x4, offset = 0x4, fixed_abs, tag = 'smem constant byte address 0x4 - core index']
  #allocation1 [shape = 'u32[144,128]{1,0:T(1,128)}', space=vmem, size = 0x12000, scoped, tag = 'internal scratch']
  #allocation2 [shape = 'f32[32,256]{1,0:T(8,128)}', space=vmem, size = 0x8000, scoped, tag = 'scratch operand']
  %s0 = inlined_call_operand.vmem [shape: bf16[32,1024], index: 0, kind: input, shape index: {}]
  %s1 = inlined_call_operand.vmem [shape: bf16[1024,512], index: 1, kind: input, shape index: {}]
  %s2 = inlined_call_operand.vmem [shape: f32[1,512], index: 2, kind: input, shape index: {}]
  %s3 = inlined_call_operand.vmem [shape: f32[32,512], index: 3, kind: output, shape index: {}]
  %s4 = sld [smem:[#allocation0]]
  $region133: #{generator_forward.41} parent=0
    _
  %s6 = ssub.s32 1, %s4
  %s7 = scalar_select 0, %s6, %s4
  $region1: #{generator_forward.41} parent=0
    #allocation3 [shape = 'u8[65536]{0}', space=vmem, size = 0x10000, scoped, tag = 'input window, operand 0']
    #allocation4 [shape = 'u8[524288]{0}', space=vmem, size = 0x80000, scoped, tag = 'input window, operand 1']
    #allocation5 [shape = 'u8[65536]{0}', space=vmem, size = 0x10000, scoped, tag = 'output window, operand 0']
    loop: start=0, step=1, limit=6
    $region2: #{generator_forward.41} parent=1 // loop_pre_header
      _
    $region3: #{generator_forward.41} parent=1 // loop_header
      %s9 = sphi 0, %s13
      %p10 = scmp.ge.s32.totalorder %s9, 6
      %s16 = sphi 0, %s35
      %s17 = sphi 0, %s31
      %s18 = sphi 0, %s27
      %s19 = sphi 0, %s16
      %s20 = sphi 0, %s17
      %s21 = sphi 0, %s18
      %s22 = sphi 0, %s19
      %s23 = sphi 0, %s20
      %s24 = sphi 0, %s21
      %s40 = sphi 0, %s42
      %s43 = sphi 0, %s40
      %s44 = sphi 0, %s43
      %s60 = sphi 0, %s44
      %s68 = sphi 0, %s70
      %s71 = sphi 0, %s68
      %s72 = sphi 0, %s71
      %s88 = sphi 0, %s72
      %s94 = sphi 0, %s96
      %s97 = sphi 0, %s94
      %s98 = sphi 0, %s97
      %s114 = sphi 0, %s98
      %s122 = sphi 0, %s124
      %s125 = sphi 0, %s122
      %s126 = sphi 0, %s125
      %s142 = sphi 0, %s126
    $region4: #{generator_forward.41} parent=1 // loop_header_branch
      %12 = sbr.rel (%p10) target = $region8
    $region5: #{generator_forward.41} parent=1 // loop_body
      %s14 = ssub.s32 %s9, 1
      %s15 = ssub.s32 %s9, 2
      %s25 = sadd.s32 1, %s18
      %p26 = scmp.ge.s32.totalorder %s25, 2
      %s27 = scalar_select %p26, 0, %s25
      %s28 = sadd.s32 1, %s17
      %s29 = scalar_select %p26, %s28, %s17
      %p30 = scmp.ge.s32.totalorder %s29, 2
      %s31 = scalar_select %p30, 0, %s29
      %s32 = sadd.s32 1, %s16
      %s33 = scalar_select %p30, %s32, %s16
      %p34 = scmp.ge.s32.totalorder %s33, 1
      %s35 = scalar_select %p34, 0, %s33
      %s36 = ssub.s32 %s16, %s35
      %s37 = ssub.s32 %s18, %s27
      %s38 = sor.u32 %s36, %s37
      %p39 = scmp.eq.s32.totalorder %s38, 0
      %s41 = sadd.s32 %s40, 1
      %s42 = scalar_select %p39, %s40, %s41
      %p45 = pneg %p39
      %p46 = scmp.eq.s32.totalorder %s9, 3
      %p47 = por %p45, %p46
      %p48 = scmp.ne.s32.totalorder %s40, %s43
      %p49 = scmp.eq.s32.totalorder %s9, 0
      %p50 = por %p48, %p49
      %p51 = scmp.ne.s32.totalorder %s40, %s43
      %p52 = scmp.eq.s32.totalorder %s14, 3
      %p53 = por %p51, %p52
      %p54 = scmp.ne.s32.totalorder %s43, %s44
      %p55 = scmp.eq.s32.totalorder %s14, 0
      %p56 = por %p54, %p55
      %p57 = scmp.ne.s32.totalorder %s43, %s44
      %p58 = scmp.eq.s32.totalorder %s15, 3
      %p59 = por %p57, %p58
      %p61 = scmp.ne.s32.totalorder %s44, %s60
      %p62 = scmp.eq.s32.totalorder %s15, 0
      %p63 = por %p61, %p62
      %s64 = ssub.s32 %s18, %s27
      %s65 = ssub.s32 %s17, %s31
      %s66 = sor.u32 %s64, %s65
      %p67 = scmp.eq.s32.totalorder %s66, 0
      %s69 = sadd.s32 %s68, 1
      %s70 = scalar_select %p67, %s68, %s69
      %p73 = pneg %p67
      %p74 = scmp.eq.s32.totalorder %s9, 3
      %p75 = por %p73, %p74
      %p76 = scmp.ne.s32.totalorder %s68, %s71
      %p77 = scmp.eq.s32.totalorder %s9, 0
      %p78 = por %p76, %p77
      %p79 = scmp.ne.s32.totalorder %s68, %s71
      %p80 = scmp.eq.s32.totalorder %s14, 3
      %p81 = por %p79, %p80
      %p82 = scmp.ne.s32.totalorder %s71, %s72
      %p83 = scmp.eq.s32.totalorder %s14, 0
      %p84 = por %p82, %p83
      %p85 = scmp.ne.s32.totalorder %s71, %s72
      %p86 = scmp.eq.s32.totalorder %s15, 3
      %p87 = por %p85, %p86
      %p89 = scmp.ne.s32.totalorder %s72, %s88
      %p90 = scmp.eq.s32.totalorder %s15, 0
      %p91 = por %p89, %p90
      %s92 = ssub.s32 %s17, %s31
      %p93 = scmp.eq.s32.totalorder %s92, 0
      %s95 = sadd.s32 %s94, 1
      %s96 = scalar_select %p93, %s94, %s95
      %p99 = pneg %p93
      %p100 = scmp.eq.s32.totalorder %s9, 3
      %p101 = por %p99, %p100
      %p102 = scmp.ne.s32.totalorder %s94, %s97
      %p103 = scmp.eq.s32.totalorder %s9, 0
      %p104 = por %p102, %p103
      %p105 = scmp.ne.s32.totalorder %s94, %s97
      %p106 = scmp.eq.s32.totalorder %s14, 3
      %p107 = por %p105, %p106
      %p108 = scmp.ne.s32.totalorder %s97, %s98
      %p109 = scmp.eq.s32.totalorder %s14, 0
      %p110 = por %p108, %p109
      %p111 = scmp.ne.s32.totalorder %s97, %s98
      %p112 = scmp.eq.s32.totalorder %s15, 3
      %p113 = por %p111, %p112
      %p115 = scmp.ne.s32.totalorder %s98, %s114
      %p116 = scmp.eq.s32.totalorder %s15, 0
      %p117 = por %p115, %p116
      %s118 = ssub.s32 %s16, %s35
      %s119 = ssub.s32 %s17, %s31
      %s120 = sor.u32 %s118, %s119
      %p121 = scmp.eq.s32.totalorder %s120, 0
      %s123 = sadd.s32 %s122, 1
      %s124 = scalar_select %p121, %s122, %s123
      %p127 = pneg %p121
      %p128 = scmp.eq.s32.totalorder %s9, 3
      %p129 = por %p127, %p128
      %p130 = scmp.ne.s32.totalorder %s122, %s125
      %p131 = scmp.eq.s32.totalorder %s9, 0
      %p132 = por %p130, %p131
      %p133 = scmp.ne.s32.totalorder %s122, %s125
      %p134 = scmp.eq.s32.totalorder %s14, 3
      %p135 = por %p133, %p134
      %p136 = scmp.ne.s32.totalorder %s125, %s126
      %p137 = scmp.eq.s32.totalorder %s14, 0
      %p138 = por %p136, %p137
      %p139 = scmp.ne.s32.totalorder %s125, %s126
      %p140 = scmp.eq.s32.totalorder %s15, 3
      %p141 = por %p139, %p140
      %p143 = scmp.ne.s32.totalorder %s126, %s142
      %p144 = scmp.eq.s32.totalorder %s15, 0
      %p145 = por %p143, %p144
      %p146 = scmp.le.s32.totalorder 1, %s9
      %p147 = scmp.lt.s32.totalorder %s9, 5
      %p148 = pnand %p146, %p147
      %p149 = pneg %p148
      // Predicated region
      $region9: #{generator_forward.41} parent=5 // pred_check
        _
      $region10: #{generator_forward.41} parent=5 // pred_check_branch
        %151 = sbr.rel (%p148) target = $region12
      $region11: #{generator_forward.41} parent=5 // pred_region
        %s152 = ssub.s32 %s9, 1
      $region12: #{generator_forward.41} parent=5 // pred_fallthru
        _
      %p153 = scmp.lt.s32.totalorder %s9, 4
      // Predicated region
      $region13: #{generator_forward.41} parent=5 // pred_check
        %p154 = pneg %p153
      $region14: #{generator_forward.41} parent=5 // pred_check_branch
        %156 = sbr.rel (%p154) target = $region16
      $region15: #{generator_forward.41} parent=5 // pred_region
        // Predicated region
        $region17: #{generator_forward.41} parent=15 // pred_check
          %p157 = pneg %p50
        $region18: #{generator_forward.41} parent=15 // pred_check_branch
          %159 = sbr.rel (%p157) target = $region20
        $region19: #{generator_forward.41} parent=15 // pred_region
          %s160 = sand.u32 %s40, 1
          %s161 = sand.u32 %s40, 1
          %s162 = smul.addr %s161, 64
          %s163 = scalar_lea.vmem [#allocation3], %s162
          %s164 = smul.u32 4, %s16
          %s165 = smul.u32 4, %s18
          %s166 = smul.addr %s164, 8
          %s167 = sadd.s32 %s165, %s166
          %s168 = smul.addr %s167, 4
          %s169 = scalar_lea.vmem %s0, %s168
          // Predicated region
          $region21: #{generator_forward.41} parent=19 // pred_check
            _
          $region22: #{generator_forward.41} parent=19 // pred_check_branch
            %171 = sbr.rel (0) target = $region24
          $region23: #{generator_forward.41} parent=19 // pred_region
            // Predicated region
            $region25: #{generator_forward.41} parent=23 // pred_check
              _
            $region26: #{generator_forward.41} parent=23 // pred_check_branch
              %173 = sbr.rel (0) target = $region28
            $region27: #{generator_forward.41} parent=23 // pred_region
              loop: start=0, step=1, limit=1
              $region29: #{generator_forward.41} parent=27 // loop_pre_header
                _
              $region30: #{generator_forward.41} parent=27 // loop_header
                %s175 = sphi 0, %s179
                %p176 = scmp.ge.s32.totalorder %s175, 1
                %s180 = sphi %s169, %s169
                %s181 = sphi %s163, %s163
              $region31: #{generator_forward.41} parent=27 // loop_header_branch
                %178 = sbr.rel (%p176) target = $region35
              $region32: #{generator_forward.41} parent=27 // loop_body
                %v182 = vld [vmem:[%s180] sm:$0xff]
                %183 = vst [vmem:[%s181] sm:$0xff] %v182
                %v184 = vld [vmem:[%s180 + $0x8] sm:$0xff]
                %185 = vst [vmem:[%s181 + $0x8] sm:$0xff] %v184
                %v186 = vld [vmem:[%s180 + $0x20] sm:$0xff]
                %187 = vst [vmem:[%s181 + $0x10] sm:$0xff] %v186
                %v188 = vld [vmem:[%s180 + $0x28] sm:$0xff]
                %189 = vst [vmem:[%s181 + $0x18] sm:$0xff] %v188
                %v190 = vld [vmem:[%s180 + $0x40] sm:$0xff]
                %191 = vst [vmem:[%s181 + $0x20] sm:$0xff] %v190
                %v192 = vld [vmem:[%s180 + $0x48] sm:$0xff]
                %193 = vst [vmem:[%s181 + $0x28] sm:$0xff] %v192
                %v194 = vld [vmem:[%s180 + $0x60] sm:$0xff]
                %195 = vst [vmem:[%s181 + $0x30] sm:$0xff] %v194
                %v196 = vld [vmem:[%s180 + $0x68] sm:$0xff]
                %197 = vst [vmem:[%s181 + $0x38] sm:$0xff] %v196
              $region33: #{generator_forward.41} parent=27 // loop_footer
                %s179 = sadd.s32 1, %s175
              $region34: #{generator_forward.41} parent=27 // loop_footer_branch
                %174 = sbr.rel target = $region30
              $region35: #{generator_forward.41} parent=27 // loop_exit
                _
            $region28: #{generator_forward.41} parent=23 // pred_fallthru
              _
            // Predicated region
            $region36: #{generator_forward.41} parent=23 // pred_check
              _
            $region37: #{generator_forward.41} parent=23 // pred_check_branch
              %199 = sbr.rel target = $region39
            $region38: #{generator_forward.41} parent=23 // pred_region
              _
            $region39: #{generator_forward.41} parent=23 // pred_fallthru
              _
          $region24: #{generator_forward.41} parent=19 // pred_fallthru
            _
          %200 = vnop
        $region20: #{generator_forward.41} parent=15 // pred_fallthru
          _
        // Predicated region
        $region40: #{generator_forward.41} parent=15 // pred_check
          %p201 = pneg %p78
        $region41: #{generator_forward.41} parent=15 // pred_check_branch
          %203 = sbr.rel (%p201) target = $region43
        $region42: #{generator_forward.41} parent=15 // pred_region
          %s204 = sand.u32 %s68, 1
          %s205 = sand.u32 %s68, 1
          %s206 = smul.addr %s205, 512
          %s207 = scalar_lea.vmem [#allocation4], %s206
          %s208 = smul.u32 64, %s18
          %s209 = smul.u32 2, %s17
          %s210 = smul.addr %s208, 4
          %s211 = sadd.s32 %s209, %s210
          %s212 = smul.addr %s211, 4
          %s213 = scalar_lea.vmem %s1, %s212
          // Predicated region
          $region44: #{generator_forward.41} parent=42 // pred_check
            _
          $region45: #{generator_forward.41} parent=42 // pred_check_branch
            %215 = sbr.rel (0) target = $region47
          $region46: #{generator_forward.41} parent=42 // pred_region
            // Predicated region
            $region48: #{generator_forward.41} parent=46 // pred_check
              _
            $region49: #{generator_forward.41} parent=46 // pred_check_branch
              %217 = sbr.rel (0) target = $region51
            $region50: #{generator_forward.41} parent=46 // pred_region
              // Predicated region
              $region63: #{generator_forward.41} parent=50 // pred_check
                _
              $region64: #{generator_forward.41} parent=50 // pred_check_branch
                %358 = sbr.rel (0) target = $region66
              $region65: #{generator_forward.41} parent=50 // pred_region
                loop: start=0, step=1, limit=1
                $region67: #{generator_forward.41} parent=65 // loop_pre_header
                  _
                $region68: #{generator_forward.41} parent=65 // loop_header
                  %s360 = sphi 0, %s364
                  %p361 = scmp.ge.s32.totalorder %s360, 1
                  %s365 = sphi %s213, %s213
                  %s366 = sphi %s207, %s207
                $region69: #{generator_forward.41} parent=65 // loop_header_branch
                  %363 = sbr.rel (%p361) target = $region73
                $region70: #{generator_forward.41} parent=65 // loop_body
                  %v367 = vld [vmem:[%s365] sm:$0xff]
                  %368 = vst [vmem:[%s366] sm:$0xff] %v367
                  %v369 = vld [vmem:[%s365 + $0x10] sm:$0xff]
                  %370 = vst [vmem:[%s366 + $0x8] sm:$0xff] %v369
                  %v371 = vld [vmem:[%s365 + $0x20] sm:$0xff]
                  %372 = vst [vmem:[%s366 + $0x10] sm:$0xff] %v371
                  %v373 = vld [vmem:[%s365 + $0x30] sm:$0xff]
                  %374 = vst [vmem:[%s366 + $0x18] sm:$0xff] %v373
                  %v375 = vld [vmem:[%s365 + $0x40] sm:$0xff]
                  %376 = vst [vmem:[%s366 + $0x20] sm:$0xff] %v375
                  %v377 = vld [vmem:[%s365 + $0x50] sm:$0xff]
                  %378 = vst [vmem:[%s366 + $0x28] sm:$0xff] %v377
                  %v379 = vld [vmem:[%s365 + $0x60] sm:$0xff]
                  %380 = vst [vmem:[%s366 + $0x30] sm:$0xff] %v379
                  %v381 = vld [vmem:[%s365 + $0x70] sm:$0xff]
                  %382 = vst [vmem:[%s366 + $0x38] sm:$0xff] %v381
                  %v383 = vld [vmem:[%s365 + $0x80] sm:$0xff]
                  %384 = vst [vmem:[%s366 + $0x40] sm:$0xff] %v383
                  %v385 = vld [vmem:[%s365 + $0x90] sm:$0xff]
                  %386 = vst [vmem:[%s366 + $0x48] sm:$0xff] %v385
                  %v387 = vld [vmem:[%s365 + $0xa0] sm:$0xff]
                  %388 = vst [vmem:[%s366 + $0x50] sm:$0xff] %v387
                  %v389 = vld [vmem:[%s365 + $0xb0] sm:$0xff]
                  %390 = vst [vmem:[%s366 + $0x58] sm:$0xff] %v389
                  %v391 = vld [vmem:[%s365 + $0xc0] sm:$0xff]
                  %392 = vst [vmem:[%s366 + $0x60] sm:$0xff] %v391
                  %v393 = vld [vmem:[%s365 + $0xd0] sm:$0xff]
                  %394 = vst [vmem:[%s366 + $0x68] sm:$0xff] %v393
                  %v395 = vld [vmem:[%s365 + $0xe0] sm:$0xff]
                  %396 = vst [vmem:[%s366 + $0x70] sm:$0xff] %v395
                  %v397 = vld [vmem:[%s365 + $0xf0] sm:$0xff]
                  %398 = vst [vmem:[%s366 + $0x78] sm:$0xff] %v397
                  %v399 = vld [vmem:[%s365 + $0x100] sm:$0xff]
                  %400 = vst [vmem:[%s366 + $0x80] sm:$0xff] %v399
                  %v401 = vld [vmem:[%s365 + $0x110] sm:$0xff]
                  %402 = vst [vmem:[%s366 + $0x88] sm:$0xff] %v401
                  %v403 = vld [vmem:[%s365 + $0x120] sm:$0xff]
                  %404 = vst [vmem:[%s366 + $0x90] sm:$0xff] %v403
                  %v405 = vld [vmem:[%s365 + $0x130] sm:$0xff]
                  %406 = vst [vmem:[%s366 + $0x98] sm:$0xff] %v405
                  %v407 = vld [vmem:[%s365 + $0x140] sm:$0xff]
                  %408 = vst [vmem:[%s366 + $0xa0] sm:$0xff] %v407
                  %v409 = vld [vmem:[%s365 + $0x150] sm:$0xff]
                  %410 = vst [vmem:[%s366 + $0xa8] sm:$0xff] %v409
                  %v411 = vld [vmem:[%s365 + $0x160] sm:$0xff]
                  %412 = vst [vmem:[%s366 + $0xb0] sm:$0xff] %v411
                  %v413 = vld [vmem:[%s365 + $0x170] sm:$0xff]
                  %414 = vst [vmem:[%s366 + $0xb8] sm:$0xff] %v413
                  %v415 = vld [vmem:[%s365 + $0x180] sm:$0xff]
                  %416 = vst [vmem:[%s366 + $0xc0] sm:$0xff] %v415
                  %v417 = vld [vmem:[%s365 + $0x190] sm:$0xff]
                  %418 = vst [vmem:[%s366 + $0xc8] sm:$0xff] %v417
                  %v419 = vld [vmem:[%s365 + $0x1a0] sm:$0xff]
                  %420 = vst [vmem:[%s366 + $0xd0] sm:$0xff] %v419
                  %v421 = vld [vmem:[%s365 + $0x1b0] sm:$0xff]
                  %422 = vst [vmem:[%s366 + $0xd8] sm:$0xff] %v421
                  %v423 = vld [vmem:[%s365 + $0x1c0] sm:$0xff]
                  %424 = vst [vmem:[%s366 + $0xe0] sm:$0xff] %v423
                  %v425 = vld [vmem:[%s365 + $0x1d0] sm:$0xff]
                  %426 = vst [vmem:[%s366 + $0xe8] sm:$0xff] %v425
                  %v427 = vld [vmem:[%s365 + $0x1e0] sm:$0xff]
                  %428 = vst [vmem:[%s366 + $0xf0] sm:$0xff] %v427
                  %v429 = vld [vmem:[%s365 + $0x1f0] sm:$0xff]
                  %430 = vst [vmem:[%s366 + $0xf8] sm:$0xff] %v429
                  %v431 = vld [vmem:[%s365 + $0x200] sm:$0xff]
                  %432 = vst [vmem:[%s366 + $0x100] sm:$0xff] %v431
                  %v433 = vld [vmem:[%s365 + $0x210] sm:$0xff]
                  %434 = vst [vmem:[%s366 + $0x108] sm:$0xff] %v433
                  %v435 = vld [vmem:[%s365 + $0x220] sm:$0xff]
                  %436 = vst [vmem:[%s366 + $0x110] sm:$0xff] %v435
                  %v437 = vld [vmem:[%s365 + $0x230] sm:$0xff]
                  %438 = vst [vmem:[%s366 + $0x118] sm:$0xff] %v437
                  %v439 = vld [vmem:[%s365 + $0x240] sm:$0xff]
                  %440 = vst [vmem:[%s366 + $0x120] sm:$0xff] %v439
                  %v441 = vld [vmem:[%s365 + $0x250] sm:$0xff]
                  %442 = vst [vmem:[%s366 + $0x128] sm:$0xff] %v441
                  %v443 = vld [vmem:[%s365 + $0x260] sm:$0xff]
                  %444 = vst [vmem:[%s366 + $0x130] sm:$0xff] %v443
                  %v445 = vld [vmem:[%s365 + $0x270] sm:$0xff]
                  %446 = vst [vmem:[%s366 + $0x138] sm:$0xff] %v445
                  %v447 = vld [vmem:[%s365 + $0x280] sm:$0xff]
                  %448 = vst [vmem:[%s366 + $0x140] sm:$0xff] %v447
                  %v449 = vld [vmem:[%s365 + $0x290] sm:$0xff]
                  %450 = vst [vmem:[%s366 + $0x148] sm:$0xff] %v449
                  %v451 = vld [vmem:[%s365 + $0x2a0] sm:$0xff]
                  %452 = vst [vmem:[%s366 + $0x150] sm:$0xff] %v451
                  %v453 = vld [vmem:[%s365 + $0x2b0] sm:$0xff]
                  %454 = vst [vmem:[%s366 + $0x158] sm:$0xff] %v453
                  %v455 = vld [vmem:[%s365 + $0x2c0] sm:$0xff]
                  %456 = vst [vmem:[%s366 + $0x160] sm:$0xff] %v455
                  %v457 = vld [vmem:[%s365 + $0x2d0] sm:$0xff]
                  %458 = vst [vmem:[%s366 + $0x168] sm:$0xff] %v457
                  %v459 = vld [vmem:[%s365 + $0x2e0] sm:$0xff]
                  %460 = vst [vmem:[%s366 + $0x170] sm:$0xff] %v459
                  %v461 = vld [vmem:[%s365 + $0x2f0] sm:$0xff]
                  %462 = vst [vmem:[%s366 + $0x178] sm:$0xff] %v461
                  %v463 = vld [vmem:[%s365 + $0x300] sm:$0xff]
                  %464 = vst [vmem:[%s366 + $0x180] sm:$0xff] %v463
                  %v465 = vld [vmem:[%s365 + $0x310] sm:$0xff]
                  %466 = vst [vmem:[%s366 + $0x188] sm:$0xff] %v465
                  %v467 = vld [vmem:[%s365 + $0x320] sm:$0xff]
                  %468 = vst [vmem:[%s366 + $0x190] sm:$0xff] %v467
                  %v469 = vld [vmem:[%s365 + $0x330] sm:$0xff]
                  %470 = vst [vmem:[%s366 + $0x198] sm:$0xff] %v469
                  %v471 = vld [vmem:[%s365 + $0x340] sm:$0xff]
                  %472 = vst [vmem:[%s366 + $0x1a0] sm:$0xff] %v471
                  %v473 = vld [vmem:[%s365 + $0x350] sm:$0xff]
                  %474 = vst [vmem:[%s366 + $0x1a8] sm:$0xff] %v473
                  %v475 = vld [vmem:[%s365 + $0x360] sm:$0xff]
                  %476 = vst [vmem:[%s366 + $0x1b0] sm:$0xff] %v475
                  %v477 = vld [vmem:[%s365 + $0x370] sm:$0xff]
                  %478 = vst [vmem:[%s366 + $0x1b8] sm:$0xff] %v477
                  %v479 = vld [vmem:[%s365 + $0x380] sm:$0xff]
                  %480 = vst [vmem:[%s366 + $0x1c0] sm:$0xff] %v479
                  %v481 = vld [vmem:[%s365 + $0x390] sm:$0xff]
                  %482 = vst [vmem:[%s366 + $0x1c8] sm:$0xff] %v481
                  %v483 = vld [vmem:[%s365 + $0x3a0] sm:$0xff]
                  %484 = vst [vmem:[%s366 + $0x1d0] sm:$0xff] %v483
                  %v485 = vld [vmem:[%s365 + $0x3b0] sm:$0xff]
                  %486 = vst [vmem:[%s366 + $0x1d8] sm:$0xff] %v485
                  %v487 = vld [vmem:[%s365 + $0x3c0] sm:$0xff]
                  %488 = vst [vmem:[%s366 + $0x1e0] sm:$0xff] %v487
                  %v489 = vld [vmem:[%s365 + $0x3d0] sm:$0xff]
                  %490 = vst [vmem:[%s366 + $0x1e8] sm:$0xff] %v489
                  %v491 = vld [vmem:[%s365 + $0x3e0] sm:$0xff]
                  %492 = vst [vmem:[%s366 + $0x1f0] sm:$0xff] %v491
                  %v493 = vld [vmem:[%s365 + $0x3f0] sm:$0xff]
                  %494 = vst [vmem:[%s366 + $0x1f8] sm:$0xff] %v493
                $region71: #{generator_forward.41} parent=65 // loop_footer
                  %s364 = sadd.s32 1, %s360
                $region72: #{generator_forward.41} parent=65 // loop_footer_branch
                  %359 = sbr.rel target = $region68
                $region73: #{generator_forward.41} parent=65 // loop_exit
                  _
              $region66: #{generator_forward.41} parent=50 // pred_fallthru
                _
              // Predicated region
              $region74: #{generator_forward.41} parent=50 // pred_check
                _
              $region75: #{generator_forward.41} parent=50 // pred_check_branch
                %496 = sbr.rel target = $region77
              $region76: #{generator_forward.41} parent=50 // pred_region
                _
              $region77: #{generator_forward.41} parent=50 // pred_fallthru
                _
            $region51: #{generator_forward.41} parent=46 // pred_fallthru
              _
            // Predicated region
            $region52: #{generator_forward.41} parent=46 // pred_check
              _
            $region53: #{generator_forward.41} parent=46 // pred_check_branch
              %219 = sbr.rel target = $region55
            $region54: #{generator_forward.41} parent=46 // pred_region
              loop: start=0, step=1, limit=1
              $region56: #{generator_forward.41} parent=54 // loop_pre_header
                _
              $region57: #{generator_forward.41} parent=54 // loop_header
                %s222 = sphi 0, %s226
                %p223 = scmp.ge.s32.totalorder %s222, 1
                %s227 = sphi %s213, %s213
                %s228 = sphi %s207, %s207
              $region58: #{generator_forward.41} parent=54 // loop_header_branch
                %225 = sbr.rel (%p223) target = $region62
              $region59: #{generator_forward.41} parent=54 // loop_body
                %v229 = vld [vmem:[%s227] sm:$0xff]
                %230 = vst [vmem:[%s228] sm:$0xff] %v229
                %v231 = vld [vmem:[%s227 + $0x10] sm:$0xff]
                %232 = vst [vmem:[%s228 + $0x8] sm:$0xff] %v231
                %v233 = vld [vmem:[%s227 + $0x20] sm:$0xff]
                %234 = vst [vmem:[%s228 + $0x10] sm:$0xff] %v233
                %v235 = vld [vmem:[%s227 + $0x30] sm:$0xff]
                %236 = vst [vmem:[%s228 + $0x18] sm:$0xff] %v235
                %v237 = vld [vmem:[%s227 + $0x40] sm:$0xff]
                %238 = vst [vmem:[%s228 + $0x20] sm:$0xff] %v237
                %v239 = vld [vmem:[%s227 + $0x50] sm:$0xff]
                %240 = vst [vmem:[%s228 + $0x28] sm:$0xff] %v239
                %v241 = vld [vmem:[%s227 + $0x60] sm:$0xff]
                %242 = vst [vmem:[%s228 + $0x30] sm:$0xff] %v241
                %v243 = vld [vmem:[%s227 + $0x70] sm:$0xff]
                %244 = vst [vmem:[%s228 + $0x38] sm:$0xff] %v243
                %v245 = vld [vmem:[%s227 + $0x80] sm:$0xff]
                %246 = vst [vmem:[%s228 + $0x40] sm:$0xff] %v245
                %v247 = vld [vmem:[%s227 + $0x90] sm:$0xff]
                %248 = vst [vmem:[%s228 + $0x48] sm:$0xff] %v247
                %v249 = vld [vmem:[%s227 + $0xa0] sm:$0xff]
                %250 = vst [vmem:[%s228 + $0x50] sm:$0xff] %v249
                %v251 = vld [vmem:[%s227 + $0xb0] sm:$0xff]
                %252 = vst [vmem:[%s228 + $0x58] sm:$0xff] %v251
                %v253 = vld [vmem:[%s227 + $0xc0] sm:$0xff]
                %254 = vst [vmem:[%s228 + $0x60] sm:$0xff] %v253
                %v255 = vld [vmem:[%s227 + $0xd0] sm:$0xff]
                %256 = vst [vmem:[%s228 + $0x68] sm:$0xff] %v255
                %v257 = vld [vmem:[%s227 + $0xe0] sm:$0xff]
                %258 = vst [vmem:[%s228 + $0x70] sm:$0xff] %v257
                %v259 = vld [vmem:[%s227 + $0xf0] sm:$0xff]
                %260 = vst [vmem:[%s228 + $0x78] sm:$0xff] %v259
                %v261 = vld [vmem:[%s227 + $0x100] sm:$0xff]
                %262 = vst [vmem:[%s228 + $0x80] sm:$0xff] %v261
                %v263 = vld [vmem:[%s227 + $0x110] sm:$0xff]
                %264 = vst [vmem:[%s228 + $0x88] sm:$0xff] %v263
                %v265 = vld [vmem:[%s227 + $0x120] sm:$0xff]
                %266 = vst [vmem:[%s228 + $0x90] sm:$0xff] %v265
                %v267 = vld [vmem:[%s227 + $0x130] sm:$0xff]
                %268 = vst [vmem:[%s228 + $0x98] sm:$0xff] %v267
                %v269 = vld [vmem:[%s227 + $0x140] sm:$0xff]
                %270 = vst [vmem:[%s228 + $0xa0] sm:$0xff] %v269
                %v271 = vld [vmem:[%s227 + $0x150] sm:$0xff]
                %272 = vst [vmem:[%s228 + $0xa8] sm:$0xff] %v271
                %v273 = vld [vmem:[%s227 + $0x160] sm:$0xff]
                %274 = vst [vmem:[%s228 + $0xb0] sm:$0xff] %v273
                %v275 = vld [vmem:[%s227 + $0x170] sm:$0xff]
                %276 = vst [vmem:[%s228 + $0xb8] sm:$0xff] %v275
                %v277 = vld [vmem:[%s227 + $0x180] sm:$0xff]
                %278 = vst [vmem:[%s228 + $0xc0] sm:$0xff] %v277
                %v279 = vld [vmem:[%s227 + $0x190] sm:$0xff]
                %280 = vst [vmem:[%s228 + $0xc8] sm:$0xff] %v279
                %v281 = vld [vmem:[%s227 + $0x1a0] sm:$0xff]
                %282 = vst [vmem:[%s228 + $0xd0] sm:$0xff] %v281
                %v283 = vld [vmem:[%s227 + $0x1b0] sm:$0xff]
                %284 = vst [vmem:[%s228 + $0xd8] sm:$0xff] %v283
                %v285 = vld [vmem:[%s227 + $0x1c0] sm:$0xff]
                %286 = vst [vmem:[%s228 + $0xe0] sm:$0xff] %v285
                %v287 = vld [vmem:[%s227 + $0x1d0] sm:$0xff]
                %288 = vst [vmem:[%s228 + $0xe8] sm:$0xff] %v287
                %v289 = vld [vmem:[%s227 + $0x1e0] sm:$0xff]
                %290 = vst [vmem:[%s228 + $0xf0] sm:$0xff] %v289
                %v291 = vld [vmem:[%s227 + $0x1f0] sm:$0xff]
                %292 = vst [vmem:[%s228 + $0xf8] sm:$0xff] %v291
                %v293 = vld [vmem:[%s227 + $0x200] sm:$0xff]
                %294 = vst [vmem:[%s228 + $0x100] sm:$0xff] %v293
                %v295 = vld [vmem:[%s227 + $0x210] sm:$0xff]
                %296 = vst [vmem:[%s228 + $0x108] sm:$0xff] %v295
                %v297 = vld [vmem:[%s227 + $0x220] sm:$0xff]
                %298 = vst [vmem:[%s228 + $0x110] sm:$0xff] %v297
                %v299 = vld [vmem:[%s227 + $0x230] sm:$0xff]
                %300 = vst [vmem:[%s228 + $0x118] sm:$0xff] %v299
                %v301 = vld [vmem:[%s227 + $0x240] sm:$0xff]
                %302 = vst [vmem:[%s228 + $0x120] sm:$0xff] %v301
                %v303 = vld [vmem:[%s227 + $0x250] sm:$0xff]
                %304 = vst [vmem:[%s228 + $0x128] sm:$0xff] %v303
                %v305 = vld [vmem:[%s227 + $0x260] sm:$0xff]
                %306 = vst [vmem:[%s228 + $0x130] sm:$0xff] %v305
                %v307 = vld [vmem:[%s227 + $0x270] sm:$0xff]
                %308 = vst [vmem:[%s228 + $0x138] sm:$0xff] %v307
                %v309 = vld [vmem:[%s227 + $0x280] sm:$0xff]
                %310 = vst [vmem:[%s228 + $0x140] sm:$0xff] %v309
                %v311 = vld [vmem:[%s227 + $0x290] sm:$0xff]
                %312 = vst [vmem:[%s228 + $0x148] sm:$0xff] %v311
                %v313 = vld [vmem:[%s227 + $0x2a0] sm:$0xff]
                %314 = vst [vmem:[%s228 + $0x150] sm:$0xff] %v313
                %v315 = vld [vmem:[%s227 + $0x2b0] sm:$0xff]
                %316 = vst [vmem:[%s228 + $0x158] sm:$0xff] %v315
                %v317 = vld [vmem:[%s227 + $0x2c0] sm:$0xff]
                %318 = vst [vmem:[%s228 + $0x160] sm:$0xff] %v317
                %v319 = vld [vmem:[%s227 + $0x2d0] sm:$0xff]
                %320 = vst [vmem:[%s228 + $0x168] sm:$0xff] %v319
                %v321 = vld [vmem:[%s227 + $0x2e0] sm:$0xff]
                %322 = vst [vmem:[%s228 + $0x170] sm:$0xff] %v321
                %v323 = vld [vmem:[%s227 + $0x2f0] sm:$0xff]
                %324 = vst [vmem:[%s228 + $0x178] sm:$0xff] %v323
                %v325 = vld [vmem:[%s227 + $0x300] sm:$0xff]
                %326 = vst [vmem:[%s228 + $0x180] sm:$0xff] %v325
                %v327 = vld [vmem:[%s227 + $0x310] sm:$0xff]
                %328 = vst [vmem:[%s228 + $0x188] sm:$0xff] %v327
                %v329 = vld [vmem:[%s227 + $0x320] sm:$0xff]
                %330 = vst [vmem:[%s228 + $0x190] sm:$0xff] %v329
                %v331 = vld [vmem:[%s227 + $0x330] sm:$0xff]
                %332 = vst [vmem:[%s228 + $0x198] sm:$0xff] %v331
                %v333 = vld [vmem:[%s227 + $0x340] sm:$0xff]
                %334 = vst [vmem:[%s228 + $0x1a0] sm:$0xff] %v333
                %v335 = vld [vmem:[%s227 + $0x350] sm:$0xff]
                %336 = vst [vmem:[%s228 + $0x1a8] sm:$0xff] %v335
                %v337 = vld [vmem:[%s227 + $0x360] sm:$0xff]
                %338 = vst [vmem:[%s228 + $0x1b0] sm:$0xff] %v337
                %v339 = vld [vmem:[%s227 + $0x370] sm:$0xff]
                %340 = vst [vmem:[%s228 + $0x1b8] sm:$0xff] %v339
                %v341 = vld [vmem:[%s227 + $0x380] sm:$0xff]
                %342 = vst [vmem:[%s228 + $0x1c0] sm:$0xff] %v341
                %v343 = vld [vmem:[%s227 + $0x390] sm:$0xff]
                %344 = vst [vmem:[%s228 + $0x1c8] sm:$0xff] %v343
                %v345 = vld [vmem:[%s227 + $0x3a0] sm:$0xff]
                %346 = vst [vmem:[%s228 + $0x1d0] sm:$0xff] %v345
                %v347 = vld [vmem:[%s227 + $0x3b0] sm:$0xff]
                %348 = vst [vmem:[%s228 + $0x1d8] sm:$0xff] %v347
                %v349 = vld [vmem:[%s227 + $0x3c0] sm:$0xff]
                %350 = vst [vmem:[%s228 + $0x1e0] sm:$0xff] %v349
                %v351 = vld [vmem:[%s227 + $0x3d0] sm:$0xff]
                %352 = vst [vmem:[%s228 + $0x1e8] sm:$0xff] %v351
                %v353 = vld [vmem:[%s227 + $0x3e0] sm:$0xff]
                %354 = vst [vmem:[%s228 + $0x1f0] sm:$0xff] %v353
                %v355 = vld [vmem:[%s227 + $0x3f0] sm:$0xff]
                %356 = vst [vmem:[%s228 + $0x1f8] sm:$0xff] %v355
              $region60: #{generator_forward.41} parent=54 // loop_footer
                %s226 = sadd.s32 1, %s222
              $region61: #{generator_forward.41} parent=54 // loop_footer_branch
                %221 = sbr.rel target = $region57
              $region62: #{generator_forward.41} parent=54 // loop_exit
                _
            $region55: #{generator_forward.41} parent=46 // pred_fallthru
              _
          $region47: #{generator_forward.41} parent=42 // pred_fallthru
            _
          %497 = vnop
        $region43: #{generator_forward.41} parent=15 // pred_fallthru
          _
        // Predicated region
        $region78: #{generator_forward.41} parent=15 // pred_check
          %p498 = pneg %p104
        $region79: #{generator_forward.41} parent=15 // pred_check_branch
          %500 = sbr.rel (%p498) target = $region81
        $region80: #{generator_forward.41} parent=15 // pred_region
          %s501 = smul.u32 2, %s17
          %p502 = scmp.lt.s32.totalorder %s501, 3
          %s503 = scalar_select %p502, %s501, 3
          %s504 = scalar_lea.vmem %s2, %s503
          %s505 = smul.u32 2, %s17
        $region81: #{generator_forward.41} parent=15 // pred_fallthru
          _
      $region16: #{generator_forward.41} parent=5 // pred_fallthru
        _
      %p506 = scmp.le.s32.totalorder 1, %s9
      %p507 = scmp.lt.s32.totalorder %s9, 5
      %p508 = pnand %p506, %p507
      %p509 = pneg %p508
      // Predicated region
      $region82: #{generator_forward.41} parent=5 // pred_check
        _
      $region83: #{generator_forward.41} parent=5 // pred_check_branch
        %511 = sbr.rel (%p508) target = $region85
      $region84: #{generator_forward.41} parent=5 // pred_region
        %s512 = ssub.s32 %s9, 1
        %s513 = sand.u32 %s43, 1
        %s514 = sand.u32 %s43, 1
        %s515 = smul.addr %s514, 64
        %s516 = scalar_lea.vmem [#allocation3], %s515
        // Predicated region
        $region86: #{generator_forward.41} parent=84 // pred_check
          %p517 = pneg %p56
        $region87: #{generator_forward.41} parent=84 // pred_check_branch
          %519 = sbr.rel (%p517) target = $region89
        $region88: #{generator_forward.41} parent=84 // pred_region
          _
        $region89: #{generator_forward.41} parent=84 // pred_fallthru
          _
        %s520 = sand.u32 %s71, 1
        %s521 = sand.u32 %s71, 1
        %s522 = smul.addr %s521, 512
        %s523 = scalar_lea.vmem [#allocation4], %s522
        // Predicated region
        $region90: #{generator_forward.41} parent=84 // pred_check
          %p524 = pneg %p84
        $region91: #{generator_forward.41} parent=84 // pred_check_branch
          %526 = sbr.rel (%p524) target = $region93
        $region92: #{generator_forward.41} parent=84 // pred_region
          _
        $region93: #{generator_forward.41} parent=84 // pred_fallthru
          _
        %s527 = sand.u32 %s43, 1
        %s528 = sand.u32 %s43, 1
        %s529 = smul.addr %s528, 64
        %s530 = scalar_lea.vmem [#allocation3], %s529
        %p531 = pneg %p56
        %p532 = pneg %p53
        %s533 = sand.u32 %s71, 1
        %s534 = sand.u32 %s71, 1
        %s535 = smul.addr %s534, 512
        %s536 = scalar_lea.vmem [#allocation4], %s535
        %p537 = pneg %p84
        %p538 = pneg %p81
        %s539 = smul.u32 2, %s20
        %p540 = scmp.lt.s32.totalorder %s539, 3
        %s541 = scalar_select %p540, %s539, 3
        %s542 = scalar_lea.vmem %s2, %s541
        %p543 = pneg %p110
        %p544 = pneg %p107
        %p545 = pneg %p138
        %p546 = pneg %p135
        %s547 = sand.u32 %s125, 1
        %s548 = sand.u32 %s125, 1
        %s549 = smul.addr %s548, 64
        %s550 = scalar_lea.vmem [#allocation5], %s549
        %s551 = smul.u32 4, %s19
        %s552 = smul.u32 4, %s21
        %s553 = smul.u32 64, %s21
        %s554 = smul.u32 2, %s20
        %s555 = smul.u32 2, %s20
        %p556 = scmp.lt.s32.totalorder %s555, 3
        %s557 = scalar_select %p556, %s555, 3
        %s558 = scalar_lea.vmem %s2, %s557
        %s559 = smul.u32 2, %s20
        %s560 = smul.u32 4, %s19
        %s561 = smul.u32 2, %s20
        %p562 = scmp.eq.s32.totalorder %s21, 0
        // Predicated region
        $region94: #{generator_forward.41} parent=84 // pred_check
          %p563 = pneg %p562
        $region95: #{generator_forward.41} parent=84 // pred_check_branch
          %565 = sbr.rel (%p563) target = $region97
        $region96: #{generator_forward.41} parent=84 // pred_region
          %566 = vst [vmem:[#allocation2] sm:$0xff] 0.0
          %567 = vst [vmem:[#allocation2 + $0x8] sm:$0xff] 0.0
          %568 = vst [vmem:[#allocation2 + $0x10] sm:$0xff] 0.0
          %569 = vst [vmem:[#allocation2 + $0x18] sm:$0xff] 0.0
          %570 = vst [vmem:[#allocation2 + $0x20] sm:$0xff] 0.0
          %571 = vst [vmem:[#allocation2 + $0x28] sm:$0xff] 0.0
          %572 = vst [vmem:[#allocation2 + $0x30] sm:$0xff] 0.0
          %573 = vst [vmem:[#allocation2 + $0x38] sm:$0xff] 0.0
        $region97: #{generator_forward.41} parent=84 // pred_fallthru
          _
        %v574 = vld [vmem:[#allocation2] sm:$0xff]
        %v575 = vld [vmem:[#allocation2 + $0x8] sm:$0xff]
        %v576 = vld [vmem:[#allocation2 + $0x10] sm:$0xff]
        %v577 = vld [vmem:[#allocation2 + $0x18] sm:$0xff]
        %v578 = vld [vmem:[#allocation2 + $0x20] sm:$0xff]
        %v579 = vld [vmem:[#allocation2 + $0x28] sm:$0xff]
        %v580 = vld [vmem:[#allocation2 + $0x30] sm:$0xff]
        %v581 = vld [vmem:[#allocation2 + $0x38] sm:$0xff]
        %v582 = vld [vmem:[%s516] sm:$0xff]
        %v583 = vld [vmem:[%s516 + $0x8] sm:$0xff]
        %v584 = vld [vmem:[%s516 + $0x10] sm:$0xff]
        %v585 = vld [vmem:[%s516 + $0x18] sm:$0xff]
        %v586 = vld [vmem:[%s516 + $0x20] sm:$0xff]
        %v587 = vld [vmem:[%s516 + $0x28] sm:$0xff]
        %v588 = vld [vmem:[%s516 + $0x30] sm:$0xff]
        %v589 = vld [vmem:[%s516 + $0x38] sm:$0xff]
        %v590 = vld [vmem:[%s523] sm:$0xff]
        %v591 = vld [vmem:[%s523 + $0x8] sm:$0xff]
        %v592 = vld [vmem:[%s523 + $0x10] sm:$0xff]
        %v593 = vld [vmem:[%s523 + $0x18] sm:$0xff]
        %v594 = vld [vmem:[%s523 + $0x20] sm:$0xff]
        %v595 = vld [vmem:[%s523 + $0x28] sm:$0xff]
        %v596 = vld [vmem:[%s523 + $0x30] sm:$0xff]
        %v597 = vld [vmem:[%s523 + $0x38] sm:$0xff]
        %v598 = vld [vmem:[%s523 + $0x40] sm:$0xff]
        %v599 = vld [vmem:[%s523 + $0x48] sm:$0xff]
        %v600 = vld [vmem:[%s523 + $0x50] sm:$0xff]
        %v601 = vld [vmem:[%s523 + $0x58] sm:$0xff]
        %v602 = vld [vmem:[%s523 + $0x60] sm:$0xff]
        %v603 = vld [vmem:[%s523 + $0x68] sm:$0xff]
        %v604 = vld [vmem:[%s523 + $0x70] sm:$0xff]
        %v605 = vld [vmem:[%s523 + $0x78] sm:$0xff]
        %v606 = vld [vmem:[%s523 + $0x80] sm:$0xff]
        %v607 = vld [vmem:[%s523 + $0x88] sm:$0xff]
        %v608 = vld [vmem:[%s523 + $0x90] sm:$0xff]
        %v609 = vld [vmem:[%s523 + $0x98] sm:$0xff]
        %v610 = vld [vmem:[%s523 + $0xa0] sm:$0xff]
        %v611 = vld [vmem:[%s523 + $0xa8] sm:$0xff]
        %v612 = vld [vmem:[%s523 + $0xb0] sm:$0xff]
        %v613 = vld [vmem:[%s523 + $0xb8] sm:$0xff]
        %v614 = vld [vmem:[%s523 + $0xc0] sm:$0xff]
        %v615 = vld [vmem:[%s523 + $0xc8] sm:$0xff]
        %v616 = vld [vmem:[%s523 + $0xd0] sm:$0xff]
        %v617 = vld [vmem:[%s523 + $0xd8] sm:$0xff]
        %v618 = vld [vmem:[%s523 + $0xe0] sm:$0xff]
        %v619 = vld [vmem:[%s523 + $0xe8] sm:$0xff]
        %v620 = vld [vmem:[%s523 + $0xf0] sm:$0xff]
        %v621 = vld [vmem:[%s523 + $0xf8] sm:$0xff]
        %v622 = vld [vmem:[%s523 + $0x100] sm:$0xff]
        %v623 = vld [vmem:[%s523 + $0x108] sm:$0xff]
        %v624 = vld [vmem:[%s523 + $0x110] sm:$0xff]
        %v625 = vld [vmem:[%s523 + $0x118] sm:$0xff]
        %v626 = vld [vmem:[%s523 + $0x120] sm:$0xff]
        %v627 = vld [vmem:[%s523 + $0x128] sm:$0xff]
        %v628 = vld [vmem:[%s523 + $0x130] sm:$0xff]
        %v629 = vld [vmem:[%s523 + $0x138] sm:$0xff]
        %v630 = vld [vmem:[%s523 + $0x140] sm:$0xff]
        %v631 = vld [vmem:[%s523 + $0x148] sm:$0xff]
        %v632 = vld [vmem:[%s523 + $0x150] sm:$0xff]
        %v633 = vld [vmem:[%s523 + $0x158] sm:$0xff]
        %v634 = vld [vmem:[%s523 + $0x160] sm:$0xff]
        %v635 = vld [vmem:[%s523 + $0x168] sm:$0xff]
        %v636 = vld [vmem:[%s523 + $0x170] sm:$0xff]
        %v637 = vld [vmem:[%s523 + $0x178] sm:$0xff]
        %v638 = vld [vmem:[%s523 + $0x180] sm:$0xff]
        %v639 = vld [vmem:[%s523 + $0x188] sm:$0xff]
        %v640 = vld [vmem:[%s523 + $0x190] sm:$0xff]
        %v641 = vld [vmem:[%s523 + $0x198] sm:$0xff]
        %v642 = vld [vmem:[%s523 + $0x1a0] sm:$0xff]
        %v643 = vld [vmem:[%s523 + $0x1a8] sm:$0xff]
        %v644 = vld [vmem:[%s523 + $0x1b0] sm:$0xff]
        %v645 = vld [vmem:[%s523 + $0x1b8] sm:$0xff]
        %v646 = vld [vmem:[%s523 + $0x1c0] sm:$0xff]
        %v647 = vld [vmem:[%s523 + $0x1c8] sm:$0xff]
        %v648 = vld [vmem:[%s523 + $0x1d0] sm:$0xff]
        %v649 = vld [vmem:[%s523 + $0x1d8] sm:$0xff]
        %v650 = vld [vmem:[%s523 + $0x1e0] sm:$0xff]
        %v651 = vld [vmem:[%s523 + $0x1e8] sm:$0xff]
        %v652 = vld [vmem:[%s523 + $0x1f0] sm:$0xff]
        %v653 = vld [vmem:[%s523 + $0x1f8] sm:$0xff]
        %v662 = vunpack.c.l.b16 %v582
        %v663 = vunpack.c.h.b16 %v582
        %v664 = vunpack.c.l.b16 %v583
        %v665 = vunpack.c.h.b16 %v583
        %v666 = vunpack.c.l.b16 %v584
        %v667 = vunpack.c.h.b16 %v584
        %v668 = vunpack.c.l.b16 %v585
        %v669 = vunpack.c.h.b16 %v585
        %v670 = vunpack.c.l.b16 %v586
        %v671 = vunpack.c.h.b16 %v586
        %v672 = vunpack.c.l.b16 %v587
        %v673 = vunpack.c.h.b16 %v587
        %v674 = vunpack.c.l.b16 %v588
        %v675 = vunpack.c.h.b16 %v588
        %v676 = vunpack.c.l.b16 %v589
        %v677 = vunpack.c.h.b16 %v589
        %v678 = vpack.c.b16 %v666, %v662
        %v679 = vpack.c.b16 %v667, %v663
        %v680 = vpack.c.b16 %v668, %v664
        %v681 = vpack.c.b16 %v669, %v665
        %v682 = vpack.c.b16 %v674, %v670
        %v683 = vpack.c.b16 %v675, %v671
        %v684 = vpack.c.b16 %v676, %v672
        %v685 = vpack.c.b16 %v677, %v673
        %v758 = vunpack.c.l.b16 %v590
        %v759 = vunpack.c.h.b16 %v590
        %v760 = vunpack.c.l.b16 %v591
        %v761 = vunpack.c.h.b16 %v591
        %v762 = vunpack.c.l.b16 %v592
        %v763 = vunpack.c.h.b16 %v592
        %v764 = vunpack.c.l.b16 %v593
        %v765 = vunpack.c.h.b16 %v593
        %v766 = vunpack.c.l.b16 %v594
        %v767 = vunpack.c.h.b16 %v594
        %v768 = vunpack.c.l.b16 %v595
        %v769 = vunpack.c.h.b16 %v595
        %v770 = vunpack.c.l.b16 %v596
        %v771 = vunpack.c.h.b16 %v596
        %v772 = vunpack.c.l.b16 %v597
        %v773 = vunpack.c.h.b16 %v597
        %v774 = vunpack.c.l.b16 %v598
        %v775 = vunpack.c.h.b16 %v598
        %v776 = vunpack.c.l.b16 %v599
        %v777 = vunpack.c.h.b16 %v599
        %v778 = vunpack.c.l.b16 %v600
        %v779 = vunpack.c.h.b16 %v600
        %v780 = vunpack.c.l.b16 %v601
        %v781 = vunpack.c.h.b16 %v601
        %v782 = vunpack.c.l.b16 %v602
        %v783 = vunpack.c.h.b16 %v602
        %v784 = vunpack.c.l.b16 %v603
        %v785 = vunpack.c.h.b16 %v603
        %v786 = vunpack.c.l.b16 %v604
        %v787 = vunpack.c.h.b16 %v604
        %v788 = vunpack.c.l.b16 %v605
        %v789 = vunpack.c.h.b16 %v605
        %v790 = vunpack.c.l.b16 %v606
        %v791 = vunpack.c.h.b16 %v606
        %v792 = vunpack.c.l.b16 %v607
        %v793 = vunpack.c.h.b16 %v607
        %v794 = vunpack.c.l.b16 %v608
        %v795 = vunpack.c.h.b16 %v608
        %v796 = vunpack.c.l.b16 %v609
        %v797 = vunpack.c.h.b16 %v609
        %v798 = vunpack.c.l.b16 %v610
        %v799 = vunpack.c.h.b16 %v610
        %v800 = vunpack.c.l.b16 %v611
        %v801 = vunpack.c.h.b16 %v611
        %v802 = vunpack.c.l.b16 %v612
        %v803 = vunpack.c.h.b16 %v612
        %v804 = vunpack.c.l.b16 %v613
        %v805 = vunpack.c.h.b16 %v613
        %v806 = vunpack.c.l.b16 %v614
        %v807 = vunpack.c.h.b16 %v614
        %v808 = vunpack.c.l.b16 %v615
        %v809 = vunpack.c.h.b16 %v615
        %v810 = vunpack.c.l.b16 %v616
        %v811 = vunpack.c.h.b16 %v616
        %v812 = vunpack.c.l.b16 %v617
        %v813 = vunpack.c.h.b16 %v617
        %v814 = vunpack.c.l.b16 %v618
        %v815 = vunpack.c.h.b16 %v618
        %v816 = vunpack.c.l.b16 %v619
        %v817 = vunpack.c.h.b16 %v619
        %v818 = vunpack.c.l.b16 %v620
        %v819 = vunpack.c.h.b16 %v620
        %v820 = vunpack.c.l.b16 %v621
        %v821 = vunpack.c.h.b16 %v621
        %v822 = vunpack.c.l.b16 %v622
        %v823 = vunpack.c.h.b16 %v622
        %v824 = vunpack.c.l.b16 %v623
        %v825 = vunpack.c.h.b16 %v623
        %v826 = vunpack.c.l.b16 %v624
        %v827 = vunpack.c.h.b16 %v624
        %v828 = vunpack.c.l.b16 %v625
        %v829 = vunpack.c.h.b16 %v625
        %v830 = vunpack.c.l.b16 %v626
        %v831 = vunpack.c.h.b16 %v626
        %v832 = vunpack.c.l.b16 %v627
        %v833 = vunpack.c.h.b16 %v627
        %v834 = vunpack.c.l.b16 %v628
        %v835 = vunpack.c.h.b16 %v628
        %v836 = vunpack.c.l.b16 %v629
        %v837 = vunpack.c.h.b16 %v629
        %v838 = vunpack.c.l.b16 %v630
        %v839 = vunpack.c.h.b16 %v630
        %v840 = vunpack.c.l.b16 %v631
        %v841 = vunpack.c.h.b16 %v631
        %v842 = vunpack.c.l.b16 %v632
        %v843 = vunpack.c.h.b16 %v632
        %v844 = vunpack.c.l.b16 %v633
        %v845 = vunpack.c.h.b16 %v633
        %v846 = vunpack.c.l.b16 %v634
        %v847 = vunpack.c.h.b16 %v634
        %v848 = vunpack.c.l.b16 %v635
        %v849 = vunpack.c.h.b16 %v635
        %v850 = vunpack.c.l.b16 %v636
        %v851 = vunpack.c.h.b16 %v636
        %v852 = vunpack.c.l.b16 %v637
        %v853 = vunpack.c.h.b16 %v637
        %v854 = vunpack.c.l.b16 %v638
        %v855 = vunpack.c.h.b16 %v638
        %v856 = vunpack.c.l.b16 %v639
        %v857 = vunpack.c.h.b16 %v639
        %v858 = vunpack.c.l.b16 %v640
        %v859 = vunpack.c.h.b16 %v640
        %v860 = vunpack.c.l.b16 %v641
        %v861 = vunpack.c.h.b16 %v641
        %v862 = vunpack.c.l.b16 %v642
        %v863 = vunpack.c.h.b16 %v642
        %v864 = vunpack.c.l.b16 %v643
        %v865 = vunpack.c.h.b16 %v643
        %v866 = vunpack.c.l.b16 %v644
        %v867 = vunpack.c.h.b16 %v644
        %v868 = vunpack.c.l.b16 %v645
        %v869 = vunpack.c.h.b16 %v645
        %v870 = vunpack.c.l.b16 %v646
        %v871 = vunpack.c.h.b16 %v646
        %v872 = vunpack.c.l.b16 %v647
        %v873 = vunpack.c.h.b16 %v647
        %v874 = vunpack.c.l.b16 %v648
        %v875 = vunpack.c.h.b16 %v648
        %v876 = vunpack.c.l.b16 %v649
        %v877 = vunpack.c.h.b16 %v649
        %v878 = vunpack.c.l.b16 %v650
        %v879 = vunpack.c.h.b16 %v650
        %v880 = vunpack.c.l.b16 %v651
        %v881 = vunpack.c.h.b16 %v651
        %v882 = vunpack.c.l.b16 %v652
        %v883 = vunpack.c.h.b16 %v652
        %v884 = vunpack.c.l.b16 %v653
        %v885 = vunpack.c.h.b16 %v653
        %v886 = vpack.c.b16 %v760, %v758
        %v887 = vpack.c.b16 %v761, %v759
        %v888 = vpack.c.b16 %v764, %v762
        %v889 = vpack.c.b16 %v765, %v763
        %v890 = vpack.c.b16 %v768, %v766
        %v891 = vpack.c.b16 %v769, %v767
        %v892 = vpack.c.b16 %v772, %v770
        %v893 = vpack.c.b16 %v773, %v771
        %v894 = vpack.c.b16 %v776, %v774
        %v895 = vpack.c.b16 %v777, %v775
        %v896 = vpack.c.b16 %v780, %v778
        %v897 = vpack.c.b16 %v781, %v779
        %v898 = vpack.c.b16 %v784, %v782
        %v899 = vpack.c.b16 %v785, %v783
        %v900 = vpack.c.b16 %v788, %v786
        %v901 = vpack.c.b16 %v789, %v787
        %v902 = vpack.c.b16 %v792, %v790
        %v903 = vpack.c.b16 %v793, %v791
        %v904 = vpack.c.b16 %v796, %v794
        %v905 = vpack.c.b16 %v797, %v795
        %v906 = vpack.c.b16 %v800, %v798
        %v907 = vpack.c.b16 %v801, %v799
        %v908 = vpack.c.b16 %v804, %v802
        %v909 = vpack.c.b16 %v805, %v803
        %v910 = vpack.c.b16 %v808, %v806
        %v911 = vpack.c.b16 %v809, %v807
        %v912 = vpack.c.b16 %v812, %v810
        %v913 = vpack.c.b16 %v813, %v811
        %v914 = vpack.c.b16 %v816, %v814
        %v915 = vpack.c.b16 %v817, %v815
        %v916 = vpack.c.b16 %v820, %v818
        %v917 = vpack.c.b16 %v821, %v819
        %v918 = vpack.c.b16 %v824, %v822
        %v919 = vpack.c.b16 %v825, %v823
        %v920 = vpack.c.b16 %v828, %v826
        %v921 = vpack.c.b16 %v829, %v827
        %v922 = vpack.c.b16 %v832, %v830
        %v923 = vpack.c.b16 %v833, %v831
        %v924 = vpack.c.b16 %v836, %v834
        %v925 = vpack.c.b16 %v837, %v835
        %v926 = vpack.c.b16 %v840, %v838
        %v927 = vpack.c.b16 %v841, %v839
        %v928 = vpack.c.b16 %v844, %v842
        %v929 = vpack.c.b16 %v845, %v843
        %v930 = vpack.c.b16 %v848, %v846
        %v931 = vpack.c.b16 %v849, %v847
        %v932 = vpack.c.b16 %v852, %v850
        %v933 = vpack.c.b16 %v853, %v851
        %v934 = vpack.c.b16 %v856, %v854
        %v935 = vpack.c.b16 %v857, %v855
        %v936 = vpack.c.b16 %v860, %v858
        %v937 = vpack.c.b16 %v861, %v859
        %v938 = vpack.c.b16 %v864, %v862
        %v939 = vpack.c.b16 %v865, %v863
        %v940 = vpack.c.b16 %v868, %v866
        %v941 = vpack.c.b16 %v869, %v867
        %v942 = vpack.c.b16 %v872, %v870
        %v943 = vpack.c.b16 %v873, %v871
        %v944 = vpack.c.b16 %v876, %v874
        %v945 = vpack.c.b16 %v877, %v875
        %v946 = vpack.c.b16 %v880, %v878
        %v947 = vpack.c.b16 %v881, %v879
        %v948 = vpack.c.b16 %v884, %v882
        %v949 = vpack.c.b16 %v885, %v883
        %1014 = vmatprep.subr.bf16.mxu0 %v887
        %1015 = vmatpush1.bf16.msra.mxu0 %v886
        %1016 = vmatprep.subr.bf16.mxu0 %v889
        %1017 = vmatpush1.bf16.msra.mxu0 %v888
        %1018 = vmatprep.subr.bf16.mxu0 %v891
        %1019 = vmatpush1.bf16.msra.mxu0 %v890
        %1020 = vmatprep.subr.bf16.mxu0 %v893
        %1021 = vmatpush1.bf16.msra.mxu0 %v892
        %1022 = vmatprep.subr.bf16.mxu0 %v895
        %1023 = vmatpush1.bf16.msra.mxu0 %v894
        %1024 = vmatprep.subr.bf16.mxu0 %v897
        %1025 = vmatpush1.bf16.msra.mxu0 %v896
        %1026 = vmatprep.subr.bf16.mxu0 %v899
        %1027 = vmatpush1.bf16.msra.mxu0 %v898
        %1028 = vmatprep.subr.bf16.mxu0 %v901
        %1029 = vmatpush1.bf16.msra.mxu0 %v900
        %1030 = vmatprep.subr.bf16.mxu0 %v903
        %1031 = vmatpush1.bf16.msra.mxu0 %v902
        %1032 = vmatprep.subr.bf16.mxu0 %v905
        %1033 = vmatpush1.bf16.msra.mxu0 %v904
        %1034 = vmatprep.subr.bf16.mxu0 %v907
        %1035 = vmatpush1.bf16.msra.mxu0 %v906
        %1036 = vmatprep.subr.bf16.mxu0 %v909
        %1037 = vmatpush1.bf16.msra.mxu0 %v908
        %1038 = vmatprep.subr.bf16.mxu0 %v911
        %1039 = vmatpush1.bf16.msra.mxu0 %v910
        %1040 = vmatprep.subr.bf16.mxu0 %v913
        %1041 = vmatpush1.bf16.msra.mxu0 %v912
        %1042 = vmatprep.subr.bf16.mxu0 %v915
        %1043 = vmatpush1.bf16.msra.mxu0 %v914
        %1044 = vmatprep.subr.bf16.mxu0 %v917
        %1045 = vmatpush1.bf16.msra.mxu0 %v916
        %1046 = vmatprep.mubr.bf16.mxu0 %v679
        %1047 = vmatmul.mubr.bf16.gmra.mrb[0].mxu0 %v678
        %v1048 = vpop.f32.mrb[0].mxu0
        %v1049 = vadd.f32 0.0, %v1048
        %v1050 = vpop.f32.mrb[0].mxu0
        %v1051 = vadd.f32 0.0, %v1050
        %v1052 = vpop.f32.mrb[0].mxu0
        %v1053 = vadd.f32 0.0, %v1052
        %v1054 = vpop.f32.mrb[0].mxu0
        %v1055 = vadd.f32 0.0, %v1054
        %1056 = vmatprep.mubr.bf16.mxu0 %v683
        %1057 = vmatmul.mubr.bf16.gmra.mrb[0].mxu0 %v682
        %v1058 = vpop.f32.mrb[0].mxu0
        %v1059 = vadd.f32 0.0, %v1058
        %v1060 = vpop.f32.mrb[0].mxu0
        %v1061 = vadd.f32 0.0, %v1060
        %v1062 = vpop.f32.mrb[0].mxu0
        %v1063 = vadd.f32 0.0, %v1062
        %v1064 = vpop.f32.mrb[0].mxu0
        %v1065 = vadd.f32 0.0, %v1064
        %1066 = vdwg.mxu0
        %1067 = vmatprep.subr.bf16.mxu0 %v919
        %1068 = vmatpush1.bf16.msra.mxu0 %v918
        %1069 = vmatprep.subr.bf16.mxu0 %v921
        %1070 = vmatpush1.bf16.msra.mxu0 %v920
        %1071 = vmatprep.subr.bf16.mxu0 %v923
        %1072 = vmatpush1.bf16.msra.mxu0 %v922
        %1073 = vmatprep.subr.bf16.mxu0 %v925
        %1074 = vmatpush1.bf16.msra.mxu0 %v924
        %1075 = vmatprep.subr.bf16.mxu0 %v927
        %1076 = vmatpush1.bf16.msra.mxu0 %v926
        %1077 = vmatprep.subr.bf16.mxu0 %v929
        %1078 = vmatpush1.bf16.msra.mxu0 %v928
        %1079 = vmatprep.subr.bf16.mxu0 %v931
        %1080 = vmatpush1.bf16.msra.mxu0 %v930
        %1081 = vmatprep.subr.bf16.mxu0 %v933
        %1082 = vmatpush1.bf16.msra.mxu0 %v932
        %1083 = vmatprep.subr.bf16.mxu0 %v935
        %1084 = vmatpush1.bf16.msra.mxu0 %v934
        %1085 = vmatprep.subr.bf16.mxu0 %v937
        %1086 = vmatpush1.bf16.msra.mxu0 %v936
        %1087 = vmatprep.subr.bf16.mxu0 %v939
        %1088 = vmatpush1.bf16.msra.mxu0 %v938
        %1089 = vmatprep.subr.bf16.mxu0 %v941
        %1090 = vmatpush1.bf16.msra.mxu0 %v940
        %1091 = vmatprep.subr.bf16.mxu0 %v943
        %1092 = vmatpush1.bf16.msra.mxu0 %v942
        %1093 = vmatprep.subr.bf16.mxu0 %v945
        %1094 = vmatpush1.bf16.msra.mxu0 %v944
        %1095 = vmatprep.subr.bf16.mxu0 %v947
        %1096 = vmatpush1.bf16.msra.mxu0 %v946
        %1097 = vmatprep.subr.bf16.mxu0 %v949
        %1098 = vmatpush1.bf16.msra.mxu0 %v948
        %1099 = vmatprep.mubr.bf16.mxu0 %v681
        %1100 = vmatmul.mubr.bf16.gmra.mrb[0].mxu0 %v680
        %v1101 = vpop.f32.mrb[0].mxu0
        %v1102 = vadd.f32 %v1049, %v1101
        %v1103 = vpop.f32.mrb[0].mxu0
        %v1104 = vadd.f32 %v1051, %v1103
        %v1105 = vpop.f32.mrb[0].mxu0
        %v1106 = vadd.f32 %v1053, %v1105
        %v1107 = vpop.f32.mrb[0].mxu0
        %v1108 = vadd.f32 %v1055, %v1107
        %1109 = vmatprep.mubr.bf16.mxu0 %v685
        %1110 = vmatmul.mubr.bf16.gmra.mrb[0].mxu0 %v684
        %v1111 = vpop.f32.mrb[0].mxu0
        %v1112 = vadd.f32 %v1059, %v1111
        %v1113 = vpop.f32.mrb[0].mxu0
        %v1114 = vadd.f32 %v1061, %v1113
        %v1115 = vpop.f32.mrb[0].mxu0
        %v1116 = vadd.f32 %v1063, %v1115
        %v1117 = vpop.f32.mrb[0].mxu0
        %v1118 = vadd.f32 %v1065, %v1117
        %1119 = vdwg.mxu0
        %v1120 = vadd.f32 %v574, %v1102
        %v1121 = vadd.f32 %v575, %v1104
        %v1122 = vadd.f32 %v576, %v1106
        %v1123 = vadd.f32 %v577, %v1108
        %v1124 = vadd.f32 %v578, %v1112
        %v1125 = vadd.f32 %v579, %v1114
        %v1126 = vadd.f32 %v580, %v1116
        %v1127 = vadd.f32 %v581, %v1118
        %1128 = vst [vmem:[#allocation2] sm:$0xff] %v1120
        %1129 = vst [vmem:[#allocation2 + $0x8] sm:$0xff] %v1121
        %1130 = vst [vmem:[#allocation2 + $0x10] sm:$0xff] %v1122
        %1131 = vst [vmem:[#allocation2 + $0x18] sm:$0xff] %v1123
        %1132 = vst [vmem:[#allocation2 + $0x20] sm:$0xff] %v1124
        %1133 = vst [vmem:[#allocation2 + $0x28] sm:$0xff] %v1125
        %1134 = vst [vmem:[#allocation2 + $0x30] sm:$0xff] %v1126
        %1135 = vst [vmem:[#allocation2 + $0x38] sm:$0xff] %v1127
        %p1136 = scmp.eq.s32.totalorder %s21, 1
        // Predicated region
        $region98: #{generator_forward.41} parent=84 // pred_check
          %p1137 = pneg %p1136
        $region99: #{generator_forward.41} parent=84 // pred_check_branch
          %1139 = sbr.rel (%p1137) target = $region101
        $region100: #{generator_forward.41} parent=84 // pred_region
          %v1140 = vld [vmem:[#allocation2] sm:$0xff]
          %v1141 = vld [vmem:[#allocation2 + $0x8] sm:$0xff]
          %v1142 = vld [vmem:[#allocation2 + $0x10] sm:$0xff]
          %v1143 = vld [vmem:[#allocation2 + $0x18] sm:$0xff]
          %v1144 = vld [vmem:[#allocation2 + $0x20] sm:$0xff]
          %v1145 = vld [vmem:[#allocation2 + $0x28] sm:$0xff]
          %v1146 = vld [vmem:[#allocation2 + $0x30] sm:$0xff]
          %v1147 = vld [vmem:[#allocation2 + $0x38] sm:$0xff]
          %v1148 = vld [vmem:[%s558] sm:$0x3]
          %v1150 = vlaneseq
          %v1151 = vshrl.u32 %v1150, 7
          %v1152 = vsub.s32 0, %v1151
          %v1153 = vrot.slane %v1148, %v1152
          %v1154 = vlaneseq
          %v1155 = vshrl.u32 %v1154, 7
          %v1156 = vsub.s32 1, %v1155
          %v1157 = vrot.slane %v1148, %v1156
          %v1160 = vadd.f32 %v1140, %v1153
          %v1161 = vadd.f32 %v1141, %v1157
          %v1162 = vadd.f32 %v1142, %v1153
          %v1163 = vadd.f32 %v1143, %v1157
          %v1164 = vadd.f32 %v1144, %v1153
          %v1165 = vadd.f32 %v1145, %v1157
          %v1166 = vadd.f32 %v1146, %v1153
          %v1167 = vadd.f32 %v1147, %v1157
          %1168 = vst [vmem:[%s550] sm:$0xff] %v1160
          %1169 = vst [vmem:[%s550 + $0x8] sm:$0xff] %v1161
          %1170 = vst [vmem:[%s550 + $0x10] sm:$0xff] %v1162
          %1171 = vst [vmem:[%s550 + $0x18] sm:$0xff] %v1163
          %1172 = vst [vmem:[%s550 + $0x20] sm:$0xff] %v1164
          %1173 = vst [vmem:[%s550 + $0x28] sm:$0xff] %v1165
          %1174 = vst [vmem:[%s550 + $0x30] sm:$0xff] %v1166
          %1175 = vst [vmem:[%s550 + $0x38] sm:$0xff] %v1167
        $region101: #{generator_forward.41} parent=84 // pred_fallthru
          _
        %s1176 = sand.u32 %s125, 1
        %s1177 = sand.u32 %s125, 1
        %s1178 = smul.addr %s1177, 64
        %s1179 = scalar_lea.vmem [#allocation5], %s1178
        // Predicated region
        $region102: #{generator_forward.41} parent=84 // pred_check
          %p1180 = pneg %p135
        $region103: #{generator_forward.41} parent=84 // pred_check_branch
          %1182 = sbr.rel (%p1180) target = $region105
        $region104: #{generator_forward.41} parent=84 // pred_region
          %s1183 = smul.u32 4, %s19
          %s1184 = smul.u32 2, %s20
          %s1185 = smul.addr %s1183, 4
          %s1186 = sadd.s32 %s1184, %s1185
          %s1187 = smul.addr %s1186, 8
          %s1188 = scalar_lea.vmem %s3, %s1187
          // Predicated region
          $region106: #{generator_forward.41} parent=104 // pred_check
            _
          $region107: #{generator_forward.41} parent=104 // pred_check_branch
            %1190 = sbr.rel (0) target = $region109
          $region108: #{generator_forward.41} parent=104 // pred_region
            // Predicated region
            $region110: #{generator_forward.41} parent=108 // pred_check
              _
            $region111: #{generator_forward.41} parent=108 // pred_check_branch
              %1192 = sbr.rel (0) target = $region113
            $region112: #{generator_forward.41} parent=108 // pred_region
              loop: start=0, step=1, limit=1
              $region114: #{generator_forward.41} parent=112 // loop_pre_header
                _
              $region115: #{generator_forward.41} parent=112 // loop_header
                %s1194 = sphi 0, %s1198
                %p1195 = scmp.ge.s32.totalorder %s1194, 1
                %s1199 = sphi %s1179, %s1179
                %s1200 = sphi %s1188, %s1188
              $region116: #{generator_forward.41} parent=112 // loop_header_branch
                %1197 = sbr.rel (%p1195) target = $region120
              $region117: #{generator_forward.41} parent=112 // loop_body
                %v1201 = vld [vmem:[%s1199] sm:$0xff]
                %1202 = vst [vmem:[%s1200] sm:$0xff] %v1201
                %v1203 = vld [vmem:[%s1199 + $0x8] sm:$0xff]
                %1204 = vst [vmem:[%s1200 + $0x8] sm:$0xff] %v1203
                %v1205 = vld [vmem:[%s1199 + $0x10] sm:$0xff]
                %1206 = vst [vmem:[%s1200 + $0x20] sm:$0xff] %v1205
                %v1207 = vld [vmem:[%s1199 + $0x18] sm:$0xff]
                %1208 = vst [vmem:[%s1200 + $0x28] sm:$0xff] %v1207
                %v1209 = vld [vmem:[%s1199 + $0x20] sm:$0xff]
                %1210 = vst [vmem:[%s1200 + $0x40] sm:$0xff] %v1209
                %v1211 = vld [vmem:[%s1199 + $0x28] sm:$0xff]
                %1212 = vst [vmem:[%s1200 + $0x48] sm:$0xff] %v1211
                %v1213 = vld [vmem:[%s1199 + $0x30] sm:$0xff]
                %1214 = vst [vmem:[%s1200 + $0x60] sm:$0xff] %v1213
                %v1215 = vld [vmem:[%s1199 + $0x38] sm:$0xff]
                %1216 = vst [vmem:[%s1200 + $0x68] sm:$0xff] %v1215
              $region118: #{generator_forward.41} parent=112 // loop_footer
                %s1198 = sadd.s32 1, %s1194
              $region119: #{generator_forward.41} parent=112 // loop_footer_branch
                %1193 = sbr.rel target = $region115
              $region120: #{generator_forward.41} parent=112 // loop_exit
                _
            $region113: #{generator_forward.41} parent=108 // pred_fallthru
              _
            // Predicated region
            $region121: #{generator_forward.41} parent=108 // pred_check
              _
            $region122: #{generator_forward.41} parent=108 // pred_check_branch
              %1218 = sbr.rel target = $region124
            $region123: #{generator_forward.41} parent=108 // pred_region
              _
            $region124: #{generator_forward.41} parent=108 // pred_fallthru
              _
          $region109: #{generator_forward.41} parent=104 // pred_fallthru
            _
          %1219 = vnop
        $region105: #{generator_forward.41} parent=84 // pred_fallthru
          _
      $region85: #{generator_forward.41} parent=5 // pred_fallthru
        _
      %p1220 = scmp.le.s32.totalorder 2, %s9
      // Predicated region
      $region125: #{generator_forward.41} parent=5 // pred_check
        %p1221 = pneg %p1220
      $region126: #{generator_forward.41} parent=5 // pred_check_branch
        %1223 = sbr.rel (%p1221) target = $region128
      $region127: #{generator_forward.41} parent=5 // pred_region
        %s1224 = ssub.s32 %s9, 2
        // Predicated region
        $region129: #{generator_forward.41} parent=127 // pred_check
          %p1225 = pneg %p141
        $region130: #{generator_forward.41} parent=127 // pred_check_branch
          %1227 = sbr.rel (%p1225) target = $region132
        $region131: #{generator_forward.41} parent=127 // pred_region
          %s1228 = sand.u32 %s126, 1
          %s1229 = sand.u32 %s126, 1
          %s1230 = smul.addr %s1229, 64
          %s1231 = scalar_lea.vmem [#allocation5], %s1230
        $region132: #{generator_forward.41} parent=127 // pred_fallthru
          _
      $region128: #{generator_forward.41} parent=5 // pred_fallthru
        _
    $region6: #{generator_forward.41} parent=1 // loop_footer
      %s13 = sadd.s32 1, %s9
    $region7: #{generator_forward.41} parent=1 // loop_footer_branch
      %8 = sbr.rel target = $region3
    $region8: #{generator_forward.41} parent=1 // loop_exit
      _

// kernel: generator_forward.43
$region0: #{generator_forward.43}
  #allocation0 [shape = 'u32[]', space=smem, size = 0x4, offset = 0x4, fixed_abs, tag = 'smem constant byte address 0x4 - core index']
  #allocation1 [shape = 'u32[144,128]{1,0:T(1,128)}', space=vmem, size = 0x12000, scoped, tag = 'internal scratch']
  #allocation2 [shape = 'f32[128,256]{1,0:T(8,128)}', space=vmem, size = 0x20000, scoped, tag = 'scratch operand']
  %s0 = inlined_call_operand.vmem [shape: bf16[128,512], index: 0, kind: input, shape index: {}]
  %s1 = inlined_call_operand.vmem [shape: bf16[512,256], index: 1, kind: input, shape index: {}]
  %s2 = inlined_call_operand.vmem [shape: f32[1,256], index: 2, kind: input, shape index: {}]
  %s3 = inlined_call_operand.vmem [shape: f32[128,256], index: 3, kind: output, shape index: {}]
  %s4 = sld [smem:[#allocation0]]
  $region30: #{generator_forward.43} parent=0
    _
  %s6 = ssub.s32 1, %s4
  %s7 = scalar_select 0, %s6, %s4
  // Predicated region
  $region2: #{generator_forward.43} parent=0 // pred_check
    _
  $region3: #{generator_forward.43} parent=0 // pred_check_branch
    %9 = sbr.rel (0) target = $region5
  $region4: #{generator_forward.43} parent=0 // pred_region
    _
  $region5: #{generator_forward.43} parent=0 // pred_fallthru
    _
  // Predicated region
  $region6: #{generator_forward.43} parent=0 // pred_check
    _
  $region7: #{generator_forward.43} parent=0 // pred_check_branch
    %11 = sbr.rel (0) target = $region9
  $region8: #{generator_forward.43} parent=0 // pred_region
    _
  $region9: #{generator_forward.43} parent=0 // pred_fallthru
    _
  // Predicated region
  $region10: #{generator_forward.43} parent=0 // pred_check
    _
  $region11: #{generator_forward.43} parent=0 // pred_check_branch
    %13 = sbr.rel (0) target = $region13
  $region12: #{generator_forward.43} parent=0 // pred_region
    _
  $region13: #{generator_forward.43} parent=0 // pred_fallthru
    _
  %p14 = scmp.eq.s32.totalorder 0, 0
  // Predicated region
  $region14: #{generator_forward.43} parent=0 // pred_check
    %p15 = pneg %p14
  $region15: #{generator_forward.43} parent=0 // pred_check_branch
    %17 = sbr.rel (%p15) target = $region17
  $region16: #{generator_forward.43} parent=0 // pred_region
    %18 = vst [vmem:[#allocation2] sm:$0xff] 0.0
    %19 = vst [vmem:[#allocation2 + $0x8] sm:$0xff] 0.0
    %20 = vst [vmem:[#allocation2 + $0x10] sm:$0xff] 0.0
    %21 = vst [vmem:[#allocation2 + $0x18] sm:$0xff] 0.0
    %22 = vst [vmem:[#allocation2 + $0x20] sm:$0xff] 0.0
    %23 = vst [vmem:[#allocation2 + $0x28] sm:$0xff] 0.0
    %24 = vst [vmem:[#allocation2 + $0x30] sm:$0xff] 0.0
    %25 = vst [vmem:[#allocation2 + $0x38] sm:$0xff] 0.0
    %26 = vst [vmem:[#allocation2 + $0x40] sm:$0xff] 0.0
    %27 = vst [vmem:[#allocation2 + $0x48] sm:$0xff] 0.0
    %28 = vst [vmem:[#allocation2 + $0x50] sm:$0xff] 0.0
    %29 = vst [vmem:[#allocation2 + $0x58] sm:$0xff] 0.0
    %30 = vst [vmem:[#allocation2 + $0x60] sm:$0xff] 0.0
    %31 = vst [vmem:[#allocation2 + $0x68] sm:$0xff] 0.0
    %32 = vst [vmem:[#allocation2 + $0x70] sm:$0xff] 0.0
    %33 = vst [vmem:[#allocation2 + $0x78] sm:$0xff] 0.0
    %34 = vst [vmem:[#allocation2 + $0x80] sm:$0xff] 0.0
    %35 = vst [vmem:[#allocation2 + $0x88] sm:$0xff] 0.0
    %36 = vst [vmem:[#allocation2 + $0x90] sm:$0xff] 0.0
    %37 = vst [vmem:[#allocation2 + $0x98] sm:$0xff] 0.0
    %38 = vst [vmem:[#allocation2 + $0xa0] sm:$0xff] 0.0
    %39 = vst [vmem:[#allocation2 + $0xa8] sm:$0xff] 0.0
    %40 = vst [vmem:[#allocation2 + $0xb0] sm:$0xff] 0.0
    %41 = vst [vmem:[#allocation2 + $0xb8] sm:$0xff] 0.0
    %42 = vst [vmem:[#allocation2 + $0xc0] sm:$0xff] 0.0
    %43 = vst [vmem:[#allocation2 + $0xc8] sm:$0xff] 0.0
    %44 = vst [vmem:[#allocation2 + $0xd0] sm:$0xff] 0.0
    %45 = vst [vmem:[#allocation2 + $0xd8] sm:$0xff] 0.0
    %46 = vst [vmem:[#allocation2 + $0xe0] sm:$0xff] 0.0
    %47 = vst [vmem:[#allocation2 + $0xe8] sm:$0xff] 0.0
    %48 = vst [vmem:[#allocation2 + $0xf0] sm:$0xff] 0.0
    %49 = vst [vmem:[#allocation2 + $0xf8] sm:$0xff] 0.0
  $region17: #{generator_forward.43} parent=0 // pred_fallthru
    _
  %v50 = vld [vmem:[#allocation2] sm:$0xff]
  %v51 = vld [vmem:[#allocation2 + $0x8] sm:$0xff]
  %v52 = vld [vmem:[#allocation2 + $0x10] sm:$0xff]
  %v53 = vld [vmem:[#allocation2 + $0x18] sm:$0xff]
  %v54 = vld [vmem:[#allocation2 + $0x20] sm:$0xff]
  %v55 = vld [vmem:[#allocation2 + $0x28] sm:$0xff]
  %v56 = vld [vmem:[#allocation2 + $0x30] sm:$0xff]
  %v57 = vld [vmem:[#allocation2 + $0x38] sm:$0xff]
  %v58 = vld [vmem:[#allocation2 + $0x40] sm:$0xff]
  %v59 = vld [vmem:[#allocation2 + $0x48] sm:$0xff]
  %v60 = vld [vmem:[#allocation2 + $0x50] sm:$0xff]
  %v61 = vld [vmem:[#allocation2 + $0x58] sm:$0xff]
  %v62 = vld [vmem:[#allocation2 + $0x60] sm:$0xff]
  %v63 = vld [vmem:[#allocation2 + $0x68] sm:$0xff]
  %v64 = vld [vmem:[#allocation2 + $0x70] sm:$0xff]
  %v65 = vld [vmem:[#allocation2 + $0x78] sm:$0xff]
  %v66 = vld [vmem:[#allocation2 + $0x80] sm:$0xff]
  %v67 = vld [vmem:[#allocation2 + $0x88] sm:$0xff]
  %v68 = vld [vmem:[#allocation2 + $0x90] sm:$0xff]
  %v69 = vld [vmem:[#allocation2 + $0x98] sm:$0xff]
  %v70 = vld [vmem:[#allocation2 + $0xa0] sm:$0xff]
  %v71 = vld [vmem:[#allocation2 + $0xa8] sm:$0xff]
  %v72 = vld [vmem:[#allocation2 + $0xb0] sm:$0xff]
  %v73 = vld [vmem:[#allocation2 + $0xb8] sm:$0xff]
  %v74 = vld [vmem:[#allocation2 + $0xc0] sm:$0xff]
  %v75 = vld [vmem:[#allocation2 + $0xc8] sm:$0xff]
  %v76 = vld [vmem:[#allocation2 + $0xd0] sm:$0xff]
  %v77 = vld [vmem:[#allocation2 + $0xd8] sm:$0xff]
  %v78 = vld [vmem:[#allocation2 + $0xe0] sm:$0xff]
  %v79 = vld [vmem:[#allocation2 + $0xe8] sm:$0xff]
  %v80 = vld [vmem:[#allocation2 + $0xf0] sm:$0xff]
  %v81 = vld [vmem:[#allocation2 + $0xf8] sm:$0xff]
  %v82 = vld [vmem:[%s0] sm:$0xff]
  %v83 = vld [vmem:[%s0 + $0x8] sm:$0xff]
  %v84 = vld [vmem:[%s0 + $0x10] sm:$0xff]
  %v85 = vld [vmem:[%s0 + $0x18] sm:$0xff]
  %v86 = vld [vmem:[%s0 + $0x20] sm:$0xff]
  %v87 = vld [vmem:[%s0 + $0x28] sm:$0xff]
  %v88 = vld [vmem:[%s0 + $0x30] sm:$0xff]
  %v89 = vld [vmem:[%s0 + $0x38] sm:$0xff]
  %v90 = vld [vmem:[%s0 + $0x40] sm:$0xff]
  %v91 = vld [vmem:[%s0 + $0x48] sm:$0xff]
  %v92 = vld [vmem:[%s0 + $0x50] sm:$0xff]
  %v93 = vld [vmem:[%s0 + $0x58] sm:$0xff]
  %v94 = vld [vmem:[%s0 + $0x60] sm:$0xff]
  %v95 = vld [vmem:[%s0 + $0x68] sm:$0xff]
  %v96 = vld [vmem:[%s0 + $0x70] sm:$0xff]
  %v97 = vld [vmem:[%s0 + $0x78] sm:$0xff]
  %v98 = vld [vmem:[%s0 + $0x80] sm:$0xff]
  %v99 = vld [vmem:[%s0 + $0x88] sm:$0xff]
  %v100 = vld [vmem:[%s0 + $0x90] sm:$0xff]
  %v101 = vld [vmem:[%s0 + $0x98] sm:$0xff]
  %v102 = vld [vmem:[%s0 + $0xa0] sm:$0xff]
  %v103 = vld [vmem:[%s0 + $0xa8] sm:$0xff]
  %v104 = vld [vmem:[%s0 + $0xb0] sm:$0xff]
  %v105 = vld [vmem:[%s0 + $0xb8] sm:$0xff]
  %v106 = vld [vmem:[%s0 + $0xc0] sm:$0xff]
  %v107 = vld [vmem:[%s0 + $0xc8] sm:$0xff]
  %v108 = vld [vmem:[%s0 + $0xd0] sm:$0xff]
  %v109 = vld [vmem:[%s0 + $0xd8] sm:$0xff]
  %v110 = vld [vmem:[%s0 + $0xe0] sm:$0xff]
  %v111 = vld [vmem:[%s0 + $0xe8] sm:$0xff]
  %v112 = vld [vmem:[%s0 + $0xf0] sm:$0xff]
  %v113 = vld [vmem:[%s0 + $0xf8] sm:$0xff]
  %v114 = vld [vmem:[%s1] sm:$0xff]
  %v115 = vld [vmem:[%s1 + $0x8] sm:$0xff]
  %v116 = vld [vmem:[%s1 + $0x10] sm:$0xff]
  %v117 = vld [vmem:[%s1 + $0x18] sm:$0xff]
  %v118 = vld [vmem:[%s1 + $0x20] sm:$0xff]
  %v119 = vld [vmem:[%s1 + $0x28] sm:$0xff]
  %v120 = vld [vmem:[%s1 + $0x30] sm:$0xff]
  %v121 = vld [vmem:[%s1 + $0x38] sm:$0xff]
  %v122 = vld [vmem:[%s1 + $0x40] sm:$0xff]
  %v123 = vld [vmem:[%s1 + $0x48] sm:$0xff]
  %v124 = vld [vmem:[%s1 + $0x50] sm:$0xff]
  %v125 = vld [vmem:[%s1 + $0x58] sm:$0xff]
  %v126 = vld [vmem:[%s1 + $0x60] sm:$0xff]
  %v127 = vld [vmem:[%s1 + $0x68] sm:$0xff]
  %v128 = vld [vmem:[%s1 + $0x70] sm:$0xff]
  %v129 = vld [vmem:[%s1 + $0x78] sm:$0xff]
  %v130 = vld [vmem:[%s1 + $0x80] sm:$0xff]
  %v131 = vld [vmem:[%s1 + $0x88] sm:$0xff]
  %v132 = vld [vmem:[%s1 + $0x90] sm:$0xff]
  %v133 = vld [vmem:[%s1 + $0x98] sm:$0xff]
  %v134 = vld [vmem:[%s1 + $0xa0] sm:$0xff]
  %v135 = vld [vmem:[%s1 + $0xa8] sm:$0xff]
  %v136 = vld [vmem:[%s1 + $0xb0] sm:$0xff]
  %v137 = vld [vmem:[%s1 + $0xb8] sm:$0xff]
  %v138 = vld [vmem:[%s1 + $0xc0] sm:$0xff]
  %v139 = vld [vmem:[%s1 + $0xc8] sm:$0xff]
  %v140 = vld [vmem:[%s1 + $0xd0] sm:$0xff]
  %v141 = vld [vmem:[%s1 + $0xd8] sm:$0xff]
  %v142 = vld [vmem:[%s1 + $0xe0] sm:$0xff]
  %v143 = vld [vmem:[%s1 + $0xe8] sm:$0xff]
  %v144 = vld [vmem:[%s1 + $0xf0] sm:$0xff]
  %v145 = vld [vmem:[%s1 + $0xf8] sm:$0xff]
  %v146 = vld [vmem:[%s1 + $0x100] sm:$0xff]
  %v147 = vld [vmem:[%s1 + $0x108] sm:$0xff]
  %v148 = vld [vmem:[%s1 + $0x110] sm:$0xff]
  %v149 = vld [vmem:[%s1 + $0x118] sm:$0xff]
  %v150 = vld [vmem:[%s1 + $0x120] sm:$0xff]
  %v151 = vld [vmem:[%s1 + $0x128] sm:$0xff]
  %v152 = vld [vmem:[%s1 + $0x130] sm:$0xff]
  %v153 = vld [vmem:[%s1 + $0x138] sm:$0xff]
  %v154 = vld [vmem:[%s1 + $0x140] sm:$0xff]
  %v155 = vld [vmem:[%s1 + $0x148] sm:$0xff]
  %v156 = vld [vmem:[%s1 + $0x150] sm:$0xff]
  %v157 = vld [vmem:[%s1 + $0x158] sm:$0xff]
  %v158 = vld [vmem:[%s1 + $0x160] sm:$0xff]
  %v159 = vld [vmem:[%s1 + $0x168] sm:$0xff]
  %v160 = vld [vmem:[%s1 + $0x170] sm:$0xff]
  %v161 = vld [vmem:[%s1 + $0x178] sm:$0xff]
  %v162 = vld [vmem:[%s1 + $0x180] sm:$0xff]
  %v163 = vld [vmem:[%s1 + $0x188] sm:$0xff]
  %v164 = vld [vmem:[%s1 + $0x190] sm:$0xff]
  %v165 = vld [vmem:[%s1 + $0x198] sm:$0xff]
  %v166 = vld [vmem:[%s1 + $0x1a0] sm:$0xff]
  %v167 = vld [vmem:[%s1 + $0x1a8] sm:$0xff]
  %v168 = vld [vmem:[%s1 + $0x1b0] sm:$0xff]
  %v169 = vld [vmem:[%s1 + $0x1b8] sm:$0xff]
  %v170 = vld [vmem:[%s1 + $0x1c0] sm:$0xff]
  %v171 = vld [vmem:[%s1 + $0x1c8] sm:$0xff]
  %v172 = vld [vmem:[%s1 + $0x1d0] sm:$0xff]
  %v173 = vld [vmem:[%s1 + $0x1d8] sm:$0xff]
  %v174 = vld [vmem:[%s1 + $0x1e0] sm:$0xff]
  %v175 = vld [vmem:[%s1 + $0x1e8] sm:$0xff]
  %v176 = vld [vmem:[%s1 + $0x1f0] sm:$0xff]
  %v177 = vld [vmem:[%s1 + $0x1f8] sm:$0xff]
  %v210 = vunpack.c.l.b16 %v82
  %v211 = vunpack.c.h.b16 %v82
  %v212 = vunpack.c.l.b16 %v83
  %v213 = vunpack.c.h.b16 %v83
  %v214 = vunpack.c.l.b16 %v84
  %v215 = vunpack.c.h.b16 %v84
  %v216 = vunpack.c.l.b16 %v85
  %v217 = vunpack.c.h.b16 %v85
  %v218 = vunpack.c.l.b16 %v86
  %v219 = vunpack.c.h.b16 %v86
  %v220 = vunpack.c.l.b16 %v87
  %v221 = vunpack.c.h.b16 %v87
  %v222 = vunpack.c.l.b16 %v88
  %v223 = vunpack.c.h.b16 %v88
  %v224 = vunpack.c.l.b16 %v89
  %v225 = vunpack.c.h.b16 %v89
  %v226 = vunpack.c.l.b16 %v90
  %v227 = vunpack.c.h.b16 %v90
  %v228 = vunpack.c.l.b16 %v91
  %v229 = vunpack.c.h.b16 %v91
  %v230 = vunpack.c.l.b16 %v92
  %v231 = vunpack.c.h.b16 %v92
  %v232 = vunpack.c.l.b16 %v93
  %v233 = vunpack.c.h.b16 %v93
  %v234 = vunpack.c.l.b16 %v94
  %v235 = vunpack.c.h.b16 %v94
  %v236 = vunpack.c.l.b16 %v95
  %v237 = vunpack.c.h.b16 %v95
  %v238 = vunpack.c.l.b16 %v96
  %v239 = vunpack.c.h.b16 %v96
  %v240 = vunpack.c.l.b16 %v97
  %v241 = vunpack.c.h.b16 %v97
  %v242 = vunpack.c.l.b16 %v98
  %v243 = vunpack.c.h.b16 %v98
  %v244 = vunpack.c.l.b16 %v99
  %v245 = vunpack.c.h.b16 %v99
  %v246 = vunpack.c.l.b16 %v100
  %v247 = vunpack.c.h.b16 %v100
  %v248 = vunpack.c.l.b16 %v101
  %v249 = vunpack.c.h.b16 %v101
  %v250 = vunpack.c.l.b16 %v102
  %v251 = vunpack.c.h.b16 %v102
  %v252 = vunpack.c.l.b16 %v103
  %v253 = vunpack.c.h.b16 %v103
  %v254 = vunpack.c.l.b16 %v104
  %v255 = vunpack.c.h.b16 %v104
  %v256 = vunpack.c.l.b16 %v105
  %v257 = vunpack.c.h.b16 %v105
  %v258 = vunpack.c.l.b16 %v106
  %v259 = vunpack.c.h.b16 %v106
  %v260 = vunpack.c.l.b16 %v107
  %v261 = vunpack.c.h.b16 %v107
  %v262 = vunpack.c.l.b16 %v108
  %v263 = vunpack.c.h.b16 %v108
  %v264 = vunpack.c.l.b16 %v109
  %v265 = vunpack.c.h.b16 %v109
  %v266 = vunpack.c.l.b16 %v110
  %v267 = vunpack.c.h.b16 %v110
  %v268 = vunpack.c.l.b16 %v111
  %v269 = vunpack.c.h.b16 %v111
  %v270 = vunpack.c.l.b16 %v112
  %v271 = vunpack.c.h.b16 %v112
  %v272 = vunpack.c.l.b16 %v113
  %v273 = vunpack.c.h.b16 %v113
  %v274 = vpack.c.b16 %v214, %v210
  %v275 = vpack.c.b16 %v215, %v211
  %v276 = vpack.c.b16 %v216, %v212
  %v277 = vpack.c.b16 %v217, %v213
  %v278 = vpack.c.b16 %v222, %v218
  %v279 = vpack.c.b16 %v223, %v219
  %v280 = vpack.c.b16 %v224, %v220
  %v281 = vpack.c.b16 %v225, %v221
  %v282 = vpack.c.b16 %v230, %v226
  %v283 = vpack.c.b16 %v231, %v227
  %v284 = vpack.c.b16 %v232, %v228
  %v285 = vpack.c.b16 %v233, %v229
  %v286 = vpack.c.b16 %v238, %v234
  %v287 = vpack.c.b16 %v239, %v235
  %v288 = vpack.c.b16 %v240, %v236
  %v289 = vpack.c.b16 %v241, %v237
  %v290 = vpack.c.b16 %v246, %v242
  %v291 = vpack.c.b16 %v247, %v243
  %v292 = vpack.c.b16 %v248, %v244
  %v293 = vpack.c.b16 %v249, %v245
  %v294 = vpack.c.b16 %v254, %v250
  %v295 = vpack.c.b16 %v255, %v251
  %v296 = vpack.c.b16 %v256, %v252
  %v297 = vpack.c.b16 %v257, %v253
  %v298 = vpack.c.b16 %v262, %v258
  %v299 = vpack.c.b16 %v263, %v259
  %v300 = vpack.c.b16 %v264, %v260
  %v301 = vpack.c.b16 %v265, %v261
  %v302 = vpack.c.b16 %v270, %v266
  %v303 = vpack.c.b16 %v271, %v267
  %v304 = vpack.c.b16 %v272, %v268
  %v305 = vpack.c.b16 %v273, %v269
  %v402 = vunpack.c.l.b16 %v114
  %v403 = vunpack.c.h.b16 %v114
  %v404 = vunpack.c.l.b16 %v115
  %v405 = vunpack.c.h.b16 %v115
  %v406 = vunpack.c.l.b16 %v116
  %v407 = vunpack.c.h.b16 %v116
  %v408 = vunpack.c.l.b16 %v117
  %v409 = vunpack.c.h.b16 %v117
  %v410 = vunpack.c.l.b16 %v118
  %v411 = vunpack.c.h.b16 %v118
  %v412 = vunpack.c.l.b16 %v119
  %v413 = vunpack.c.h.b16 %v119
  %v414 = vunpack.c.l.b16 %v120
  %v415 = vunpack.c.h.b16 %v120
  %v416 = vunpack.c.l.b16 %v121
  %v417 = vunpack.c.h.b16 %v121
  %v418 = vunpack.c.l.b16 %v122
  %v419 = vunpack.c.h.b16 %v122
  %v420 = vunpack.c.l.b16 %v123
  %v421 = vunpack.c.h.b16 %v123
  %v422 = vunpack.c.l.b16 %v124
  %v423 = vunpack.c.h.b16 %v124
  %v424 = vunpack.c.l.b16 %v125
  %v425 = vunpack.c.h.b16 %v125
  %v426 = vunpack.c.l.b16 %v126
  %v427 = vunpack.c.h.b16 %v126
  %v428 = vunpack.c.l.b16 %v127
  %v429 = vunpack.c.h.b16 %v127
  %v430 = vunpack.c.l.b16 %v128
  %v431 = vunpack.c.h.b16 %v128
  %v432 = vunpack.c.l.b16 %v129
  %v433 = vunpack.c.h.b16 %v129
  %v434 = vunpack.c.l.b16 %v130
  %v435 = vunpack.c.h.b16 %v130
  %v436 = vunpack.c.l.b16 %v131
  %v437 = vunpack.c.h.b16 %v131
  %v438 = vunpack.c.l.b16 %v132
  %v439 = vunpack.c.h.b16 %v132
  %v440 = vunpack.c.l.b16 %v133
  %v441 = vunpack.c.h.b16 %v133
  %v442 = vunpack.c.l.b16 %v134
  %v443 = vunpack.c.h.b16 %v134
  %v444 = vunpack.c.l.b16 %v135
  %v445 = vunpack.c.h.b16 %v135
  %v446 = vunpack.c.l.b16 %v136
  %v447 = vunpack.c.h.b16 %v136
  %v448 = vunpack.c.l.b16 %v137
  %v449 = vunpack.c.h.b16 %v137
  %v450 = vunpack.c.l.b16 %v138
  %v451 = vunpack.c.h.b16 %v138
  %v452 = vunpack.c.l.b16 %v139
  %v453 = vunpack.c.h.b16 %v139
  %v454 = vunpack.c.l.b16 %v140
  %v455 = vunpack.c.h.b16 %v140
  %v456 = vunpack.c.l.b16 %v141
  %v457 = vunpack.c.h.b16 %v141
  %v458 = vunpack.c.l.b16 %v142
  %v459 = vunpack.c.h.b16 %v142
  %v460 = vunpack.c.l.b16 %v143
  %v461 = vunpack.c.h.b16 %v143
  %v462 = vunpack.c.l.b16 %v144
  %v463 = vunpack.c.h.b16 %v144
  %v464 = vunpack.c.l.b16 %v145
  %v465 = vunpack.c.h.b16 %v145
  %v466 = vunpack.c.l.b16 %v146
  %v467 = vunpack.c.h.b16 %v146
  %v468 = vunpack.c.l.b16 %v147
  %v469 = vunpack.c.h.b16 %v147
  %v470 = vunpack.c.l.b16 %v148
  %v471 = vunpack.c.h.b16 %v148
  %v472 = vunpack.c.l.b16 %v149
  %v473 = vunpack.c.h.b16 %v149
  %v474 = vunpack.c.l.b16 %v150
  %v475 = vunpack.c.h.b16 %v150
  %v476 = vunpack.c.l.b16 %v151
  %v477 = vunpack.c.h.b16 %v151
  %v478 = vunpack.c.l.b16 %v152
  %v479 = vunpack.c.h.b16 %v152
  %v480 = vunpack.c.l.b16 %v153
  %v481 = vunpack.c.h.b16 %v153
  %v482 = vunpack.c.l.b16 %v154
  %v483 = vunpack.c.h.b16 %v154
  %v484 = vunpack.c.l.b16 %v155
  %v485 = vunpack.c.h.b16 %v155
  %v486 = vunpack.c.l.b16 %v156
  %v487 = vunpack.c.h.b16 %v156
  %v488 = vunpack.c.l.b16 %v157
  %v489 = vunpack.c.h.b16 %v157
  %v490 = vunpack.c.l.b16 %v158
  %v491 = vunpack.c.h.b16 %v158
  %v492 = vunpack.c.l.b16 %v159
  %v493 = vunpack.c.h.b16 %v159
  %v494 = vunpack.c.l.b16 %v160
  %v495 = vunpack.c.h.b16 %v160
  %v496 = vunpack.c.l.b16 %v161
  %v497 = vunpack.c.h.b16 %v161
  %v498 = vunpack.c.l.b16 %v162
  %v499 = vunpack.c.h.b16 %v162
  %v500 = vunpack.c.l.b16 %v163
  %v501 = vunpack.c.h.b16 %v163
  %v502 = vunpack.c.l.b16 %v164
  %v503 = vunpack.c.h.b16 %v164
  %v504 = vunpack.c.l.b16 %v165
  %v505 = vunpack.c.h.b16 %v165
  %v506 = vunpack.c.l.b16 %v166
  %v507 = vunpack.c.h.b16 %v166
  %v508 = vunpack.c.l.b16 %v167
  %v509 = vunpack.c.h.b16 %v167
  %v510 = vunpack.c.l.b16 %v168
  %v511 = vunpack.c.h.b16 %v168
  %v512 = vunpack.c.l.b16 %v169
  %v513 = vunpack.c.h.b16 %v169
  %v514 = vunpack.c.l.b16 %v170
  %v515 = vunpack.c.h.b16 %v170
  %v516 = vunpack.c.l.b16 %v171
  %v517 = vunpack.c.h.b16 %v171
  %v518 = vunpack.c.l.b16 %v172
  %v519 = vunpack.c.h.b16 %v172
  %v520 = vunpack.c.l.b16 %v173
  %v521 = vunpack.c.h.b16 %v173
  %v522 = vunpack.c.l.b16 %v174
  %v523 = vunpack.c.h.b16 %v174
  %v524 = vunpack.c.l.b16 %v175
  %v525 = vunpack.c.h.b16 %v175
  %v526 = vunpack.c.l.b16 %v176
  %v527 = vunpack.c.h.b16 %v176
  %v528 = vunpack.c.l.b16 %v177
  %v529 = vunpack.c.h.b16 %v177
  %v530 = vpack.c.b16 %v404, %v402
  %v531 = vpack.c.b16 %v405, %v403
  %v532 = vpack.c.b16 %v408, %v406
  %v533 = vpack.c.b16 %v409, %v407
  %v534 = vpack.c.b16 %v412, %v410
  %v535 = vpack.c.b16 %v413, %v411
  %v536 = vpack.c.b16 %v416, %v414
  %v537 = vpack.c.b16 %v417, %v415
  %v538 = vpack.c.b16 %v420, %v418
  %v539 = vpack.c.b16 %v421, %v419
  %v540 = vpack.c.b16 %v424, %v422
  %v541 = vpack.c.b16 %v425, %v423
  %v542 = vpack.c.b16 %v428, %v426
  %v543 = vpack.c.b16 %v429, %v427
  %v544 = vpack.c.b16 %v432, %v430
  %v545 = vpack.c.b16 %v433, %v431
  %v546 = vpack.c.b16 %v436, %v434
  %v547 = vpack.c.b16 %v437, %v435
  %v548 = vpack.c.b16 %v440, %v438
  %v549 = vpack.c.b16 %v441, %v439
  %v550 = vpack.c.b16 %v444, %v442
  %v551 = vpack.c.b16 %v445, %v443
  %v552 = vpack.c.b16 %v448, %v446
  %v553 = vpack.c.b16 %v449, %v447
  %v554 = vpack.c.b16 %v452, %v450
  %v555 = vpack.c.b16 %v453, %v451
  %v556 = vpack.c.b16 %v456, %v454
  %v557 = vpack.c.b16 %v457, %v455
  %v558 = vpack.c.b16 %v460, %v458
  %v559 = vpack.c.b16 %v461, %v459
  %v560 = vpack.c.b16 %v464, %v462
  %v561 = vpack.c.b16 %v465, %v463
  %v562 = vpack.c.b16 %v468, %v466
  %v563 = vpack.c.b16 %v469, %v467
  %v564 = vpack.c.b16 %v472, %v470
  %v565 = vpack.c.b16 %v473, %v471
  %v566 = vpack.c.b16 %v476, %v474
  %v567 = vpack.c.b16 %v477, %v475
  %v568 = vpack.c.b16 %v480, %v478
  %v569 = vpack.c.b16 %v481, %v479
  %v570 = vpack.c.b16 %v484, %v482
  %v571 = vpack.c.b16 %v485, %v483
  %v572 = vpack.c.b16 %v488, %v486
  %v573 = vpack.c.b16 %v489, %v487
  %v574 = vpack.c.b16 %v492, %v490
  %v575 = vpack.c.b16 %v493, %v491
  %v576 = vpack.c.b16 %v496, %v494
  %v577 = vpack.c.b16 %v497, %v495
  %v578 = vpack.c.b16 %v500, %v498
  %v579 = vpack.c.b16 %v501, %v499
  %v580 = vpack.c.b16 %v504, %v502
  %v581 = vpack.c.b16 %v505, %v503
  %v582 = vpack.c.b16 %v508, %v506
  %v583 = vpack.c.b16 %v509, %v507
  %v584 = vpack.c.b16 %v512, %v510
  %v585 = vpack.c.b16 %v513, %v511
  %v586 = vpack.c.b16 %v516, %v514
  %v587 = vpack.c.b16 %v517, %v515
  %v588 = vpack.c.b16 %v520, %v518
  %v589 = vpack.c.b16 %v521, %v519
  %v590 = vpack.c.b16 %v524, %v522
  %v591 = vpack.c.b16 %v525, %v523
  %v592 = vpack.c.b16 %v528, %v526
  %v593 = vpack.c.b16 %v529, %v527
  %658 = vmatprep.subr.bf16.mxu0 %v531
  %659 = vmatpush1.bf16.msra.mxu0 %v530
  %660 = vmatprep.subr.bf16.mxu0 %v533
  %661 = vmatpush1.bf16.msra.mxu0 %v532
  %662 = vmatprep.subr.bf16.mxu0 %v535
  %663 = vmatpush1.bf16.msra.mxu0 %v534
  %664 = vmatprep.subr.bf16.mxu0 %v537
  %665 = vmatpush1.bf16.msra.mxu0 %v536
  %666 = vmatprep.subr.bf16.mxu0 %v539
  %667 = vmatpush1.bf16.msra.mxu0 %v538
  %668 = vmatprep.subr.bf16.mxu0 %v541
  %669 = vmatpush1.bf16.msra.mxu0 %v540
  %670 = vmatprep.subr.bf16.mxu0 %v543
  %671 = vmatpush1.bf16.msra.mxu0 %v542
  %672 = vmatprep.subr.bf16.mxu0 %v545
  %673 = vmatpush1.bf16.msra.mxu0 %v544
  %674 = vmatprep.subr.bf16.mxu0 %v547
  %675 = vmatpush1.bf16.msra.mxu0 %v546
  %676 = vmatprep.subr.bf16.mxu0 %v549
  %677 = vmatpush1.bf16.msra.mxu0 %v548
  %678 = vmatprep.subr.bf16.mxu0 %v551
  %679 = vmatpush1.bf16.msra.mxu0 %v550
  %680 = vmatprep.subr.bf16.mxu0 %v553
  %681 = vmatpush1.bf16.msra.mxu0 %v552
  %682 = vmatprep.subr.bf16.mxu0 %v555
  %683 = vmatpush1.bf16.msra.mxu0 %v554
  %684 = vmatprep.subr.bf16.mxu0 %v557
  %685 = vmatpush1.bf16.msra.mxu0 %v556
  %686 = vmatprep.subr.bf16.mxu0 %v559
  %687 = vmatpush1.bf16.msra.mxu0 %v558
  %688 = vmatprep.subr.bf16.mxu0 %v561
  %689 = vmatpush1.bf16.msra.mxu0 %v560
  %690 = vmatprep.mubr.bf16.mxu0 %v275
  %691 = vmatmul.mubr.bf16.gmra.mrb[0].mxu0 %v274
  %v692 = vpop.f32.mrb[0].mxu0
  %v693 = vadd.f32 0.0, %v692
  %v694 = vpop.f32.mrb[0].mxu0
  %v695 = vadd.f32 0.0, %v694
  %v696 = vpop.f32.mrb[0].mxu0
  %v697 = vadd.f32 0.0, %v696
  %v698 = vpop.f32.mrb[0].mxu0
  %v699 = vadd.f32 0.0, %v698
  %700 = vmatprep.mubr.bf16.mxu0 %v279
  %701 = vmatmul.mubr.bf16.gmra.mrb[0].mxu0 %v278
  %v702 = vpop.f32.mrb[0].mxu0
  %v703 = vadd.f32 0.0, %v702
  %v704 = vpop.f32.mrb[0].mxu0
  %v705 = vadd.f32 0.0, %v704
  %v706 = vpop.f32.mrb[0].mxu0
  %v707 = vadd.f32 0.0, %v706
  %v708 = vpop.f32.mrb[0].mxu0
  %v709 = vadd.f32 0.0, %v708
  %710 = vmatprep.mubr.bf16.mxu0 %v283
  %711 = vmatmul.mubr.bf16.gmra.mrb[0].mxu0 %v282
  %v712 = vpop.f32.mrb[0].mxu0
  %v713 = vadd.f32 0.0, %v712
  %v714 = vpop.f32.mrb[0].mxu0
  %v715 = vadd.f32 0.0, %v714
  %v716 = vpop.f32.mrb[0].mxu0
  %v717 = vadd.f32 0.0, %v716
  %v718 = vpop.f32.mrb[0].mxu0
  %v719 = vadd.f32 0.0, %v718
  %720 = vmatprep.mubr.bf16.mxu0 %v287
  %721 = vmatmul.mubr.bf16.gmra.mrb[0].mxu0 %v286
  %v722 = vpop.f32.mrb[0].mxu0
  %v723 = vadd.f32 0.0, %v722
  %v724 = vpop.f32.mrb[0].mxu0
  %v725 = vadd.f32 0.0, %v724
  %v726 = vpop.f32.mrb[0].mxu0
  %v727 = vadd.f32 0.0, %v726
  %v728 = vpop.f32.mrb[0].mxu0
  %v729 = vadd.f32 0.0, %v728
  %730 = vmatprep.mubr.bf16.mxu0 %v291
  %731 = vmatmul.mubr.bf16.gmra.mrb[0].mxu0 %v290
  %v732 = vpop.f32.mrb[0].mxu0
  %v733 = vadd.f32 0.0, %v732
  %v734 = vpop.f32.mrb[0].mxu0
  %v735 = vadd.f32 0.0, %v734
  %v736 = vpop.f32.mrb[0].mxu0
  %v737 = vadd.f32 0.0, %v736
  %v738 = vpop.f32.mrb[0].mxu0
  %v739 = vadd.f32 0.0, %v738
  %740 = vmatprep.mubr.bf16.mxu0 %v295
  %741 = vmatmul.mubr.bf16.gmra.mrb[0].mxu0 %v294
  %v742 = vpop.f32.mrb[0].mxu0
  %v743 = vadd.f32 0.0, %v742
  %v744 = vpop.f32.mrb[0].mxu0
  %v745 = vadd.f32 0.0, %v744
  %v746 = vpop.f32.mrb[0].mxu0
  %v747 = vadd.f32 0.0, %v746
  %v748 = vpop.f32.mrb[0].mxu0
  %v749 = vadd.f32 0.0, %v748
  %750 = vmatprep.mubr.bf16.mxu0 %v299
  %751 = vmatmul.mubr.bf16.gmra.mrb[0].mxu0 %v298
  %v752 = vpop.f32.mrb[0].mxu0
  %v753 = vadd.f32 0.0, %v752
  %v754 = vpop.f32.mrb[0].mxu0
  %v755 = vadd.f32 0.0, %v754
  %v756 = vpop.f32.mrb[0].mxu0
  %v757 = vadd.f32 0.0, %v756
  %v758 = vpop.f32.mrb[0].mxu0
  %v759 = vadd.f32 0.0, %v758
  %760 = vmatprep.mubr.bf16.mxu0 %v303
  %761 = vmatmul.mubr.bf16.gmra.mrb[0].mxu0 %v302
  %v762 = vpop.f32.mrb[0].mxu0
  %v763 = vadd.f32 0.0, %v762
  %v764 = vpop.f32.mrb[0].mxu0
  %v765 = vadd.f32 0.0, %v764
  %v766 = vpop.f32.mrb[0].mxu0
  %v767 = vadd.f32 0.0, %v766
  %v768 = vpop.f32.mrb[0].mxu0
  %v769 = vadd.f32 0.0, %v768
  %770 = vdwg.mxu0
  %771 = vmatprep.subr.bf16.mxu0 %v563
  %772 = vmatpush1.bf16.msra.mxu0 %v562
  %773 = vmatprep.subr.bf16.mxu0 %v565
  %774 = vmatpush1.bf16.msra.mxu0 %v564
  %775 = vmatprep.subr.bf16.mxu0 %v567
  %776 = vmatpush1.bf16.msra.mxu0 %v566
  %777 = vmatprep.subr.bf16.mxu0 %v569
  %778 = vmatpush1.bf16.msra.mxu0 %v568
  %779 = vmatprep.subr.bf16.mxu0 %v571
  %780 = vmatpush1.bf16.msra.mxu0 %v570
  %781 = vmatprep.subr.bf16.mxu0 %v573
  %782 = vmatpush1.bf16.msra.mxu0 %v572
  %783 = vmatprep.subr.bf16.mxu0 %v575
  %784 = vmatpush1.bf16.msra.mxu0 %v574
  %785 = vmatprep.subr.bf16.mxu0 %v577
  %786 = vmatpush1.bf16.msra.mxu0 %v576
  %787 = vmatprep.subr.bf16.mxu0 %v579
  %788 = vmatpush1.bf16.msra.mxu0 %v578
  %789 = vmatprep.subr.bf16.mxu0 %v581
  %790 = vmatpush1.bf16.msra.mxu0 %v580
  %791 = vmatprep.subr.bf16.mxu0 %v583
  %792 = vmatpush1.bf16.msra.mxu0 %v582
  %793 = vmatprep.subr.bf16.mxu0 %v585
  %794 = vmatpush1.bf16.msra.mxu0 %v584
  %795 = vmatprep.subr.bf16.mxu0 %v587
  %796 = vmatpush1.bf16.msra.mxu0 %v586
  %797 = vmatprep.subr.bf16.mxu0 %v589
  %798 = vmatpush1.bf16.msra.mxu0 %v588
  %799 = vmatprep.subr.bf16.mxu0 %v591
  %800 = vmatpush1.bf16.msra.mxu0 %v590
  %801 = vmatprep.subr.bf16.mxu0 %v593
  %802 = vmatpush1.bf16.msra.mxu0 %v592
  %803 = vmatprep.mubr.bf16.mxu0 %v277
  %804 = vmatmul.mubr.bf16.gmra.mrb[0].mxu0 %v276
  %v805 = vpop.f32.mrb[0].mxu0
  %v806 = vadd.f32 %v693, %v805
  %v807 = vpop.f32.mrb[0].mxu0
  %v808 = vadd.f32 %v695, %v807
  %v809 = vpop.f32.mrb[0].mxu0
  %v810 = vadd.f32 %v697, %v809
  %v811 = vpop.f32.mrb[0].mxu0
  %v812 = vadd.f32 %v699, %v811
  %813 = vmatprep.mubr.bf16.mxu0 %v281
  %814 = vmatmul.mubr.bf16.gmra.mrb[0].mxu0 %v280
  %v815 = vpop.f32.mrb[0].mxu0
  %v816 = vadd.f32 %v703, %v815
  %v817 = vpop.f32.mrb[0].mxu0
  %v818 = vadd.f32 %v705, %v817
  %v819 = vpop.f32.mrb[0].mxu0
  %v820 = vadd.f32 %v707, %v819
  %v821 = vpop.f32.mrb[0].mxu0
  %v822 = vadd.f32 %v709, %v821
  %823 = vmatprep.mubr.bf16.mxu0 %v285
  %824 = vmatmul.mubr.bf16.gmra.mrb[0].mxu0 %v284
  %v825 = vpop.f32.mrb[0].mxu0
  %v826 = vadd.f32 %v713, %v825
  %v827 = vpop.f32.mrb[0].mxu0
  %v828 = vadd.f32 %v715, %v827
  %v829 = vpop.f32.mrb[0].mxu0
  %v830 = vadd.f32 %v717, %v829
  %v831 = vpop.f32.mrb[0].mxu0
  %v832 = vadd.f32 %v719, %v831
  %833 = vmatprep.mubr.bf16.mxu0 %v289
  %834 = vmatmul.mubr.bf16.gmra.mrb[0].mxu0 %v288
  %v835 = vpop.f32.mrb[0].mxu0
  %v836 = vadd.f32 %v723, %v835
  %v837 = vpop.f32.mrb[0].mxu0
  %v838 = vadd.f32 %v725, %v837
  %v839 = vpop.f32.mrb[0].mxu0
  %v840 = vadd.f32 %v727, %v839
  %v841 = vpop.f32.mrb[0].mxu0
  %v842 = vadd.f32 %v729, %v841
  %843 = vmatprep.mubr.bf16.mxu0 %v293
  %844 = vmatmul.mubr.bf16.gmra.mrb[0].mxu0 %v292
  %v845 = vpop.f32.mrb[0].mxu0
  %v846 = vadd.f32 %v733, %v845
  %v847 = vpop.f32.mrb[0].mxu0
  %v848 = vadd.f32 %v735, %v847
  %v849 = vpop.f32.mrb[0].mxu0
  %v850 = vadd.f32 %v737, %v849
  %v851 = vpop.f32.mrb[0].mxu0
  %v852 = vadd.f32 %v739, %v851
  %853 = vmatprep.mubr.bf16.mxu0 %v297
  %854 = vmatmul.mubr.bf16.gmra.mrb[0].mxu0 %v296
  %v855 = vpop.f32.mrb[0].mxu0
  %v856 = vadd.f32 %v743, %v855
  %v857 = vpop.f32.mrb[0].mxu0
  %v858 = vadd.f32 %v745, %v857
  %v859 = vpop.f32.mrb[0].mxu0
  %v860 = vadd.f32 %v747, %v859
  %v861 = vpop.f32.mrb[0].mxu0
  %v862 = vadd.f32 %v749, %v861
  %863 = vmatprep.mubr.bf16.mxu0 %v301
  %864 = vmatmul.mubr.bf16.gmra.mrb[0].mxu0 %v300
  %v865 = vpop.f32.mrb[0].mxu0
  %v866 = vadd.f32 %v753, %v865
  %v867 = vpop.f32.mrb[0].mxu0
  %v868 = vadd.f32 %v755, %v867
  %v869 = vpop.f32.mrb[0].mxu0
  %v870 = vadd.f32 %v757, %v869
  %v871 = vpop.f32.mrb[0].mxu0
  %v872 = vadd.f32 %v759, %v871
  %873 = vmatprep.mubr.bf16.mxu0 %v305
  %874 = vmatmul.mubr.bf16.gmra.mrb[0].mxu0 %v304
  %v875 = vpop.f32.mrb[0].mxu0
  %v876 = vadd.f32 %v763, %v875
  %v877 = vpop.f32.mrb[0].mxu0
  %v878 = vadd.f32 %v765, %v877
  %v879 = vpop.f32.mrb[0].mxu0
  %v880 = vadd.f32 %v767, %v879
  %v881 = vpop.f32.mrb[0].mxu0
  %v882 = vadd.f32 %v769, %v881
  %883 = vdwg.mxu0
  %v884 = vadd.f32 %v50, %v806
  %v885 = vadd.f32 %v51, %v808
  %v886 = vadd.f32 %v52, %v810
  %v887 = vadd.f32 %v53, %v812
  %v888 = vadd.f32 %v54, %v816
  %v889 = vadd.f32 %v55, %v818
  %v890 = vadd.f32 %v56, %v820
  %v891 = vadd.f32 %v57, %v822
  %v892 = vadd.f32 %v58, %v826
  %v893 = vadd.f32 %v59, %v828
  %v894 = vadd.f32 %v60, %v830
  %v895 = vadd.f32 %v61, %v832
  %v896 = vadd.f32 %v62, %v836
  %v897 = vadd.f32 %v63, %v838
  %v898 = vadd.f32 %v64, %v840
  %v899 = vadd.f32 %v65, %v842
  %v900 = vadd.f32 %v66, %v846
  %v901 = vadd.f32 %v67, %v848
  %v902 = vadd.f32 %v68, %v850
  %v903 = vadd.f32 %v69, %v852
  %v904 = vadd.f32 %v70, %v856
  %v905 = vadd.f32 %v71, %v858
  %v906 = vadd.f32 %v72, %v860
  %v907 = vadd.f32 %v73, %v862
  %v908 = vadd.f32 %v74, %v866
  %v909 = vadd.f32 %v75, %v868
  %v910 = vadd.f32 %v76, %v870
  %v911 = vadd.f32 %v77, %v872
  %v912 = vadd.f32 %v78, %v876
  %v913 = vadd.f32 %v79, %v878
  %v914 = vadd.f32 %v80, %v880
  %v915 = vadd.f32 %v81, %v882
  %916 = vst [vmem:[#allocation2] sm:$0xff] %v884
  %917 = vst [vmem:[#allocation2 + $0x8] sm:$0xff] %v885
  %918 = vst [vmem:[#allocation2 + $0x10] sm:$0xff] %v886
  %919 = vst [vmem:[#allocation2 + $0x18] sm:$0xff] %v887
  %920 = vst [vmem:[#allocation2 + $0x20] sm:$0xff] %v888
  %921 = vst [vmem:[#allocation2 + $0x28] sm:$0xff] %v889
  %922 = vst [vmem:[#allocation2 + $0x30] sm:$0xff] %v890
  %923 = vst [vmem:[#allocation2 + $0x38] sm:$0xff] %v891
  %924 = vst [vmem:[#allocation2 + $0x40] sm:$0xff] %v892
  %925 = vst [vmem:[#allocation2 + $0x48] sm:$0xff] %v893
  %926 = vst [vmem:[#allocation2 + $0x50] sm:$0xff] %v894
  %927 = vst [vmem:[#allocation2 + $0x58] sm:$0xff] %v895
  %928 = vst [vmem:[#allocation2 + $0x60] sm:$0xff] %v896
  %929 = vst [vmem:[#allocation2 + $0x68] sm:$0xff] %v897
  %930 = vst [vmem:[#allocation2 + $0x70] sm:$0xff] %v898
  %931 = vst [vmem:[#allocation2 + $0x78] sm:$0xff] %v899
  %932 = vst [vmem:[#allocation2 + $0x80] sm:$0xff] %v900
  %933 = vst [vmem:[#allocation2 + $0x88] sm:$0xff] %v901
  %934 = vst [vmem:[#allocation2 + $0x90] sm:$0xff] %v902
  %935 = vst [vmem:[#allocation2 + $0x98] sm:$0xff] %v903
  %936 = vst [vmem:[#allocation2 + $0xa0] sm:$0xff] %v904
  %937 = vst [vmem:[#allocation2 + $0xa8] sm:$0xff] %v905
  %938 = vst [vmem:[#allocation2 + $0xb0] sm:$0xff] %v906
  %939 = vst [vmem:[#allocation2 + $0xb8] sm:$0xff] %v907
  %940 = vst [vmem:[#allocation2 + $0xc0] sm:$0xff] %v908
  %941 = vst [vmem:[#allocation2 + $0xc8] sm:$0xff] %v909
  %942 = vst [vmem:[#allocation2 + $0xd0] sm:$0xff] %v910
  %943 = vst [vmem:[#allocation2 + $0xd8] sm:$0xff] %v911
  %944 = vst [vmem:[#allocation2 + $0xe0] sm:$0xff] %v912
  %945 = vst [vmem:[#allocation2 + $0xe8] sm:$0xff] %v913
  %946 = vst [vmem:[#allocation2 + $0xf0] sm:$0xff] %v914
  %947 = vst [vmem:[#allocation2 + $0xf8] sm:$0xff] %v915
  // Predicated region
  $region18: #{generator_forward.43} parent=0 // pred_check
    %p948 = pneg %p14
  $region19: #{generator_forward.43} parent=0 // pred_check_branch
    %950 = sbr.rel (%p948) target = $region21
  $region20: #{generator_forward.43} parent=0 // pred_region
    %v951 = vld [vmem:[#allocation2] sm:$0xff]
    %v952 = vld [vmem:[#allocation2 + $0x8] sm:$0xff]
    %v953 = vld [vmem:[#allocation2 + $0x10] sm:$0xff]
    %v954 = vld [vmem:[#allocation2 + $0x18] sm:$0xff]
    %v955 = vld [vmem:[#allocation2 + $0x20] sm:$0xff]
    %v956 = vld [vmem:[#allocation2 + $0x28] sm:$0xff]
    %v957 = vld [vmem:[#allocation2 + $0x30] sm:$0xff]
    %v958 = vld [vmem:[#allocation2 + $0x38] sm:$0xff]
    %v959 = vld [vmem:[#allocation2 + $0x40] sm:$0xff]
    %v960 = vld [vmem:[#allocation2 + $0x48] sm:$0xff]
    %v961 = vld [vmem:[#allocation2 + $0x50] sm:$0xff]
    %v962 = vld [vmem:[#allocation2 + $0x58] sm:$0xff]
    %v963 = vld [vmem:[#allocation2 + $0x60] sm:$0xff]
    %v964 = vld [vmem:[#allocation2 + $0x68] sm:$0xff]
    %v965 = vld [vmem:[#allocation2 + $0x70] sm:$0xff]
    %v966 = vld [vmem:[#allocation2 + $0x78] sm:$0xff]
    %v967 = vld [vmem:[#allocation2 + $0x80] sm:$0xff]
    %v968 = vld [vmem:[#allocation2 + $0x88] sm:$0xff]
    %v969 = vld [vmem:[#allocation2 + $0x90] sm:$0xff]
    %v970 = vld [vmem:[#allocation2 + $0x98] sm:$0xff]
    %v971 = vld [vmem:[#allocation2 + $0xa0] sm:$0xff]
    %v972 = vld [vmem:[#allocation2 + $0xa8] sm:$0xff]
    %v973 = vld [vmem:[#allocation2 + $0xb0] sm:$0xff]
    %v974 = vld [vmem:[#allocation2 + $0xb8] sm:$0xff]
    %v975 = vld [vmem:[#allocation2 + $0xc0] sm:$0xff]
    %v976 = vld [vmem:[#allocation2 + $0xc8] sm:$0xff]
    %v977 = vld [vmem:[#allocation2 + $0xd0] sm:$0xff]
    %v978 = vld [vmem:[#allocation2 + $0xd8] sm:$0xff]
    %v979 = vld [vmem:[#allocation2 + $0xe0] sm:$0xff]
    %v980 = vld [vmem:[#allocation2 + $0xe8] sm:$0xff]
    %v981 = vld [vmem:[#allocation2 + $0xf0] sm:$0xff]
    %v982 = vld [vmem:[#allocation2 + $0xf8] sm:$0xff]
    %v983 = vld [vmem:[%s2] sm:$0x3]
    %v985 = vlaneseq
    %v986 = vshrl.u32 %v985, 7
    %v987 = vsub.s32 0, %v986
    %v988 = vrot.slane %v983, %v987
    %v989 = vlaneseq
    %v990 = vshrl.u32 %v989, 7
    %v991 = vsub.s32 1, %v990
    %v992 = vrot.slane %v983, %v991
    %v995 = vadd.f32 %v951, %v988
    %v996 = vadd.f32 %v952, %v992
    %v997 = vadd.f32 %v953, %v988
    %v998 = vadd.f32 %v954, %v992
    %v999 = vadd.f32 %v955, %v988
    %v1000 = vadd.f32 %v956, %v992
    %v1001 = vadd.f32 %v957, %v988
    %v1002 = vadd.f32 %v958, %v992
    %v1003 = vadd.f32 %v959, %v988
    %v1004 = vadd.f32 %v960, %v992
    %v1005 = vadd.f32 %v961, %v988
    %v1006 = vadd.f32 %v962, %v992
    %v1007 = vadd.f32 %v963, %v988
    %v1008 = vadd.f32 %v964, %v992
    %v1009 = vadd.f32 %v965, %v988
    %v1010 = vadd.f32 %v966, %v992
    %v1011 = vadd.f32 %v967, %v988
    %v1012 = vadd.f32 %v968, %v992
    %v1013 = vadd.f32 %v969, %v988
    %v1014 = vadd.f32 %v970, %v992
    %v1015 = vadd.f32 %v971, %v988
    %v1016 = vadd.f32 %v972, %v992
    %v1017 = vadd.f32 %v973, %v988
    %v1018 = vadd.f32 %v974, %v992
    %v1019 = vadd.f32 %v975, %v988
    %v1020 = vadd.f32 %v976, %v992
    %v1021 = vadd.f32 %v977, %v988
    %v1022 = vadd.f32 %v978, %v992
    %v1023 = vadd.f32 %v979, %v988
    %v1024 = vadd.f32 %v980, %v992
    %v1025 = vadd.f32 %v981, %v988
    %v1026 = vadd.f32 %v982, %v992
    %1027 = vst [vmem:[%s3] sm:$0xff] %v995
    %1028 = vst [vmem:[%s3 + $0x8] sm:$0xff] %v996
    %1029 = vst [vmem:[%s3 + $0x10] sm:$0xff] %v997
    %1030 = vst [vmem:[%s3 + $0x18] sm:$0xff] %v998
    %1031 = vst [vmem:[%s3 + $0x20] sm:$0xff] %v999
    %1032 = vst [vmem:[%s3 + $0x28] sm:$0xff] %v1000
    %1033 = vst [vmem:[%s3 + $0x30] sm:$0xff] %v1001
    %1034 = vst [vmem:[%s3 + $0x38] sm:$0xff] %v1002
    %1035 = vst [vmem:[%s3 + $0x40] sm:$0xff] %v1003
    %1036 = vst [vmem:[%s3 + $0x48] sm:$0xff] %v1004
    %1037 = vst [vmem:[%s3 + $0x50] sm:$0xff] %v1005
    %1038 = vst [vmem:[%s3 + $0x58] sm:$0xff] %v1006
    %1039 = vst [vmem:[%s3 + $0x60] sm:$0xff] %v1007
    %1040 = vst [vmem:[%s3 + $0x68] sm:$0xff] %v1008
    %1041 = vst [vmem:[%s3 + $0x70] sm:$0xff] %v1009
    %1042 = vst [vmem:[%s3 + $0x78] sm:$0xff] %v1010
    %1043 = vst [vmem:[%s3 + $0x80] sm:$0xff] %v1011
    %1044 = vst [vmem:[%s3 + $0x88] sm:$0xff] %v1012
    %1045 = vst [vmem:[%s3 + $0x90] sm:$0xff] %v1013
    %1046 = vst [vmem:[%s3 + $0x98] sm:$0xff] %v1014
    %1047 = vst [vmem:[%s3 + $0xa0] sm:$0xff] %v1015
    %1048 = vst [vmem:[%s3 + $0xa8] sm:$0xff] %v1016
    %1049 = vst [vmem:[%s3 + $0xb0] sm:$0xff] %v1017
    %1050 = vst [vmem:[%s3 + $0xb8] sm:$0xff] %v1018
    %1051 = vst [vmem:[%s3 + $0xc0] sm:$0xff] %v1019
    %1052 = vst [vmem:[%s3 + $0xc8] sm:$0xff] %v1020
    %1053 = vst [vmem:[%s3 + $0xd0] sm:$0xff] %v1021
    %1054 = vst [vmem:[%s3 + $0xd8] sm:$0xff] %v1022
    %1055 = vst [vmem:[%s3 + $0xe0] sm:$0xff] %v1023
    %1056 = vst [vmem:[%s3 + $0xe8] sm:$0xff] %v1024
    %1057 = vst [vmem:[%s3 + $0xf0] sm:$0xff] %v1025
    %1058 = vst [vmem:[%s3 + $0xf8] sm:$0xff] %v1026
  $region21: #{generator_forward.43} parent=0 // pred_fallthru
    _
  // Predicated region
  $region22: #{generator_forward.43} parent=0 // pred_check
    _
  $region23: #{generator_forward.43} parent=0 // pred_check_branch
    %1060 = sbr.rel (0) target = $region25
  $region24: #{generator_forward.43} parent=0 // pred_region
    _
  $region25: #{generator_forward.43} parent=0 // pred_fallthru
    _
  // Predicated region
  $region26: #{generator_forward.43} parent=0 // pred_check
    _
  $region27: #{generator_forward.43} parent=0 // pred_check_branch
    %1062 = sbr.rel (0) target = $region29
  $region28: #{generator_forward.43} parent=0 // pred_region
    _
  $region29: #{generator_forward.43} parent=0 // pred_fallthru
    _

// kernel: generator_forward.45
$region0: #{generator_forward.45}
  #allocation0 [shape = 'u32[]', space=smem, size = 0x4, offset = 0x4, fixed_abs, tag = 'smem constant byte address 0x4 - core index']
  #allocation1 [shape = 'u32[144,128]{1,0:T(1,128)}', space=vmem, size = 0x12000, scoped, tag = 'internal scratch']
  #allocation2 [shape = 'f32[256,128]{1,0:T(8,128)}', space=vmem, size = 0x20000, scoped, tag = 'scratch operand']
  %s0 = inlined_call_operand.vmem [shape: bf16[512,3200], index: 0, kind: input, shape index: {}]
  %s1 = inlined_call_operand.vmem [shape: bf16[3200,128], index: 1, kind: input, shape index: {}]
  %s2 = inlined_call_operand.vmem [shape: f32[1,128], index: 2, kind: input, shape index: {}]
  %s3 = inlined_call_operand.vmem [shape: f32[512,128], index: 3, kind: output, shape index: {}]
  %s4 = sld [smem:[#allocation0]]
  $region94: #{generator_forward.45} parent=0
    _
  %s6 = ssub.s32 1, %s4
  %s7 = scalar_select 0, %s6, %s4
  $region1: #{generator_forward.45} parent=0
    #allocation3 [shape = 'u8[131072]{0}', space=vmem, size = 0x20000, scoped, tag = 'input window, operand 0']
    loop: start=0, step=1, limit=52
    $region2: #{generator_forward.45} parent=1 // loop_pre_header
      _
    $region3: #{generator_forward.45} parent=1 // loop_header
      %s9 = sphi 0, %s13
      %p10 = scmp.ge.s32.totalorder %s9, 52
      %s16 = sphi 0, %s35
      %s17 = sphi 0, %s31
      %s18 = sphi 0, %s27
      %s19 = sphi 0, %s16
      %s20 = sphi 0, %s17
      %s21 = sphi 0, %s18
      %s22 = sphi 0, %s19
      %s23 = sphi 0, %s20
      %s24 = sphi 0, %s21
      %s40 = sphi 0, %s42
      %s43 = sphi 0, %s40
      %s44 = sphi 0, %s43
      %s60 = sphi 0, %s44
      %s68 = sphi 0, %s70
      %s71 = sphi 0, %s68
      %s72 = sphi 0, %s71
      %s88 = sphi 0, %s72
      %s94 = sphi 0, %s96
      %s97 = sphi 0, %s94
      %s98 = sphi 0, %s97
      %s114 = sphi 0, %s98
      %s122 = sphi 0, %s124
      %s125 = sphi 0, %s122
      %s126 = sphi 0, %s125
      %s142 = sphi 0, %s126
    $region4: #{generator_forward.45} parent=1 // loop_header_branch
      %12 = sbr.rel (%p10) target = $region8
    $region5: #{generator_forward.45} parent=1 // loop_body
      %s14 = ssub.s32 %s9, 1
      %s15 = ssub.s32 %s9, 2
      %s25 = sadd.s32 1, %s18
      %p26 = scmp.ge.s32.totalorder %s25, 25
      %s27 = scalar_select %p26, 0, %s25
      %s28 = sadd.s32 1, %s17
      %s29 = scalar_select %p26, %s28, %s17
      %p30 = scmp.ge.s32.totalorder %s29, 1
      %s31 = scalar_select %p30, 0, %s29
      %s32 = sadd.s32 1, %s16
      %s33 = scalar_select %p30, %s32, %s16
      %p34 = scmp.ge.s32.totalorder %s33, 2
      %s35 = scalar_select %p34, 0, %s33
      %s36 = ssub.s32 %s16, %s35
      %s37 = ssub.s32 %s18, %s27
      %s38 = sor.u32 %s36, %s37
      %p39 = scmp.eq.s32.totalorder %s38, 0
      %s41 = sadd.s32 %s40, 1
      %s42 = scalar_select %p39, %s40, %s41
      %p45 = pneg %p39
      %p46 = scmp.eq.s32.totalorder %s9, 49
      %p47 = por %p45, %p46
      %p48 = scmp.ne.s32.totalorder %s40, %s43
      %p49 = scmp.eq.s32.totalorder %s9, 0
      %p50 = por %p48, %p49
      %p51 = scmp.ne.s32.totalorder %s40, %s43
      %p52 = scmp.eq.s32.totalorder %s14, 49
      %p53 = por %p51, %p52
      %p54 = scmp.ne.s32.totalorder %s43, %s44
      %p55 = scmp.eq.s32.totalorder %s14, 0
      %p56 = por %p54, %p55
      %p57 = scmp.ne.s32.totalorder %s43, %s44
      %p58 = scmp.eq.s32.totalorder %s15, 49
      %p59 = por %p57, %p58
      %p61 = scmp.ne.s32.totalorder %s44, %s60
      %p62 = scmp.eq.s32.totalorder %s15, 0
      %p63 = por %p61, %p62
      %s64 = ssub.s32 %s18, %s27
      %s65 = ssub.s32 %s17, %s31
      %s66 = sor.u32 %s64, %s65
      %p67 = scmp.eq.s32.totalorder %s66, 0
      %s69 = sadd.s32 %s68, 1
      %s70 = scalar_select %p67, %s68, %s69
      %p73 = pneg %p67
      %p74 = scmp.eq.s32.totalorder %s9, 49
      %p75 = por %p73, %p74
      %p76 = scmp.ne.s32.totalorder %s68, %s71
      %p77 = scmp.eq.s32.totalorder %s9, 0
      %p78 = por %p76, %p77
      %p79 = scmp.ne.s32.totalorder %s68, %s71
      %p80 = scmp.eq.s32.totalorder %s14, 49
      %p81 = por %p79, %p80
      %p82 = scmp.ne.s32.totalorder %s71, %s72
      %p83 = scmp.eq.s32.totalorder %s14, 0
      %p84 = por %p82, %p83
      %p85 = scmp.ne.s32.totalorder %s71, %s72
      %p86 = scmp.eq.s32.totalorder %s15, 49
      %p87 = por %p85, %p86
      %p89 = scmp.ne.s32.totalorder %s72, %s88
      %p90 = scmp.eq.s32.totalorder %s15, 0
      %p91 = por %p89, %p90
      %s92 = ssub.s32 %s17, %s31
      %p93 = scmp.eq.s32.totalorder %s92, 0
      %s95 = sadd.s32 %s94, 1
      %s96 = scalar_select %p93, %s94, %s95
      %p99 = pneg %p93
      %p100 = scmp.eq.s32.totalorder %s9, 49
      %p101 = por %p99, %p100
      %p102 = scmp.ne.s32.totalorder %s94, %s97
      %p103 = scmp.eq.s32.totalorder %s9, 0
      %p104 = por %p102, %p103
      %p105 = scmp.ne.s32.totalorder %s94, %s97
      %p106 = scmp.eq.s32.totalorder %s14, 49
      %p107 = por %p105, %p106
      %p108 = scmp.ne.s32.totalorder %s97, %s98
      %p109 = scmp.eq.s32.totalorder %s14, 0
      %p110 = por %p108, %p109
      %p111 = scmp.ne.s32.totalorder %s97, %s98
      %p112 = scmp.eq.s32.totalorder %s15, 49
      %p113 = por %p111, %p112
      %p115 = scmp.ne.s32.totalorder %s98, %s114
      %p116 = scmp.eq.s32.totalorder %s15, 0
      %p117 = por %p115, %p116
      %s118 = ssub.s32 %s16, %s35
      %s119 = ssub.s32 %s17, %s31
      %s120 = sor.u32 %s118, %s119
      %p121 = scmp.eq.s32.totalorder %s120, 0
      %s123 = sadd.s32 %s122, 1
      %s124 = scalar_select %p121, %s122, %s123
      %p127 = pneg %p121
      %p128 = scmp.eq.s32.totalorder %s9, 49
      %p129 = por %p127, %p128
      %p130 = scmp.ne.s32.totalorder %s122, %s125
      %p131 = scmp.eq.s32.totalorder %s9, 0
      %p132 = por %p130, %p131
      %p133 = scmp.ne.s32.totalorder %s122, %s125
      %p134 = scmp.eq.s32.totalorder %s14, 49
      %p135 = por %p133, %p134
      %p136 = scmp.ne.s32.totalorder %s125, %s126
      %p137 = scmp.eq.s32.totalorder %s14, 0
      %p138 = por %p136, %p137
      %p139 = scmp.ne.s32.totalorder %s125, %s126
      %p140 = scmp.eq.s32.totalorder %s15, 49
      %p141 = por %p139, %p140
      %p143 = scmp.ne.s32.totalorder %s126, %s142
      %p144 = scmp.eq.s32.totalorder %s15, 0
      %p145 = por %p143, %p144
      %p146 = scmp.le.s32.totalorder 1, %s9
      %p147 = scmp.lt.s32.totalorder %s9, 51
      %p148 = pnand %p146, %p147
      %p149 = pneg %p148
      // Predicated region
      $region9: #{generator_forward.45} parent=5 // pred_check
        _
      $region10: #{generator_forward.45} parent=5 // pred_check_branch
        %151 = sbr.rel (%p148) target = $region12
      $region11: #{generator_forward.45} parent=5 // pred_region
        %s152 = ssub.s32 %s9, 1
        // Predicated region
        $region13: #{generator_forward.45} parent=11 // pred_check
          %p153 = pneg %p110
        $region14: #{generator_forward.45} parent=11 // pred_check_branch
          %155 = sbr.rel (%p153) target = $region16
        $region15: #{generator_forward.45} parent=11 // pred_region
          %p156 = scmp.lt.s32.totalorder %s20, 0
          %s157 = scalar_select %p156, %s20, 0
          %s158 = scalar_lea.vmem %s2, %s157
        $region16: #{generator_forward.45} parent=11 // pred_fallthru
          _
      $region12: #{generator_forward.45} parent=5 // pred_fallthru
        _
      %p159 = scmp.lt.s32.totalorder %s9, 50
      // Predicated region
      $region17: #{generator_forward.45} parent=5 // pred_check
        %p160 = pneg %p159
      $region18: #{generator_forward.45} parent=5 // pred_check_branch
        %162 = sbr.rel (%p160) target = $region20
      $region19: #{generator_forward.45} parent=5 // pred_region
        // Predicated region
        $region21: #{generator_forward.45} parent=19 // pred_check
          %p163 = pneg %p50
        $region22: #{generator_forward.45} parent=19 // pred_check_branch
          %165 = sbr.rel (%p163) target = $region24
        $region23: #{generator_forward.45} parent=19 // pred_region
          %s166 = sand.u32 %s40, 1
          %s167 = sand.u32 %s40, 1
          %s168 = smul.addr %s167, 128
          %s169 = scalar_lea.vmem [#allocation3], %s168
          %s170 = smul.u32 32, %s16
          %s171 = smul.addr %s170, 25
          %s172 = sadd.s32 %s18, %s171
          %s173 = smul.addr %s172, 4
          %s174 = scalar_lea.vmem %s0, %s173
          // Predicated region
          $region25: #{generator_forward.45} parent=23 // pred_check
            _
          $region26: #{generator_forward.45} parent=23 // pred_check_branch
            %176 = sbr.rel (0) target = $region28
          $region27: #{generator_forward.45} parent=23 // pred_region
            // Predicated region
            $region29: #{generator_forward.45} parent=27 // pred_check
              _
            $region30: #{generator_forward.45} parent=27 // pred_check_branch
              %178 = sbr.rel target = $region32
            $region31: #{generator_forward.45} parent=27 // pred_region
              // Predicated region
              $region44: #{generator_forward.45} parent=31 // pred_check
                _
              $region45: #{generator_forward.45} parent=31 // pred_check_branch
                %255 = sbr.rel (0) target = $region47
              $region46: #{generator_forward.45} parent=31 // pred_region
                loop: start=0, step=1, limit=1
                $region48: #{generator_forward.45} parent=46 // loop_pre_header
                  _
                $region49: #{generator_forward.45} parent=46 // loop_header
                  %s257 = sphi 0, %s261
                  %p258 = scmp.ge.s32.totalorder %s257, 1
                  %s262 = sphi %s174, %s174
                  %s263 = sphi %s169, %s169
                $region50: #{generator_forward.45} parent=46 // loop_header_branch
                  %260 = sbr.rel (%p258) target = $region54
                $region51: #{generator_forward.45} parent=46 // loop_body
                  _
                $region52: #{generator_forward.45} parent=46 // loop_footer
                  %s261 = sadd.s32 1, %s257
                $region53: #{generator_forward.45} parent=46 // loop_footer_branch
                  %256 = sbr.rel target = $region49
                $region54: #{generator_forward.45} parent=46 // loop_exit
                  _
                loop: start=0, step=1, limit=1
                $region55: #{generator_forward.45} parent=46 // loop_pre_header
                  _
                $region56: #{generator_forward.45} parent=46 // loop_header
                  %s266 = sphi 0, %s270
                  %p267 = scmp.ge.s32.totalorder %s266, 1
                  %s271 = sphi %s174, %s174
                  %s272 = sphi %s169, %s169
                $region57: #{generator_forward.45} parent=46 // loop_header_branch
                  %269 = sbr.rel (%p267) target = $region61
                $region58: #{generator_forward.45} parent=46 // loop_body
                  %v273 = vld [vmem:[%s271] sm:$0xf]
                  %274 = vst [vmem:[%s272] sm:$0xf] %v273
                  %v275 = vld [vmem:[%s271 + $0x64] sm:$0xf]
                  %276 = vst [vmem:[%s272 + $0x4] sm:$0xf] %v275
                  %v277 = vld [vmem:[%s271 + $0xc8] sm:$0xf]
                  %278 = vst [vmem:[%s272 + $0x8] sm:$0xf] %v277
                  %v279 = vld [vmem:[%s271 + $0x12c] sm:$0xf]
                  %280 = vst [vmem:[%s272 + $0xc] sm:$0xf] %v279
                  %v281 = vld [vmem:[%s271 + $0x190] sm:$0xf]
                  %282 = vst [vmem:[%s272 + $0x10] sm:$0xf] %v281
                  %v283 = vld [vmem:[%s271 + $0x1f4] sm:$0xf]
                  %284 = vst [vmem:[%s272 + $0x14] sm:$0xf] %v283
                  %v285 = vld [vmem:[%s271 + $0x258] sm:$0xf]
                  %286 = vst [vmem:[%s272 + $0x18] sm:$0xf] %v285
                  %v287 = vld [vmem:[%s271 + $0x2bc] sm:$0xf]
                  %288 = vst [vmem:[%s272 + $0x1c] sm:$0xf] %v287
                  %v289 = vld [vmem:[%s271 + $0x320] sm:$0xf]
                  %290 = vst [vmem:[%s272 + $0x20] sm:$0xf] %v289
                  %v291 = vld [vmem:[%s271 + $0x384] sm:$0xf]
                  %292 = vst [vmem:[%s272 + $0x24] sm:$0xf] %v291
                  %v293 = vld [vmem:[%s271 + $0x3e8] sm:$0xf]
                  %294 = vst [vmem:[%s272 + $0x28] sm:$0xf] %v293
                  %v295 = vld [vmem:[%s271 + $0x44c] sm:$0xf]
                  %296 = vst [vmem:[%s272 + $0x2c] sm:$0xf] %v295
                  %v297 = vld [vmem:[%s271 + $0x4b0] sm:$0xf]
                  %298 = vst [vmem:[%s272 + $0x30] sm:$0xf] %v297
                  %v299 = vld [vmem:[%s271 + $0x514] sm:$0xf]
                  %300 = vst [vmem:[%s272 + $0x34] sm:$0xf] %v299
                  %v301 = vld [vmem:[%s271 + $0x578] sm:$0xf]
                  %302 = vst [vmem:[%s272 + $0x38] sm:$0xf] %v301
                  %v303 = vld [vmem:[%s271 + $0x5dc] sm:$0xf]
                  %304 = vst [vmem:[%s272 + $0x3c] sm:$0xf] %v303
                  %v305 = vld [vmem:[%s271 + $0x640] sm:$0xf]
                  %306 = vst [vmem:[%s272 + $0x40] sm:$0xf] %v305
                  %v307 = vld [vmem:[%s271 + $0x6a4] sm:$0xf]
                  %308 = vst [vmem:[%s272 + $0x44] sm:$0xf] %v307
                  %v309 = vld [vmem:[%s271 + $0x708] sm:$0xf]
                  %310 = vst [vmem:[%s272 + $0x48] sm:$0xf] %v309
                  %v311 = vld [vmem:[%s271 + $0x76c] sm:$0xf]
                  %312 = vst [vmem:[%s272 + $0x4c] sm:$0xf] %v311
                  %v313 = vld [vmem:[%s271 + $0x7d0] sm:$0xf]
                  %314 = vst [vmem:[%s272 + $0x50] sm:$0xf] %v313
                  %v315 = vld [vmem:[%s271 + $0x834] sm:$0xf]
                  %316 = vst [vmem:[%s272 + $0x54] sm:$0xf] %v315
                  %v317 = vld [vmem:[%s271 + $0x898] sm:$0xf]
                  %318 = vst [vmem:[%s272 + $0x58] sm:$0xf] %v317
                  %v319 = vld [vmem:[%s271 + $0x8fc] sm:$0xf]
                  %320 = vst [vmem:[%s272 + $0x5c] sm:$0xf] %v319
                  %v321 = vld [vmem:[%s271 + $0x960] sm:$0xf]
                  %322 = vst [vmem:[%s272 + $0x60] sm:$0xf] %v321
                  %v323 = vld [vmem:[%s271 + $0x9c4] sm:$0xf]
                  %324 = vst [vmem:[%s272 + $0x64] sm:$0xf] %v323
                  %v325 = vld [vmem:[%s271 + $0xa28] sm:$0xf]
                  %326 = vst [vmem:[%s272 + $0x68] sm:$0xf] %v325
                  %v327 = vld [vmem:[%s271 + $0xa8c] sm:$0xf]
                  %328 = vst [vmem:[%s272 + $0x6c] sm:$0xf] %v327
                  %v329 = vld [vmem:[%s271 + $0xaf0] sm:$0xf]
                  %330 = vst [vmem:[%s272 + $0x70] sm:$0xf] %v329
                  %v331 = vld [vmem:[%s271 + $0xb54] sm:$0xf]
                  %332 = vst [vmem:[%s272 + $0x74] sm:$0xf] %v331
                  %v333 = vld [vmem:[%s271 + $0xbb8] sm:$0xf]
                  %334 = vst [vmem:[%s272 + $0x78] sm:$0xf] %v333
                  %v335 = vld [vmem:[%s271 + $0xc1c] sm:$0xf]
                  %336 = vst [vmem:[%s272 + $0x7c] sm:$0xf] %v335
                $region59: #{generator_forward.45} parent=46 // loop_footer
                  %s270 = sadd.s32 1, %s266
                $region60: #{generator_forward.45} parent=46 // loop_footer_branch
                  %265 = sbr.rel target = $region56
                $region61: #{generator_forward.45} parent=46 // loop_exit
                  _
              $region47: #{generator_forward.45} parent=31 // pred_fallthru
                _
            $region32: #{generator_forward.45} parent=27 // pred_fallthru
              _
            // Predicated region
            $region33: #{generator_forward.45} parent=27 // pred_check
              _
            $region34: #{generator_forward.45} parent=27 // pred_check_branch
              %180 = sbr.rel (0) target = $region36
            $region35: #{generator_forward.45} parent=27 // pred_region
              loop: start=0, step=1, limit=1
              $region37: #{generator_forward.45} parent=35 // loop_pre_header
                _
              $region38: #{generator_forward.45} parent=35 // loop_header
                %s183 = sphi 0, %s187
                %p184 = scmp.ge.s32.totalorder %s183, 1
                %s188 = sphi %s174, %s174
                %s189 = sphi %s169, %s169
              $region39: #{generator_forward.45} parent=35 // loop_header_branch
                %186 = sbr.rel (%p184) target = $region43
              $region40: #{generator_forward.45} parent=35 // loop_body
                %v190 = vld [vmem:[%s188] sm:$0xf]
                %191 = vst [vmem:[%s189] sm:$0xf] %v190
                %v192 = vld [vmem:[%s188 + $0x64] sm:$0xf]
                %193 = vst [vmem:[%s189 + $0x4] sm:$0xf] %v192
                %v194 = vld [vmem:[%s188 + $0xc8] sm:$0xf]
                %195 = vst [vmem:[%s189 + $0x8] sm:$0xf] %v194
                %v196 = vld [vmem:[%s188 + $0x12c] sm:$0xf]
                %197 = vst [vmem:[%s189 + $0xc] sm:$0xf] %v196
                %v198 = vld [vmem:[%s188 + $0x190] sm:$0xf]
                %199 = vst [vmem:[%s189 + $0x10] sm:$0xf] %v198
                %v200 = vld [vmem:[%s188 + $0x1f4] sm:$0xf]
                %201 = vst [vmem:[%s189 + $0x14] sm:$0xf] %v200
                %v202 = vld [vmem:[%s188 + $0x258] sm:$0xf]
                %203 = vst [vmem:[%s189 + $0x18] sm:$0xf] %v202
                %v204 = vld [vmem:[%s188 + $0x2bc] sm:$0xf]
                %205 = vst [vmem:[%s189 + $0x1c] sm:$0xf] %v204
                %v206 = vld [vmem:[%s188 + $0x320] sm:$0xf]
                %207 = vst [vmem:[%s189 + $0x20] sm:$0xf] %v206
                %v208 = vld [vmem:[%s188 + $0x384] sm:$0xf]
                %209 = vst [vmem:[%s189 + $0x24] sm:$0xf] %v208
                %v210 = vld [vmem:[%s188 + $0x3e8] sm:$0xf]
                %211 = vst [vmem:[%s189 + $0x28] sm:$0xf] %v210
                %v212 = vld [vmem:[%s188 + $0x44c] sm:$0xf]
                %213 = vst [vmem:[%s189 + $0x2c] sm:$0xf] %v212
                %v214 = vld [vmem:[%s188 + $0x4b0] sm:$0xf]
                %215 = vst [vmem:[%s189 + $0x30] sm:$0xf] %v214
                %v216 = vld [vmem:[%s188 + $0x514] sm:$0xf]
                %217 = vst [vmem:[%s189 + $0x34] sm:$0xf] %v216
                %v218 = vld [vmem:[%s188 + $0x578] sm:$0xf]
                %219 = vst [vmem:[%s189 + $0x38] sm:$0xf] %v218
                %v220 = vld [vmem:[%s188 + $0x5dc] sm:$0xf]
                %221 = vst [vmem:[%s189 + $0x3c] sm:$0xf] %v220
                %v222 = vld [vmem:[%s188 + $0x640] sm:$0xf]
                %223 = vst [vmem:[%s189 + $0x40] sm:$0xf] %v222
                %v224 = vld [vmem:[%s188 + $0x6a4] sm:$0xf]
                %225 = vst [vmem:[%s189 + $0x44] sm:$0xf] %v224
                %v226 = vld [vmem:[%s188 + $0x708] sm:$0xf]
                %227 = vst [vmem:[%s189 + $0x48] sm:$0xf] %v226
                %v228 = vld [vmem:[%s188 + $0x76c] sm:$0xf]
                %229 = vst [vmem:[%s189 + $0x4c] sm:$0xf] %v228
                %v230 = vld [vmem:[%s188 + $0x7d0] sm:$0xf]
                %231 = vst [vmem:[%s189 + $0x50] sm:$0xf] %v230
                %v232 = vld [vmem:[%s188 + $0x834] sm:$0xf]
                %233 = vst [vmem:[%s189 + $0x54] sm:$0xf] %v232
                %v234 = vld [vmem:[%s188 + $0x898] sm:$0xf]
                %235 = vst [vmem:[%s189 + $0x58] sm:$0xf] %v234
                %v236 = vld [vmem:[%s188 + $0x8fc] sm:$0xf]
                %237 = vst [vmem:[%s189 + $0x5c] sm:$0xf] %v236
                %v238 = vld [vmem:[%s188 + $0x960] sm:$0xf]
                %239 = vst [vmem:[%s189 + $0x60] sm:$0xf] %v238
                %v240 = vld [vmem:[%s188 + $0x9c4] sm:$0xf]
                %241 = vst [vmem:[%s189 + $0x64] sm:$0xf] %v240
                %v242 = vld [vmem:[%s188 + $0xa28] sm:$0xf]
                %243 = vst [vmem:[%s189 + $0x68] sm:$0xf] %v242
                %v244 = vld [vmem:[%s188 + $0xa8c] sm:$0xf]
                %245 = vst [vmem:[%s189 + $0x6c] sm:$0xf] %v244
                %v246 = vld [vmem:[%s188 + $0xaf0] sm:$0xf]
                %247 = vst [vmem:[%s189 + $0x70] sm:$0xf] %v246
                %v248 = vld [vmem:[%s188 + $0xb54] sm:$0xf]
                %249 = vst [vmem:[%s189 + $0x74] sm:$0xf] %v248
                %v250 = vld [vmem:[%s188 + $0xbb8] sm:$0xf]
                %251 = vst [vmem:[%s189 + $0x78] sm:$0xf] %v250
                %v252 = vld [vmem:[%s188 + $0xc1c] sm:$0xf]
                %253 = vst [vmem:[%s189 + $0x7c] sm:$0xf] %v252
              $region41: #{generator_forward.45} parent=35 // loop_footer
                %s187 = sadd.s32 1, %s183
              $region42: #{generator_forward.45} parent=35 // loop_footer_branch
                %182 = sbr.rel target = $region38
              $region43: #{generator_forward.45} parent=35 // loop_exit
                _
            $region36: #{generator_forward.45} parent=27 // pred_fallthru
              _
          $region28: #{generator_forward.45} parent=23 // pred_fallthru
            _
          %337 = vnop
        $region24: #{generator_forward.45} parent=19 // pred_fallthru
          _
        // Predicated region
        $region62: #{generator_forward.45} parent=19 // pred_check
          %p338 = pneg %p78
        $region63: #{generator_forward.45} parent=19 // pred_check_branch
          %340 = sbr.rel (%p338) target = $region65
        $region64: #{generator_forward.45} parent=19 // pred_region
          %s341 = smul.u32 16, %s18
          %p342 = scmp.lt.s32.totalorder %s341, 399
          %s343 = scalar_select %p342, %s341, 399
          %p344 = scmp.lt.s32.totalorder %s17, 0
          %s345 = scalar_select %p344, %s17, 0
          %s346 = sadd.s32 %s345, %s343
          %s347 = smul.addr %s346, 4
          %s348 = scalar_lea.vmem %s1, %s347
          %s349 = smul.u32 16, %s18
        $region65: #{generator_forward.45} parent=19 // pred_fallthru
          _
      $region20: #{generator_forward.45} parent=5 // pred_fallthru
        _
      %p350 = scmp.le.s32.totalorder 1, %s9
      %p351 = scmp.lt.s32.totalorder %s9, 51
      %p352 = pnand %p350, %p351
      %p353 = pneg %p352
      // Predicated region
      $region66: #{generator_forward.45} parent=5 // pred_check
        _
      $region67: #{generator_forward.45} parent=5 // pred_check_branch
        %355 = sbr.rel (%p352) target = $region69
      $region68: #{generator_forward.45} parent=5 // pred_region
        %s356 = ssub.s32 %s9, 1
        %s357 = sand.u32 %s43, 1
        %s358 = sand.u32 %s43, 1
        %s359 = smul.addr %s358, 128
        %s360 = scalar_lea.vmem [#allocation3], %s359
        // Predicated region
        $region70: #{generator_forward.45} parent=68 // pred_check
          %p361 = pneg %p56
        $region71: #{generator_forward.45} parent=68 // pred_check_branch
          %363 = sbr.rel (%p361) target = $region73
        $region72: #{generator_forward.45} parent=68 // pred_region
          _
        $region73: #{generator_forward.45} parent=68 // pred_fallthru
          _
        %s364 = sand.u32 %s43, 1
        %s365 = sand.u32 %s43, 1
        %s366 = smul.addr %s365, 128
        %s367 = scalar_lea.vmem [#allocation3], %s366
        %p368 = pneg %p56
        %p369 = pneg %p53
        %s370 = smul.u32 16, %s21
        %p371 = scmp.lt.s32.totalorder %s370, 399
        %s372 = scalar_select %p371, %s370, 399
        %p373 = scmp.lt.s32.totalorder %s20, 0
        %s374 = scalar_select %p373, %s20, 0
        %s375 = sadd.s32 %s374, %s372
        %s376 = smul.addr %s375, 4
        %s377 = scalar_lea.vmem %s1, %s376
        %p378 = pneg %p84
        %p379 = pneg %p81
        %p380 = scmp.lt.s32.totalorder %s20, 0
        %s381 = scalar_select %p380, %s20, 0
        %s382 = scalar_lea.vmem %s2, %s381
        %p383 = pneg %p110
        %p384 = pneg %p107
        %p385 = pneg %p138
        %p386 = pneg %p135
        %s387 = smul.u32 32, %s19
        %p388 = scmp.lt.s32.totalorder %s387, 63
        %s389 = scalar_select %p388, %s387, 63
        %p390 = scmp.lt.s32.totalorder %s20, 0
        %s391 = scalar_select %p390, %s20, 0
        %s392 = sadd.s32 %s391, %s389
        %s393 = smul.addr %s392, 8
        %s394 = scalar_lea.vmem %s3, %s393
        %s395 = smul.u32 32, %s19
        %s396 = smul.u32 16, %s21
        %p397 = scmp.lt.s32.totalorder %s396, 399
        %s398 = scalar_select %p397, %s396, 399
        %p399 = scmp.lt.s32.totalorder %s20, 0
        %s400 = scalar_select %p399, %s20, 0
        %s401 = sadd.s32 %s400, %s398
        %s402 = smul.addr %s401, 4
        %s403 = scalar_lea.vmem %s1, %s402
        %s404 = smul.u32 16, %s21
        %p405 = scmp.lt.s32.totalorder %s20, 0
        %s406 = scalar_select %p405, %s20, 0
        %s407 = scalar_lea.vmem %s2, %s406
        %s408 = smul.u32 32, %s19
        %p409 = scmp.lt.s32.totalorder %s408, 63
        %s410 = scalar_select %p409, %s408, 63
        %p411 = scmp.lt.s32.totalorder %s20, 0
        %s412 = scalar_select %p411, %s20, 0
        %s413 = sadd.s32 %s412, %s410
        %s414 = smul.addr %s413, 8
        %s415 = scalar_lea.vmem %s3, %s414
        %s416 = smul.u32 32, %s19
        %p418 = scmp.eq.s32.totalorder %s21, 0
        // Predicated region
        $region74: #{generator_forward.45} parent=68 // pred_check
          %p419 = pneg %p418
        $region75: #{generator_forward.45} parent=68 // pred_check_branch
          %421 = sbr.rel (%p419) target = $region77
        $region76: #{generator_forward.45} parent=68 // pred_region
          %422 = vst [vmem:[#allocation2] sm:$0xff] 0.0
          %423 = vst [vmem:[#allocation2 + $0x8] sm:$0xff] 0.0
          %424 = vst [vmem:[#allocation2 + $0x10] sm:$0xff] 0.0
          %425 = vst [vmem:[#allocation2 + $0x18] sm:$0xff] 0.0
          %426 = vst [vmem:[#allocation2 + $0x20] sm:$0xff] 0.0
          %427 = vst [vmem:[#allocation2 + $0x28] sm:$0xff] 0.0
          %428 = vst [vmem:[#allocation2 + $0x30] sm:$0xff] 0.0
          %429 = vst [vmem:[#allocation2 + $0x38] sm:$0xff] 0.0
          %430 = vst [vmem:[#allocation2 + $0x40] sm:$0xff] 0.0
          %431 = vst [vmem:[#allocation2 + $0x48] sm:$0xff] 0.0
          %432 = vst [vmem:[#allocation2 + $0x50] sm:$0xff] 0.0
          %433 = vst [vmem:[#allocation2 + $0x58] sm:$0xff] 0.0
          %434 = vst [vmem:[#allocation2 + $0x60] sm:$0xff] 0.0
          %435 = vst [vmem:[#allocation2 + $0x68] sm:$0xff] 0.0
          %436 = vst [vmem:[#allocation2 + $0x70] sm:$0xff] 0.0
          %437 = vst [vmem:[#allocation2 + $0x78] sm:$0xff] 0.0
          %438 = vst [vmem:[#allocation2 + $0x80] sm:$0xff] 0.0
          %439 = vst [vmem:[#allocation2 + $0x88] sm:$0xff] 0.0
          %440 = vst [vmem:[#allocation2 + $0x90] sm:$0xff] 0.0
          %441 = vst [vmem:[#allocation2 + $0x98] sm:$0xff] 0.0
          %442 = vst [vmem:[#allocation2 + $0xa0] sm:$0xff] 0.0
          %443 = vst [vmem:[#allocation2 + $0xa8] sm:$0xff] 0.0
          %444 = vst [vmem:[#allocation2 + $0xb0] sm:$0xff] 0.0
          %445 = vst [vmem:[#allocation2 + $0xb8] sm:$0xff] 0.0
          %446 = vst [vmem:[#allocation2 + $0xc0] sm:$0xff] 0.0
          %447 = vst [vmem:[#allocation2 + $0xc8] sm:$0xff] 0.0
          %448 = vst [vmem:[#allocation2 + $0xd0] sm:$0xff] 0.0
          %449 = vst [vmem:[#allocation2 + $0xd8] sm:$0xff] 0.0
          %450 = vst [vmem:[#allocation2 + $0xe0] sm:$0xff] 0.0
          %451 = vst [vmem:[#allocation2 + $0xe8] sm:$0xff] 0.0
          %452 = vst [vmem:[#allocation2 + $0xf0] sm:$0xff] 0.0
          %453 = vst [vmem:[#allocation2 + $0xf8] sm:$0xff] 0.0
        $region77: #{generator_forward.45} parent=68 // pred_fallthru
          _
        %v454 = vld [vmem:[#allocation2] sm:$0xff]
        %v455 = vld [vmem:[#allocation2 + $0x8] sm:$0xff]
        %v456 = vld [vmem:[#allocation2 + $0x10] sm:$0xff]
        %v457 = vld [vmem:[#allocation2 + $0x18] sm:$0xff]
        %v458 = vld [vmem:[#allocation2 + $0x20] sm:$0xff]
        %v459 = vld [vmem:[#allocation2 + $0x28] sm:$0xff]
        %v460 = vld [vmem:[#allocation2 + $0x30] sm:$0xff]
        %v461 = vld [vmem:[#allocation2 + $0x38] sm:$0xff]
        %v462 = vld [vmem:[#allocation2 + $0x40] sm:$0xff]
        %v463 = vld [vmem:[#allocation2 + $0x48] sm:$0xff]
        %v464 = vld [vmem:[#allocation2 + $0x50] sm:$0xff]
        %v465 = vld [vmem:[#allocation2 + $0x58] sm:$0xff]
        %v466 = vld [vmem:[#allocation2 + $0x60] sm:$0xff]
        %v467 = vld [vmem:[#allocation2 + $0x68] sm:$0xff]
        %v468 = vld [vmem:[#allocation2 + $0x70] sm:$0xff]
        %v469 = vld [vmem:[#allocation2 + $0x78] sm:$0xff]
        %v470 = vld [vmem:[#allocation2 + $0x80] sm:$0xff]
        %v471 = vld [vmem:[#allocation2 + $0x88] sm:$0xff]
        %v472 = vld [vmem:[#allocation2 + $0x90] sm:$0xff]
        %v473 = vld [vmem:[#allocation2 + $0x98] sm:$0xff]
        %v474 = vld [vmem:[#allocation2 + $0xa0] sm:$0xff]
        %v475 = vld [vmem:[#allocation2 + $0xa8] sm:$0xff]
        %v476 = vld [vmem:[#allocation2 + $0xb0] sm:$0xff]
        %v477 = vld [vmem:[#allocation2 + $0xb8] sm:$0xff]
        %v478 = vld [vmem:[#allocation2 + $0xc0] sm:$0xff]
        %v479 = vld [vmem:[#allocation2 + $0xc8] sm:$0xff]
        %v480 = vld [vmem:[#allocation2 + $0xd0] sm:$0xff]
        %v481 = vld [vmem:[#allocation2 + $0xd8] sm:$0xff]
        %v482 = vld [vmem:[#allocation2 + $0xe0] sm:$0xff]
        %v483 = vld [vmem:[#allocation2 + $0xe8] sm:$0xff]
        %v484 = vld [vmem:[#allocation2 + $0xf0] sm:$0xff]
        %v485 = vld [vmem:[#allocation2 + $0xf8] sm:$0xff]
        %v486 = vld [vmem:[%s360] sm:$0xf]
        %v487 = vld [vmem:[%s360 + $0x4] sm:$0xf]
        %v488 = vld [vmem:[%s360 + $0x8] sm:$0xf]
        %v489 = vld [vmem:[%s360 + $0xc] sm:$0xf]
        %v490 = vld [vmem:[%s360 + $0x10] sm:$0xf]
        %v491 = vld [vmem:[%s360 + $0x14] sm:$0xf]
        %v492 = vld [vmem:[%s360 + $0x18] sm:$0xf]
        %v493 = vld [vmem:[%s360 + $0x1c] sm:$0xf]
        %v494 = vld [vmem:[%s360 + $0x20] sm:$0xf]
        %v495 = vld [vmem:[%s360 + $0x24] sm:$0xf]
        %v496 = vld [vmem:[%s360 + $0x28] sm:$0xf]
        %v497 = vld [vmem:[%s360 + $0x2c] sm:$0xf]
        %v498 = vld [vmem:[%s360 + $0x30] sm:$0xf]
        %v499 = vld [vmem:[%s360 + $0x34] sm:$0xf]
        %v500 = vld [vmem:[%s360 + $0x38] sm:$0xf]
        %v501 = vld [vmem:[%s360 + $0x3c] sm:$0xf]
        %v502 = vld [vmem:[%s360 + $0x40] sm:$0xf]
        %v503 = vld [vmem:[%s360 + $0x44] sm:$0xf]
        %v504 = vld [vmem:[%s360 + $0x48] sm:$0xf]
        %v505 = vld [vmem:[%s360 + $0x4c] sm:$0xf]
        %v506 = vld [vmem:[%s360 + $0x50] sm:$0xf]
        %v507 = vld [vmem:[%s360 + $0x54] sm:$0xf]
        %v508 = vld [vmem:[%s360 + $0x58] sm:$0xf]
        %v509 = vld [vmem:[%s360 + $0x5c] sm:$0xf]
        %v510 = vld [vmem:[%s360 + $0x60] sm:$0xf]
        %v511 = vld [vmem:[%s360 + $0x64] sm:$0xf]
        %v512 = vld [vmem:[%s360 + $0x68] sm:$0xf]
        %v513 = vld [vmem:[%s360 + $0x6c] sm:$0xf]
        %v514 = vld [vmem:[%s360 + $0x70] sm:$0xf]
        %v515 = vld [vmem:[%s360 + $0x74] sm:$0xf]
        %v516 = vld [vmem:[%s360 + $0x78] sm:$0xf]
        %v517 = vld [vmem:[%s360 + $0x7c] sm:$0xf]
        %v518 = vld [vmem:[%s403] sm:$0xf]
        %v519 = vld [vmem:[%s403 + $0x4] sm:$0xf]
        %v520 = vld [vmem:[%s403 + $0x8] sm:$0xf]
        %v521 = vld [vmem:[%s403 + $0xc] sm:$0xf]
        %v522 = vld [vmem:[%s403 + $0x10] sm:$0xf]
        %v523 = vld [vmem:[%s403 + $0x14] sm:$0xf]
        %v524 = vld [vmem:[%s403 + $0x18] sm:$0xf]
        %v525 = vld [vmem:[%s403 + $0x1c] sm:$0xf]
        %v526 = vld [vmem:[%s403 + $0x20] sm:$0xf]
        %v527 = vld [vmem:[%s403 + $0x24] sm:$0xf]
        %v528 = vld [vmem:[%s403 + $0x28] sm:$0xf]
        %v529 = vld [vmem:[%s403 + $0x2c] sm:$0xf]
        %v530 = vld [vmem:[%s403 + $0x30] sm:$0xf]
        %v531 = vld [vmem:[%s403 + $0x34] sm:$0xf]
        %v532 = vld [vmem:[%s403 + $0x38] sm:$0xf]
        %v533 = vld [vmem:[%s403 + $0x3c] sm:$0xf]
        %v566 = vunpack.c.l.b16 %v486
        %v567 = vunpack.c.l.b16 %v487
        %v568 = vunpack.c.l.b16 %v488
        %v569 = vunpack.c.l.b16 %v489
        %v570 = vunpack.c.l.b16 %v490
        %v571 = vunpack.c.l.b16 %v491
        %v572 = vunpack.c.l.b16 %v492
        %v573 = vunpack.c.l.b16 %v493
        %v574 = vunpack.c.l.b16 %v494
        %v575 = vunpack.c.l.b16 %v495
        %v576 = vunpack.c.l.b16 %v496
        %v577 = vunpack.c.l.b16 %v497
        %v578 = vunpack.c.l.b16 %v498
        %v579 = vunpack.c.l.b16 %v499
        %v580 = vunpack.c.l.b16 %v500
        %v581 = vunpack.c.l.b16 %v501
        %v582 = vunpack.c.l.b16 %v502
        %v583 = vunpack.c.l.b16 %v503
        %v584 = vunpack.c.l.b16 %v504
        %v585 = vunpack.c.l.b16 %v505
        %v586 = vunpack.c.l.b16 %v506
        %v587 = vunpack.c.l.b16 %v507
        %v588 = vunpack.c.l.b16 %v508
        %v589 = vunpack.c.l.b16 %v509
        %v590 = vunpack.c.l.b16 %v510
        %v591 = vunpack.c.l.b16 %v511
        %v592 = vunpack.c.l.b16 %v512
        %v593 = vunpack.c.l.b16 %v513
        %v594 = vunpack.c.l.b16 %v514
        %v595 = vunpack.c.l.b16 %v515
        %v596 = vunpack.c.l.b16 %v516
        %v597 = vunpack.c.l.b16 %v517
        %v598 = vpack.c.b16 %v567, %v566
        %v599 = vpack.c.b16 %v569, %v568
        %v600 = vpack.c.b16 %v571, %v570
        %v601 = vpack.c.b16 %v573, %v572
        %v602 = vpack.c.b16 %v575, %v574
        %v603 = vpack.c.b16 %v577, %v576
        %v604 = vpack.c.b16 %v579, %v578
        %v605 = vpack.c.b16 %v581, %v580
        %v606 = vpack.c.b16 %v583, %v582
        %v607 = vpack.c.b16 %v585, %v584
        %v608 = vpack.c.b16 %v587, %v586
        %v609 = vpack.c.b16 %v589, %v588
        %v610 = vpack.c.b16 %v591, %v590
        %v611 = vpack.c.b16 %v593, %v592
        %v612 = vpack.c.b16 %v595, %v594
        %v613 = vpack.c.b16 %v597, %v596
        %v646 = vunpack.c.l.b16 %v518
        %v647 = vunpack.c.l.b16 %v519
        %v648 = vunpack.c.l.b16 %v520
        %v649 = vunpack.c.l.b16 %v521
        %v650 = vunpack.c.l.b16 %v522
        %v651 = vunpack.c.l.b16 %v523
        %v652 = vunpack.c.l.b16 %v524
        %v653 = vunpack.c.l.b16 %v525
        %v654 = vunpack.c.l.b16 %v526
        %v655 = vunpack.c.l.b16 %v527
        %v656 = vunpack.c.l.b16 %v528
        %v657 = vunpack.c.l.b16 %v529
        %v658 = vunpack.c.l.b16 %v530
        %v659 = vunpack.c.l.b16 %v531
        %v660 = vunpack.c.l.b16 %v532
        %v661 = vunpack.c.l.b16 %v533
        %v662 = vpack.c.b16 %v647, %v646
        %v663 = vpack.c.b16 %v649, %v648
        %v664 = vpack.c.b16 %v651, %v650
        %v665 = vpack.c.b16 %v653, %v652
        %v666 = vpack.c.b16 %v655, %v654
        %v667 = vpack.c.b16 %v657, %v656
        %v668 = vpack.c.b16 %v659, %v658
        %v669 = vpack.c.b16 %v661, %v660
        %678 = vmatprep.subr.bf16.mxu0 0
        %679 = vmatpush1.bf16.msra.mxu0 %v662
        %680 = vmatprep.subr.bf16.mxu0 0
        %681 = vmatpush1.bf16.msra.mxu0 %v663
        %682 = vmatprep.subr.bf16.mxu0 0
        %683 = vmatpush1.bf16.msra.mxu0 %v664
        %684 = vmatprep.subr.bf16.mxu0 0
        %685 = vmatpush1.bf16.msra.mxu0 %v665
        %686 = vmatprep.subr.bf16.mxu0 0
        %687 = vmatpush1.bf16.msra.mxu0 %v666
        %688 = vmatprep.subr.bf16.mxu0 0
        %689 = vmatpush1.bf16.msra.mxu0 %v667
        %690 = vmatprep.subr.bf16.mxu0 0
        %691 = vmatpush1.bf16.msra.mxu0 %v668
        %692 = vmatprep.subr.bf16.mxu0 0
        %693 = vmatpush1.bf16.msra.mxu0 %v669
        %694 = vmatprep.subr.bf16.mxu0 0
        %695 = vmatpush1.bf16.msra.mxu0 0
        %696 = vmatprep.subr.bf16.mxu0 0
        %697 = vmatpush1.bf16.msra.mxu0 0
        %698 = vmatprep.subr.bf16.mxu0 0
        %699 = vmatpush1.bf16.msra.mxu0 0
        %700 = vmatprep.subr.bf16.mxu0 0
        %701 = vmatpush1.bf16.msra.mxu0 0
        %702 = vmatprep.subr.bf16.mxu0 0
        %703 = vmatpush1.bf16.msra.mxu0 0
        %704 = vmatprep.subr.bf16.mxu0 0
        %705 = vmatpush1.bf16.msra.mxu0 0
        %706 = vmatprep.subr.bf16.mxu0 0
        %707 = vmatpush1.bf16.msra.mxu0 0
        %708 = vmatprep.subr.bf16.mxu0 0
        %709 = vmatpush1.bf16.msra.mxu0 0
        %710 = vmatprep.mubr.bf16.mxu0 0
        %711 = vmatmul.mubr.bf16.gmra.mrb[0].mxu0 %v598
        %v712 = vpop.f32.mrb[0].mxu0
        %v713 = vadd.f32 0.0, %v712
        %v714 = vpop.f32.mrb[0].mxu0
        %v715 = vpop.f32.mrb[0].mxu0
        %v716 = vadd.f32 0.0, %v715
        %v717 = vpop.f32.mrb[0].mxu0
        %718 = vmatprep.mubr.bf16.mxu0 0
        %719 = vmatmul.mubr.bf16.gmra.mrb[0].mxu0 %v599
        %v720 = vpop.f32.mrb[0].mxu0
        %v721 = vadd.f32 0.0, %v720
        %v722 = vpop.f32.mrb[0].mxu0
        %v723 = vpop.f32.mrb[0].mxu0
        %v724 = vadd.f32 0.0, %v723
        %v725 = vpop.f32.mrb[0].mxu0
        %726 = vmatprep.mubr.bf16.mxu0 0
        %727 = vmatmul.mubr.bf16.gmra.mrb[0].mxu0 %v600
        %v728 = vpop.f32.mrb[0].mxu0
        %v729 = vadd.f32 0.0, %v728
        %v730 = vpop.f32.mrb[0].mxu0
        %v731 = vpop.f32.mrb[0].mxu0
        %v732 = vadd.f32 0.0, %v731
        %v733 = vpop.f32.mrb[0].mxu0
        %734 = vmatprep.mubr.bf16.mxu0 0
        %735 = vmatmul.mubr.bf16.gmra.mrb[0].mxu0 %v601
        %v736 = vpop.f32.mrb[0].mxu0
        %v737 = vadd.f32 0.0, %v736
        %v738 = vpop.f32.mrb[0].mxu0
        %v739 = vpop.f32.mrb[0].mxu0
        %v740 = vadd.f32 0.0, %v739
        %v741 = vpop.f32.mrb[0].mxu0
        %742 = vmatprep.mubr.bf16.mxu0 0
        %743 = vmatmul.mubr.bf16.gmra.mrb[0].mxu0 %v602
        %v744 = vpop.f32.mrb[0].mxu0
        %v745 = vadd.f32 0.0, %v744
        %v746 = vpop.f32.mrb[0].mxu0
        %v747 = vpop.f32.mrb[0].mxu0
        %v748 = vadd.f32 0.0, %v747
        %v749 = vpop.f32.mrb[0].mxu0
        %750 = vmatprep.mubr.bf16.mxu0 0
        %751 = vmatmul.mubr.bf16.gmra.mrb[0].mxu0 %v603
        %v752 = vpop.f32.mrb[0].mxu0
        %v753 = vadd.f32 0.0, %v752
        %v754 = vpop.f32.mrb[0].mxu0
        %v755 = vpop.f32.mrb[0].mxu0
        %v756 = vadd.f32 0.0, %v755
        %v757 = vpop.f32.mrb[0].mxu0
        %758 = vmatprep.mubr.bf16.mxu0 0
        %759 = vmatmul.mubr.bf16.gmra.mrb[0].mxu0 %v604
        %v760 = vpop.f32.mrb[0].mxu0
        %v761 = vadd.f32 0.0, %v760
        %v762 = vpop.f32.mrb[0].mxu0
        %v763 = vpop.f32.mrb[0].mxu0
        %v764 = vadd.f32 0.0, %v763
        %v765 = vpop.f32.mrb[0].mxu0
        %766 = vmatprep.mubr.bf16.mxu0 0
        %767 = vmatmul.mubr.bf16.gmra.mrb[0].mxu0 %v605
        %v768 = vpop.f32.mrb[0].mxu0
        %v769 = vadd.f32 0.0, %v768
        %v770 = vpop.f32.mrb[0].mxu0
        %v771 = vpop.f32.mrb[0].mxu0
        %v772 = vadd.f32 0.0, %v771
        %v773 = vpop.f32.mrb[0].mxu0
        %774 = vmatprep.mubr.bf16.mxu0 0
        %775 = vmatmul.mubr.bf16.gmra.mrb[0].mxu0 %v606
        %v776 = vpop.f32.mrb[0].mxu0
        %v777 = vadd.f32 0.0, %v776
        %v778 = vpop.f32.mrb[0].mxu0
        %v779 = vpop.f32.mrb[0].mxu0
        %v780 = vadd.f32 0.0, %v779
        %v781 = vpop.f32.mrb[0].mxu0
        %782 = vmatprep.mubr.bf16.mxu0 0
        %783 = vmatmul.mubr.bf16.gmra.mrb[0].mxu0 %v607
        %v784 = vpop.f32.mrb[0].mxu0
        %v785 = vadd.f32 0.0, %v784
        %v786 = vpop.f32.mrb[0].mxu0
        %v787 = vpop.f32.mrb[0].mxu0
        %v788 = vadd.f32 0.0, %v787
        %v789 = vpop.f32.mrb[0].mxu0
        %790 = vmatprep.mubr.bf16.mxu0 0
        %791 = vmatmul.mubr.bf16.gmra.mrb[0].mxu0 %v608
        %v792 = vpop.f32.mrb[0].mxu0
        %v793 = vadd.f32 0.0, %v792
        %v794 = vpop.f32.mrb[0].mxu0
        %v795 = vpop.f32.mrb[0].mxu0
        %v796 = vadd.f32 0.0, %v795
        %v797 = vpop.f32.mrb[0].mxu0
        %798 = vmatprep.mubr.bf16.mxu0 0
        %799 = vmatmul.mubr.bf16.gmra.mrb[0].mxu0 %v609
        %v800 = vpop.f32.mrb[0].mxu0
        %v801 = vadd.f32 0.0, %v800
        %v802 = vpop.f32.mrb[0].mxu0
        %v803 = vpop.f32.mrb[0].mxu0
        %v804 = vadd.f32 0.0, %v803
        %v805 = vpop.f32.mrb[0].mxu0
        %806 = vmatprep.mubr.bf16.mxu0 0
        %807 = vmatmul.mubr.bf16.gmra.mrb[0].mxu0 %v610
        %v808 = vpop.f32.mrb[0].mxu0
        %v809 = vadd.f32 0.0, %v808
        %v810 = vpop.f32.mrb[0].mxu0
        %v811 = vpop.f32.mrb[0].mxu0
        %v812 = vadd.f32 0.0, %v811
        %v813 = vpop.f32.mrb[0].mxu0
        %814 = vmatprep.mubr.bf16.mxu0 0
        %815 = vmatmul.mubr.bf16.gmra.mrb[0].mxu0 %v611
        %v816 = vpop.f32.mrb[0].mxu0
        %v817 = vadd.f32 0.0, %v816
        %v818 = vpop.f32.mrb[0].mxu0
        %v819 = vpop.f32.mrb[0].mxu0
        %v820 = vadd.f32 0.0, %v819
        %v821 = vpop.f32.mrb[0].mxu0
        %822 = vmatprep.mubr.bf16.mxu0 0
        %823 = vmatmul.mubr.bf16.gmra.mrb[0].mxu0 %v612
        %v824 = vpop.f32.mrb[0].mxu0
        %v825 = vadd.f32 0.0, %v824
        %v826 = vpop.f32.mrb[0].mxu0
        %v827 = vpop.f32.mrb[0].mxu0
        %v828 = vadd.f32 0.0, %v827
        %v829 = vpop.f32.mrb[0].mxu0
        %830 = vmatprep.mubr.bf16.mxu0 0
        %831 = vmatmul.mubr.bf16.gmra.mrb[0].mxu0 %v613
        %v832 = vpop.f32.mrb[0].mxu0
        %v833 = vadd.f32 0.0, %v832
        %v834 = vpop.f32.mrb[0].mxu0
        %v835 = vpop.f32.mrb[0].mxu0
        %v836 = vadd.f32 0.0, %v835
        %v837 = vpop.f32.mrb[0].mxu0
        %838 = vdwg.mxu0
        %v839 = vadd.f32 %v454, %v713
        %v840 = vadd.f32 %v455, %v716
        %v841 = vadd.f32 %v456, %v721
        %v842 = vadd.f32 %v457, %v724
        %v843 = vadd.f32 %v458, %v729
        %v844 = vadd.f32 %v459, %v732
        %v845 = vadd.f32 %v460, %v737
        %v846 = vadd.f32 %v461, %v740
        %v847 = vadd.f32 %v462, %v745
        %v848 = vadd.f32 %v463, %v748
        %v849 = vadd.f32 %v464, %v753
        %v850 = vadd.f32 %v465, %v756
        %v851 = vadd.f32 %v466, %v761
        %v852 = vadd.f32 %v467, %v764
        %v853 = vadd.f32 %v468, %v769
        %v854 = vadd.f32 %v469, %v772
        %v855 = vadd.f32 %v470, %v777
        %v856 = vadd.f32 %v471, %v780
        %v857 = vadd.f32 %v472, %v785
        %v858 = vadd.f32 %v473, %v788
        %v859 = vadd.f32 %v474, %v793
        %v860 = vadd.f32 %v475, %v796
        %v861 = vadd.f32 %v476, %v801
        %v862 = vadd.f32 %v477, %v804
        %v863 = vadd.f32 %v478, %v809
        %v864 = vadd.f32 %v479, %v812
        %v865 = vadd.f32 %v480, %v817
        %v866 = vadd.f32 %v481, %v820
        %v867 = vadd.f32 %v482, %v825
        %v868 = vadd.f32 %v483, %v828
        %v869 = vadd.f32 %v484, %v833
        %v870 = vadd.f32 %v485, %v836
        %871 = vst [vmem:[#allocation2] sm:$0xff] %v839
        %872 = vst [vmem:[#allocation2 + $0x8] sm:$0xff] %v840
        %873 = vst [vmem:[#allocation2 + $0x10] sm:$0xff] %v841
        %874 = vst [vmem:[#allocation2 + $0x18] sm:$0xff] %v842
        %875 = vst [vmem:[#allocation2 + $0x20] sm:$0xff] %v843
        %876 = vst [vmem:[#allocation2 + $0x28] sm:$0xff] %v844
        %877 = vst [vmem:[#allocation2 + $0x30] sm:$0xff] %v845
        %878 = vst [vmem:[#allocation2 + $0x38] sm:$0xff] %v846
        %879 = vst [vmem:[#allocation2 + $0x40] sm:$0xff] %v847
        %880 = vst [vmem:[#allocation2 + $0x48] sm:$0xff] %v848
        %881 = vst [vmem:[#allocation2 + $0x50] sm:$0xff] %v849
        %882 = vst [vmem:[#allocation2 + $0x58] sm:$0xff] %v850
        %883 = vst [vmem:[#allocation2 + $0x60] sm:$0xff] %v851
        %884 = vst [vmem:[#allocation2 + $0x68] sm:$0xff] %v852
        %885 = vst [vmem:[#allocation2 + $0x70] sm:$0xff] %v853
        %886 = vst [vmem:[#allocation2 + $0x78] sm:$0xff] %v854
        %887 = vst [vmem:[#allocation2 + $0x80] sm:$0xff] %v855
        %888 = vst [vmem:[#allocation2 + $0x88] sm:$0xff] %v856
        %889 = vst [vmem:[#allocation2 + $0x90] sm:$0xff] %v857
        %890 = vst [vmem:[#allocation2 + $0x98] sm:$0xff] %v858
        %891 = vst [vmem:[#allocation2 + $0xa0] sm:$0xff] %v859
        %892 = vst [vmem:[#allocation2 + $0xa8] sm:$0xff] %v860
        %893 = vst [vmem:[#allocation2 + $0xb0] sm:$0xff] %v861
        %894 = vst [vmem:[#allocation2 + $0xb8] sm:$0xff] %v862
        %895 = vst [vmem:[#allocation2 + $0xc0] sm:$0xff] %v863
        %896 = vst [vmem:[#allocation2 + $0xc8] sm:$0xff] %v864
        %897 = vst [vmem:[#allocation2 + $0xd0] sm:$0xff] %v865
        %898 = vst [vmem:[#allocation2 + $0xd8] sm:$0xff] %v866
        %899 = vst [vmem:[#allocation2 + $0xe0] sm:$0xff] %v867
        %900 = vst [vmem:[#allocation2 + $0xe8] sm:$0xff] %v868
        %901 = vst [vmem:[#allocation2 + $0xf0] sm:$0xff] %v869
        %902 = vst [vmem:[#allocation2 + $0xf8] sm:$0xff] %v870
        %p903 = scmp.eq.s32.totalorder %s21, 24
        // Predicated region
        $region78: #{generator_forward.45} parent=68 // pred_check
          %p904 = pneg %p903
        $region79: #{generator_forward.45} parent=68 // pred_check_branch
          %906 = sbr.rel (%p904) target = $region81
        $region80: #{generator_forward.45} parent=68 // pred_region
          %v907 = vld [vmem:[#allocation2] sm:$0xff]
          %v908 = vld [vmem:[#allocation2 + $0x8] sm:$0xff]
          %v909 = vld [vmem:[#allocation2 + $0x10] sm:$0xff]
          %v910 = vld [vmem:[#allocation2 + $0x18] sm:$0xff]
          %v911 = vld [vmem:[#allocation2 + $0x20] sm:$0xff]
          %v912 = vld [vmem:[#allocation2 + $0x28] sm:$0xff]
          %v913 = vld [vmem:[#allocation2 + $0x30] sm:$0xff]
          %v914 = vld [vmem:[#allocation2 + $0x38] sm:$0xff]
          %v915 = vld [vmem:[#allocation2 + $0x40] sm:$0xff]
          %v916 = vld [vmem:[#allocation2 + $0x48] sm:$0xff]
          %v917 = vld [vmem:[#allocation2 + $0x50] sm:$0xff]
          %v918 = vld [vmem:[#allocation2 + $0x58] sm:$0xff]
          %v919 = vld [vmem:[#allocation2 + $0x60] sm:$0xff]
          %v920 = vld [vmem:[#allocation2 + $0x68] sm:$0xff]
          %v921 = vld [vmem:[#allocation2 + $0x70] sm:$0xff]
          %v922 = vld [vmem:[#allocation2 + $0x78] sm:$0xff]
          %v923 = vld [vmem:[#allocation2 + $0x80] sm:$0xff]
          %v924 = vld [vmem:[#allocation2 + $0x88] sm:$0xff]
          %v925 = vld [vmem:[#allocation2 + $0x90] sm:$0xff]
          %v926 = vld [vmem:[#allocation2 + $0x98] sm:$0xff]
          %v927 = vld [vmem:[#allocation2 + $0xa0] sm:$0xff]
          %v928 = vld [vmem:[#allocation2 + $0xa8] sm:$0xff]
          %v929 = vld [vmem:[#allocation2 + $0xb0] sm:$0xff]
          %v930 = vld [vmem:[#allocation2 + $0xb8] sm:$0xff]
          %v931 = vld [vmem:[#allocation2 + $0xc0] sm:$0xff]
          %v932 = vld [vmem:[#allocation2 + $0xc8] sm:$0xff]
          %v933 = vld [vmem:[#allocation2 + $0xd0] sm:$0xff]
          %v934 = vld [vmem:[#allocation2 + $0xd8] sm:$0xff]
          %v935 = vld [vmem:[#allocation2 + $0xe0] sm:$0xff]
          %v936 = vld [vmem:[#allocation2 + $0xe8] sm:$0xff]
          %v937 = vld [vmem:[#allocation2 + $0xf0] sm:$0xff]
          %v938 = vld [vmem:[#allocation2 + $0xf8] sm:$0xff]
          %v939 = vld [vmem:[%s407] sm:$0x1]
          %v941 = vlaneseq
          %v942 = vshrl.u32 %v941, 7
          %v943 = vsub.s32 0, %v942
          %v944 = vrot.slane %v939, %v943
          %v946 = vadd.f32 %v907, %v944
          %v947 = vadd.f32 %v908, %v944
          %v948 = vadd.f32 %v909, %v944
          %v949 = vadd.f32 %v910, %v944
          %v950 = vadd.f32 %v911, %v944
          %v951 = vadd.f32 %v912, %v944
          %v952 = vadd.f32 %v913, %v944
          %v953 = vadd.f32 %v914, %v944
          %v954 = vadd.f32 %v915, %v944
          %v955 = vadd.f32 %v916, %v944
          %v956 = vadd.f32 %v917, %v944
          %v957 = vadd.f32 %v918, %v944
          %v958 = vadd.f32 %v919, %v944
          %v959 = vadd.f32 %v920, %v944
          %v960 = vadd.f32 %v921, %v944
          %v961 = vadd.f32 %v922, %v944
          %v962 = vadd.f32 %v923, %v944
          %v963 = vadd.f32 %v924, %v944
          %v964 = vadd.f32 %v925, %v944
          %v965 = vadd.f32 %v926, %v944
          %v966 = vadd.f32 %v927, %v944
          %v967 = vadd.f32 %v928, %v944
          %v968 = vadd.f32 %v929, %v944
          %v969 = vadd.f32 %v930, %v944
          %v970 = vadd.f32 %v931, %v944
          %v971 = vadd.f32 %v932, %v944
          %v972 = vadd.f32 %v933, %v944
          %v973 = vadd.f32 %v934, %v944
          %v974 = vadd.f32 %v935, %v944
          %v975 = vadd.f32 %v936, %v944
          %v976 = vadd.f32 %v937, %v944
          %v977 = vadd.f32 %v938, %v944
          %v978 = vsub.f32 0.0, %v946
          %v979 = vsub.f32 0.0, %v947
          %v980 = vsub.f32 0.0, %v948
          %v981 = vsub.f32 0.0, %v949
          %v982 = vsub.f32 0.0, %v950
          %v983 = vsub.f32 0.0, %v951
          %v984 = vsub.f32 0.0, %v952
          %v985 = vsub.f32 0.0, %v953
          %v986 = vsub.f32 0.0, %v954
          %v987 = vsub.f32 0.0, %v955
          %v988 = vsub.f32 0.0, %v956
          %v989 = vsub.f32 0.0, %v957
          %v990 = vsub.f32 0.0, %v958
          %v991 = vsub.f32 0.0, %v959
          %v992 = vsub.f32 0.0, %v960
          %v993 = vsub.f32 0.0, %v961
          %v994 = vsub.f32 0.0, %v962
          %v995 = vsub.f32 0.0, %v963
          %v996 = vsub.f32 0.0, %v964
          %v997 = vsub.f32 0.0, %v965
          %v998 = vsub.f32 0.0, %v966
          %v999 = vsub.f32 0.0, %v967
          %v1000 = vsub.f32 0.0, %v968
          %v1001 = vsub.f32 0.0, %v969
          %v1002 = vsub.f32 0.0, %v970
          %v1003 = vsub.f32 0.0, %v971
          %v1004 = vsub.f32 0.0, %v972
          %v1005 = vsub.f32 0.0, %v973
          %v1006 = vsub.f32 0.0, %v974
          %v1007 = vsub.f32 0.0, %v975
          %v1008 = vsub.f32 0.0, %v976
          %v1009 = vsub.f32 0.0, %v977
          %v1010 = vmul.f32 %v978, 1.442695
          %v1011 = vpow.pop %v1010
          %v1012 = vmul.f32 %v979, 1.442695
          %v1013 = vpow.pop %v1012
          %v1014 = vmul.f32 %v980, 1.442695
          %v1015 = vpow.pop %v1014
          %v1016 = vmul.f32 %v981, 1.442695
          %v1017 = vpow.pop %v1016
          %v1018 = vmul.f32 %v982, 1.442695
          %v1019 = vpow.pop %v1018
          %v1020 = vmul.f32 %v983, 1.442695
          %v1021 = vpow.pop %v1020
          %v1022 = vmul.f32 %v984, 1.442695
          %v1023 = vpow.pop %v1022
          %v1024 = vmul.f32 %v985, 1.442695
          %v1025 = vpow.pop %v1024
          %v1026 = vmul.f32 %v986, 1.442695
          %v1027 = vpow.pop %v1026
          %v1028 = vmul.f32 %v987, 1.442695
          %v1029 = vpow.pop %v1028
          %v1030 = vmul.f32 %v988, 1.442695
          %v1031 = vpow.pop %v1030
          %v1032 = vmul.f32 %v989, 1.442695
          %v1033 = vpow.pop %v1032
          %v1034 = vmul.f32 %v990, 1.442695
          %v1035 = vpow.pop %v1034
          %v1036 = vmul.f32 %v991, 1.442695
          %v1037 = vpow.pop %v1036
          %v1038 = vmul.f32 %v992, 1.442695
          %v1039 = vpow.pop %v1038
          %v1040 = vmul.f32 %v993, 1.442695
          %v1041 = vpow.pop %v1040
          %v1042 = vmul.f32 %v994, 1.442695
          %v1043 = vpow.pop %v1042
          %v1044 = vmul.f32 %v995, 1.442695
          %v1045 = vpow.pop %v1044
          %v1046 = vmul.f32 %v996, 1.442695
          %v1047 = vpow.pop %v1046
          %v1048 = vmul.f32 %v997, 1.442695
          %v1049 = vpow.pop %v1048
          %v1050 = vmul.f32 %v998, 1.442695
          %v1051 = vpow.pop %v1050
          %v1052 = vmul.f32 %v999, 1.442695
          %v1053 = vpow.pop %v1052
          %v1054 = vmul.f32 %v1000, 1.442695
          %v1055 = vpow.pop %v1054
          %v1056 = vmul.f32 %v1001, 1.442695
          %v1057 = vpow.pop %v1056
          %v1058 = vmul.f32 %v1002, 1.442695
          %v1059 = vpow.pop %v1058
          %v1060 = vmul.f32 %v1003, 1.442695
          %v1061 = vpow.pop %v1060
          %v1062 = vmul.f32 %v1004, 1.442695
          %v1063 = vpow.pop %v1062
          %v1064 = vmul.f32 %v1005, 1.442695
          %v1065 = vpow.pop %v1064
          %v1066 = vmul.f32 %v1006, 1.442695
          %v1067 = vpow.pop %v1066
          %v1068 = vmul.f32 %v1007, 1.442695
          %v1069 = vpow.pop %v1068
          %v1070 = vmul.f32 %v1008, 1.442695
          %v1071 = vpow.pop %v1070
          %v1072 = vmul.f32 %v1009, 1.442695
          %v1073 = vpow.pop %v1072
          %v1074 = vadd.f32 %v1011, 1.0
          %v1075 = vadd.f32 %v1013, 1.0
          %v1076 = vadd.f32 %v1015, 1.0
          %v1077 = vadd.f32 %v1017, 1.0
          %v1078 = vadd.f32 %v1019, 1.0
          %v1079 = vadd.f32 %v1021, 1.0
          %v1080 = vadd.f32 %v1023, 1.0
          %v1081 = vadd.f32 %v1025, 1.0
          %v1082 = vadd.f32 %v1027, 1.0
          %v1083 = vadd.f32 %v1029, 1.0
          %v1084 = vadd.f32 %v1031, 1.0
          %v1085 = vadd.f32 %v1033, 1.0
          %v1086 = vadd.f32 %v1035, 1.0
          %v1087 = vadd.f32 %v1037, 1.0
          %v1088 = vadd.f32 %v1039, 1.0
          %v1089 = vadd.f32 %v1041, 1.0
          %v1090 = vadd.f32 %v1043, 1.0
          %v1091 = vadd.f32 %v1045, 1.0
          %v1092 = vadd.f32 %v1047, 1.0
          %v1093 = vadd.f32 %v1049, 1.0
          %v1094 = vadd.f32 %v1051, 1.0
          %v1095 = vadd.f32 %v1053, 1.0
          %v1096 = vadd.f32 %v1055, 1.0
          %v1097 = vadd.f32 %v1057, 1.0
          %v1098 = vadd.f32 %v1059, 1.0
          %v1099 = vadd.f32 %v1061, 1.0
          %v1100 = vadd.f32 %v1063, 1.0
          %v1101 = vadd.f32 %v1065, 1.0
          %v1102 = vadd.f32 %v1067, 1.0
          %v1103 = vadd.f32 %v1069, 1.0
          %v1104 = vadd.f32 %v1071, 1.0
          %v1105 = vadd.f32 %v1073, 1.0
          %v1106 = vrcp.pop %v1074
          %v1107 = vmul.f32 1.0, %v1106
          %v1108 = vrcp.pop %v1075
          %v1109 = vmul.f32 1.0, %v1108
          %v1110 = vrcp.pop %v1076
          %v1111 = vmul.f32 1.0, %v1110
          %v1112 = vrcp.pop %v1077
          %v1113 = vmul.f32 1.0, %v1112
          %v1114 = vrcp.pop %v1078
          %v1115 = vmul.f32 1.0, %v1114
          %v1116 = vrcp.pop %v1079
          %v1117 = vmul.f32 1.0, %v1116
          %v1118 = vrcp.pop %v1080
          %v1119 = vmul.f32 1.0, %v1118
          %v1120 = vrcp.pop %v1081
          %v1121 = vmul.f32 1.0, %v1120
          %v1122 = vrcp.pop %v1082
          %v1123 = vmul.f32 1.0, %v1122
          %v1124 = vrcp.pop %v1083
          %v1125 = vmul.f32 1.0, %v1124
          %v1126 = vrcp.pop %v1084
          %v1127 = vmul.f32 1.0, %v1126
          %v1128 = vrcp.pop %v1085
          %v1129 = vmul.f32 1.0, %v1128
          %v1130 = vrcp.pop %v1086
          %v1131 = vmul.f32 1.0, %v1130
          %v1132 = vrcp.pop %v1087
          %v1133 = vmul.f32 1.0, %v1132
          %v1134 = vrcp.pop %v1088
          %v1135 = vmul.f32 1.0, %v1134
          %v1136 = vrcp.pop %v1089
          %v1137 = vmul.f32 1.0, %v1136
          %v1138 = vrcp.pop %v1090
          %v1139 = vmul.f32 1.0, %v1138
          %v1140 = vrcp.pop %v1091
          %v1141 = vmul.f32 1.0, %v1140
          %v1142 = vrcp.pop %v1092
          %v1143 = vmul.f32 1.0, %v1142
          %v1144 = vrcp.pop %v1093
          %v1145 = vmul.f32 1.0, %v1144
          %v1146 = vrcp.pop %v1094
          %v1147 = vmul.f32 1.0, %v1146
          %v1148 = vrcp.pop %v1095
          %v1149 = vmul.f32 1.0, %v1148
          %v1150 = vrcp.pop %v1096
          %v1151 = vmul.f32 1.0, %v1150
          %v1152 = vrcp.pop %v1097
          %v1153 = vmul.f32 1.0, %v1152
          %v1154 = vrcp.pop %v1098
          %v1155 = vmul.f32 1.0, %v1154
          %v1156 = vrcp.pop %v1099
          %v1157 = vmul.f32 1.0, %v1156
          %v1158 = vrcp.pop %v1100
          %v1159 = vmul.f32 1.0, %v1158
          %v1160 = vrcp.pop %v1101
          %v1161 = vmul.f32 1.0, %v1160
          %v1162 = vrcp.pop %v1102
          %v1163 = vmul.f32 1.0, %v1162
          %v1164 = vrcp.pop %v1103
          %v1165 = vmul.f32 1.0, %v1164
          %v1166 = vrcp.pop %v1104
          %v1167 = vmul.f32 1.0, %v1166
          %v1168 = vrcp.pop %v1105
          %v1169 = vmul.f32 1.0, %v1168
          %1170 = vst [vmem:[%s415] sm:$0xff] %v1107
          %1171 = vst [vmem:[%s415 + $0x8] sm:$0xff] %v1109
          %1172 = vst [vmem:[%s415 + $0x10] sm:$0xff] %v1111
          %1173 = vst [vmem:[%s415 + $0x18] sm:$0xff] %v1113
          %1174 = vst [vmem:[%s415 + $0x20] sm:$0xff] %v1115
          %1175 = vst [vmem:[%s415 + $0x28] sm:$0xff] %v1117
          %1176 = vst [vmem:[%s415 + $0x30] sm:$0xff] %v1119
          %1177 = vst [vmem:[%s415 + $0x38] sm:$0xff] %v1121
          %1178 = vst [vmem:[%s415 + $0x40] sm:$0xff] %v1123
          %1179 = vst [vmem:[%s415 + $0x48] sm:$0xff] %v1125
          %1180 = vst [vmem:[%s415 + $0x50] sm:$0xff] %v1127
          %1181 = vst [vmem:[%s415 + $0x58] sm:$0xff] %v1129
          %1182 = vst [vmem:[%s415 + $0x60] sm:$0xff] %v1131
          %1183 = vst [vmem:[%s415 + $0x68] sm:$0xff] %v1133
          %1184 = vst [vmem:[%s415 + $0x70] sm:$0xff] %v1135
          %1185 = vst [vmem:[%s415 + $0x78] sm:$0xff] %v1137
          %1186 = vst [vmem:[%s415 + $0x80] sm:$0xff] %v1139
          %1187 = vst [vmem:[%s415 + $0x88] sm:$0xff] %v1141
          %1188 = vst [vmem:[%s415 + $0x90] sm:$0xff] %v1143
          %1189 = vst [vmem:[%s415 + $0x98] sm:$0xff] %v1145
          %1190 = vst [vmem:[%s415 + $0xa0] sm:$0xff] %v1147
          %1191 = vst [vmem:[%s415 + $0xa8] sm:$0xff] %v1149
          %1192 = vst [vmem:[%s415 + $0xb0] sm:$0xff] %v1151
          %1193 = vst [vmem:[%s415 + $0xb8] sm:$0xff] %v1153
          %1194 = vst [vmem:[%s415 + $0xc0] sm:$0xff] %v1155
          %1195 = vst [vmem:[%s415 + $0xc8] sm:$0xff] %v1157
          %1196 = vst [vmem:[%s415 + $0xd0] sm:$0xff] %v1159
          %1197 = vst [vmem:[%s415 + $0xd8] sm:$0xff] %v1161
          %1198 = vst [vmem:[%s415 + $0xe0] sm:$0xff] %v1163
          %1199 = vst [vmem:[%s415 + $0xe8] sm:$0xff] %v1165
          %1200 = vst [vmem:[%s415 + $0xf0] sm:$0xff] %v1167
          %1201 = vst [vmem:[%s415 + $0xf8] sm:$0xff] %v1169
        $region81: #{generator_forward.45} parent=68 // pred_fallthru
          _
        %s1202 = smul.u32 32, %s19
        %p1203 = scmp.lt.s32.totalorder %s1202, 63
        %s1204 = scalar_select %p1203, %s1202, 63
        %p1205 = scmp.lt.s32.totalorder %s20, 0
        %s1206 = scalar_select %p1205, %s20, 0
        %s1207 = sadd.s32 %s1206, %s1204
        %s1208 = smul.addr %s1207, 8
        %s1209 = scalar_lea.vmem %s3, %s1208
        // Predicated region
        $region82: #{generator_forward.45} parent=68 // pred_check
          %p1210 = pneg %p135
        $region83: #{generator_forward.45} parent=68 // pred_check_branch
          %1212 = sbr.rel (%p1210) target = $region85
        $region84: #{generator_forward.45} parent=68 // pred_region
          %s1213 = smul.u32 32, %s19
        $region85: #{generator_forward.45} parent=68 // pred_fallthru
          _
      $region69: #{generator_forward.45} parent=5 // pred_fallthru
        _
      %p1214 = scmp.le.s32.totalorder 2, %s9
      // Predicated region
      $region86: #{generator_forward.45} parent=5 // pred_check
        %p1215 = pneg %p1214
      $region87: #{generator_forward.45} parent=5 // pred_check_branch
        %1217 = sbr.rel (%p1215) target = $region89
      $region88: #{generator_forward.45} parent=5 // pred_region
        %s1218 = ssub.s32 %s9, 2
        // Predicated region
        $region90: #{generator_forward.45} parent=88 // pred_check
          %p1219 = pneg %p141
        $region91: #{generator_forward.45} parent=88 // pred_check_branch
          %1221 = sbr.rel (%p1219) target = $region93
        $region92: #{generator_forward.45} parent=88 // pred_region
          %s1222 = smul.u32 32, %s22
          %p1223 = scmp.lt.s32.totalorder %s1222, 63
          %s1224 = scalar_select %p1223, %s1222, 63
          %p1225 = scmp.lt.s32.totalorder %s23, 0
          %s1226 = scalar_select %p1225, %s23, 0
          %s1227 = sadd.s32 %s1226, %s1224
          %s1228 = smul.addr %s1227, 8
          %s1229 = scalar_lea.vmem %s3, %s1228
        $region93: #{generator_forward.45} parent=88 // pred_fallthru
          _
      $region89: #{generator_forward.45} parent=5 // pred_fallthru
        _
    $region6: #{generator_forward.45} parent=1 // loop_footer
      %s13 = sadd.s32 1, %s9
    $region7: #{generator_forward.45} parent=1 // loop_footer_branch
      %8 = sbr.rel target = $region3
    $region8: #{generator_forward.45} parent=1 // loop_exit
      _

</llo_original>
